<compile_context>
chip_gen: v7x
topology: tpu7x:2x2x1
jax: 0.10.0
libtpu: 0.0.40
codegen_flags: <defaults>
</compile_context>

<pallas_src>
import jax
import jax.numpy as jnp
from jax.experimental import pallas as pl
from jax.experimental.pallas import tpu as pltpu


def whatnet_kernel(x_ref, w1_ref, b1_ref, w2_ref, b2_ref,
                   fw1_ref, fb1_ref, fw2_ref, fb2_ref, out_ref):
    """Fused forward pass for one batch tile of B samples.

    x_ref:   (B, 28, 28)   f32   input images (Cin == 1 squeezed away)
    w1_ref:  (140, 480)    f32   banded conv1 weight, rows (kh, wi), cols (wo, c)
    b1_ref:  (1, 480)      f32   conv1 bias tiled to the (wo, c) lane layout
    w2_ref:  (1200, 400)   f32   banded conv2 weight, rows (kh, w, ci), cols (wo, co)
    b2_ref:  (1, 400)      f32   conv2 bias tiled to the (wo, co) lane layout
    fw1_ref: (800, 500)    f32   fc1 weight, rows permuted to (h, w, c) order
    fb1_ref: (1, 500)      f32
    fw2_ref: (500, 128)    f32   fc2 weight, outputs zero-padded 10 -> 128
    fb2_ref: (1, 128)      f32
    out_ref: (B, 128)      f32   padded logits (cols 0..9 are the real ones)
    """
    B = x_ref.shape[0]
    f32 = jnp.float32
    x = x_ref[...]                                              # (B, 28, 28)

    # ------- conv1 (1->20, 5x5, valid) + ReLU : one MXU matmul -------
    # lhs rows = (b, ho), lanes = (kh, wi); the banded weight contracts the
    # width taps, so h1[b*24+ho, wo*20+c] is the conv output.
    lhs1 = jnp.concatenate([x[:, kh:kh + 24, :] for kh in range(5)], axis=-1)
    lhs1 = lhs1.reshape(B * 24, 5 * 28)                         # (B*24, 140)
    h1 = jnp.dot(lhs1, w1_ref[...], preferred_element_type=f32) + b1_ref[...]
    h1 = jnp.maximum(h1, 0.0)                                   # (B*24, 480) lanes=(wo:24, c:20)

    # ------- max-pool 2x2 stride 2 -------
    # width: max of adjacent 20-lane channel groups
    h1 = jnp.concatenate(
        [jnp.maximum(h1[:, 40 * j:40 * j + 20], h1[:, 40 * j + 20:40 * j + 40])
         for j in range(12)], axis=-1)                          # (B*24, 240) lanes=(w:12, c:20)
    # height: max of adjacent row pairs
    h1 = h1.reshape(B, 12, 2, 240)
    p1 = jnp.max(h1, axis=2)                                    # (B, 12, 240)

    # ------- conv2 (20->50, 5x5, valid) + ReLU : one MXU matmul -------
    # lhs rows = (b, ho), lanes = (kh, w, ci); K = 1200.
    lhs2 = jnp.concatenate([p1[:, kh:kh + 8, :] for kh in range(5)], axis=-1)
    lhs2 = lhs2.reshape(B * 8, 5 * 240)                         # (B*8, 1200)
    h2 = jnp.dot(lhs2, w2_ref[...], preferred_element_type=f32) + b2_ref[...]
    h2 = jnp.maximum(h2, 0.0)                                   # (B*8, 400) lanes=(wo:8, co:50)

    # ------- max-pool 2x2 stride 2 + flatten to (B, 800) in (h, w, c) order -------
    h2 = jnp.concatenate(
        [jnp.maximum(h2[:, 100 * j:100 * j + 50], h2[:, 100 * j + 50:100 * j + 100])
         for j in range(4)], axis=-1)                           # (B*8, 200) lanes=(w:4, co:50)
    h2 = h2.reshape(B, 8, 200)
    flat = jnp.concatenate(
        [jnp.maximum(h2[:, 2 * j, :], h2[:, 2 * j + 1, :]) for j in range(4)],
        axis=-1)                                                # (B, 800) lanes=(h:4, w:4, c:50)

    # ------- fc1 -> ReLU -> fc2 (output padded to 128 lanes) -------
    a1 = jnp.dot(flat, fw1_ref[...], preferred_element_type=f32) + fb1_ref[...]
    a1 = jnp.maximum(a1, 0.0)                                   # (B, 500)
    out_ref[...] = jnp.dot(a1, fw2_ref[...], preferred_element_type=f32) + fb2_ref[...]


def whatnet_forward(x, kp, block_n=8):
    """x: (N, 1, 28, 28) f32 NCHW -> logits (N, 10) f32."""
    assert block_n % 8 == 0, "block_n must be a multiple of 8 (sublane tile)"
    N = x.shape[0]
    B = block_n

    x2 = x[:, 0, :, :].astype(jnp.float32)                      # Cin == 1 -> (N, 28, 28)
    n_pad = (-N) % B
    if n_pad:
        x2 = jnp.pad(x2, ((0, n_pad), (0, 0), (0, 0)))
    n_total = N + n_pad

    logits_pad = pl.pallas_call(
        whatnet_kernel,
        out_shape=jax.ShapeDtypeStruct((n_total, 128), jnp.float32),
        grid=(n_total // B,),
        in_specs=[
            pl.BlockSpec((B, 28, 28), lambda i: (i, 0, 0)),      # images (batched tile)
            pl.BlockSpec((140, 480), lambda i: (0, 0)),          # conv1 banded weight
            pl.BlockSpec((1, 480), lambda i: (0, 0)),            # conv1 bias (tiled row)
            pl.BlockSpec((1200, 400), lambda i: (0, 0)),         # conv2 banded weight
            pl.BlockSpec((1, 400), lambda i: (0, 0)),            # conv2 bias (tiled row)
            pl.BlockSpec((800, 500), lambda i: (0, 0)),          # fc1 weight (h,w,c rows)
            pl.BlockSpec((1, 500), lambda i: (0, 0)),            # fc1 bias
            pl.BlockSpec((500, 128), lambda i: (0, 0)),          # fc2 weight (padded)
            pl.BlockSpec((1, 128), lambda i: (0, 0)),            # fc2 bias (padded)
        ],
        out_specs=pl.BlockSpec((B, 128), lambda i: (i, 0)),
        compiler_params=pltpu.CompilerParams(
            dimension_semantics=("parallel",)),
    )(x2, kp["w1_band"], kp["b1_row"], kp["w2_band"], kp["b2_row"],
      kp["fc1_w"], kp["fc1_b"], kp["fc2_w"], kp["fc2_b"])

    return logits_pad[:N, :10]


def prepare_params(p):
    """Convert torch-layout WhatNet parameters into the kernel layouts.

    conv1.weight (20,1,5,5) -> banded (140, 480):
        band[kh*28 + wi, wo*20 + c] = W[c,0,kh,wi-wo] if 0 <= wi-wo < 5 else 0
    conv2.weight (50,20,5,5) -> banded (1200, 400):
        band[kh*240 + w*20 + ci, wo*50 + co] = W[co,ci,kh,w-wo] if 0 <= w-wo < 5 else 0
    fc1.weight (500,800): rows reordered from torch's (c,h,w) flatten to the
        kernel's (h,w,c) flatten; stored transposed for x @ W.
    fc2.weight (10,500): transposed and zero-padded to (500,128).
    Biases are tiled/reshaped to 2-D rows matching the activation lane layout.
    """
    f32 = jnp.float32

    # conv1
    w1 = jnp.transpose(p["conv1_w"][:, 0], (1, 2, 0)).astype(f32)       # (kh, kw, c)
    wi = jnp.arange(28)[:, None]
    wo = jnp.arange(24)[None, :]
    k = wi - wo
    valid = ((k >= 0) & (k < 5)).astype(f32)                            # (28, 24)
    band1 = w1[:, jnp.clip(k, 0, 4), :] * valid[None, :, :, None]       # (5, 28, 24, 20)
    w1_band = band1.reshape(5 * 28, 24 * 20)                            # (140, 480)

    # conv2
    w2 = jnp.transpose(p["conv2_w"], (2, 3, 1, 0)).astype(f32)          # (kh, kw, ci, co)
    wi = jnp.arange(12)[:, None]
    wo = jnp.arange(8)[None, :]
    k = wi - wo
    valid = ((k >= 0) & (k < 5)).astype(f32)                            # (12, 8)
    band2 = w2[:, jnp.clip(k, 0, 4), :, :] * valid[None, :, :, None, None]  # (5, 12, 8, 20, 50)
    band2 = jnp.transpose(band2, (0, 1, 3, 2, 4))                       # (kh, w, ci, wo, co)
    w2_band = band2.reshape(5 * 12 * 20, 8 * 50)                        # (1200, 400)

    # biases tiled to the (wo-major, channel-minor) lane layouts
    b1_row = jnp.tile(p["conv1_b"].astype(f32), 24).reshape(1, 480)
    b2_row = jnp.tile(p["conv2_b"].astype(f32), 8).reshape(1, 400)

    # fc1: torch flatten order is (c, h, w); kernel flatten order is (h, w, c)
    fw1 = p["fc1_w"].astype(f32).T.reshape(50, 4, 4, 500)               # (c, h, w, out)
    fw1 = jnp.transpose(fw1, (1, 2, 0, 3)).reshape(800, 500)            # rows (h, w, c)
    fb1 = p["fc1_b"].astype(f32).reshape(1, 500)

    # fc2: transpose + zero-pad outputs 10 -> 128 lanes
    fw2 = jnp.zeros((500, 128), f32).at[:, :10].set(p["fc2_w"].astype(f32).T)
    fb2 = jnp.zeros((1, 128), f32).at[0, :10].set(p["fc2_b"].astype(f32))

    return {"w1_band": w1_band, "b1_row": b1_row,
            "w2_band": w2_band, "b2_row": b2_row,
            "fc1_w": fw1, "fc1_b": fb1, "fc2_w": fw2, "fc2_b": fb2}


def init_params(key):
    """Deterministic synthetic parameters in torch state_dict layouts."""
    ks = jax.random.split(key, 8)
    s = 0.05
    return {
        "conv1_w": s * jax.random.normal(ks[0], (20, 1, 5, 5), jnp.float32),
        "conv1_b": s * jax.random.normal(ks[1], (20,), jnp.float32),
        "conv2_w": s * jax.random.normal(ks[2], (50, 20, 5, 5), jnp.float32),
        "conv2_b": s * jax.random.normal(ks[3], (50,), jnp.float32),
        "fc1_w": s * jax.random.normal(ks[4], (500, 800), jnp.float32),
        "fc1_b": s * jax.random.normal(ks[5], (500,), jnp.float32),
        "fc2_w": s * jax.random.normal(ks[6], (10, 500), jnp.float32),
        "fc2_b": s * jax.random.normal(ks[7], (10,), jnp.float32),
    }


if __name__ == "__main__":
    key = jax.random.PRNGKey(0)
    k_param, k_x = jax.random.split(key)
    params = init_params(k_param)
    kparams = prepare_params(params)

    # MNIST-shaped input is required by the 4*4*50 flatten in the module.
    x = jax.random.normal(k_x, (2, 1, 28, 28), jnp.float32)

    fwd = jax.jit(whatnet_forward)
    out = fwd(x, kparams)
    jax.block_until_ready(out)
    assert out.shape == (2, 10) and out.dtype == jnp.float32
    print("KERNEL_OK")
</pallas_src>

<mosaic_0001>
module attributes {stable_mosaic.version = 11 : i64} {
  func.func @whatnet_kernel(%arg0: i32, %arg1: memref<8x28x28xf32, #tpu.memory_space<vmem>>, %arg2: memref<140x480xf32, #tpu.memory_space<vmem>>, %arg3: memref<1x480xf32, #tpu.memory_space<vmem>>, %arg4: memref<1200x400xf32, #tpu.memory_space<vmem>>, %arg5: memref<1x400xf32, #tpu.memory_space<vmem>>, %arg6: memref<800x500xf32, #tpu.memory_space<vmem>>, %arg7: memref<1x500xf32, #tpu.memory_space<vmem>>, %arg8: memref<500x128xf32, #tpu.memory_space<vmem>>, %arg9: memref<1x128xf32, #tpu.memory_space<vmem>>, %arg10: memref<8x128xf32, #tpu.memory_space<vmem>>) attributes {dimension_semantics = [#tpu.dimension_semantics<parallel>], iteration_bounds = array<i64: 1>, scalar_prefetch = 0 : i64, scratch_operands = 0 : i64, tpu.core_type = #tpu.core_type<tc>, window_params = [{transform_indices = @transform_0, window_bounds = array<i64: 8, 28, 28>}, {pipeline_mode = #tpu.pipeline_mode<synchronous>, transform_indices = @transform_1, window_bounds = array<i64: 140, 480>}, {pipeline_mode = #tpu.pipeline_mode<synchronous>, transform_indices = @transform_2, window_bounds = array<i64: 1, 480>}, {pipeline_mode = #tpu.pipeline_mode<synchronous>, transform_indices = @transform_3, window_bounds = array<i64: 1200, 400>}, {pipeline_mode = #tpu.pipeline_mode<synchronous>, transform_indices = @transform_4, window_bounds = array<i64: 1, 400>}, {pipeline_mode = #tpu.pipeline_mode<synchronous>, transform_indices = @transform_5, window_bounds = array<i64: 800, 500>}, {pipeline_mode = #tpu.pipeline_mode<synchronous>, transform_indices = @transform_6, window_bounds = array<i64: 1, 500>}, {pipeline_mode = #tpu.pipeline_mode<synchronous>, transform_indices = @transform_7, window_bounds = array<i64: 500, 128>}, {pipeline_mode = #tpu.pipeline_mode<synchronous>, transform_indices = @transform_8, window_bounds = array<i64: 1, 128>}, {transform_indices = @transform_9, window_bounds = array<i64: 8, 128>}]} {
    %c0 = arith.constant 0 : index
    %c0_0 = arith.constant 0 : index
    %c0_1 = arith.constant 0 : index
    %0 = vector.load %arg1[%c0, %c0_0, %c0_1] : memref<8x28x28xf32, #tpu.memory_space<vmem>>, vector<8x28x28xf32>
    %1 = vector.extract_strided_slice %0 {offsets = [0, 0, 0], sizes = [8, 24, 28], strides = [1, 1, 1]} : vector<8x28x28xf32> to vector<8x24x28xf32>
    %2 = vector.extract_strided_slice %0 {offsets = [0, 1, 0], sizes = [8, 24, 28], strides = [1, 1, 1]} : vector<8x28x28xf32> to vector<8x24x28xf32>
    %3 = vector.extract_strided_slice %0 {offsets = [0, 2, 0], sizes = [8, 24, 28], strides = [1, 1, 1]} : vector<8x28x28xf32> to vector<8x24x28xf32>
    %4 = vector.extract_strided_slice %0 {offsets = [0, 3, 0], sizes = [8, 24, 28], strides = [1, 1, 1]} : vector<8x28x28xf32> to vector<8x24x28xf32>
    %5 = vector.extract_strided_slice %0 {offsets = [0, 4, 0], sizes = [8, 24, 28], strides = [1, 1, 1]} : vector<8x28x28xf32> to vector<8x24x28xf32>
    %6 = tpu.concatenate %1, %2, %3, %4, %5 in 2 : vector<8x24x28xf32>, vector<8x24x28xf32>, vector<8x24x28xf32>, vector<8x24x28xf32>, vector<8x24x28xf32> -> vector<8x24x140xf32>
    %7 = vector.shape_cast %6 : vector<8x24x140xf32> to vector<192x140xf32>
    %c0_2 = arith.constant 0 : index
    %c0_3 = arith.constant 0 : index
    %8 = vector.load %arg2[%c0_2, %c0_3] : memref<140x480xf32, #tpu.memory_space<vmem>>, vector<140x480xf32>
    %cst = arith.constant dense<0.000000e+00> : vector<192x480xf32>
    %9 = tpu.matmul %7, %8, %cst {dimension_numbers = #tpu.dot_dimension_numbers<[1], [0], [0], [1], [0, 0, 1, 1], [], []>} : vector<192x140xf32>, vector<140x480xf32>, vector<192x480xf32> -> vector<192x480xf32>
    %c0_4 = arith.constant 0 : index
    %c0_5 = arith.constant 0 : index
    %10 = vector.load %arg3[%c0_4, %c0_5] : memref<1x480xf32, #tpu.memory_space<vmem>>, vector<1x480xf32>
    %11 = vector.broadcast %10 : vector<1x480xf32> to vector<192x480xf32>
    %12 = arith.addf %9, %11 : vector<192x480xf32>
    %cst_6 = arith.constant 0.000000e+00 : f32
    %13 = vector.broadcast %cst_6 : f32 to vector<192x480xf32>
    %14 = arith.maximumf %12, %13 : vector<192x480xf32>
    %15 = vector.extract_strided_slice %14 {offsets = [0, 0], sizes = [192, 20], strides = [1, 1]} : vector<192x480xf32> to vector<192x20xf32>
    %16 = vector.extract_strided_slice %14 {offsets = [0, 20], sizes = [192, 20], strides = [1, 1]} : vector<192x480xf32> to vector<192x20xf32>
    %17 = arith.maximumf %15, %16 : vector<192x20xf32>
    %18 = vector.extract_strided_slice %14 {offsets = [0, 40], sizes = [192, 20], strides = [1, 1]} : vector<192x480xf32> to vector<192x20xf32>
    %19 = vector.extract_strided_slice %14 {offsets = [0, 60], sizes = [192, 20], strides = [1, 1]} : vector<192x480xf32> to vector<192x20xf32>
    %20 = arith.maximumf %18, %19 : vector<192x20xf32>
    %21 = vector.extract_strided_slice %14 {offsets = [0, 80], sizes = [192, 20], strides = [1, 1]} : vector<192x480xf32> to vector<192x20xf32>
    %22 = vector.extract_strided_slice %14 {offsets = [0, 100], sizes = [192, 20], strides = [1, 1]} : vector<192x480xf32> to vector<192x20xf32>
    %23 = arith.maximumf %21, %22 : vector<192x20xf32>
    %24 = vector.extract_strided_slice %14 {offsets = [0, 120], sizes = [192, 20], strides = [1, 1]} : vector<192x480xf32> to vector<192x20xf32>
    %25 = vector.extract_strided_slice %14 {offsets = [0, 140], sizes = [192, 20], strides = [1, 1]} : vector<192x480xf32> to vector<192x20xf32>
    %26 = arith.maximumf %24, %25 : vector<192x20xf32>
    %27 = vector.extract_strided_slice %14 {offsets = [0, 160], sizes = [192, 20], strides = [1, 1]} : vector<192x480xf32> to vector<192x20xf32>
    %28 = vector.extract_strided_slice %14 {offsets = [0, 180], sizes = [192, 20], strides = [1, 1]} : vector<192x480xf32> to vector<192x20xf32>
    %29 = arith.maximumf %27, %28 : vector<192x20xf32>
    %30 = vector.extract_strided_slice %14 {offsets = [0, 200], sizes = [192, 20], strides = [1, 1]} : vector<192x480xf32> to vector<192x20xf32>
    %31 = vector.extract_strided_slice %14 {offsets = [0, 220], sizes = [192, 20], strides = [1, 1]} : vector<192x480xf32> to vector<192x20xf32>
    %32 = arith.maximumf %30, %31 : vector<192x20xf32>
    %33 = vector.extract_strided_slice %14 {offsets = [0, 240], sizes = [192, 20], strides = [1, 1]} : vector<192x480xf32> to vector<192x20xf32>
    %34 = vector.extract_strided_slice %14 {offsets = [0, 260], sizes = [192, 20], strides = [1, 1]} : vector<192x480xf32> to vector<192x20xf32>
    %35 = arith.maximumf %33, %34 : vector<192x20xf32>
    %36 = vector.extract_strided_slice %14 {offsets = [0, 280], sizes = [192, 20], strides = [1, 1]} : vector<192x480xf32> to vector<192x20xf32>
    %37 = vector.extract_strided_slice %14 {offsets = [0, 300], sizes = [192, 20], strides = [1, 1]} : vector<192x480xf32> to vector<192x20xf32>
    %38 = arith.maximumf %36, %37 : vector<192x20xf32>
    %39 = vector.extract_strided_slice %14 {offsets = [0, 320], sizes = [192, 20], strides = [1, 1]} : vector<192x480xf32> to vector<192x20xf32>
    %40 = vector.extract_strided_slice %14 {offsets = [0, 340], sizes = [192, 20], strides = [1, 1]} : vector<192x480xf32> to vector<192x20xf32>
    %41 = arith.maximumf %39, %40 : vector<192x20xf32>
    %42 = vector.extract_strided_slice %14 {offsets = [0, 360], sizes = [192, 20], strides = [1, 1]} : vector<192x480xf32> to vector<192x20xf32>
    %43 = vector.extract_strided_slice %14 {offsets = [0, 380], sizes = [192, 20], strides = [1, 1]} : vector<192x480xf32> to vector<192x20xf32>
    %44 = arith.maximumf %42, %43 : vector<192x20xf32>
    %45 = vector.extract_strided_slice %14 {offsets = [0, 400], sizes = [192, 20], strides = [1, 1]} : vector<192x480xf32> to vector<192x20xf32>
    %46 = vector.extract_strided_slice %14 {offsets = [0, 420], sizes = [192, 20], strides = [1, 1]} : vector<192x480xf32> to vector<192x20xf32>
    %47 = arith.maximumf %45, %46 : vector<192x20xf32>
    %48 = vector.extract_strided_slice %14 {offsets = [0, 440], sizes = [192, 20], strides = [1, 1]} : vector<192x480xf32> to vector<192x20xf32>
    %49 = vector.extract_strided_slice %14 {offsets = [0, 460], sizes = [192, 20], strides = [1, 1]} : vector<192x480xf32> to vector<192x20xf32>
    %50 = arith.maximumf %48, %49 : vector<192x20xf32>
    %51 = tpu.concatenate %17, %20, %23, %26, %29, %32, %35, %38, %41, %44, %47, %50 in 1 : vector<192x20xf32>, vector<192x20xf32>, vector<192x20xf32>, vector<192x20xf32>, vector<192x20xf32>, vector<192x20xf32>, vector<192x20xf32>, vector<192x20xf32>, vector<192x20xf32>, vector<192x20xf32>, vector<192x20xf32>, vector<192x20xf32> -> vector<192x240xf32>
    %52 = vector.shape_cast %51 : vector<192x240xf32> to vector<8x12x2x240xf32>
    %cst_7 = arith.constant dense<0xFF800000> : vector<8x12x240xf32>
    %53 = vector.multi_reduction <maximumf>, %52, %cst_7 [2] : vector<8x12x2x240xf32> to vector<8x12x240xf32>
    %54 = vector.extract_strided_slice %53 {offsets = [0, 0, 0], sizes = [8, 8, 240], strides = [1, 1, 1]} : vector<8x12x240xf32> to vector<8x8x240xf32>
    %55 = vector.extract_strided_slice %53 {offsets = [0, 1, 0], sizes = [8, 8, 240], strides = [1, 1, 1]} : vector<8x12x240xf32> to vector<8x8x240xf32>
    %56 = vector.extract_strided_slice %53 {offsets = [0, 2, 0], sizes = [8, 8, 240], strides = [1, 1, 1]} : vector<8x12x240xf32> to vector<8x8x240xf32>
    %57 = vector.extract_strided_slice %53 {offsets = [0, 3, 0], sizes = [8, 8, 240], strides = [1, 1, 1]} : vector<8x12x240xf32> to vector<8x8x240xf32>
    %58 = vector.extract_strided_slice %53 {offsets = [0, 4, 0], sizes = [8, 8, 240], strides = [1, 1, 1]} : vector<8x12x240xf32> to vector<8x8x240xf32>
    %59 = tpu.concatenate %54, %55, %56, %57, %58 in 2 : vector<8x8x240xf32>, vector<8x8x240xf32>, vector<8x8x240xf32>, vector<8x8x240xf32>, vector<8x8x240xf32> -> vector<8x8x1200xf32>
    %60 = vector.shape_cast %59 : vector<8x8x1200xf32> to vector<64x1200xf32>
    %c0_8 = arith.constant 0 : index
    %c0_9 = arith.constant 0 : index
    %61 = vector.load %arg4[%c0_8, %c0_9] : memref<1200x400xf32, #tpu.memory_space<vmem>>, vector<1200x400xf32>
    %cst_10 = arith.constant dense<0.000000e+00> : vector<64x400xf32>
    %62 = tpu.matmul %60, %61, %cst_10 {dimension_numbers = #tpu.dot_dimension_numbers<[1], [0], [0], [1], [0, 0, 1, 1], [], []>} : vector<64x1200xf32>, vector<1200x400xf32>, vector<64x400xf32> -> vector<64x400xf32>
    %c0_11 = arith.constant 0 : index
    %c0_12 = arith.constant 0 : index
    %63 = vector.load %arg5[%c0_11, %c0_12] : memref<1x400xf32, #tpu.memory_space<vmem>>, vector<1x400xf32>
    %64 = vector.broadcast %63 : vector<1x400xf32> to vector<64x400xf32>
    %65 = arith.addf %62, %64 : vector<64x400xf32>
    %cst_13 = arith.constant 0.000000e+00 : f32
    %66 = vector.broadcast %cst_13 : f32 to vector<64x400xf32>
    %67 = arith.maximumf %65, %66 : vector<64x400xf32>
    %68 = vector.extract_strided_slice %67 {offsets = [0, 0], sizes = [64, 50], strides = [1, 1]} : vector<64x400xf32> to vector<64x50xf32>
    %69 = vector.extract_strided_slice %67 {offsets = [0, 50], sizes = [64, 50], strides = [1, 1]} : vector<64x400xf32> to vector<64x50xf32>
    %70 = arith.maximumf %68, %69 : vector<64x50xf32>
    %71 = vector.extract_strided_slice %67 {offsets = [0, 100], sizes = [64, 50], strides = [1, 1]} : vector<64x400xf32> to vector<64x50xf32>
    %72 = vector.extract_strided_slice %67 {offsets = [0, 150], sizes = [64, 50], strides = [1, 1]} : vector<64x400xf32> to vector<64x50xf32>
    %73 = arith.maximumf %71, %72 : vector<64x50xf32>
    %74 = vector.extract_strided_slice %67 {offsets = [0, 200], sizes = [64, 50], strides = [1, 1]} : vector<64x400xf32> to vector<64x50xf32>
    %75 = vector.extract_strided_slice %67 {offsets = [0, 250], sizes = [64, 50], strides = [1, 1]} : vector<64x400xf32> to vector<64x50xf32>
    %76 = arith.maximumf %74, %75 : vector<64x50xf32>
    %77 = vector.extract_strided_slice %67 {offsets = [0, 300], sizes = [64, 50], strides = [1, 1]} : vector<64x400xf32> to vector<64x50xf32>
    %78 = vector.extract_strided_slice %67 {offsets = [0, 350], sizes = [64, 50], strides = [1, 1]} : vector<64x400xf32> to vector<64x50xf32>
    %79 = arith.maximumf %77, %78 : vector<64x50xf32>
    %80 = tpu.concatenate %70, %73, %76, %79 in 1 : vector<64x50xf32>, vector<64x50xf32>, vector<64x50xf32>, vector<64x50xf32> -> vector<64x200xf32>
    %81 = vector.shape_cast %80 : vector<64x200xf32> to vector<8x8x200xf32>
    %82 = vector.extract_strided_slice %81 {offsets = [0, 0, 0], sizes = [8, 1, 200], strides = [1, 1, 1]} : vector<8x8x200xf32> to vector<8x1x200xf32>
    %83 = vector.shape_cast %82 : vector<8x1x200xf32> to vector<8x200xf32>
    %84 = vector.extract_strided_slice %81 {offsets = [0, 1, 0], sizes = [8, 1, 200], strides = [1, 1, 1]} : vector<8x8x200xf32> to vector<8x1x200xf32>
    %85 = vector.shape_cast %84 : vector<8x1x200xf32> to vector<8x200xf32>
    %86 = arith.maximumf %83, %85 : vector<8x200xf32>
    %87 = vector.extract_strided_slice %81 {offsets = [0, 2, 0], sizes = [8, 1, 200], strides = [1, 1, 1]} : vector<8x8x200xf32> to vector<8x1x200xf32>
    %88 = vector.shape_cast %87 : vector<8x1x200xf32> to vector<8x200xf32>
    %89 = vector.extract_strided_slice %81 {offsets = [0, 3, 0], sizes = [8, 1, 200], strides = [1, 1, 1]} : vector<8x8x200xf32> to vector<8x1x200xf32>
    %90 = vector.shape_cast %89 : vector<8x1x200xf32> to vector<8x200xf32>
    %91 = arith.maximumf %88, %90 : vector<8x200xf32>
    %92 = vector.extract_strided_slice %81 {offsets = [0, 4, 0], sizes = [8, 1, 200], strides = [1, 1, 1]} : vector<8x8x200xf32> to vector<8x1x200xf32>
    %93 = vector.shape_cast %92 : vector<8x1x200xf32> to vector<8x200xf32>
    %94 = vector.extract_strided_slice %81 {offsets = [0, 5, 0], sizes = [8, 1, 200], strides = [1, 1, 1]} : vector<8x8x200xf32> to vector<8x1x200xf32>
    %95 = vector.shape_cast %94 : vector<8x1x200xf32> to vector<8x200xf32>
    %96 = arith.maximumf %93, %95 : vector<8x200xf32>
    %97 = vector.extract_strided_slice %81 {offsets = [0, 6, 0], sizes = [8, 1, 200], strides = [1, 1, 1]} : vector<8x8x200xf32> to vector<8x1x200xf32>
    %98 = vector.shape_cast %97 : vector<8x1x200xf32> to vector<8x200xf32>
    %99 = vector.extract_strided_slice %81 {offsets = [0, 7, 0], sizes = [8, 1, 200], strides = [1, 1, 1]} : vector<8x8x200xf32> to vector<8x1x200xf32>
    %100 = vector.shape_cast %99 : vector<8x1x200xf32> to vector<8x200xf32>
    %101 = arith.maximumf %98, %100 : vector<8x200xf32>
    %102 = tpu.concatenate %86, %91, %96, %101 in 1 : vector<8x200xf32>, vector<8x200xf32>, vector<8x200xf32>, vector<8x200xf32> -> vector<8x800xf32>
    %c0_14 = arith.constant 0 : index
    %c0_15 = arith.constant 0 : index
    %103 = vector.load %arg6[%c0_14, %c0_15] : memref<800x500xf32, #tpu.memory_space<vmem>>, vector<800x500xf32>
    %cst_16 = arith.constant dense<0.000000e+00> : vector<8x500xf32>
    %104 = tpu.matmul %102, %103, %cst_16 {dimension_numbers = #tpu.dot_dimension_numbers<[1], [0], [0], [1], [0, 0, 1, 1], [], []>} : vector<8x800xf32>, vector<800x500xf32>, vector<8x500xf32> -> vector<8x500xf32>
    %c0_17 = arith.constant 0 : index
    %c0_18 = arith.constant 0 : index
    %105 = vector.load %arg7[%c0_17, %c0_18] : memref<1x500xf32, #tpu.memory_space<vmem>>, vector<1x500xf32>
    %106 = vector.broadcast %105 : vector<1x500xf32> to vector<8x500xf32>
    %107 = arith.addf %104, %106 : vector<8x500xf32>
    %cst_19 = arith.constant 0.000000e+00 : f32
    %108 = vector.broadcast %cst_19 : f32 to vector<8x500xf32>
    %109 = arith.maximumf %107, %108 : vector<8x500xf32>
    %c0_20 = arith.constant 0 : index
    %c0_21 = arith.constant 0 : index
    %110 = vector.load %arg8[%c0_20, %c0_21] : memref<500x128xf32, #tpu.memory_space<vmem>>, vector<500x128xf32>
    %cst_22 = arith.constant dense<0.000000e+00> : vector<8x128xf32>
    %111 = tpu.matmul %109, %110, %cst_22 {dimension_numbers = #tpu.dot_dimension_numbers<[1], [0], [0], [1], [0, 0, 1, 1], [], []>} : vector<8x500xf32>, vector<500x128xf32>, vector<8x128xf32> -> vector<8x128xf32>
    %c0_23 = arith.constant 0 : index
    %c0_24 = arith.constant 0 : index
    %112 = vector.load %arg9[%c0_23, %c0_24] : memref<1x128xf32, #tpu.memory_space<vmem>>, vector<1x128xf32>
    %113 = vector.broadcast %112 : vector<1x128xf32> to vector<8x128xf32>
    %114 = arith.addf %111, %113 : vector<8x128xf32>
    %c0_25 = arith.constant 0 : index
    %c0_26 = arith.constant 0 : index
    %115 = vector.load %arg10[%c0_25, %c0_26] : memref<8x128xf32, #tpu.memory_space<vmem>>, vector<8x128xf32>
    tpu.vector_store %arg10[%c0_25, %c0_26], %114 {strides = array<i32>} : memref<8x128xf32, #tpu.memory_space<vmem>>, vector<8x128xf32>,
    return
  }
  func.func @transform_0(%arg0: i32) -> (i32, i32, i32) {
    %c0_i32 = arith.constant 0 : i32
    %c0_i32_0 = arith.constant 0 : i32
    %c0_i32_1 = arith.constant 0 : i32
    return %arg0, %c0_i32, %c0_i32_0 : i32, i32, i32
  }
  func.func @transform_1(%arg0: i32) -> (i32, i32) {
    %c0_i32 = arith.constant 0 : i32
    %c0_i32_0 = arith.constant 0 : i32
    %c0_i32_1 = arith.constant 0 : i32
    return %c0_i32, %c0_i32_0 : i32, i32
  }
  func.func @transform_2(%arg0: i32) -> (i32, i32) {
    %c0_i32 = arith.constant 0 : i32
    %c0_i32_0 = arith.constant 0 : i32
    %c0_i32_1 = arith.constant 0 : i32
    return %c0_i32, %c0_i32_0 : i32, i32
  }
  func.func @transform_3(%arg0: i32) -> (i32, i32) {
    %c0_i32 = arith.constant 0 : i32
    %c0_i32_0 = arith.constant 0 : i32
    %c0_i32_1 = arith.constant 0 : i32
    return %c0_i32, %c0_i32_0 : i32, i32
  }
  func.func @transform_4(%arg0: i32) -> (i32, i32) {
    %c0_i32 = arith.constant 0 : i32
    %c0_i32_0 = arith.constant 0 : i32
    %c0_i32_1 = arith.constant 0 : i32
    return %c0_i32, %c0_i32_0 : i32, i32
  }
  func.func @transform_5(%arg0: i32) -> (i32, i32) {
    %c0_i32 = arith.constant 0 : i32
    %c0_i32_0 = arith.constant 0 : i32
    %c0_i32_1 = arith.constant 0 : i32
    return %c0_i32, %c0_i32_0 : i32, i32
  }
  func.func @transform_6(%arg0: i32) -> (i32, i32) {
    %c0_i32 = arith.constant 0 : i32
    %c0_i32_0 = arith.constant 0 : i32
    %c0_i32_1 = arith.constant 0 : i32
    return %c0_i32, %c0_i32_0 : i32, i32
  }
  func.func @transform_7(%arg0: i32) -> (i32, i32) {
    %c0_i32 = arith.constant 0 : i32
    %c0_i32_0 = arith.constant 0 : i32
    %c0_i32_1 = arith.constant 0 : i32
    return %c0_i32, %c0_i32_0 : i32, i32
  }
  func.func @transform_8(%arg0: i32) -> (i32, i32) {
    %c0_i32 = arith.constant 0 : i32
    %c0_i32_0 = arith.constant 0 : i32
    %c0_i32_1 = arith.constant 0 : i32
    return %c0_i32, %c0_i32_0 : i32, i32
  }
  func.func @transform_9(%arg0: i32) -> (i32, i32) {
    %c0_i32 = arith.constant 0 : i32
    %c0_i32_0 = arith.constant 0 : i32
    return %arg0, %c0_i32 : i32, i32
  }
}

</mosaic_0001>

<llo_original>
// kernel: whatnet_forward.1
$region0: #{whatnet_forward.1}
  #allocation0 [shape = 'u32[]', space=smem, size = 0x4, offset = 0x4, fixed_abs, tag = 'smem constant byte address 0x4 - core index']
  #allocation1 [shape = 'u32[144,128]{1,0:T(1,128)}', space=vmem, size = 0x12000, scoped, tag = 'internal scratch']
  %s0 = inlined_call_operand.vmem [shape: f32[8,28,28], index: 0, kind: input, shape index: {}]
  %s1 = inlined_call_operand.vmem [shape: f32[140,480], index: 1, kind: input, shape index: {}]
  %s2 = inlined_call_operand.vmem [shape: f32[1,480], index: 2, kind: input, shape index: {}]
  %s3 = inlined_call_operand.vmem [shape: f32[1200,400], index: 3, kind: input, shape index: {}]
  %s4 = inlined_call_operand.vmem [shape: f32[1,400], index: 4, kind: input, shape index: {}]
  %s5 = inlined_call_operand.vmem [shape: f32[800,500], index: 5, kind: input, shape index: {}]
  %s6 = inlined_call_operand.vmem [shape: f32[1,500], index: 6, kind: input, shape index: {}]
  %s7 = inlined_call_operand.vmem [shape: f32[500,128], index: 7, kind: input, shape index: {}]
  %s8 = inlined_call_operand.vmem [shape: f32[1,128], index: 8, kind: input, shape index: {}]
  %s9 = inlined_call_operand.vmem [shape: f32[8,128], index: 9, kind: output, shape index: {}]
  %s10 = sld [smem:[#allocation0]]
  $region46: #{whatnet_forward.1} parent=0
    _
  %s12 = ssub.s32 1, %s10
  %s13 = scalar_select 0, %s12, %s10
  // Predicated region
  $region2: #{whatnet_forward.1} parent=0 // pred_check
    _
  $region3: #{whatnet_forward.1} parent=0 // pred_check_branch
    %15 = sbr.rel (0) target = $region5
  $region4: #{whatnet_forward.1} parent=0 // pred_region
    _
  $region5: #{whatnet_forward.1} parent=0 // pred_fallthru
    _
  // Predicated region
  $region6: #{whatnet_forward.1} parent=0 // pred_check
    _
  $region7: #{whatnet_forward.1} parent=0 // pred_check_branch
    %17 = sbr.rel (0) target = $region9
  $region8: #{whatnet_forward.1} parent=0 // pred_region
    _
  $region9: #{whatnet_forward.1} parent=0 // pred_fallthru
    _
  // Predicated region
  $region10: #{whatnet_forward.1} parent=0 // pred_check
    _
  $region11: #{whatnet_forward.1} parent=0 // pred_check_branch
    %19 = sbr.rel (0) target = $region13
  $region12: #{whatnet_forward.1} parent=0 // pred_region
    _
  $region13: #{whatnet_forward.1} parent=0 // pred_fallthru
    _
  // Predicated region
  $region14: #{whatnet_forward.1} parent=0 // pred_check
    _
  $region15: #{whatnet_forward.1} parent=0 // pred_check_branch
    %21 = sbr.rel (0) target = $region17
  $region16: #{whatnet_forward.1} parent=0 // pred_region
    _
  $region17: #{whatnet_forward.1} parent=0 // pred_fallthru
    _
  // Predicated region
  $region18: #{whatnet_forward.1} parent=0 // pred_check
    _
  $region19: #{whatnet_forward.1} parent=0 // pred_check_branch
    %23 = sbr.rel (0) target = $region21
  $region20: #{whatnet_forward.1} parent=0 // pred_region
    _
  $region21: #{whatnet_forward.1} parent=0 // pred_fallthru
    _
  // Predicated region
  $region22: #{whatnet_forward.1} parent=0 // pred_check
    _
  $region23: #{whatnet_forward.1} parent=0 // pred_check_branch
    %25 = sbr.rel (0) target = $region25
  $region24: #{whatnet_forward.1} parent=0 // pred_region
    _
  $region25: #{whatnet_forward.1} parent=0 // pred_fallthru
    _
  // Predicated region
  $region26: #{whatnet_forward.1} parent=0 // pred_check
    _
  $region27: #{whatnet_forward.1} parent=0 // pred_check_branch
    %27 = sbr.rel (0) target = $region29
  $region28: #{whatnet_forward.1} parent=0 // pred_region
    _
  $region29: #{whatnet_forward.1} parent=0 // pred_fallthru
    _
  // Predicated region
  $region30: #{whatnet_forward.1} parent=0 // pred_check
    _
  $region31: #{whatnet_forward.1} parent=0 // pred_check_branch
    %29 = sbr.rel (0) target = $region33
  $region32: #{whatnet_forward.1} parent=0 // pred_region
    _
  $region33: #{whatnet_forward.1} parent=0 // pred_fallthru
    _
  // Predicated region
  $region34: #{whatnet_forward.1} parent=0 // pred_check
    _
  $region35: #{whatnet_forward.1} parent=0 // pred_check_branch
    %31 = sbr.rel (0) target = $region37
  $region36: #{whatnet_forward.1} parent=0 // pred_region
    _
  $region37: #{whatnet_forward.1} parent=0 // pred_fallthru
    _
  %v32 = vld [vmem:[%s0] sm:$0xff]
  %v33 = vld [vmem:[%s0 + $0x8] sm:$0xff]
  %v34 = vld [vmem:[%s0 + $0x10] sm:$0xff]
  %v35 = vld [vmem:[%s0 + $0x18] sm:$0xf]
  %v36 = vld [vmem:[%s0 + $0x20] sm:$0xff]
  %v37 = vld [vmem:[%s0 + $0x28] sm:$0xff]
  %v38 = vld [vmem:[%s0 + $0x30] sm:$0xff]
  %v39 = vld [vmem:[%s0 + $0x38] sm:$0xf]
  %v40 = vld [vmem:[%s0 + $0x40] sm:$0xff]
  %v41 = vld [vmem:[%s0 + $0x48] sm:$0xff]
  %v42 = vld [vmem:[%s0 + $0x50] sm:$0xff]
  %v43 = vld [vmem:[%s0 + $0x58] sm:$0xf]
  %v44 = vld [vmem:[%s0 + $0x60] sm:$0xff]
  %v45 = vld [vmem:[%s0 + $0x68] sm:$0xff]
  %v46 = vld [vmem:[%s0 + $0x70] sm:$0xff]
  %v47 = vld [vmem:[%s0 + $0x78] sm:$0xf]
  %v48 = vld [vmem:[%s0 + $0x80] sm:$0xff]
  %v49 = vld [vmem:[%s0 + $0x88] sm:$0xff]
  %v50 = vld [vmem:[%s0 + $0x90] sm:$0xff]
  %v51 = vld [vmem:[%s0 + $0x98] sm:$0xf]
  %v52 = vld [vmem:[%s0 + $0xa0] sm:$0xff]
  %v53 = vld [vmem:[%s0 + $0xa8] sm:$0xff]
  %v54 = vld [vmem:[%s0 + $0xb0] sm:$0xff]
  %v55 = vld [vmem:[%s0 + $0xb8] sm:$0xf]
  %v56 = vld [vmem:[%s0 + $0xc0] sm:$0xff]
  %v57 = vld [vmem:[%s0 + $0xc8] sm:$0xff]
  %v58 = vld [vmem:[%s0 + $0xd0] sm:$0xff]
  %v59 = vld [vmem:[%s0 + $0xd8] sm:$0xf]
  %v60 = vld [vmem:[%s0 + $0xe0] sm:$0xff]
  %v61 = vld [vmem:[%s0 + $0xe8] sm:$0xff]
  %v62 = vld [vmem:[%s0 + $0xf0] sm:$0xff]
  %v63 = vld [vmem:[%s0 + $0xf8] sm:$0xf]
  %vm96 = vcmask 1046528
  %v97 = vrot.slane %v32, 1
  %v98 = vrot.slane %v33, 1
  %v99 = vsel %vm96, %v97, %v98
  %v100 = vrot.slane %v34, 1
  %v101 = vsel %vm96, %v98, %v100
  %v102 = vrot.slane %v35, 1
  %v103 = vsel %vm96, %v100, %v102
  %v104 = vrot.slane %v36, 1
  %v105 = vrot.slane %v37, 1
  %v106 = vsel %vm96, %v104, %v105
  %v107 = vrot.slane %v38, 1
  %v108 = vsel %vm96, %v105, %v107
  %v109 = vrot.slane %v39, 1
  %v110 = vsel %vm96, %v107, %v109
  %v111 = vrot.slane %v40, 1
  %v112 = vrot.slane %v41, 1
  %v113 = vsel %vm96, %v111, %v112
  %v114 = vrot.slane %v42, 1
  %v115 = vsel %vm96, %v112, %v114
  %v116 = vrot.slane %v43, 1
  %v117 = vsel %vm96, %v114, %v116
  %v118 = vrot.slane %v44, 1
  %v119 = vrot.slane %v45, 1
  %v120 = vsel %vm96, %v118, %v119
  %v121 = vrot.slane %v46, 1
  %v122 = vsel %vm96, %v119, %v121
  %v123 = vrot.slane %v47, 1
  %v124 = vsel %vm96, %v121, %v123
  %v125 = vrot.slane %v48, 1
  %v126 = vrot.slane %v49, 1
  %v127 = vsel %vm96, %v125, %v126
  %v128 = vrot.slane %v50, 1
  %v129 = vsel %vm96, %v126, %v128
  %v130 = vrot.slane %v51, 1
  %v131 = vsel %vm96, %v128, %v130
  %v132 = vrot.slane %v52, 1
  %v133 = vrot.slane %v53, 1
  %v134 = vsel %vm96, %v132, %v133
  %v135 = vrot.slane %v54, 1
  %v136 = vsel %vm96, %v133, %v135
  %v137 = vrot.slane %v55, 1
  %v138 = vsel %vm96, %v135, %v137
  %v139 = vrot.slane %v56, 1
  %v140 = vrot.slane %v57, 1
  %v141 = vsel %vm96, %v139, %v140
  %v142 = vrot.slane %v58, 1
  %v143 = vsel %vm96, %v140, %v142
  %v144 = vrot.slane %v59, 1
  %v145 = vsel %vm96, %v142, %v144
  %v146 = vrot.slane %v60, 1
  %v147 = vrot.slane %v61, 1
  %v148 = vsel %vm96, %v146, %v147
  %v149 = vrot.slane %v62, 1
  %v150 = vsel %vm96, %v147, %v149
  %v151 = vrot.slane %v63, 1
  %v152 = vsel %vm96, %v149, %v151
  %153 = vrot.lane.b32.xlu0 %v99, 28
  %v154 = vpop.permute.xlu0 %153
  %155 = vrot.lane.b32.xlu0 %v101, 28
  %v156 = vpop.permute.xlu0 %155
  %157 = vrot.lane.b32.xlu0 %v103, 28
  %v158 = vpop.permute.xlu0 %157
  %159 = vrot.lane.b32.xlu0 %v106, 28
  %v160 = vpop.permute.xlu0 %159
  %161 = vrot.lane.b32.xlu0 %v108, 28
  %v162 = vpop.permute.xlu0 %161
  %163 = vrot.lane.b32.xlu0 %v110, 28
  %v164 = vpop.permute.xlu0 %163
  %165 = vrot.lane.b32.xlu0 %v113, 28
  %v166 = vpop.permute.xlu0 %165
  %167 = vrot.lane.b32.xlu0 %v115, 28
  %v168 = vpop.permute.xlu0 %167
  %169 = vrot.lane.b32.xlu0 %v117, 28
  %v170 = vpop.permute.xlu0 %169
  %171 = vrot.lane.b32.xlu0 %v120, 28
  %v172 = vpop.permute.xlu0 %171
  %173 = vrot.lane.b32.xlu0 %v122, 28
  %v174 = vpop.permute.xlu0 %173
  %175 = vrot.lane.b32.xlu0 %v124, 28
  %v176 = vpop.permute.xlu0 %175
  %177 = vrot.lane.b32.xlu0 %v127, 28
  %v178 = vpop.permute.xlu0 %177
  %179 = vrot.lane.b32.xlu0 %v129, 28
  %v180 = vpop.permute.xlu0 %179
  %181 = vrot.lane.b32.xlu0 %v131, 28
  %v182 = vpop.permute.xlu0 %181
  %183 = vrot.lane.b32.xlu0 %v134, 28
  %v184 = vpop.permute.xlu0 %183
  %185 = vrot.lane.b32.xlu0 %v136, 28
  %v186 = vpop.permute.xlu0 %185
  %187 = vrot.lane.b32.xlu0 %v138, 28
  %v188 = vpop.permute.xlu0 %187
  %189 = vrot.lane.b32.xlu0 %v141, 28
  %v190 = vpop.permute.xlu0 %189
  %191 = vrot.lane.b32.xlu0 %v143, 28
  %v192 = vpop.permute.xlu0 %191
  %193 = vrot.lane.b32.xlu0 %v145, 28
  %v194 = vpop.permute.xlu0 %193
  %195 = vrot.lane.b32.xlu0 %v148, 28
  %v196 = vpop.permute.xlu0 %195
  %197 = vrot.lane.b32.xlu0 %v150, 28
  %v198 = vpop.permute.xlu0 %197
  %199 = vrot.lane.b32.xlu0 %v152, 28
  %v200 = vpop.permute.xlu0 %199
  %vm225 = vcmask 1045504
  %v226 = vrot.slane %v32, 2
  %v227 = vrot.slane %v33, 2
  %v228 = vsel %vm225, %v226, %v227
  %v229 = vrot.slane %v34, 2
  %v230 = vsel %vm225, %v227, %v229
  %v231 = vrot.slane %v35, 2
  %v232 = vsel %vm225, %v229, %v231
  %v233 = vrot.slane %v36, 2
  %v234 = vrot.slane %v37, 2
  %v235 = vsel %vm225, %v233, %v234
  %v236 = vrot.slane %v38, 2
  %v237 = vsel %vm225, %v234, %v236
  %v238 = vrot.slane %v39, 2
  %v239 = vsel %vm225, %v236, %v238
  %v240 = vrot.slane %v40, 2
  %v241 = vrot.slane %v41, 2
  %v242 = vsel %vm225, %v240, %v241
  %v243 = vrot.slane %v42, 2
  %v244 = vsel %vm225, %v241, %v243
  %v245 = vrot.slane %v43, 2
  %v246 = vsel %vm225, %v243, %v245
  %v247 = vrot.slane %v44, 2
  %v248 = vrot.slane %v45, 2
  %v249 = vsel %vm225, %v247, %v248
  %v250 = vrot.slane %v46, 2
  %v251 = vsel %vm225, %v248, %v250
  %v252 = vrot.slane %v47, 2
  %v253 = vsel %vm225, %v250, %v252
  %v254 = vrot.slane %v48, 2
  %v255 = vrot.slane %v49, 2
  %v256 = vsel %vm225, %v254, %v255
  %v257 = vrot.slane %v50, 2
  %v258 = vsel %vm225, %v255, %v257
  %v259 = vrot.slane %v51, 2
  %v260 = vsel %vm225, %v257, %v259
  %v261 = vrot.slane %v52, 2
  %v262 = vrot.slane %v53, 2
  %v263 = vsel %vm225, %v261, %v262
  %v264 = vrot.slane %v54, 2
  %v265 = vsel %vm225, %v262, %v264
  %v266 = vrot.slane %v55, 2
  %v267 = vsel %vm225, %v264, %v266
  %v268 = vrot.slane %v56, 2
  %v269 = vrot.slane %v57, 2
  %v270 = vsel %vm225, %v268, %v269
  %v271 = vrot.slane %v58, 2
  %v272 = vsel %vm225, %v269, %v271
  %v273 = vrot.slane %v59, 2
  %v274 = vsel %vm225, %v271, %v273
  %v275 = vrot.slane %v60, 2
  %v276 = vrot.slane %v61, 2
  %v277 = vsel %vm225, %v275, %v276
  %v278 = vrot.slane %v62, 2
  %v279 = vsel %vm225, %v276, %v278
  %v280 = vrot.slane %v63, 2
  %v281 = vsel %vm225, %v278, %v280
  %282 = vrot.lane.b32.xlu0 %v228, 56
  %v283 = vpop.permute.xlu0 %282
  %284 = vrot.lane.b32.xlu0 %v230, 56
  %v285 = vpop.permute.xlu0 %284
  %286 = vrot.lane.b32.xlu0 %v232, 56
  %v287 = vpop.permute.xlu0 %286
  %288 = vrot.lane.b32.xlu0 %v235, 56
  %v289 = vpop.permute.xlu0 %288
  %290 = vrot.lane.b32.xlu0 %v237, 56
  %v291 = vpop.permute.xlu0 %290
  %292 = vrot.lane.b32.xlu0 %v239, 56
  %v293 = vpop.permute.xlu0 %292
  %294 = vrot.lane.b32.xlu0 %v242, 56
  %v295 = vpop.permute.xlu0 %294
  %296 = vrot.lane.b32.xlu0 %v244, 56
  %v297 = vpop.permute.xlu0 %296
  %298 = vrot.lane.b32.xlu0 %v246, 56
  %v299 = vpop.permute.xlu0 %298
  %300 = vrot.lane.b32.xlu0 %v249, 56
  %v301 = vpop.permute.xlu0 %300
  %302 = vrot.lane.b32.xlu0 %v251, 56
  %v303 = vpop.permute.xlu0 %302
  %304 = vrot.lane.b32.xlu0 %v253, 56
  %v305 = vpop.permute.xlu0 %304
  %306 = vrot.lane.b32.xlu0 %v256, 56
  %v307 = vpop.permute.xlu0 %306
  %308 = vrot.lane.b32.xlu0 %v258, 56
  %v309 = vpop.permute.xlu0 %308
  %310 = vrot.lane.b32.xlu0 %v260, 56
  %v311 = vpop.permute.xlu0 %310
  %312 = vrot.lane.b32.xlu0 %v263, 56
  %v313 = vpop.permute.xlu0 %312
  %314 = vrot.lane.b32.xlu0 %v265, 56
  %v315 = vpop.permute.xlu0 %314
  %316 = vrot.lane.b32.xlu0 %v267, 56
  %v317 = vpop.permute.xlu0 %316
  %318 = vrot.lane.b32.xlu0 %v270, 56
  %v319 = vpop.permute.xlu0 %318
  %320 = vrot.lane.b32.xlu0 %v272, 56
  %v321 = vpop.permute.xlu0 %320
  %322 = vrot.lane.b32.xlu0 %v274, 56
  %v323 = vpop.permute.xlu0 %322
  %324 = vrot.lane.b32.xlu0 %v277, 56
  %v325 = vpop.permute.xlu0 %324
  %326 = vrot.lane.b32.xlu0 %v279, 56
  %v327 = vpop.permute.xlu0 %326
  %328 = vrot.lane.b32.xlu0 %v281, 56
  %v329 = vpop.permute.xlu0 %328
  %vm354 = vcmask 1044480
  %v355 = vrot.slane %v32, 3
  %v356 = vrot.slane %v33, 3
  %v357 = vsel %vm354, %v355, %v356
  %v358 = vrot.slane %v34, 3
  %v359 = vsel %vm354, %v356, %v358
  %v360 = vrot.slane %v35, 3
  %v361 = vsel %vm354, %v358, %v360
  %v362 = vrot.slane %v36, 3
  %v363 = vrot.slane %v37, 3
  %v364 = vsel %vm354, %v362, %v363
  %v365 = vrot.slane %v38, 3
  %v366 = vsel %vm354, %v363, %v365
  %v367 = vrot.slane %v39, 3
  %v368 = vsel %vm354, %v365, %v367
  %v369 = vrot.slane %v40, 3
  %v370 = vrot.slane %v41, 3
  %v371 = vsel %vm354, %v369, %v370
  %v372 = vrot.slane %v42, 3
  %v373 = vsel %vm354, %v370, %v372
  %v374 = vrot.slane %v43, 3
  %v375 = vsel %vm354, %v372, %v374
  %v376 = vrot.slane %v44, 3
  %v377 = vrot.slane %v45, 3
  %v378 = vsel %vm354, %v376, %v377
  %v379 = vrot.slane %v46, 3
  %v380 = vsel %vm354, %v377, %v379
  %v381 = vrot.slane %v47, 3
  %v382 = vsel %vm354, %v379, %v381
  %v383 = vrot.slane %v48, 3
  %v384 = vrot.slane %v49, 3
  %v385 = vsel %vm354, %v383, %v384
  %v386 = vrot.slane %v50, 3
  %v387 = vsel %vm354, %v384, %v386
  %v388 = vrot.slane %v51, 3
  %v389 = vsel %vm354, %v386, %v388
  %v390 = vrot.slane %v52, 3
  %v391 = vrot.slane %v53, 3
  %v392 = vsel %vm354, %v390, %v391
  %v393 = vrot.slane %v54, 3
  %v394 = vsel %vm354, %v391, %v393
  %v395 = vrot.slane %v55, 3
  %v396 = vsel %vm354, %v393, %v395
  %v397 = vrot.slane %v56, 3
  %v398 = vrot.slane %v57, 3
  %v399 = vsel %vm354, %v397, %v398
  %v400 = vrot.slane %v58, 3
  %v401 = vsel %vm354, %v398, %v400
  %v402 = vrot.slane %v59, 3
  %v403 = vsel %vm354, %v400, %v402
  %v404 = vrot.slane %v60, 3
  %v405 = vrot.slane %v61, 3
  %v406 = vsel %vm354, %v404, %v405
  %v407 = vrot.slane %v62, 3
  %v408 = vsel %vm354, %v405, %v407
  %v409 = vrot.slane %v63, 3
  %v410 = vsel %vm354, %v407, %v409
  %411 = vrot.lane.b32.xlu0 %v357, 84
  %v412 = vpop.permute.xlu0 %411
  %413 = vrot.lane.b32.xlu0 %v359, 84
  %v414 = vpop.permute.xlu0 %413
  %415 = vrot.lane.b32.xlu0 %v361, 84
  %v416 = vpop.permute.xlu0 %415
  %417 = vrot.lane.b32.xlu0 %v364, 84
  %v418 = vpop.permute.xlu0 %417
  %419 = vrot.lane.b32.xlu0 %v366, 84
  %v420 = vpop.permute.xlu0 %419
  %421 = vrot.lane.b32.xlu0 %v368, 84
  %v422 = vpop.permute.xlu0 %421
  %423 = vrot.lane.b32.xlu0 %v371, 84
  %v424 = vpop.permute.xlu0 %423
  %425 = vrot.lane.b32.xlu0 %v373, 84
  %v426 = vpop.permute.xlu0 %425
  %427 = vrot.lane.b32.xlu0 %v375, 84
  %v428 = vpop.permute.xlu0 %427
  %429 = vrot.lane.b32.xlu0 %v378, 84
  %v430 = vpop.permute.xlu0 %429
  %431 = vrot.lane.b32.xlu0 %v380, 84
  %v432 = vpop.permute.xlu0 %431
  %433 = vrot.lane.b32.xlu0 %v382, 84
  %v434 = vpop.permute.xlu0 %433
  %435 = vrot.lane.b32.xlu0 %v385, 84
  %v436 = vpop.permute.xlu0 %435
  %437 = vrot.lane.b32.xlu0 %v387, 84
  %v438 = vpop.permute.xlu0 %437
  %439 = vrot.lane.b32.xlu0 %v389, 84
  %v440 = vpop.permute.xlu0 %439
  %441 = vrot.lane.b32.xlu0 %v392, 84
  %v442 = vpop.permute.xlu0 %441
  %443 = vrot.lane.b32.xlu0 %v394, 84
  %v444 = vpop.permute.xlu0 %443
  %445 = vrot.lane.b32.xlu0 %v396, 84
  %v446 = vpop.permute.xlu0 %445
  %447 = vrot.lane.b32.xlu0 %v399, 84
  %v448 = vpop.permute.xlu0 %447
  %449 = vrot.lane.b32.xlu0 %v401, 84
  %v450 = vpop.permute.xlu0 %449
  %451 = vrot.lane.b32.xlu0 %v403, 84
  %v452 = vpop.permute.xlu0 %451
  %453 = vrot.lane.b32.xlu0 %v406, 84
  %v454 = vpop.permute.xlu0 %453
  %455 = vrot.lane.b32.xlu0 %v408, 84
  %v456 = vpop.permute.xlu0 %455
  %457 = vrot.lane.b32.xlu0 %v410, 84
  %v458 = vpop.permute.xlu0 %457
  %vm483 = vcmask 1043456
  %v484 = vrot.slane %v32, 4
  %v485 = vrot.slane %v33, 4
  %v486 = vsel %vm483, %v484, %v485
  %v487 = vrot.slane %v34, 4
  %v488 = vsel %vm483, %v485, %v487
  %v489 = vrot.slane %v35, 4
  %v490 = vsel %vm483, %v487, %v489
  %v491 = vrot.slane %v36, 4
  %v492 = vrot.slane %v37, 4
  %v493 = vsel %vm483, %v491, %v492
  %v494 = vrot.slane %v38, 4
  %v495 = vsel %vm483, %v492, %v494
  %v496 = vrot.slane %v39, 4
  %v497 = vsel %vm483, %v494, %v496
  %v498 = vrot.slane %v40, 4
  %v499 = vrot.slane %v41, 4
  %v500 = vsel %vm483, %v498, %v499
  %v501 = vrot.slane %v42, 4
  %v502 = vsel %vm483, %v499, %v501
  %v503 = vrot.slane %v43, 4
  %v504 = vsel %vm483, %v501, %v503
  %v505 = vrot.slane %v44, 4
  %v506 = vrot.slane %v45, 4
  %v507 = vsel %vm483, %v505, %v506
  %v508 = vrot.slane %v46, 4
  %v509 = vsel %vm483, %v506, %v508
  %v510 = vrot.slane %v47, 4
  %v511 = vsel %vm483, %v508, %v510
  %v512 = vrot.slane %v48, 4
  %v513 = vrot.slane %v49, 4
  %v514 = vsel %vm483, %v512, %v513
  %v515 = vrot.slane %v50, 4
  %v516 = vsel %vm483, %v513, %v515
  %v517 = vrot.slane %v51, 4
  %v518 = vsel %vm483, %v515, %v517
  %v519 = vrot.slane %v52, 4
  %v520 = vrot.slane %v53, 4
  %v521 = vsel %vm483, %v519, %v520
  %v522 = vrot.slane %v54, 4
  %v523 = vsel %vm483, %v520, %v522
  %v524 = vrot.slane %v55, 4
  %v525 = vsel %vm483, %v522, %v524
  %v526 = vrot.slane %v56, 4
  %v527 = vrot.slane %v57, 4
  %v528 = vsel %vm483, %v526, %v527
  %v529 = vrot.slane %v58, 4
  %v530 = vsel %vm483, %v527, %v529
  %v531 = vrot.slane %v59, 4
  %v532 = vsel %vm483, %v529, %v531
  %v533 = vrot.slane %v60, 4
  %v534 = vrot.slane %v61, 4
  %v535 = vsel %vm483, %v533, %v534
  %v536 = vrot.slane %v62, 4
  %v537 = vsel %vm483, %v534, %v536
  %v538 = vrot.slane %v63, 4
  %v539 = vsel %vm483, %v536, %v538
  %540 = vrot.lane.b32.xlu0 %v486, 112
  %v541 = vpop.permute.xlu0 %540
  %542 = vrot.lane.b32.xlu0 %v488, 112
  %v543 = vpop.permute.xlu0 %542
  %544 = vrot.lane.b32.xlu0 %v490, 112
  %v545 = vpop.permute.xlu0 %544
  %546 = vrot.lane.b32.xlu0 %v493, 112
  %v547 = vpop.permute.xlu0 %546
  %548 = vrot.lane.b32.xlu0 %v495, 112
  %v549 = vpop.permute.xlu0 %548
  %550 = vrot.lane.b32.xlu0 %v497, 112
  %v551 = vpop.permute.xlu0 %550
  %552 = vrot.lane.b32.xlu0 %v500, 112
  %v553 = vpop.permute.xlu0 %552
  %554 = vrot.lane.b32.xlu0 %v502, 112
  %v555 = vpop.permute.xlu0 %554
  %556 = vrot.lane.b32.xlu0 %v504, 112
  %v557 = vpop.permute.xlu0 %556
  %558 = vrot.lane.b32.xlu0 %v507, 112
  %v559 = vpop.permute.xlu0 %558
  %560 = vrot.lane.b32.xlu0 %v509, 112
  %v561 = vpop.permute.xlu0 %560
  %562 = vrot.lane.b32.xlu0 %v511, 112
  %v563 = vpop.permute.xlu0 %562
  %564 = vrot.lane.b32.xlu0 %v514, 112
  %v565 = vpop.permute.xlu0 %564
  %566 = vrot.lane.b32.xlu0 %v516, 112
  %v567 = vpop.permute.xlu0 %566
  %568 = vrot.lane.b32.xlu0 %v518, 112
  %v569 = vpop.permute.xlu0 %568
  %570 = vrot.lane.b32.xlu0 %v521, 112
  %v571 = vpop.permute.xlu0 %570
  %572 = vrot.lane.b32.xlu0 %v523, 112
  %v573 = vpop.permute.xlu0 %572
  %574 = vrot.lane.b32.xlu0 %v525, 112
  %v575 = vpop.permute.xlu0 %574
  %576 = vrot.lane.b32.xlu0 %v528, 112
  %v577 = vpop.permute.xlu0 %576
  %578 = vrot.lane.b32.xlu0 %v530, 112
  %v579 = vpop.permute.xlu0 %578
  %580 = vrot.lane.b32.xlu0 %v532, 112
  %v581 = vpop.permute.xlu0 %580
  %582 = vrot.lane.b32.xlu0 %v535, 112
  %v583 = vpop.permute.xlu0 %582
  %584 = vrot.lane.b32.xlu0 %v537, 112
  %v585 = vpop.permute.xlu0 %584
  %586 = vrot.lane.b32.xlu0 %v539, 112
  %v587 = vpop.permute.xlu0 %586
  %vm612 = vcmask 228352
  %v613 = vsel %vm612, %v32, %v154
  %v614 = vsel %vm612, %v33, %v156
  %v615 = vsel %vm612, %v34, %v158
  %v616 = vsel %vm612, %v36, %v160
  %v617 = vsel %vm612, %v37, %v162
  %v618 = vsel %vm612, %v38, %v164
  %v619 = vsel %vm612, %v40, %v166
  %v620 = vsel %vm612, %v41, %v168
  %v621 = vsel %vm612, %v42, %v170
  %v622 = vsel %vm612, %v44, %v172
  %v623 = vsel %vm612, %v45, %v174
  %v624 = vsel %vm612, %v46, %v176
  %v625 = vsel %vm612, %v48, %v178
  %v626 = vsel %vm612, %v49, %v180
  %v627 = vsel %vm612, %v50, %v182
  %v628 = vsel %vm612, %v52, %v184
  %v629 = vsel %vm612, %v53, %v186
  %v630 = vsel %vm612, %v54, %v188
  %v631 = vsel %vm612, %v56, %v190
  %v632 = vsel %vm612, %v57, %v192
  %v633 = vsel %vm612, %v58, %v194
  %v634 = vsel %vm612, %v60, %v196
  %v635 = vsel %vm612, %v61, %v198
  %v636 = vsel %vm612, %v62, %v200
  %vm637 = vcmask 457728
  %v638 = vsel %vm637, %v613, %v283
  %v639 = vsel %vm637, %v614, %v285
  %v640 = vsel %vm637, %v615, %v287
  %v641 = vsel %vm637, %v616, %v289
  %v642 = vsel %vm637, %v617, %v291
  %v643 = vsel %vm637, %v618, %v293
  %v644 = vsel %vm637, %v619, %v295
  %v645 = vsel %vm637, %v620, %v297
  %v646 = vsel %vm637, %v621, %v299
  %v647 = vsel %vm637, %v622, %v301
  %v648 = vsel %vm637, %v623, %v303
  %v649 = vsel %vm637, %v624, %v305
  %v650 = vsel %vm637, %v625, %v307
  %v651 = vsel %vm637, %v626, %v309
  %v652 = vsel %vm637, %v627, %v311
  %v653 = vsel %vm637, %v628, %v313
  %v654 = vsel %vm637, %v629, %v315
  %v655 = vsel %vm637, %v630, %v317
  %v656 = vsel %vm637, %v631, %v319
  %v657 = vsel %vm637, %v632, %v321
  %v658 = vsel %vm637, %v633, %v323
  %v659 = vsel %vm637, %v634, %v325
  %v660 = vsel %vm637, %v635, %v327
  %v661 = vsel %vm637, %v636, %v329
  %vm662 = vcmask 687104
  %v663 = vsel %vm662, %v638, %v412
  %v664 = vsel %vm662, %v639, %v414
  %v665 = vsel %vm662, %v640, %v416
  %v666 = vsel %vm662, %v641, %v418
  %v667 = vsel %vm662, %v642, %v420
  %v668 = vsel %vm662, %v643, %v422
  %v669 = vsel %vm662, %v644, %v424
  %v670 = vsel %vm662, %v645, %v426
  %v671 = vsel %vm662, %v646, %v428
  %v672 = vsel %vm662, %v647, %v430
  %v673 = vsel %vm662, %v648, %v432
  %v674 = vsel %vm662, %v649, %v434
  %v675 = vsel %vm662, %v650, %v436
  %v676 = vsel %vm662, %v651, %v438
  %v677 = vsel %vm662, %v652, %v440
  %v678 = vsel %vm662, %v653, %v442
  %v679 = vsel %vm662, %v654, %v444
  %v680 = vsel %vm662, %v655, %v446
  %v681 = vsel %vm662, %v656, %v448
  %v682 = vsel %vm662, %v657, %v450
  %v683 = vsel %vm662, %v658, %v452
  %v684 = vsel %vm662, %v659, %v454
  %v685 = vsel %vm662, %v660, %v456
  %v686 = vsel %vm662, %v661, %v458
  %vm687 = vcmask 916480
  %v688 = vsel %vm687, %v663, %v541
  %v689 = vsel %vm687, %v664, %v543
  %v690 = vsel %vm687, %v665, %v545
  %v691 = vsel %vm687, %v666, %v547
  %v692 = vsel %vm687, %v667, %v549
  %v693 = vsel %vm687, %v668, %v551
  %v694 = vsel %vm687, %v669, %v553
  %v695 = vsel %vm687, %v670, %v555
  %v696 = vsel %vm687, %v671, %v557
  %v697 = vsel %vm687, %v672, %v559
  %v698 = vsel %vm687, %v673, %v561
  %v699 = vsel %vm687, %v674, %v563
  %v700 = vsel %vm687, %v675, %v565
  %v701 = vsel %vm687, %v676, %v567
  %v702 = vsel %vm687, %v677, %v569
  %v703 = vsel %vm687, %v678, %v571
  %v704 = vsel %vm687, %v679, %v573
  %v705 = vsel %vm687, %v680, %v575
  %v706 = vsel %vm687, %v681, %v577
  %v707 = vsel %vm687, %v682, %v579
  %v708 = vsel %vm687, %v683, %v581
  %v709 = vsel %vm687, %v684, %v583
  %v710 = vsel %vm687, %v685, %v585
  %v711 = vsel %vm687, %v686, %v587
  %v712 = vld [vmem:[%s1] sm:$0xff]
  %v713 = vld [vmem:[%s1 + $0x8] sm:$0xff]
  %v714 = vld [vmem:[%s1 + $0x10] sm:$0xff]
  %v715 = vld [vmem:[%s1 + $0x18] sm:$0xff]
  %v716 = vld [vmem:[%s1 + $0x20] sm:$0xff]
  %v717 = vld [vmem:[%s1 + $0x28] sm:$0xff]
  %v718 = vld [vmem:[%s1 + $0x30] sm:$0xff]
  %v719 = vld [vmem:[%s1 + $0x38] sm:$0xff]
  %v720 = vld [vmem:[%s1 + $0x40] sm:$0xff]
  %v721 = vld [vmem:[%s1 + $0x48] sm:$0xff]
  %v722 = vld [vmem:[%s1 + $0x50] sm:$0xff]
  %v723 = vld [vmem:[%s1 + $0x58] sm:$0xff]
  %v724 = vld [vmem:[%s1 + $0x60] sm:$0xff]
  %v725 = vld [vmem:[%s1 + $0x68] sm:$0xff]
  %v726 = vld [vmem:[%s1 + $0x70] sm:$0xff]
  %v727 = vld [vmem:[%s1 + $0x78] sm:$0xff]
  %v728 = vld [vmem:[%s1 + $0x80] sm:$0xff]
  %v729 = vld [vmem:[%s1 + $0x88] sm:$0xff]
  %v730 = vld [vmem:[%s1 + $0x90] sm:$0xff]
  %v731 = vld [vmem:[%s1 + $0x98] sm:$0xff]
  %v732 = vld [vmem:[%s1 + $0xa0] sm:$0xff]
  %v733 = vld [vmem:[%s1 + $0xa8] sm:$0xff]
  %v734 = vld [vmem:[%s1 + $0xb0] sm:$0xff]
  %v735 = vld [vmem:[%s1 + $0xb8] sm:$0xff]
  %v736 = vld [vmem:[%s1 + $0xc0] sm:$0xff]
  %v737 = vld [vmem:[%s1 + $0xc8] sm:$0xff]
  %v738 = vld [vmem:[%s1 + $0xd0] sm:$0xff]
  %v739 = vld [vmem:[%s1 + $0xd8] sm:$0xff]
  %v740 = vld [vmem:[%s1 + $0xe0] sm:$0xff]
  %v741 = vld [vmem:[%s1 + $0xe8] sm:$0xff]
  %v742 = vld [vmem:[%s1 + $0xf0] sm:$0xff]
  %v743 = vld [vmem:[%s1 + $0xf8] sm:$0xff]
  %v744 = vld [vmem:[%s1 + $0x100] sm:$0xff]
  %v745 = vld [vmem:[%s1 + $0x108] sm:$0xff]
  %v746 = vld [vmem:[%s1 + $0x110] sm:$0xff]
  %v747 = vld [vmem:[%s1 + $0x118] sm:$0xff]
  %v748 = vld [vmem:[%s1 + $0x120] sm:$0xff]
  %v749 = vld [vmem:[%s1 + $0x128] sm:$0xff]
  %v750 = vld [vmem:[%s1 + $0x130] sm:$0xff]
  %v751 = vld [vmem:[%s1 + $0x138] sm:$0xff]
  %v752 = vld [vmem:[%s1 + $0x140] sm:$0xff]
  %v753 = vld [vmem:[%s1 + $0x148] sm:$0xff]
  %v754 = vld [vmem:[%s1 + $0x150] sm:$0xff]
  %v755 = vld [vmem:[%s1 + $0x158] sm:$0xff]
  %v756 = vld [vmem:[%s1 + $0x160] sm:$0xff]
  %v757 = vld [vmem:[%s1 + $0x168] sm:$0xff]
  %v758 = vld [vmem:[%s1 + $0x170] sm:$0xff]
  %v759 = vld [vmem:[%s1 + $0x178] sm:$0xff]
  %v760 = vld [vmem:[%s1 + $0x180] sm:$0xff]
  %v761 = vld [vmem:[%s1 + $0x188] sm:$0xff]
  %v762 = vld [vmem:[%s1 + $0x190] sm:$0xff]
  %v763 = vld [vmem:[%s1 + $0x198] sm:$0xff]
  %v764 = vld [vmem:[%s1 + $0x1a0] sm:$0xff]
  %v765 = vld [vmem:[%s1 + $0x1a8] sm:$0xff]
  %v766 = vld [vmem:[%s1 + $0x1b0] sm:$0xff]
  %v767 = vld [vmem:[%s1 + $0x1b8] sm:$0xff]
  %v768 = vld [vmem:[%s1 + $0x1c0] sm:$0xff]
  %v769 = vld [vmem:[%s1 + $0x1c8] sm:$0xff]
  %v770 = vld [vmem:[%s1 + $0x1d0] sm:$0xff]
  %v771 = vld [vmem:[%s1 + $0x1d8] sm:$0xff]
  %v772 = vld [vmem:[%s1 + $0x1e0] sm:$0xff]
  %v773 = vld [vmem:[%s1 + $0x1e8] sm:$0xff]
  %v774 = vld [vmem:[%s1 + $0x1f0] sm:$0xff]
  %v775 = vld [vmem:[%s1 + $0x1f8] sm:$0xff]
  %v776 = vld [vmem:[%s1 + $0x200] sm:$0xff]
  %v777 = vld [vmem:[%s1 + $0x208] sm:$0xff]
  %v778 = vld [vmem:[%s1 + $0x210] sm:$0xff]
  %v779 = vld [vmem:[%s1 + $0x218] sm:$0xff]
  %v780 = vld [vmem:[%s1 + $0x220] sm:$0xf]
  %v781 = vld [vmem:[%s1 + $0x228] sm:$0xf]
  %v782 = vld [vmem:[%s1 + $0x230] sm:$0xf]
  %v783 = vld [vmem:[%s1 + $0x238] sm:$0xf]
  %v784 = vld [vmem:[%s2] sm:$0xf]
  %v786 = vlaneseq
  %v787 = vshrl.u32 %v786, 7
  %v788 = vsub.s32 0, %v787
  %v789 = vrot.slane %v784, %v788
  %v790 = vlaneseq
  %v791 = vshrl.u32 %v790, 7
  %v792 = vsub.s32 1, %v791
  %v793 = vrot.slane %v784, %v792
  %v794 = vlaneseq
  %v795 = vshrl.u32 %v794, 7
  %v796 = vsub.s32 2, %v795
  %v797 = vrot.slane %v784, %v796
  %v798 = vlaneseq
  %v799 = vshrl.u32 %v798, 7
  %v800 = vsub.s32 3, %v799
  %v801 = vrot.slane %v784, %v800
  %vm806 = vcmask 97280
  %v807 = vsel %vm806, %v541, 0
  %v809 = vsel %vm806, %v543, 0
  %v811 = vsel %vm806, %v545, 0
  %v813 = vsel %vm806, %v547, 0
  %v815 = vsel %vm806, %v549, 0
  %v817 = vsel %vm806, %v551, 0
  %v819 = vsel %vm806, %v553, 0
  %v821 = vsel %vm806, %v555, 0
  %v823 = vsel %vm806, %v557, 0
  %v825 = vsel %vm806, %v559, 0
  %v827 = vsel %vm806, %v561, 0
  %v829 = vsel %vm806, %v563, 0
  %v831 = vsel %vm806, %v565, 0
  %v833 = vsel %vm806, %v567, 0
  %v835 = vsel %vm806, %v569, 0
  %v837 = vsel %vm806, %v571, 0
  %v839 = vsel %vm806, %v573, 0
  %v841 = vsel %vm806, %v575, 0
  %v843 = vsel %vm806, %v577, 0
  %v845 = vsel %vm806, %v579, 0
  %v847 = vsel %vm806, %v581, 0
  %v849 = vsel %vm806, %v583, 0
  %v851 = vsel %vm806, %v585, 0
  %v853 = vsel %vm806, %v587, 0
  %v856 = vsel %vm483, %v780, 0
  %v859 = vsel %vm483, %v781, 0
  %v862 = vsel %vm483, %v782, 0
  %v865 = vsel %vm483, %v783, 0
  %867 = vmatprep.subr.mxu0 %v713
  %868 = vmatpush1.msra.mxu0 %v712
  %869 = vmatprep.subr.mxu0 %v717
  %870 = vmatpush1.msra.mxu0 %v716
  %871 = vmatprep.subr.mxu0 %v721
  %872 = vmatpush1.msra.mxu0 %v720
  %873 = vmatprep.subr.mxu0 %v725
  %874 = vmatpush1.msra.mxu0 %v724
  %875 = vmatprep.subr.mxu0 %v729
  %876 = vmatpush1.msra.mxu0 %v728
  %877 = vmatprep.subr.mxu0 %v733
  %878 = vmatpush1.msra.mxu0 %v732
  %879 = vmatprep.subr.mxu0 %v737
  %880 = vmatpush1.msra.mxu0 %v736
  %881 = vmatprep.subr.mxu0 %v741
  %882 = vmatpush1.msra.mxu0 %v740
  %883 = vmatprep.subr.mxu0 %v745
  %884 = vmatpush1.msra.mxu0 %v744
  %885 = vmatprep.subr.mxu0 %v749
  %886 = vmatpush1.msra.mxu0 %v748
  %887 = vmatprep.subr.mxu0 %v753
  %888 = vmatpush1.msra.mxu0 %v752
  %889 = vmatprep.subr.mxu0 %v757
  %890 = vmatpush1.msra.mxu0 %v756
  %891 = vmatprep.subr.mxu0 %v761
  %892 = vmatpush1.msra.mxu0 %v760
  %893 = vmatprep.subr.mxu0 %v765
  %894 = vmatpush1.msra.mxu0 %v764
  %895 = vmatprep.subr.mxu0 %v769
  %896 = vmatpush1.msra.mxu0 %v768
  %897 = vmatprep.subr.mxu0 %v773
  %898 = vmatpush1.msra.mxu0 %v772
  %899 = vmatprep.subr.mxu0 %v777
  %900 = vmatpush1.msra.mxu0 %v776
  %901 = vmatprep.subr.mxu0 %v859
  %902 = vmatpush1.msra.mxu0 %v856
  %903 = vmatprep.subr.mxu0 0.0
  %904 = vmatpush1.msra.mxu0 0.0
  %905 = vmatprep.subr.mxu0 0.0
  %906 = vmatpush1.msra.mxu0 0.0
  %907 = vmatprep.subr.mxu0 0.0
  %908 = vmatpush1.msra.mxu0 0.0
  %909 = vmatprep.subr.mxu0 0.0
  %910 = vmatpush1.msra.mxu0 0.0
  %911 = vmatprep.subr.mxu0 0.0
  %912 = vmatpush1.msra.mxu0 0.0
  %913 = vmatprep.subr.mxu0 0.0
  %914 = vmatpush1.msra.mxu0 0.0
  %915 = vmatprep.subr.mxu0 0.0
  %916 = vmatpush1.msra.mxu0 0.0
  %917 = vmatprep.subr.mxu0 0.0
  %918 = vmatpush1.msra.mxu0 0.0
  %919 = vmatprep.subr.mxu0 0.0
  %920 = vmatpush1.msra.mxu0 0.0
  %921 = vmatprep.subr.mxu0 0.0
  %922 = vmatpush1.msra.mxu0 0.0
  %923 = vmatprep.subr.mxu0 0.0
  %924 = vmatpush1.msra.mxu0 0.0
  %925 = vmatprep.subr.mxu0 0.0
  %926 = vmatpush1.msra.mxu0 0.0
  %927 = vmatprep.subr.mxu0 0.0
  %928 = vmatpush1.msra.mxu0 0.0
  %929 = vmatprep.subr.mxu0 0.0
  %930 = vmatpush1.msra.mxu0 0.0
  %931 = vmatprep.mubr.f32.mxu0 %v807
  %932 = vmatmul.mubr.f32.gmra.mrb[0].mxu0 %v688
  %v933 = vpop.f32.mrb[0].mxu0
  %v934 = vadd.f32 %v789, %v933
  %v935 = vpop.f32.mrb[0].mxu0
  %v936 = vadd.f32 %v793, %v935
  %937 = vmatprep.mubr.f32.mxu0 %v809
  %938 = vmatmul.mubr.f32.gmra.mrb[0].mxu0 %v689
  %v939 = vpop.f32.mrb[0].mxu0
  %v940 = vadd.f32 %v789, %v939
  %v941 = vpop.f32.mrb[0].mxu0
  %v942 = vadd.f32 %v793, %v941
  %943 = vmatprep.mubr.f32.mxu0 %v811
  %944 = vmatmul.mubr.f32.gmra.mrb[0].mxu0 %v690
  %v945 = vpop.f32.mrb[0].mxu0
  %v946 = vadd.f32 %v789, %v945
  %v947 = vpop.f32.mrb[0].mxu0
  %v948 = vadd.f32 %v793, %v947
  %949 = vmatprep.mubr.f32.mxu0 %v813
  %950 = vmatmul.mubr.f32.gmra.mrb[0].mxu0 %v691
  %v951 = vpop.f32.mrb[0].mxu0
  %v952 = vadd.f32 %v789, %v951
  %v953 = vpop.f32.mrb[0].mxu0
  %v954 = vadd.f32 %v793, %v953
  %955 = vmatprep.mubr.f32.mxu0 %v815
  %956 = vmatmul.mubr.f32.gmra.mrb[0].mxu0 %v692
  %v957 = vpop.f32.mrb[0].mxu0
  %v958 = vadd.f32 %v789, %v957
  %v959 = vpop.f32.mrb[0].mxu0
  %v960 = vadd.f32 %v793, %v959
  %961 = vmatprep.mubr.f32.mxu0 %v817
  %962 = vmatmul.mubr.f32.gmra.mrb[0].mxu0 %v693
  %v963 = vpop.f32.mrb[0].mxu0
  %v964 = vadd.f32 %v789, %v963
  %v965 = vpop.f32.mrb[0].mxu0
  %v966 = vadd.f32 %v793, %v965
  %967 = vmatprep.mubr.f32.mxu0 %v819
  %968 = vmatmul.mubr.f32.gmra.mrb[0].mxu0 %v694
  %v969 = vpop.f32.mrb[0].mxu0
  %v970 = vadd.f32 %v789, %v969
  %v971 = vpop.f32.mrb[0].mxu0
  %v972 = vadd.f32 %v793, %v971
  %973 = vmatprep.mubr.f32.mxu0 %v821
  %974 = vmatmul.mubr.f32.gmra.mrb[0].mxu0 %v695
  %v975 = vpop.f32.mrb[0].mxu0
  %v976 = vadd.f32 %v789, %v975
  %v977 = vpop.f32.mrb[0].mxu0
  %v978 = vadd.f32 %v793, %v977
  %979 = vmatprep.mubr.f32.mxu0 %v823
  %980 = vmatmul.mubr.f32.gmra.mrb[0].mxu0 %v696
  %v981 = vpop.f32.mrb[0].mxu0
  %v982 = vadd.f32 %v789, %v981
  %v983 = vpop.f32.mrb[0].mxu0
  %v984 = vadd.f32 %v793, %v983
  %985 = vmatprep.mubr.f32.mxu0 %v825
  %986 = vmatmul.mubr.f32.gmra.mrb[0].mxu0 %v697
  %v987 = vpop.f32.mrb[0].mxu0
  %v988 = vadd.f32 %v789, %v987
  %v989 = vpop.f32.mrb[0].mxu0
  %v990 = vadd.f32 %v793, %v989
  %991 = vmatprep.mubr.f32.mxu0 %v827
  %992 = vmatmul.mubr.f32.gmra.mrb[0].mxu0 %v698
  %v993 = vpop.f32.mrb[0].mxu0
  %v994 = vadd.f32 %v789, %v993
  %v995 = vpop.f32.mrb[0].mxu0
  %v996 = vadd.f32 %v793, %v995
  %997 = vmatprep.mubr.f32.mxu0 %v829
  %998 = vmatmul.mubr.f32.gmra.mrb[0].mxu0 %v699
  %v999 = vpop.f32.mrb[0].mxu0
  %v1000 = vadd.f32 %v789, %v999
  %v1001 = vpop.f32.mrb[0].mxu0
  %v1002 = vadd.f32 %v793, %v1001
  %1003 = vmatprep.mubr.f32.mxu0 %v831
  %1004 = vmatmul.mubr.f32.gmra.mrb[0].mxu0 %v700
  %v1005 = vpop.f32.mrb[0].mxu0
  %v1006 = vadd.f32 %v789, %v1005
  %v1007 = vpop.f32.mrb[0].mxu0
  %v1008 = vadd.f32 %v793, %v1007
  %1009 = vmatprep.mubr.f32.mxu0 %v833
  %1010 = vmatmul.mubr.f32.gmra.mrb[0].mxu0 %v701
  %v1011 = vpop.f32.mrb[0].mxu0
  %v1012 = vadd.f32 %v789, %v1011
  %v1013 = vpop.f32.mrb[0].mxu0
  %v1014 = vadd.f32 %v793, %v1013
  %1015 = vmatprep.mubr.f32.mxu0 %v835
  %1016 = vmatmul.mubr.f32.gmra.mrb[0].mxu0 %v702
  %v1017 = vpop.f32.mrb[0].mxu0
  %v1018 = vadd.f32 %v789, %v1017
  %v1019 = vpop.f32.mrb[0].mxu0
  %v1020 = vadd.f32 %v793, %v1019
  %1021 = vmatprep.mubr.f32.mxu0 %v837
  %1022 = vmatmul.mubr.f32.gmra.mrb[0].mxu0 %v703
  %v1023 = vpop.f32.mrb[0].mxu0
  %v1024 = vadd.f32 %v789, %v1023
  %v1025 = vpop.f32.mrb[0].mxu0
  %v1026 = vadd.f32 %v793, %v1025
  %1027 = vmatprep.mubr.f32.mxu0 %v839
  %1028 = vmatmul.mubr.f32.gmra.mrb[0].mxu0 %v704
  %v1029 = vpop.f32.mrb[0].mxu0
  %v1030 = vadd.f32 %v789, %v1029
  %v1031 = vpop.f32.mrb[0].mxu0
  %v1032 = vadd.f32 %v793, %v1031
  %1033 = vmatprep.mubr.f32.mxu0 %v841
  %1034 = vmatmul.mubr.f32.gmra.mrb[0].mxu0 %v705
  %v1035 = vpop.f32.mrb[0].mxu0
  %v1036 = vadd.f32 %v789, %v1035
  %v1037 = vpop.f32.mrb[0].mxu0
  %v1038 = vadd.f32 %v793, %v1037
  %1039 = vmatprep.mubr.f32.mxu0 %v843
  %1040 = vmatmul.mubr.f32.gmra.mrb[0].mxu0 %v706
  %v1041 = vpop.f32.mrb[0].mxu0
  %v1042 = vadd.f32 %v789, %v1041
  %v1043 = vpop.f32.mrb[0].mxu0
  %v1044 = vadd.f32 %v793, %v1043
  %1045 = vmatprep.mubr.f32.mxu0 %v845
  %1046 = vmatmul.mubr.f32.gmra.mrb[0].mxu0 %v707
  %v1047 = vpop.f32.mrb[0].mxu0
  %v1048 = vadd.f32 %v789, %v1047
  %v1049 = vpop.f32.mrb[0].mxu0
  %v1050 = vadd.f32 %v793, %v1049
  %1051 = vmatprep.mubr.f32.mxu0 %v847
  %1052 = vmatmul.mubr.f32.gmra.mrb[0].mxu0 %v708
  %v1053 = vpop.f32.mrb[0].mxu0
  %v1054 = vadd.f32 %v789, %v1053
  %v1055 = vpop.f32.mrb[0].mxu0
  %v1056 = vadd.f32 %v793, %v1055
  %1057 = vmatprep.mubr.f32.mxu0 %v849
  %1058 = vmatmul.mubr.f32.gmra.mrb[0].mxu0 %v709
  %v1059 = vpop.f32.mrb[0].mxu0
  %v1060 = vadd.f32 %v789, %v1059
  %v1061 = vpop.f32.mrb[0].mxu0
  %v1062 = vadd.f32 %v793, %v1061
  %1063 = vmatprep.mubr.f32.mxu0 %v851
  %1064 = vmatmul.mubr.f32.gmra.mrb[0].mxu0 %v710
  %v1065 = vpop.f32.mrb[0].mxu0
  %v1066 = vadd.f32 %v789, %v1065
  %v1067 = vpop.f32.mrb[0].mxu0
  %v1068 = vadd.f32 %v793, %v1067
  %1069 = vmatprep.mubr.f32.mxu0 %v853
  %1070 = vmatmul.mubr.f32.gmra.mrb[0].mxu0 %v711
  %v1071 = vpop.f32.mrb[0].mxu0
  %v1072 = vadd.f32 %v789, %v1071
  %v1073 = vpop.f32.mrb[0].mxu0
  %v1074 = vadd.f32 %v793, %v1073
  %1075 = vdwg.mxu0
  %1076 = vmatprep.subr.mxu0 %v715
  %1077 = vmatpush1.msra.mxu0 %v714
  %1078 = vmatprep.subr.mxu0 %v719
  %1079 = vmatpush1.msra.mxu0 %v718
  %1080 = vmatprep.subr.mxu0 %v723
  %1081 = vmatpush1.msra.mxu0 %v722
  %1082 = vmatprep.subr.mxu0 %v727
  %1083 = vmatpush1.msra.mxu0 %v726
  %1084 = vmatprep.subr.mxu0 %v731
  %1085 = vmatpush1.msra.mxu0 %v730
  %1086 = vmatprep.subr.mxu0 %v735
  %1087 = vmatpush1.msra.mxu0 %v734
  %1088 = vmatprep.subr.mxu0 %v739
  %1089 = vmatpush1.msra.mxu0 %v738
  %1090 = vmatprep.subr.mxu0 %v743
  %1091 = vmatpush1.msra.mxu0 %v742
  %1092 = vmatprep.subr.mxu0 %v747
  %1093 = vmatpush1.msra.mxu0 %v746
  %1094 = vmatprep.subr.mxu0 %v751
  %1095 = vmatpush1.msra.mxu0 %v750
  %1096 = vmatprep.subr.mxu0 %v755
  %1097 = vmatpush1.msra.mxu0 %v754
  %1098 = vmatprep.subr.mxu0 %v759
  %1099 = vmatpush1.msra.mxu0 %v758
  %1100 = vmatprep.subr.mxu0 %v763
  %1101 = vmatpush1.msra.mxu0 %v762
  %1102 = vmatprep.subr.mxu0 %v767
  %1103 = vmatpush1.msra.mxu0 %v766
  %1104 = vmatprep.subr.mxu0 %v771
  %1105 = vmatpush1.msra.mxu0 %v770
  %1106 = vmatprep.subr.mxu0 %v775
  %1107 = vmatpush1.msra.mxu0 %v774
  %1108 = vmatprep.subr.mxu0 %v779
  %1109 = vmatpush1.msra.mxu0 %v778
  %1110 = vmatprep.subr.mxu0 %v865
  %1111 = vmatpush1.msra.mxu0 %v862
  %1112 = vmatprep.subr.mxu0 0.0
  %1113 = vmatpush1.msra.mxu0 0.0
  %1114 = vmatprep.subr.mxu0 0.0
  %1115 = vmatpush1.msra.mxu0 0.0
  %1116 = vmatprep.subr.mxu0 0.0
  %1117 = vmatpush1.msra.mxu0 0.0
  %1118 = vmatprep.subr.mxu0 0.0
  %1119 = vmatpush1.msra.mxu0 0.0
  %1120 = vmatprep.subr.mxu0 0.0
  %1121 = vmatpush1.msra.mxu0 0.0
  %1122 = vmatprep.subr.mxu0 0.0
  %1123 = vmatpush1.msra.mxu0 0.0
  %1124 = vmatprep.subr.mxu0 0.0
  %1125 = vmatpush1.msra.mxu0 0.0
  %1126 = vmatprep.subr.mxu0 0.0
  %1127 = vmatpush1.msra.mxu0 0.0
  %1128 = vmatprep.subr.mxu0 0.0
  %1129 = vmatpush1.msra.mxu0 0.0
  %1130 = vmatprep.subr.mxu0 0.0
  %1131 = vmatpush1.msra.mxu0 0.0
  %1132 = vmatprep.subr.mxu0 0.0
  %1133 = vmatpush1.msra.mxu0 0.0
  %1134 = vmatprep.subr.mxu0 0.0
  %1135 = vmatpush1.msra.mxu0 0.0
  %1136 = vmatprep.subr.mxu0 0.0
  %1137 = vmatpush1.msra.mxu0 0.0
  %1138 = vmatprep.subr.mxu0 0.0
  %1139 = vmatpush1.msra.mxu0 0.0
  %1140 = vmatprep.mubr.f32.mxu0 %v807
  %1141 = vmatmul.mubr.f32.gmra.mrb[0].mxu0 %v688
  %v1142 = vpop.f32.mrb[0].mxu0
  %v1143 = vadd.f32 %v797, %v1142
  %v1144 = vpop.f32.mrb[0].mxu0
  %v1145 = vadd.f32 %v801, %v1144
  %1146 = vmatprep.mubr.f32.mxu0 %v809
  %1147 = vmatmul.mubr.f32.gmra.mrb[0].mxu0 %v689
  %v1148 = vpop.f32.mrb[0].mxu0
  %v1149 = vadd.f32 %v797, %v1148
  %v1150 = vpop.f32.mrb[0].mxu0
  %v1151 = vadd.f32 %v801, %v1150
  %1152 = vmatprep.mubr.f32.mxu0 %v811
  %1153 = vmatmul.mubr.f32.gmra.mrb[0].mxu0 %v690
  %v1154 = vpop.f32.mrb[0].mxu0
  %v1155 = vadd.f32 %v797, %v1154
  %v1156 = vpop.f32.mrb[0].mxu0
  %v1157 = vadd.f32 %v801, %v1156
  %1158 = vmatprep.mubr.f32.mxu0 %v813
  %1159 = vmatmul.mubr.f32.gmra.mrb[0].mxu0 %v691
  %v1160 = vpop.f32.mrb[0].mxu0
  %v1161 = vadd.f32 %v797, %v1160
  %v1162 = vpop.f32.mrb[0].mxu0
  %v1163 = vadd.f32 %v801, %v1162
  %1164 = vmatprep.mubr.f32.mxu0 %v815
  %1165 = vmatmul.mubr.f32.gmra.mrb[0].mxu0 %v692
  %v1166 = vpop.f32.mrb[0].mxu0
  %v1167 = vadd.f32 %v797, %v1166
  %v1168 = vpop.f32.mrb[0].mxu0
  %v1169 = vadd.f32 %v801, %v1168
  %1170 = vmatprep.mubr.f32.mxu0 %v817
  %1171 = vmatmul.mubr.f32.gmra.mrb[0].mxu0 %v693
  %v1172 = vpop.f32.mrb[0].mxu0
  %v1173 = vadd.f32 %v797, %v1172
  %v1174 = vpop.f32.mrb[0].mxu0
  %v1175 = vadd.f32 %v801, %v1174
  %1176 = vmatprep.mubr.f32.mxu0 %v819
  %1177 = vmatmul.mubr.f32.gmra.mrb[0].mxu0 %v694
  %v1178 = vpop.f32.mrb[0].mxu0
  %v1179 = vadd.f32 %v797, %v1178
  %v1180 = vpop.f32.mrb[0].mxu0
  %v1181 = vadd.f32 %v801, %v1180
  %1182 = vmatprep.mubr.f32.mxu0 %v821
  %1183 = vmatmul.mubr.f32.gmra.mrb[0].mxu0 %v695
  %v1184 = vpop.f32.mrb[0].mxu0
  %v1185 = vadd.f32 %v797, %v1184
  %v1186 = vpop.f32.mrb[0].mxu0
  %v1187 = vadd.f32 %v801, %v1186
  %1188 = vmatprep.mubr.f32.mxu0 %v823
  %1189 = vmatmul.mubr.f32.gmra.mrb[0].mxu0 %v696
  %v1190 = vpop.f32.mrb[0].mxu0
  %v1191 = vadd.f32 %v797, %v1190
  %v1192 = vpop.f32.mrb[0].mxu0
  %v1193 = vadd.f32 %v801, %v1192
  %1194 = vmatprep.mubr.f32.mxu0 %v825
  %1195 = vmatmul.mubr.f32.gmra.mrb[0].mxu0 %v697
  %v1196 = vpop.f32.mrb[0].mxu0
  %v1197 = vadd.f32 %v797, %v1196
  %v1198 = vpop.f32.mrb[0].mxu0
  %v1199 = vadd.f32 %v801, %v1198
  %1200 = vmatprep.mubr.f32.mxu0 %v827
  %1201 = vmatmul.mubr.f32.gmra.mrb[0].mxu0 %v698
  %v1202 = vpop.f32.mrb[0].mxu0
  %v1203 = vadd.f32 %v797, %v1202
  %v1204 = vpop.f32.mrb[0].mxu0
  %v1205 = vadd.f32 %v801, %v1204
  %1206 = vmatprep.mubr.f32.mxu0 %v829
  %1207 = vmatmul.mubr.f32.gmra.mrb[0].mxu0 %v699
  %v1208 = vpop.f32.mrb[0].mxu0
  %v1209 = vadd.f32 %v797, %v1208
  %v1210 = vpop.f32.mrb[0].mxu0
  %v1211 = vadd.f32 %v801, %v1210
  %1212 = vmatprep.mubr.f32.mxu0 %v831
  %1213 = vmatmul.mubr.f32.gmra.mrb[0].mxu0 %v700
  %v1214 = vpop.f32.mrb[0].mxu0
  %v1215 = vadd.f32 %v797, %v1214
  %v1216 = vpop.f32.mrb[0].mxu0
  %v1217 = vadd.f32 %v801, %v1216
  %1218 = vmatprep.mubr.f32.mxu0 %v833
  %1219 = vmatmul.mubr.f32.gmra.mrb[0].mxu0 %v701
  %v1220 = vpop.f32.mrb[0].mxu0
  %v1221 = vadd.f32 %v797, %v1220
  %v1222 = vpop.f32.mrb[0].mxu0
  %v1223 = vadd.f32 %v801, %v1222
  %1224 = vmatprep.mubr.f32.mxu0 %v835
  %1225 = vmatmul.mubr.f32.gmra.mrb[0].mxu0 %v702
  %v1226 = vpop.f32.mrb[0].mxu0
  %v1227 = vadd.f32 %v797, %v1226
  %v1228 = vpop.f32.mrb[0].mxu0
  %v1229 = vadd.f32 %v801, %v1228
  %1230 = vmatprep.mubr.f32.mxu0 %v837
  %1231 = vmatmul.mubr.f32.gmra.mrb[0].mxu0 %v703
  %v1232 = vpop.f32.mrb[0].mxu0
  %v1233 = vadd.f32 %v797, %v1232
  %v1234 = vpop.f32.mrb[0].mxu0
  %v1235 = vadd.f32 %v801, %v1234
  %1236 = vmatprep.mubr.f32.mxu0 %v839
  %1237 = vmatmul.mubr.f32.gmra.mrb[0].mxu0 %v704
  %v1238 = vpop.f32.mrb[0].mxu0
  %v1239 = vadd.f32 %v797, %v1238
  %v1240 = vpop.f32.mrb[0].mxu0
  %v1241 = vadd.f32 %v801, %v1240
  %1242 = vmatprep.mubr.f32.mxu0 %v841
  %1243 = vmatmul.mubr.f32.gmra.mrb[0].mxu0 %v705
  %v1244 = vpop.f32.mrb[0].mxu0
  %v1245 = vadd.f32 %v797, %v1244
  %v1246 = vpop.f32.mrb[0].mxu0
  %v1247 = vadd.f32 %v801, %v1246
  %1248 = vmatprep.mubr.f32.mxu0 %v843
  %1249 = vmatmul.mubr.f32.gmra.mrb[0].mxu0 %v706
  %v1250 = vpop.f32.mrb[0].mxu0
  %v1251 = vadd.f32 %v797, %v1250
  %v1252 = vpop.f32.mrb[0].mxu0
  %v1253 = vadd.f32 %v801, %v1252
  %1254 = vmatprep.mubr.f32.mxu0 %v845
  %1255 = vmatmul.mubr.f32.gmra.mrb[0].mxu0 %v707
  %v1256 = vpop.f32.mrb[0].mxu0
  %v1257 = vadd.f32 %v797, %v1256
  %v1258 = vpop.f32.mrb[0].mxu0
  %v1259 = vadd.f32 %v801, %v1258
  %1260 = vmatprep.mubr.f32.mxu0 %v847
  %1261 = vmatmul.mubr.f32.gmra.mrb[0].mxu0 %v708
  %v1262 = vpop.f32.mrb[0].mxu0
  %v1263 = vadd.f32 %v797, %v1262
  %v1264 = vpop.f32.mrb[0].mxu0
  %v1265 = vadd.f32 %v801, %v1264
  %1266 = vmatprep.mubr.f32.mxu0 %v849
  %1267 = vmatmul.mubr.f32.gmra.mrb[0].mxu0 %v709
  %v1268 = vpop.f32.mrb[0].mxu0
  %v1269 = vadd.f32 %v797, %v1268
  %v1270 = vpop.f32.mrb[0].mxu0
  %v1271 = vadd.f32 %v801, %v1270
  %1272 = vmatprep.mubr.f32.mxu0 %v851
  %1273 = vmatmul.mubr.f32.gmra.mrb[0].mxu0 %v710
  %v1274 = vpop.f32.mrb[0].mxu0
  %v1275 = vadd.f32 %v797, %v1274
  %v1276 = vpop.f32.mrb[0].mxu0
  %v1277 = vadd.f32 %v801, %v1276
  %1278 = vmatprep.mubr.f32.mxu0 %v853
  %1279 = vmatmul.mubr.f32.gmra.mrb[0].mxu0 %v711
  %v1280 = vpop.f32.mrb[0].mxu0
  %v1281 = vadd.f32 %v797, %v1280
  %v1282 = vpop.f32.mrb[0].mxu0
  %v1283 = vadd.f32 %v801, %v1282
  %1284 = vdwg.mxu0
  %v1285 = vmax.f32 %v934, 0.0
  %v1286 = vmax.f32 %v936, 0.0
  %v1287 = vmax.f32 %v1143, 0.0
  %v1288 = vmax.f32 %v1145, 0.0
  %v1289 = vmax.f32 %v940, 0.0
  %v1290 = vmax.f32 %v942, 0.0
  %v1291 = vmax.f32 %v1149, 0.0
  %v1292 = vmax.f32 %v1151, 0.0
  %v1293 = vmax.f32 %v946, 0.0
  %v1294 = vmax.f32 %v948, 0.0
  %v1295 = vmax.f32 %v1155, 0.0
  %v1296 = vmax.f32 %v1157, 0.0
  %v1297 = vmax.f32 %v952, 0.0
  %v1298 = vmax.f32 %v954, 0.0
  %v1299 = vmax.f32 %v1161, 0.0
  %v1300 = vmax.f32 %v1163, 0.0
  %v1301 = vmax.f32 %v958, 0.0
  %v1302 = vmax.f32 %v960, 0.0
  %v1303 = vmax.f32 %v1167, 0.0
  %v1304 = vmax.f32 %v1169, 0.0
  %v1305 = vmax.f32 %v964, 0.0
  %v1306 = vmax.f32 %v966, 0.0
  %v1307 = vmax.f32 %v1173, 0.0
  %v1308 = vmax.f32 %v1175, 0.0
  %v1309 = vmax.f32 %v970, 0.0
  %v1310 = vmax.f32 %v972, 0.0
  %v1311 = vmax.f32 %v1179, 0.0
  %v1312 = vmax.f32 %v1181, 0.0
  %v1313 = vmax.f32 %v976, 0.0
  %v1314 = vmax.f32 %v978, 0.0
  %v1315 = vmax.f32 %v1185, 0.0
  %v1316 = vmax.f32 %v1187, 0.0
  %v1317 = vmax.f32 %v982, 0.0
  %v1318 = vmax.f32 %v984, 0.0
  %v1319 = vmax.f32 %v1191, 0.0
  %v1320 = vmax.f32 %v1193, 0.0
  %v1321 = vmax.f32 %v988, 0.0
  %v1322 = vmax.f32 %v990, 0.0
  %v1323 = vmax.f32 %v1197, 0.0
  %v1324 = vmax.f32 %v1199, 0.0
  %v1325 = vmax.f32 %v994, 0.0
  %v1326 = vmax.f32 %v996, 0.0
  %v1327 = vmax.f32 %v1203, 0.0
  %v1328 = vmax.f32 %v1205, 0.0
  %v1329 = vmax.f32 %v1000, 0.0
  %v1330 = vmax.f32 %v1002, 0.0
  %v1331 = vmax.f32 %v1209, 0.0
  %v1332 = vmax.f32 %v1211, 0.0
  %v1333 = vmax.f32 %v1006, 0.0
  %v1334 = vmax.f32 %v1008, 0.0
  %v1335 = vmax.f32 %v1215, 0.0
  %v1336 = vmax.f32 %v1217, 0.0
  %v1337 = vmax.f32 %v1012, 0.0
  %v1338 = vmax.f32 %v1014, 0.0
  %v1339 = vmax.f32 %v1221, 0.0
  %v1340 = vmax.f32 %v1223, 0.0
  %v1341 = vmax.f32 %v1018, 0.0
  %v1342 = vmax.f32 %v1020, 0.0
  %v1343 = vmax.f32 %v1227, 0.0
  %v1344 = vmax.f32 %v1229, 0.0
  %v1345 = vmax.f32 %v1024, 0.0
  %v1346 = vmax.f32 %v1026, 0.0
  %v1347 = vmax.f32 %v1233, 0.0
  %v1348 = vmax.f32 %v1235, 0.0
  %v1349 = vmax.f32 %v1030, 0.0
  %v1350 = vmax.f32 %v1032, 0.0
  %v1351 = vmax.f32 %v1239, 0.0
  %v1352 = vmax.f32 %v1241, 0.0
  %v1353 = vmax.f32 %v1036, 0.0
  %v1354 = vmax.f32 %v1038, 0.0
  %v1355 = vmax.f32 %v1245, 0.0
  %v1356 = vmax.f32 %v1247, 0.0
  %v1357 = vmax.f32 %v1042, 0.0
  %v1358 = vmax.f32 %v1044, 0.0
  %v1359 = vmax.f32 %v1251, 0.0
  %v1360 = vmax.f32 %v1253, 0.0
  %v1361 = vmax.f32 %v1048, 0.0
  %v1362 = vmax.f32 %v1050, 0.0
  %v1363 = vmax.f32 %v1257, 0.0
  %v1364 = vmax.f32 %v1259, 0.0
  %v1365 = vmax.f32 %v1054, 0.0
  %v1366 = vmax.f32 %v1056, 0.0
  %v1367 = vmax.f32 %v1263, 0.0
  %v1368 = vmax.f32 %v1265, 0.0
  %v1369 = vmax.f32 %v1060, 0.0
  %v1370 = vmax.f32 %v1062, 0.0
  %v1371 = vmax.f32 %v1269, 0.0
  %v1372 = vmax.f32 %v1271, 0.0
  %v1373 = vmax.f32 %v1066, 0.0
  %v1374 = vmax.f32 %v1068, 0.0
  %v1375 = vmax.f32 %v1275, 0.0
  %v1376 = vmax.f32 %v1277, 0.0
  %v1377 = vmax.f32 %v1072, 0.0
  %v1378 = vmax.f32 %v1074, 0.0
  %v1379 = vmax.f32 %v1281, 0.0
  %v1380 = vmax.f32 %v1283, 0.0
  %1405 = vrot.lane.b32.xlu0 %v1285, 108
  %v1406 = vpop.permute.xlu0 %1405
  %1407 = vrot.lane.b32.xlu0 %v1289, 108
  %v1408 = vpop.permute.xlu0 %1407
  %1409 = vrot.lane.b32.xlu0 %v1293, 108
  %v1410 = vpop.permute.xlu0 %1409
  %1411 = vrot.lane.b32.xlu0 %v1297, 108
  %v1412 = vpop.permute.xlu0 %1411
  %1413 = vrot.lane.b32.xlu0 %v1301, 108
  %v1414 = vpop.permute.xlu0 %1413
  %1415 = vrot.lane.b32.xlu0 %v1305, 108
  %v1416 = vpop.permute.xlu0 %1415
  %1417 = vrot.lane.b32.xlu0 %v1309, 108
  %v1418 = vpop.permute.xlu0 %1417
  %1419 = vrot.lane.b32.xlu0 %v1313, 108
  %v1420 = vpop.permute.xlu0 %1419
  %1421 = vrot.lane.b32.xlu0 %v1317, 108
  %v1422 = vpop.permute.xlu0 %1421
  %1423 = vrot.lane.b32.xlu0 %v1321, 108
  %v1424 = vpop.permute.xlu0 %1423
  %1425 = vrot.lane.b32.xlu0 %v1325, 108
  %v1426 = vpop.permute.xlu0 %1425
  %1427 = vrot.lane.b32.xlu0 %v1329, 108
  %v1428 = vpop.permute.xlu0 %1427
  %1429 = vrot.lane.b32.xlu0 %v1333, 108
  %v1430 = vpop.permute.xlu0 %1429
  %1431 = vrot.lane.b32.xlu0 %v1337, 108
  %v1432 = vpop.permute.xlu0 %1431
  %1433 = vrot.lane.b32.xlu0 %v1341, 108
  %v1434 = vpop.permute.xlu0 %1433
  %1435 = vrot.lane.b32.xlu0 %v1345, 108
  %v1436 = vpop.permute.xlu0 %1435
  %1437 = vrot.lane.b32.xlu0 %v1349, 108
  %v1438 = vpop.permute.xlu0 %1437
  %1439 = vrot.lane.b32.xlu0 %v1353, 108
  %v1440 = vpop.permute.xlu0 %1439
  %1441 = vrot.lane.b32.xlu0 %v1357, 108
  %v1442 = vpop.permute.xlu0 %1441
  %1443 = vrot.lane.b32.xlu0 %v1361, 108
  %v1444 = vpop.permute.xlu0 %1443
  %1445 = vrot.lane.b32.xlu0 %v1365, 108
  %v1446 = vpop.permute.xlu0 %1445
  %1447 = vrot.lane.b32.xlu0 %v1369, 108
  %v1448 = vpop.permute.xlu0 %1447
  %1449 = vrot.lane.b32.xlu0 %v1373, 108
  %v1450 = vpop.permute.xlu0 %1449
  %1451 = vrot.lane.b32.xlu0 %v1377, 108
  %v1452 = vpop.permute.xlu0 %1451
  %v1477 = vmax.f32 %v1285, %v1406
  %v1478 = vmax.f32 %v1289, %v1408
  %v1479 = vmax.f32 %v1293, %v1410
  %v1480 = vmax.f32 %v1297, %v1412
  %v1481 = vmax.f32 %v1301, %v1414
  %v1482 = vmax.f32 %v1305, %v1416
  %v1483 = vmax.f32 %v1309, %v1418
  %v1484 = vmax.f32 %v1313, %v1420
  %v1485 = vmax.f32 %v1317, %v1422
  %v1486 = vmax.f32 %v1321, %v1424
  %v1487 = vmax.f32 %v1325, %v1426
  %v1488 = vmax.f32 %v1329, %v1428
  %v1489 = vmax.f32 %v1333, %v1430
  %v1490 = vmax.f32 %v1337, %v1432
  %v1491 = vmax.f32 %v1341, %v1434
  %v1492 = vmax.f32 %v1345, %v1436
  %v1493 = vmax.f32 %v1349, %v1438
  %v1494 = vmax.f32 %v1353, %v1440
  %v1495 = vmax.f32 %v1357, %v1442
  %v1496 = vmax.f32 %v1361, %v1444
  %v1497 = vmax.f32 %v1365, %v1446
  %v1498 = vmax.f32 %v1369, %v1448
  %v1499 = vmax.f32 %v1373, %v1450
  %v1500 = vmax.f32 %v1377, %v1452
  %1525 = vrot.lane.b32.xlu0 %v1286, 108
  %v1526 = vpop.permute.xlu0 %1525
  %1527 = vrot.lane.b32.xlu0 %v1290, 108
  %v1528 = vpop.permute.xlu0 %1527
  %1529 = vrot.lane.b32.xlu0 %v1294, 108
  %v1530 = vpop.permute.xlu0 %1529
  %1531 = vrot.lane.b32.xlu0 %v1298, 108
  %v1532 = vpop.permute.xlu0 %1531
  %1533 = vrot.lane.b32.xlu0 %v1302, 108
  %v1534 = vpop.permute.xlu0 %1533
  %1535 = vrot.lane.b32.xlu0 %v1306, 108
  %v1536 = vpop.permute.xlu0 %1535
  %1537 = vrot.lane.b32.xlu0 %v1310, 108
  %v1538 = vpop.permute.xlu0 %1537
  %1539 = vrot.lane.b32.xlu0 %v1314, 108
  %v1540 = vpop.permute.xlu0 %1539
  %1541 = vrot.lane.b32.xlu0 %v1318, 108
  %v1542 = vpop.permute.xlu0 %1541
  %1543 = vrot.lane.b32.xlu0 %v1322, 108
  %v1544 = vpop.permute.xlu0 %1543
  %1545 = vrot.lane.b32.xlu0 %v1326, 108
  %v1546 = vpop.permute.xlu0 %1545
  %1547 = vrot.lane.b32.xlu0 %v1330, 108
  %v1548 = vpop.permute.xlu0 %1547
  %1549 = vrot.lane.b32.xlu0 %v1334, 108
  %v1550 = vpop.permute.xlu0 %1549
  %1551 = vrot.lane.b32.xlu0 %v1338, 108
  %v1552 = vpop.permute.xlu0 %1551
  %1553 = vrot.lane.b32.xlu0 %v1342, 108
  %v1554 = vpop.permute.xlu0 %1553
  %1555 = vrot.lane.b32.xlu0 %v1346, 108
  %v1556 = vpop.permute.xlu0 %1555
  %1557 = vrot.lane.b32.xlu0 %v1350, 108
  %v1558 = vpop.permute.xlu0 %1557
  %1559 = vrot.lane.b32.xlu0 %v1354, 108
  %v1560 = vpop.permute.xlu0 %1559
  %1561 = vrot.lane.b32.xlu0 %v1358, 108
  %v1562 = vpop.permute.xlu0 %1561
  %1563 = vrot.lane.b32.xlu0 %v1362, 108
  %v1564 = vpop.permute.xlu0 %1563
  %1565 = vrot.lane.b32.xlu0 %v1366, 108
  %v1566 = vpop.permute.xlu0 %1565
  %1567 = vrot.lane.b32.xlu0 %v1370, 108
  %v1568 = vpop.permute.xlu0 %1567
  %1569 = vrot.lane.b32.xlu0 %v1374, 108
  %v1570 = vpop.permute.xlu0 %1569
  %1571 = vrot.lane.b32.xlu0 %v1378, 108
  %v1572 = vpop.permute.xlu0 %1571
  %v1597 = vmax.f32 %v1285, %v1526
  %v1598 = vmax.f32 %v1286, %v1526
  %v1599 = vmax.f32 %v1289, %v1528
  %v1600 = vmax.f32 %v1290, %v1528
  %v1601 = vmax.f32 %v1293, %v1530
  %v1602 = vmax.f32 %v1294, %v1530
  %v1603 = vmax.f32 %v1297, %v1532
  %v1604 = vmax.f32 %v1298, %v1532
  %v1605 = vmax.f32 %v1301, %v1534
  %v1606 = vmax.f32 %v1302, %v1534
  %v1607 = vmax.f32 %v1305, %v1536
  %v1608 = vmax.f32 %v1306, %v1536
  %v1609 = vmax.f32 %v1309, %v1538
  %v1610 = vmax.f32 %v1310, %v1538
  %v1611 = vmax.f32 %v1313, %v1540
  %v1612 = vmax.f32 %v1314, %v1540
  %v1613 = vmax.f32 %v1317, %v1542
  %v1614 = vmax.f32 %v1318, %v1542
  %v1615 = vmax.f32 %v1321, %v1544
  %v1616 = vmax.f32 %v1322, %v1544
  %v1617 = vmax.f32 %v1325, %v1546
  %v1618 = vmax.f32 %v1326, %v1546
  %v1619 = vmax.f32 %v1329, %v1548
  %v1620 = vmax.f32 %v1330, %v1548
  %v1621 = vmax.f32 %v1333, %v1550
  %v1622 = vmax.f32 %v1334, %v1550
  %v1623 = vmax.f32 %v1337, %v1552
  %v1624 = vmax.f32 %v1338, %v1552
  %v1625 = vmax.f32 %v1341, %v1554
  %v1626 = vmax.f32 %v1342, %v1554
  %v1627 = vmax.f32 %v1345, %v1556
  %v1628 = vmax.f32 %v1346, %v1556
  %v1629 = vmax.f32 %v1349, %v1558
  %v1630 = vmax.f32 %v1350, %v1558
  %v1631 = vmax.f32 %v1353, %v1560
  %v1632 = vmax.f32 %v1354, %v1560
  %v1633 = vmax.f32 %v1357, %v1562
  %v1634 = vmax.f32 %v1358, %v1562
  %v1635 = vmax.f32 %v1361, %v1564
  %v1636 = vmax.f32 %v1362, %v1564
  %v1637 = vmax.f32 %v1365, %v1566
  %v1638 = vmax.f32 %v1366, %v1566
  %v1639 = vmax.f32 %v1369, %v1568
  %v1640 = vmax.f32 %v1370, %v1568
  %v1641 = vmax.f32 %v1373, %v1570
  %v1642 = vmax.f32 %v1374, %v1570
  %v1643 = vmax.f32 %v1377, %v1572
  %v1644 = vmax.f32 %v1378, %v1572
  %1669 = vrot.lane.b32.xlu0 %v1287, 108
  %v1670 = vpop.permute.xlu0 %1669
  %1671 = vrot.lane.b32.xlu0 %v1291, 108
  %v1672 = vpop.permute.xlu0 %1671
  %1673 = vrot.lane.b32.xlu0 %v1295, 108
  %v1674 = vpop.permute.xlu0 %1673
  %1675 = vrot.lane.b32.xlu0 %v1299, 108
  %v1676 = vpop.permute.xlu0 %1675
  %1677 = vrot.lane.b32.xlu0 %v1303, 108
  %v1678 = vpop.permute.xlu0 %1677
  %1679 = vrot.lane.b32.xlu0 %v1307, 108
  %v1680 = vpop.permute.xlu0 %1679
  %1681 = vrot.lane.b32.xlu0 %v1311, 108
  %v1682 = vpop.permute.xlu0 %1681
  %1683 = vrot.lane.b32.xlu0 %v1315, 108
  %v1684 = vpop.permute.xlu0 %1683
  %1685 = vrot.lane.b32.xlu0 %v1319, 108
  %v1686 = vpop.permute.xlu0 %1685
  %1687 = vrot.lane.b32.xlu0 %v1323, 108
  %v1688 = vpop.permute.xlu0 %1687
  %1689 = vrot.lane.b32.xlu0 %v1327, 108
  %v1690 = vpop.permute.xlu0 %1689
  %1691 = vrot.lane.b32.xlu0 %v1331, 108
  %v1692 = vpop.permute.xlu0 %1691
  %1693 = vrot.lane.b32.xlu0 %v1335, 108
  %v1694 = vpop.permute.xlu0 %1693
  %1695 = vrot.lane.b32.xlu0 %v1339, 108
  %v1696 = vpop.permute.xlu0 %1695
  %1697 = vrot.lane.b32.xlu0 %v1343, 108
  %v1698 = vpop.permute.xlu0 %1697
  %1699 = vrot.lane.b32.xlu0 %v1347, 108
  %v1700 = vpop.permute.xlu0 %1699
  %1701 = vrot.lane.b32.xlu0 %v1351, 108
  %v1702 = vpop.permute.xlu0 %1701
  %1703 = vrot.lane.b32.xlu0 %v1355, 108
  %v1704 = vpop.permute.xlu0 %1703
  %1705 = vrot.lane.b32.xlu0 %v1359, 108
  %v1706 = vpop.permute.xlu0 %1705
  %1707 = vrot.lane.b32.xlu0 %v1363, 108
  %v1708 = vpop.permute.xlu0 %1707
  %1709 = vrot.lane.b32.xlu0 %v1367, 108
  %v1710 = vpop.permute.xlu0 %1709
  %1711 = vrot.lane.b32.xlu0 %v1371, 108
  %v1712 = vpop.permute.xlu0 %1711
  %1713 = vrot.lane.b32.xlu0 %v1375, 108
  %v1714 = vpop.permute.xlu0 %1713
  %1715 = vrot.lane.b32.xlu0 %v1379, 108
  %v1716 = vpop.permute.xlu0 %1715
  %v1741 = vmax.f32 %v1286, %v1670
  %v1742 = vmax.f32 %v1287, %v1670
  %v1743 = vmax.f32 %v1290, %v1672
  %v1744 = vmax.f32 %v1291, %v1672
  %v1745 = vmax.f32 %v1294, %v1674
  %v1746 = vmax.f32 %v1295, %v1674
  %v1747 = vmax.f32 %v1298, %v1676
  %v1748 = vmax.f32 %v1299, %v1676
  %v1749 = vmax.f32 %v1302, %v1678
  %v1750 = vmax.f32 %v1303, %v1678
  %v1751 = vmax.f32 %v1306, %v1680
  %v1752 = vmax.f32 %v1307, %v1680
  %v1753 = vmax.f32 %v1310, %v1682
  %v1754 = vmax.f32 %v1311, %v1682
  %v1755 = vmax.f32 %v1314, %v1684
  %v1756 = vmax.f32 %v1315, %v1684
  %v1757 = vmax.f32 %v1318, %v1686
  %v1758 = vmax.f32 %v1319, %v1686
  %v1759 = vmax.f32 %v1322, %v1688
  %v1760 = vmax.f32 %v1323, %v1688
  %v1761 = vmax.f32 %v1326, %v1690
  %v1762 = vmax.f32 %v1327, %v1690
  %v1763 = vmax.f32 %v1330, %v1692
  %v1764 = vmax.f32 %v1331, %v1692
  %v1765 = vmax.f32 %v1334, %v1694
  %v1766 = vmax.f32 %v1335, %v1694
  %v1767 = vmax.f32 %v1338, %v1696
  %v1768 = vmax.f32 %v1339, %v1696
  %v1769 = vmax.f32 %v1342, %v1698
  %v1770 = vmax.f32 %v1343, %v1698
  %v1771 = vmax.f32 %v1346, %v1700
  %v1772 = vmax.f32 %v1347, %v1700
  %v1773 = vmax.f32 %v1350, %v1702
  %v1774 = vmax.f32 %v1351, %v1702
  %v1775 = vmax.f32 %v1354, %v1704
  %v1776 = vmax.f32 %v1355, %v1704
  %v1777 = vmax.f32 %v1358, %v1706
  %v1778 = vmax.f32 %v1359, %v1706
  %v1779 = vmax.f32 %v1362, %v1708
  %v1780 = vmax.f32 %v1363, %v1708
  %v1781 = vmax.f32 %v1366, %v1710
  %v1782 = vmax.f32 %v1367, %v1710
  %v1783 = vmax.f32 %v1370, %v1712
  %v1784 = vmax.f32 %v1371, %v1712
  %v1785 = vmax.f32 %v1374, %v1714
  %v1786 = vmax.f32 %v1375, %v1714
  %v1787 = vmax.f32 %v1378, %v1716
  %v1788 = vmax.f32 %v1379, %v1716
  %1813 = vrot.lane.b32.xlu0 %v1288, 108
  %v1814 = vpop.permute.xlu0 %1813
  %1815 = vrot.lane.b32.xlu0 %v1292, 108
  %v1816 = vpop.permute.xlu0 %1815
  %1817 = vrot.lane.b32.xlu0 %v1296, 108
  %v1818 = vpop.permute.xlu0 %1817
  %1819 = vrot.lane.b32.xlu0 %v1300, 108
  %v1820 = vpop.permute.xlu0 %1819
  %1821 = vrot.lane.b32.xlu0 %v1304, 108
  %v1822 = vpop.permute.xlu0 %1821
  %1823 = vrot.lane.b32.xlu0 %v1308, 108
  %v1824 = vpop.permute.xlu0 %1823
  %1825 = vrot.lane.b32.xlu0 %v1312, 108
  %v1826 = vpop.permute.xlu0 %1825
  %1827 = vrot.lane.b32.xlu0 %v1316, 108
  %v1828 = vpop.permute.xlu0 %1827
  %1829 = vrot.lane.b32.xlu0 %v1320, 108
  %v1830 = vpop.permute.xlu0 %1829
  %1831 = vrot.lane.b32.xlu0 %v1324, 108
  %v1832 = vpop.permute.xlu0 %1831
  %1833 = vrot.lane.b32.xlu0 %v1328, 108
  %v1834 = vpop.permute.xlu0 %1833
  %1835 = vrot.lane.b32.xlu0 %v1332, 108
  %v1836 = vpop.permute.xlu0 %1835
  %1837 = vrot.lane.b32.xlu0 %v1336, 108
  %v1838 = vpop.permute.xlu0 %1837
  %1839 = vrot.lane.b32.xlu0 %v1340, 108
  %v1840 = vpop.permute.xlu0 %1839
  %1841 = vrot.lane.b32.xlu0 %v1344, 108
  %v1842 = vpop.permute.xlu0 %1841
  %1843 = vrot.lane.b32.xlu0 %v1348, 108
  %v1844 = vpop.permute.xlu0 %1843
  %1845 = vrot.lane.b32.xlu0 %v1352, 108
  %v1846 = vpop.permute.xlu0 %1845
  %1847 = vrot.lane.b32.xlu0 %v1356, 108
  %v1848 = vpop.permute.xlu0 %1847
  %1849 = vrot.lane.b32.xlu0 %v1360, 108
  %v1850 = vpop.permute.xlu0 %1849
  %1851 = vrot.lane.b32.xlu0 %v1364, 108
  %v1852 = vpop.permute.xlu0 %1851
  %1853 = vrot.lane.b32.xlu0 %v1368, 108
  %v1854 = vpop.permute.xlu0 %1853
  %1855 = vrot.lane.b32.xlu0 %v1372, 108
  %v1856 = vpop.permute.xlu0 %1855
  %1857 = vrot.lane.b32.xlu0 %v1376, 108
  %v1858 = vpop.permute.xlu0 %1857
  %1859 = vrot.lane.b32.xlu0 %v1380, 108
  %v1860 = vpop.permute.xlu0 %1859
  %vm1861 = vcmask 883712
  %v1862 = vsel %vm1861, %v1670, %v1814
  %v1863 = vsel %vm1861, %v1672, %v1816
  %v1864 = vsel %vm1861, %v1674, %v1818
  %v1865 = vsel %vm1861, %v1676, %v1820
  %v1866 = vsel %vm1861, %v1678, %v1822
  %v1867 = vsel %vm1861, %v1680, %v1824
  %v1868 = vsel %vm1861, %v1682, %v1826
  %v1869 = vsel %vm1861, %v1684, %v1828
  %v1870 = vsel %vm1861, %v1686, %v1830
  %v1871 = vsel %vm1861, %v1688, %v1832
  %v1872 = vsel %vm1861, %v1690, %v1834
  %v1873 = vsel %vm1861, %v1692, %v1836
  %v1874 = vsel %vm1861, %v1694, %v1838
  %v1875 = vsel %vm1861, %v1696, %v1840
  %v1876 = vsel %vm1861, %v1698, %v1842
  %v1877 = vsel %vm1861, %v1700, %v1844
  %v1878 = vsel %vm1861, %v1702, %v1846
  %v1879 = vsel %vm1861, %v1704, %v1848
  %v1880 = vsel %vm1861, %v1706, %v1850
  %v1881 = vsel %vm1861, %v1708, %v1852
  %v1882 = vsel %vm1861, %v1710, %v1854
  %v1883 = vsel %vm1861, %v1712, %v1856
  %v1884 = vsel %vm1861, %v1714, %v1858
  %v1885 = vsel %vm1861, %v1716, %v1860
  %v1910 = vmax.f32 %v1287, %v1862
  %v1911 = vmax.f32 %v1291, %v1863
  %v1912 = vmax.f32 %v1295, %v1864
  %v1913 = vmax.f32 %v1299, %v1865
  %v1914 = vmax.f32 %v1303, %v1866
  %v1915 = vmax.f32 %v1307, %v1867
  %v1916 = vmax.f32 %v1311, %v1868
  %v1917 = vmax.f32 %v1315, %v1869
  %v1918 = vmax.f32 %v1319, %v1870
  %v1919 = vmax.f32 %v1323, %v1871
  %v1920 = vmax.f32 %v1327, %v1872
  %v1921 = vmax.f32 %v1331, %v1873
  %v1922 = vmax.f32 %v1335, %v1874
  %v1923 = vmax.f32 %v1339, %v1875
  %v1924 = vmax.f32 %v1343, %v1876
  %v1925 = vmax.f32 %v1347, %v1877
  %v1926 = vmax.f32 %v1351, %v1878
  %v1927 = vmax.f32 %v1355, %v1879
  %v1928 = vmax.f32 %v1359, %v1880
  %v1929 = vmax.f32 %v1363, %v1881
  %v1930 = vmax.f32 %v1367, %v1882
  %v1931 = vmax.f32 %v1371, %v1883
  %v1932 = vmax.f32 %v1375, %v1884
  %v1933 = vmax.f32 %v1379, %v1885
  %v1958 = vmax.f32 %v1288, %v1814
  %v1959 = vmax.f32 %v1292, %v1816
  %v1960 = vmax.f32 %v1296, %v1818
  %v1961 = vmax.f32 %v1300, %v1820
  %v1962 = vmax.f32 %v1304, %v1822
  %v1963 = vmax.f32 %v1308, %v1824
  %v1964 = vmax.f32 %v1312, %v1826
  %v1965 = vmax.f32 %v1316, %v1828
  %v1966 = vmax.f32 %v1320, %v1830
  %v1967 = vmax.f32 %v1324, %v1832
  %v1968 = vmax.f32 %v1328, %v1834
  %v1969 = vmax.f32 %v1332, %v1836
  %v1970 = vmax.f32 %v1336, %v1838
  %v1971 = vmax.f32 %v1340, %v1840
  %v1972 = vmax.f32 %v1344, %v1842
  %v1973 = vmax.f32 %v1348, %v1844
  %v1974 = vmax.f32 %v1352, %v1846
  %v1975 = vmax.f32 %v1356, %v1848
  %v1976 = vmax.f32 %v1360, %v1850
  %v1977 = vmax.f32 %v1364, %v1852
  %v1978 = vmax.f32 %v1368, %v1854
  %v1979 = vmax.f32 %v1372, %v1856
  %v1980 = vmax.f32 %v1376, %v1858
  %v1981 = vmax.f32 %v1380, %v1860
  %2006 = vrot.lane.b32.xlu0 %v1477, 108
  %v2007 = vpop.permute.xlu0 %2006
  %2008 = vrot.lane.b32.xlu0 %v1478, 108
  %v2009 = vpop.permute.xlu0 %2008
  %2010 = vrot.lane.b32.xlu0 %v1479, 108
  %v2011 = vpop.permute.xlu0 %2010
  %2012 = vrot.lane.b32.xlu0 %v1480, 108
  %v2013 = vpop.permute.xlu0 %2012
  %2014 = vrot.lane.b32.xlu0 %v1481, 108
  %v2015 = vpop.permute.xlu0 %2014
  %2016 = vrot.lane.b32.xlu0 %v1482, 108
  %v2017 = vpop.permute.xlu0 %2016
  %2018 = vrot.lane.b32.xlu0 %v1483, 108
  %v2019 = vpop.permute.xlu0 %2018
  %2020 = vrot.lane.b32.xlu0 %v1484, 108
  %v2021 = vpop.permute.xlu0 %2020
  %2022 = vrot.lane.b32.xlu0 %v1485, 108
  %v2023 = vpop.permute.xlu0 %2022
  %2024 = vrot.lane.b32.xlu0 %v1486, 108
  %v2025 = vpop.permute.xlu0 %2024
  %2026 = vrot.lane.b32.xlu0 %v1487, 108
  %v2027 = vpop.permute.xlu0 %2026
  %2028 = vrot.lane.b32.xlu0 %v1488, 108
  %v2029 = vpop.permute.xlu0 %2028
  %2030 = vrot.lane.b32.xlu0 %v1489, 108
  %v2031 = vpop.permute.xlu0 %2030
  %2032 = vrot.lane.b32.xlu0 %v1490, 108
  %v2033 = vpop.permute.xlu0 %2032
  %2034 = vrot.lane.b32.xlu0 %v1491, 108
  %v2035 = vpop.permute.xlu0 %2034
  %2036 = vrot.lane.b32.xlu0 %v1492, 108
  %v2037 = vpop.permute.xlu0 %2036
  %2038 = vrot.lane.b32.xlu0 %v1493, 108
  %v2039 = vpop.permute.xlu0 %2038
  %2040 = vrot.lane.b32.xlu0 %v1494, 108
  %v2041 = vpop.permute.xlu0 %2040
  %2042 = vrot.lane.b32.xlu0 %v1495, 108
  %v2043 = vpop.permute.xlu0 %2042
  %2044 = vrot.lane.b32.xlu0 %v1496, 108
  %v2045 = vpop.permute.xlu0 %2044
  %2046 = vrot.lane.b32.xlu0 %v1497, 108
  %v2047 = vpop.permute.xlu0 %2046
  %2048 = vrot.lane.b32.xlu0 %v1498, 108
  %v2049 = vpop.permute.xlu0 %2048
  %2050 = vrot.lane.b32.xlu0 %v1499, 108
  %v2051 = vpop.permute.xlu0 %2050
  %2052 = vrot.lane.b32.xlu0 %v1500, 108
  %v2053 = vpop.permute.xlu0 %2052
  %2078 = vrot.lane.b32.xlu0 %v1477, 88
  %v2079 = vpop.permute.xlu0 %2078
  %2080 = vrot.lane.b32.xlu0 %v1478, 88
  %v2081 = vpop.permute.xlu0 %2080
  %2082 = vrot.lane.b32.xlu0 %v1479, 88
  %v2083 = vpop.permute.xlu0 %2082
  %2084 = vrot.lane.b32.xlu0 %v1480, 88
  %v2085 = vpop.permute.xlu0 %2084
  %2086 = vrot.lane.b32.xlu0 %v1481, 88
  %v2087 = vpop.permute.xlu0 %2086
  %2088 = vrot.lane.b32.xlu0 %v1482, 88
  %v2089 = vpop.permute.xlu0 %2088
  %2090 = vrot.lane.b32.xlu0 %v1483, 88
  %v2091 = vpop.permute.xlu0 %2090
  %2092 = vrot.lane.b32.xlu0 %v1484, 88
  %v2093 = vpop.permute.xlu0 %2092
  %2094 = vrot.lane.b32.xlu0 %v1485, 88
  %v2095 = vpop.permute.xlu0 %2094
  %2096 = vrot.lane.b32.xlu0 %v1486, 88
  %v2097 = vpop.permute.xlu0 %2096
  %2098 = vrot.lane.b32.xlu0 %v1487, 88
  %v2099 = vpop.permute.xlu0 %2098
  %2100 = vrot.lane.b32.xlu0 %v1488, 88
  %v2101 = vpop.permute.xlu0 %2100
  %2102 = vrot.lane.b32.xlu0 %v1489, 88
  %v2103 = vpop.permute.xlu0 %2102
  %2104 = vrot.lane.b32.xlu0 %v1490, 88
  %v2105 = vpop.permute.xlu0 %2104
  %2106 = vrot.lane.b32.xlu0 %v1491, 88
  %v2107 = vpop.permute.xlu0 %2106
  %2108 = vrot.lane.b32.xlu0 %v1492, 88
  %v2109 = vpop.permute.xlu0 %2108
  %2110 = vrot.lane.b32.xlu0 %v1493, 88
  %v2111 = vpop.permute.xlu0 %2110
  %2112 = vrot.lane.b32.xlu0 %v1494, 88
  %v2113 = vpop.permute.xlu0 %2112
  %2114 = vrot.lane.b32.xlu0 %v1495, 88
  %v2115 = vpop.permute.xlu0 %2114
  %2116 = vrot.lane.b32.xlu0 %v1496, 88
  %v2117 = vpop.permute.xlu0 %2116
  %2118 = vrot.lane.b32.xlu0 %v1497, 88
  %v2119 = vpop.permute.xlu0 %2118
  %2120 = vrot.lane.b32.xlu0 %v1498, 88
  %v2121 = vpop.permute.xlu0 %2120
  %2122 = vrot.lane.b32.xlu0 %v1499, 88
  %v2123 = vpop.permute.xlu0 %2122
  %2124 = vrot.lane.b32.xlu0 %v1500, 88
  %v2125 = vpop.permute.xlu0 %2124
  %2198 = vrot.lane.b32.xlu0 %v1597, 68
  %v2199 = vpop.permute.xlu0 %2198
  %2200 = vrot.lane.b32.xlu0 %v1598, 68
  %v2201 = vpop.permute.xlu0 %2200
  %2202 = vrot.lane.b32.xlu0 %v1599, 68
  %v2203 = vpop.permute.xlu0 %2202
  %2204 = vrot.lane.b32.xlu0 %v1600, 68
  %v2205 = vpop.permute.xlu0 %2204
  %2206 = vrot.lane.b32.xlu0 %v1601, 68
  %v2207 = vpop.permute.xlu0 %2206
  %2208 = vrot.lane.b32.xlu0 %v1602, 68
  %v2209 = vpop.permute.xlu0 %2208
  %2210 = vrot.lane.b32.xlu0 %v1603, 68
  %v2211 = vpop.permute.xlu0 %2210
  %2212 = vrot.lane.b32.xlu0 %v1604, 68
  %v2213 = vpop.permute.xlu0 %2212
  %2214 = vrot.lane.b32.xlu0 %v1605, 68
  %v2215 = vpop.permute.xlu0 %2214
  %2216 = vrot.lane.b32.xlu0 %v1606, 68
  %v2217 = vpop.permute.xlu0 %2216
  %2218 = vrot.lane.b32.xlu0 %v1607, 68
  %v2219 = vpop.permute.xlu0 %2218
  %2220 = vrot.lane.b32.xlu0 %v1608, 68
  %v2221 = vpop.permute.xlu0 %2220
  %2222 = vrot.lane.b32.xlu0 %v1609, 68
  %v2223 = vpop.permute.xlu0 %2222
  %2224 = vrot.lane.b32.xlu0 %v1610, 68
  %v2225 = vpop.permute.xlu0 %2224
  %2226 = vrot.lane.b32.xlu0 %v1611, 68
  %v2227 = vpop.permute.xlu0 %2226
  %2228 = vrot.lane.b32.xlu0 %v1612, 68
  %v2229 = vpop.permute.xlu0 %2228
  %2230 = vrot.lane.b32.xlu0 %v1613, 68
  %v2231 = vpop.permute.xlu0 %2230
  %2232 = vrot.lane.b32.xlu0 %v1614, 68
  %v2233 = vpop.permute.xlu0 %2232
  %2234 = vrot.lane.b32.xlu0 %v1615, 68
  %v2235 = vpop.permute.xlu0 %2234
  %2236 = vrot.lane.b32.xlu0 %v1616, 68
  %v2237 = vpop.permute.xlu0 %2236
  %2238 = vrot.lane.b32.xlu0 %v1617, 68
  %v2239 = vpop.permute.xlu0 %2238
  %2240 = vrot.lane.b32.xlu0 %v1618, 68
  %v2241 = vpop.permute.xlu0 %2240
  %2242 = vrot.lane.b32.xlu0 %v1619, 68
  %v2243 = vpop.permute.xlu0 %2242
  %2244 = vrot.lane.b32.xlu0 %v1620, 68
  %v2245 = vpop.permute.xlu0 %2244
  %2246 = vrot.lane.b32.xlu0 %v1621, 68
  %v2247 = vpop.permute.xlu0 %2246
  %2248 = vrot.lane.b32.xlu0 %v1622, 68
  %v2249 = vpop.permute.xlu0 %2248
  %2250 = vrot.lane.b32.xlu0 %v1623, 68
  %v2251 = vpop.permute.xlu0 %2250
  %2252 = vrot.lane.b32.xlu0 %v1624, 68
  %v2253 = vpop.permute.xlu0 %2252
  %2254 = vrot.lane.b32.xlu0 %v1625, 68
  %v2255 = vpop.permute.xlu0 %2254
  %2256 = vrot.lane.b32.xlu0 %v1626, 68
  %v2257 = vpop.permute.xlu0 %2256
  %2258 = vrot.lane.b32.xlu0 %v1627, 68
  %v2259 = vpop.permute.xlu0 %2258
  %2260 = vrot.lane.b32.xlu0 %v1628, 68
  %v2261 = vpop.permute.xlu0 %2260
  %2262 = vrot.lane.b32.xlu0 %v1629, 68
  %v2263 = vpop.permute.xlu0 %2262
  %2264 = vrot.lane.b32.xlu0 %v1630, 68
  %v2265 = vpop.permute.xlu0 %2264
  %2266 = vrot.lane.b32.xlu0 %v1631, 68
  %v2267 = vpop.permute.xlu0 %2266
  %2268 = vrot.lane.b32.xlu0 %v1632, 68
  %v2269 = vpop.permute.xlu0 %2268
  %2270 = vrot.lane.b32.xlu0 %v1633, 68
  %v2271 = vpop.permute.xlu0 %2270
  %2272 = vrot.lane.b32.xlu0 %v1634, 68
  %v2273 = vpop.permute.xlu0 %2272
  %2274 = vrot.lane.b32.xlu0 %v1635, 68
  %v2275 = vpop.permute.xlu0 %2274
  %2276 = vrot.lane.b32.xlu0 %v1636, 68
  %v2277 = vpop.permute.xlu0 %2276
  %2278 = vrot.lane.b32.xlu0 %v1637, 68
  %v2279 = vpop.permute.xlu0 %2278
  %2280 = vrot.lane.b32.xlu0 %v1638, 68
  %v2281 = vpop.permute.xlu0 %2280
  %2282 = vrot.lane.b32.xlu0 %v1639, 68
  %v2283 = vpop.permute.xlu0 %2282
  %2284 = vrot.lane.b32.xlu0 %v1640, 68
  %v2285 = vpop.permute.xlu0 %2284
  %2286 = vrot.lane.b32.xlu0 %v1641, 68
  %v2287 = vpop.permute.xlu0 %2286
  %2288 = vrot.lane.b32.xlu0 %v1642, 68
  %v2289 = vpop.permute.xlu0 %2288
  %2290 = vrot.lane.b32.xlu0 %v1643, 68
  %v2291 = vpop.permute.xlu0 %2290
  %2292 = vrot.lane.b32.xlu0 %v1644, 68
  %v2293 = vpop.permute.xlu0 %2292
  %vm2294 = vcmask 556032
  %v2295 = vsel %vm2294, %v2199, %v2201
  %v2296 = vsel %vm2294, %v2203, %v2205
  %v2297 = vsel %vm2294, %v2207, %v2209
  %v2298 = vsel %vm2294, %v2211, %v2213
  %v2299 = vsel %vm2294, %v2215, %v2217
  %v2300 = vsel %vm2294, %v2219, %v2221
  %v2301 = vsel %vm2294, %v2223, %v2225
  %v2302 = vsel %vm2294, %v2227, %v2229
  %v2303 = vsel %vm2294, %v2231, %v2233
  %v2304 = vsel %vm2294, %v2235, %v2237
  %v2305 = vsel %vm2294, %v2239, %v2241
  %v2306 = vsel %vm2294, %v2243, %v2245
  %v2307 = vsel %vm2294, %v2247, %v2249
  %v2308 = vsel %vm2294, %v2251, %v2253
  %v2309 = vsel %vm2294, %v2255, %v2257
  %v2310 = vsel %vm2294, %v2259, %v2261
  %v2311 = vsel %vm2294, %v2263, %v2265
  %v2312 = vsel %vm2294, %v2267, %v2269
  %v2313 = vsel %vm2294, %v2271, %v2273
  %v2314 = vsel %vm2294, %v2275, %v2277
  %v2315 = vsel %vm2294, %v2279, %v2281
  %v2316 = vsel %vm2294, %v2283, %v2285
  %v2317 = vsel %vm2294, %v2287, %v2289
  %v2318 = vsel %vm2294, %v2291, %v2293
  %2343 = vrot.lane.b32.xlu0 %v1598, 48
  %v2344 = vpop.permute.xlu0 %2343
  %2345 = vrot.lane.b32.xlu0 %v1600, 48
  %v2346 = vpop.permute.xlu0 %2345
  %2347 = vrot.lane.b32.xlu0 %v1602, 48
  %v2348 = vpop.permute.xlu0 %2347
  %2349 = vrot.lane.b32.xlu0 %v1604, 48
  %v2350 = vpop.permute.xlu0 %2349
  %2351 = vrot.lane.b32.xlu0 %v1606, 48
  %v2352 = vpop.permute.xlu0 %2351
  %2353 = vrot.lane.b32.xlu0 %v1608, 48
  %v2354 = vpop.permute.xlu0 %2353
  %2355 = vrot.lane.b32.xlu0 %v1610, 48
  %v2356 = vpop.permute.xlu0 %2355
  %2357 = vrot.lane.b32.xlu0 %v1612, 48
  %v2358 = vpop.permute.xlu0 %2357
  %2359 = vrot.lane.b32.xlu0 %v1614, 48
  %v2360 = vpop.permute.xlu0 %2359
  %2361 = vrot.lane.b32.xlu0 %v1616, 48
  %v2362 = vpop.permute.xlu0 %2361
  %2363 = vrot.lane.b32.xlu0 %v1618, 48
  %v2364 = vpop.permute.xlu0 %2363
  %2365 = vrot.lane.b32.xlu0 %v1620, 48
  %v2366 = vpop.permute.xlu0 %2365
  %2367 = vrot.lane.b32.xlu0 %v1622, 48
  %v2368 = vpop.permute.xlu0 %2367
  %2369 = vrot.lane.b32.xlu0 %v1624, 48
  %v2370 = vpop.permute.xlu0 %2369
  %2371 = vrot.lane.b32.xlu0 %v1626, 48
  %v2372 = vpop.permute.xlu0 %2371
  %2373 = vrot.lane.b32.xlu0 %v1628, 48
  %v2374 = vpop.permute.xlu0 %2373
  %2375 = vrot.lane.b32.xlu0 %v1630, 48
  %v2376 = vpop.permute.xlu0 %2375
  %2377 = vrot.lane.b32.xlu0 %v1632, 48
  %v2378 = vpop.permute.xlu0 %2377
  %2379 = vrot.lane.b32.xlu0 %v1634, 48
  %v2380 = vpop.permute.xlu0 %2379
  %2381 = vrot.lane.b32.xlu0 %v1636, 48
  %v2382 = vpop.permute.xlu0 %2381
  %2383 = vrot.lane.b32.xlu0 %v1638, 48
  %v2384 = vpop.permute.xlu0 %2383
  %2385 = vrot.lane.b32.xlu0 %v1640, 48
  %v2386 = vpop.permute.xlu0 %2385
  %2387 = vrot.lane.b32.xlu0 %v1642, 48
  %v2388 = vpop.permute.xlu0 %2387
  %2389 = vrot.lane.b32.xlu0 %v1644, 48
  %v2390 = vpop.permute.xlu0 %2389
  %2415 = vrot.lane.b32.xlu0 %v1598, 28
  %v2416 = vpop.permute.xlu0 %2415
  %2417 = vrot.lane.b32.xlu0 %v1600, 28
  %v2418 = vpop.permute.xlu0 %2417
  %2419 = vrot.lane.b32.xlu0 %v1602, 28
  %v2420 = vpop.permute.xlu0 %2419
  %2421 = vrot.lane.b32.xlu0 %v1604, 28
  %v2422 = vpop.permute.xlu0 %2421
  %2423 = vrot.lane.b32.xlu0 %v1606, 28
  %v2424 = vpop.permute.xlu0 %2423
  %2425 = vrot.lane.b32.xlu0 %v1608, 28
  %v2426 = vpop.permute.xlu0 %2425
  %2427 = vrot.lane.b32.xlu0 %v1610, 28
  %v2428 = vpop.permute.xlu0 %2427
  %2429 = vrot.lane.b32.xlu0 %v1612, 28
  %v2430 = vpop.permute.xlu0 %2429
  %2431 = vrot.lane.b32.xlu0 %v1614, 28
  %v2432 = vpop.permute.xlu0 %2431
  %2433 = vrot.lane.b32.xlu0 %v1616, 28
  %v2434 = vpop.permute.xlu0 %2433
  %2435 = vrot.lane.b32.xlu0 %v1618, 28
  %v2436 = vpop.permute.xlu0 %2435
  %2437 = vrot.lane.b32.xlu0 %v1620, 28
  %v2438 = vpop.permute.xlu0 %2437
  %2439 = vrot.lane.b32.xlu0 %v1622, 28
  %v2440 = vpop.permute.xlu0 %2439
  %2441 = vrot.lane.b32.xlu0 %v1624, 28
  %v2442 = vpop.permute.xlu0 %2441
  %2443 = vrot.lane.b32.xlu0 %v1626, 28
  %v2444 = vpop.permute.xlu0 %2443
  %2445 = vrot.lane.b32.xlu0 %v1628, 28
  %v2446 = vpop.permute.xlu0 %2445
  %2447 = vrot.lane.b32.xlu0 %v1630, 28
  %v2448 = vpop.permute.xlu0 %2447
  %2449 = vrot.lane.b32.xlu0 %v1632, 28
  %v2450 = vpop.permute.xlu0 %2449
  %2451 = vrot.lane.b32.xlu0 %v1634, 28
  %v2452 = vpop.permute.xlu0 %2451
  %2453 = vrot.lane.b32.xlu0 %v1636, 28
  %v2454 = vpop.permute.xlu0 %2453
  %2455 = vrot.lane.b32.xlu0 %v1638, 28
  %v2456 = vpop.permute.xlu0 %2455
  %2457 = vrot.lane.b32.xlu0 %v1640, 28
  %v2458 = vpop.permute.xlu0 %2457
  %2459 = vrot.lane.b32.xlu0 %v1642, 28
  %v2460 = vpop.permute.xlu0 %2459
  %2461 = vrot.lane.b32.xlu0 %v1644, 28
  %v2462 = vpop.permute.xlu0 %2461
  %2535 = vrot.lane.b32.xlu0 %v1741, 8
  %v2536 = vpop.permute.xlu0 %2535
  %2537 = vrot.lane.b32.xlu0 %v1742, 8
  %v2538 = vpop.permute.xlu0 %2537
  %2539 = vrot.lane.b32.xlu0 %v1743, 8
  %v2540 = vpop.permute.xlu0 %2539
  %2541 = vrot.lane.b32.xlu0 %v1744, 8
  %v2542 = vpop.permute.xlu0 %2541
  %2543 = vrot.lane.b32.xlu0 %v1745, 8
  %v2544 = vpop.permute.xlu0 %2543
  %2545 = vrot.lane.b32.xlu0 %v1746, 8
  %v2546 = vpop.permute.xlu0 %2545
  %2547 = vrot.lane.b32.xlu0 %v1747, 8
  %v2548 = vpop.permute.xlu0 %2547
  %2549 = vrot.lane.b32.xlu0 %v1748, 8
  %v2550 = vpop.permute.xlu0 %2549
  %2551 = vrot.lane.b32.xlu0 %v1749, 8
  %v2552 = vpop.permute.xlu0 %2551
  %2553 = vrot.lane.b32.xlu0 %v1750, 8
  %v2554 = vpop.permute.xlu0 %2553
  %2555 = vrot.lane.b32.xlu0 %v1751, 8
  %v2556 = vpop.permute.xlu0 %2555
  %2557 = vrot.lane.b32.xlu0 %v1752, 8
  %v2558 = vpop.permute.xlu0 %2557
  %2559 = vrot.lane.b32.xlu0 %v1753, 8
  %v2560 = vpop.permute.xlu0 %2559
  %2561 = vrot.lane.b32.xlu0 %v1754, 8
  %v2562 = vpop.permute.xlu0 %2561
  %2563 = vrot.lane.b32.xlu0 %v1755, 8
  %v2564 = vpop.permute.xlu0 %2563
  %2565 = vrot.lane.b32.xlu0 %v1756, 8
  %v2566 = vpop.permute.xlu0 %2565
  %2567 = vrot.lane.b32.xlu0 %v1757, 8
  %v2568 = vpop.permute.xlu0 %2567
  %2569 = vrot.lane.b32.xlu0 %v1758, 8
  %v2570 = vpop.permute.xlu0 %2569
  %2571 = vrot.lane.b32.xlu0 %v1759, 8
  %v2572 = vpop.permute.xlu0 %2571
  %2573 = vrot.lane.b32.xlu0 %v1760, 8
  %v2574 = vpop.permute.xlu0 %2573
  %2575 = vrot.lane.b32.xlu0 %v1761, 8
  %v2576 = vpop.permute.xlu0 %2575
  %2577 = vrot.lane.b32.xlu0 %v1762, 8
  %v2578 = vpop.permute.xlu0 %2577
  %2579 = vrot.lane.b32.xlu0 %v1763, 8
  %v2580 = vpop.permute.xlu0 %2579
  %2581 = vrot.lane.b32.xlu0 %v1764, 8
  %v2582 = vpop.permute.xlu0 %2581
  %2583 = vrot.lane.b32.xlu0 %v1765, 8
  %v2584 = vpop.permute.xlu0 %2583
  %2585 = vrot.lane.b32.xlu0 %v1766, 8
  %v2586 = vpop.permute.xlu0 %2585
  %2587 = vrot.lane.b32.xlu0 %v1767, 8
  %v2588 = vpop.permute.xlu0 %2587
  %2589 = vrot.lane.b32.xlu0 %v1768, 8
  %v2590 = vpop.permute.xlu0 %2589
  %2591 = vrot.lane.b32.xlu0 %v1769, 8
  %v2592 = vpop.permute.xlu0 %2591
  %2593 = vrot.lane.b32.xlu0 %v1770, 8
  %v2594 = vpop.permute.xlu0 %2593
  %2595 = vrot.lane.b32.xlu0 %v1771, 8
  %v2596 = vpop.permute.xlu0 %2595
  %2597 = vrot.lane.b32.xlu0 %v1772, 8
  %v2598 = vpop.permute.xlu0 %2597
  %2599 = vrot.lane.b32.xlu0 %v1773, 8
  %v2600 = vpop.permute.xlu0 %2599
  %2601 = vrot.lane.b32.xlu0 %v1774, 8
  %v2602 = vpop.permute.xlu0 %2601
  %2603 = vrot.lane.b32.xlu0 %v1775, 8
  %v2604 = vpop.permute.xlu0 %2603
  %2605 = vrot.lane.b32.xlu0 %v1776, 8
  %v2606 = vpop.permute.xlu0 %2605
  %2607 = vrot.lane.b32.xlu0 %v1777, 8
  %v2608 = vpop.permute.xlu0 %2607
  %2609 = vrot.lane.b32.xlu0 %v1778, 8
  %v2610 = vpop.permute.xlu0 %2609
  %2611 = vrot.lane.b32.xlu0 %v1779, 8
  %v2612 = vpop.permute.xlu0 %2611
  %2613 = vrot.lane.b32.xlu0 %v1780, 8
  %v2614 = vpop.permute.xlu0 %2613
  %2615 = vrot.lane.b32.xlu0 %v1781, 8
  %v2616 = vpop.permute.xlu0 %2615
  %2617 = vrot.lane.b32.xlu0 %v1782, 8
  %v2618 = vpop.permute.xlu0 %2617
  %2619 = vrot.lane.b32.xlu0 %v1783, 8
  %v2620 = vpop.permute.xlu0 %2619
  %2621 = vrot.lane.b32.xlu0 %v1784, 8
  %v2622 = vpop.permute.xlu0 %2621
  %2623 = vrot.lane.b32.xlu0 %v1785, 8
  %v2624 = vpop.permute.xlu0 %2623
  %2625 = vrot.lane.b32.xlu0 %v1786, 8
  %v2626 = vpop.permute.xlu0 %2625
  %2627 = vrot.lane.b32.xlu0 %v1787, 8
  %v2628 = vpop.permute.xlu0 %2627
  %2629 = vrot.lane.b32.xlu0 %v1788, 8
  %v2630 = vpop.permute.xlu0 %2629
  %vm2631 = vcmask 64512
  %v2632 = vsel %vm2631, %v2536, %v2538
  %v2633 = vsel %vm2631, %v2540, %v2542
  %v2634 = vsel %vm2631, %v2544, %v2546
  %v2635 = vsel %vm2631, %v2548, %v2550
  %v2636 = vsel %vm2631, %v2552, %v2554
  %v2637 = vsel %vm2631, %v2556, %v2558
  %v2638 = vsel %vm2631, %v2560, %v2562
  %v2639 = vsel %vm2631, %v2564, %v2566
  %v2640 = vsel %vm2631, %v2568, %v2570
  %v2641 = vsel %vm2631, %v2572, %v2574
  %v2642 = vsel %vm2631, %v2576, %v2578
  %v2643 = vsel %vm2631, %v2580, %v2582
  %v2644 = vsel %vm2631, %v2584, %v2586
  %v2645 = vsel %vm2631, %v2588, %v2590
  %v2646 = vsel %vm2631, %v2592, %v2594
  %v2647 = vsel %vm2631, %v2596, %v2598
  %v2648 = vsel %vm2631, %v2600, %v2602
  %v2649 = vsel %vm2631, %v2604, %v2606
  %v2650 = vsel %vm2631, %v2608, %v2610
  %v2651 = vsel %vm2631, %v2612, %v2614
  %v2652 = vsel %vm2631, %v2616, %v2618
  %v2653 = vsel %vm2631, %v2620, %v2622
  %v2654 = vsel %vm2631, %v2624, %v2626
  %v2655 = vsel %vm2631, %v2628, %v2630
  %2704 = vrot.lane.b32.xlu0 %v1742, 116
  %v2705 = vpop.permute.xlu0 %2704
  %2706 = vrot.lane.b32.xlu0 %v1744, 116
  %v2707 = vpop.permute.xlu0 %2706
  %2708 = vrot.lane.b32.xlu0 %v1746, 116
  %v2709 = vpop.permute.xlu0 %2708
  %2710 = vrot.lane.b32.xlu0 %v1748, 116
  %v2711 = vpop.permute.xlu0 %2710
  %2712 = vrot.lane.b32.xlu0 %v1750, 116
  %v2713 = vpop.permute.xlu0 %2712
  %2714 = vrot.lane.b32.xlu0 %v1752, 116
  %v2715 = vpop.permute.xlu0 %2714
  %2716 = vrot.lane.b32.xlu0 %v1754, 116
  %v2717 = vpop.permute.xlu0 %2716
  %2718 = vrot.lane.b32.xlu0 %v1756, 116
  %v2719 = vpop.permute.xlu0 %2718
  %2720 = vrot.lane.b32.xlu0 %v1758, 116
  %v2721 = vpop.permute.xlu0 %2720
  %2722 = vrot.lane.b32.xlu0 %v1760, 116
  %v2723 = vpop.permute.xlu0 %2722
  %2724 = vrot.lane.b32.xlu0 %v1762, 116
  %v2725 = vpop.permute.xlu0 %2724
  %2726 = vrot.lane.b32.xlu0 %v1764, 116
  %v2727 = vpop.permute.xlu0 %2726
  %2728 = vrot.lane.b32.xlu0 %v1766, 116
  %v2729 = vpop.permute.xlu0 %2728
  %2730 = vrot.lane.b32.xlu0 %v1768, 116
  %v2731 = vpop.permute.xlu0 %2730
  %2732 = vrot.lane.b32.xlu0 %v1770, 116
  %v2733 = vpop.permute.xlu0 %2732
  %2734 = vrot.lane.b32.xlu0 %v1772, 116
  %v2735 = vpop.permute.xlu0 %2734
  %2736 = vrot.lane.b32.xlu0 %v1774, 116
  %v2737 = vpop.permute.xlu0 %2736
  %2738 = vrot.lane.b32.xlu0 %v1776, 116
  %v2739 = vpop.permute.xlu0 %2738
  %2740 = vrot.lane.b32.xlu0 %v1778, 116
  %v2741 = vpop.permute.xlu0 %2740
  %2742 = vrot.lane.b32.xlu0 %v1780, 116
  %v2743 = vpop.permute.xlu0 %2742
  %2744 = vrot.lane.b32.xlu0 %v1782, 116
  %v2745 = vpop.permute.xlu0 %2744
  %2746 = vrot.lane.b32.xlu0 %v1784, 116
  %v2747 = vpop.permute.xlu0 %2746
  %2748 = vrot.lane.b32.xlu0 %v1786, 116
  %v2749 = vpop.permute.xlu0 %2748
  %2750 = vrot.lane.b32.xlu0 %v1788, 116
  %v2751 = vpop.permute.xlu0 %2750
  %2776 = vrot.lane.b32.xlu0 %v1742, 96
  %v2777 = vpop.permute.xlu0 %2776
  %2778 = vrot.lane.b32.xlu0 %v1744, 96
  %v2779 = vpop.permute.xlu0 %2778
  %2780 = vrot.lane.b32.xlu0 %v1746, 96
  %v2781 = vpop.permute.xlu0 %2780
  %2782 = vrot.lane.b32.xlu0 %v1748, 96
  %v2783 = vpop.permute.xlu0 %2782
  %2784 = vrot.lane.b32.xlu0 %v1750, 96
  %v2785 = vpop.permute.xlu0 %2784
  %2786 = vrot.lane.b32.xlu0 %v1752, 96
  %v2787 = vpop.permute.xlu0 %2786
  %2788 = vrot.lane.b32.xlu0 %v1754, 96
  %v2789 = vpop.permute.xlu0 %2788
  %2790 = vrot.lane.b32.xlu0 %v1756, 96
  %v2791 = vpop.permute.xlu0 %2790
  %2792 = vrot.lane.b32.xlu0 %v1758, 96
  %v2793 = vpop.permute.xlu0 %2792
  %2794 = vrot.lane.b32.xlu0 %v1760, 96
  %v2795 = vpop.permute.xlu0 %2794
  %2796 = vrot.lane.b32.xlu0 %v1762, 96
  %v2797 = vpop.permute.xlu0 %2796
  %2798 = vrot.lane.b32.xlu0 %v1764, 96
  %v2799 = vpop.permute.xlu0 %2798
  %2800 = vrot.lane.b32.xlu0 %v1766, 96
  %v2801 = vpop.permute.xlu0 %2800
  %2802 = vrot.lane.b32.xlu0 %v1768, 96
  %v2803 = vpop.permute.xlu0 %2802
  %2804 = vrot.lane.b32.xlu0 %v1770, 96
  %v2805 = vpop.permute.xlu0 %2804
  %2806 = vrot.lane.b32.xlu0 %v1772, 96
  %v2807 = vpop.permute.xlu0 %2806
  %2808 = vrot.lane.b32.xlu0 %v1774, 96
  %v2809 = vpop.permute.xlu0 %2808
  %2810 = vrot.lane.b32.xlu0 %v1776, 96
  %v2811 = vpop.permute.xlu0 %2810
  %2812 = vrot.lane.b32.xlu0 %v1778, 96
  %v2813 = vpop.permute.xlu0 %2812
  %2814 = vrot.lane.b32.xlu0 %v1780, 96
  %v2815 = vpop.permute.xlu0 %2814
  %2816 = vrot.lane.b32.xlu0 %v1782, 96
  %v2817 = vpop.permute.xlu0 %2816
  %2818 = vrot.lane.b32.xlu0 %v1784, 96
  %v2819 = vpop.permute.xlu0 %2818
  %2820 = vrot.lane.b32.xlu0 %v1786, 96
  %v2821 = vpop.permute.xlu0 %2820
  %2822 = vrot.lane.b32.xlu0 %v1788, 96
  %v2823 = vpop.permute.xlu0 %2822
  %2872 = vrot.lane.b32.xlu0 %v1910, 76
  %v2873 = vpop.permute.xlu0 %2872
  %2874 = vrot.lane.b32.xlu0 %v1911, 76
  %v2875 = vpop.permute.xlu0 %2874
  %2876 = vrot.lane.b32.xlu0 %v1912, 76
  %v2877 = vpop.permute.xlu0 %2876
  %2878 = vrot.lane.b32.xlu0 %v1913, 76
  %v2879 = vpop.permute.xlu0 %2878
  %2880 = vrot.lane.b32.xlu0 %v1914, 76
  %v2881 = vpop.permute.xlu0 %2880
  %2882 = vrot.lane.b32.xlu0 %v1915, 76
  %v2883 = vpop.permute.xlu0 %2882
  %2884 = vrot.lane.b32.xlu0 %v1916, 76
  %v2885 = vpop.permute.xlu0 %2884
  %2886 = vrot.lane.b32.xlu0 %v1917, 76
  %v2887 = vpop.permute.xlu0 %2886
  %2888 = vrot.lane.b32.xlu0 %v1918, 76
  %v2889 = vpop.permute.xlu0 %2888
  %2890 = vrot.lane.b32.xlu0 %v1919, 76
  %v2891 = vpop.permute.xlu0 %2890
  %2892 = vrot.lane.b32.xlu0 %v1920, 76
  %v2893 = vpop.permute.xlu0 %2892
  %2894 = vrot.lane.b32.xlu0 %v1921, 76
  %v2895 = vpop.permute.xlu0 %2894
  %2896 = vrot.lane.b32.xlu0 %v1922, 76
  %v2897 = vpop.permute.xlu0 %2896
  %2898 = vrot.lane.b32.xlu0 %v1923, 76
  %v2899 = vpop.permute.xlu0 %2898
  %2900 = vrot.lane.b32.xlu0 %v1924, 76
  %v2901 = vpop.permute.xlu0 %2900
  %2902 = vrot.lane.b32.xlu0 %v1925, 76
  %v2903 = vpop.permute.xlu0 %2902
  %2904 = vrot.lane.b32.xlu0 %v1926, 76
  %v2905 = vpop.permute.xlu0 %2904
  %2906 = vrot.lane.b32.xlu0 %v1927, 76
  %v2907 = vpop.permute.xlu0 %2906
  %2908 = vrot.lane.b32.xlu0 %v1928, 76
  %v2909 = vpop.permute.xlu0 %2908
  %2910 = vrot.lane.b32.xlu0 %v1929, 76
  %v2911 = vpop.permute.xlu0 %2910
  %2912 = vrot.lane.b32.xlu0 %v1930, 76
  %v2913 = vpop.permute.xlu0 %2912
  %2914 = vrot.lane.b32.xlu0 %v1931, 76
  %v2915 = vpop.permute.xlu0 %2914
  %2916 = vrot.lane.b32.xlu0 %v1932, 76
  %v2917 = vpop.permute.xlu0 %2916
  %2918 = vrot.lane.b32.xlu0 %v1933, 76
  %v2919 = vpop.permute.xlu0 %2918
  %2968 = vrot.lane.b32.xlu0 %v1958, 56
  %v2969 = vpop.permute.xlu0 %2968
  %2970 = vrot.lane.b32.xlu0 %v1959, 56
  %v2971 = vpop.permute.xlu0 %2970
  %2972 = vrot.lane.b32.xlu0 %v1960, 56
  %v2973 = vpop.permute.xlu0 %2972
  %2974 = vrot.lane.b32.xlu0 %v1961, 56
  %v2975 = vpop.permute.xlu0 %2974
  %2976 = vrot.lane.b32.xlu0 %v1962, 56
  %v2977 = vpop.permute.xlu0 %2976
  %2978 = vrot.lane.b32.xlu0 %v1963, 56
  %v2979 = vpop.permute.xlu0 %2978
  %2980 = vrot.lane.b32.xlu0 %v1964, 56
  %v2981 = vpop.permute.xlu0 %2980
  %2982 = vrot.lane.b32.xlu0 %v1965, 56
  %v2983 = vpop.permute.xlu0 %2982
  %2984 = vrot.lane.b32.xlu0 %v1966, 56
  %v2985 = vpop.permute.xlu0 %2984
  %2986 = vrot.lane.b32.xlu0 %v1967, 56
  %v2987 = vpop.permute.xlu0 %2986
  %2988 = vrot.lane.b32.xlu0 %v1968, 56
  %v2989 = vpop.permute.xlu0 %2988
  %2990 = vrot.lane.b32.xlu0 %v1969, 56
  %v2991 = vpop.permute.xlu0 %2990
  %2992 = vrot.lane.b32.xlu0 %v1970, 56
  %v2993 = vpop.permute.xlu0 %2992
  %2994 = vrot.lane.b32.xlu0 %v1971, 56
  %v2995 = vpop.permute.xlu0 %2994
  %2996 = vrot.lane.b32.xlu0 %v1972, 56
  %v2997 = vpop.permute.xlu0 %2996
  %2998 = vrot.lane.b32.xlu0 %v1973, 56
  %v2999 = vpop.permute.xlu0 %2998
  %3000 = vrot.lane.b32.xlu0 %v1974, 56
  %v3001 = vpop.permute.xlu0 %3000
  %3002 = vrot.lane.b32.xlu0 %v1975, 56
  %v3003 = vpop.permute.xlu0 %3002
  %3004 = vrot.lane.b32.xlu0 %v1976, 56
  %v3005 = vpop.permute.xlu0 %3004
  %3006 = vrot.lane.b32.xlu0 %v1977, 56
  %v3007 = vpop.permute.xlu0 %3006
  %3008 = vrot.lane.b32.xlu0 %v1978, 56
  %v3009 = vpop.permute.xlu0 %3008
  %3010 = vrot.lane.b32.xlu0 %v1979, 56
  %v3011 = vpop.permute.xlu0 %3010
  %3012 = vrot.lane.b32.xlu0 %v1980, 56
  %v3013 = vpop.permute.xlu0 %3012
  %3014 = vrot.lane.b32.xlu0 %v1981, 56
  %v3015 = vpop.permute.xlu0 %3014
  %3040 = vrot.lane.b32.xlu0 %v1958, 36
  %v3041 = vpop.permute.xlu0 %3040
  %3042 = vrot.lane.b32.xlu0 %v1959, 36
  %v3043 = vpop.permute.xlu0 %3042
  %3044 = vrot.lane.b32.xlu0 %v1960, 36
  %v3045 = vpop.permute.xlu0 %3044
  %3046 = vrot.lane.b32.xlu0 %v1961, 36
  %v3047 = vpop.permute.xlu0 %3046
  %3048 = vrot.lane.b32.xlu0 %v1962, 36
  %v3049 = vpop.permute.xlu0 %3048
  %3050 = vrot.lane.b32.xlu0 %v1963, 36
  %v3051 = vpop.permute.xlu0 %3050
  %3052 = vrot.lane.b32.xlu0 %v1964, 36
  %v3053 = vpop.permute.xlu0 %3052
  %3054 = vrot.lane.b32.xlu0 %v1965, 36
  %v3055 = vpop.permute.xlu0 %3054
  %3056 = vrot.lane.b32.xlu0 %v1966, 36
  %v3057 = vpop.permute.xlu0 %3056
  %3058 = vrot.lane.b32.xlu0 %v1967, 36
  %v3059 = vpop.permute.xlu0 %3058
  %3060 = vrot.lane.b32.xlu0 %v1968, 36
  %v3061 = vpop.permute.xlu0 %3060
  %3062 = vrot.lane.b32.xlu0 %v1969, 36
  %v3063 = vpop.permute.xlu0 %3062
  %3064 = vrot.lane.b32.xlu0 %v1970, 36
  %v3065 = vpop.permute.xlu0 %3064
  %3066 = vrot.lane.b32.xlu0 %v1971, 36
  %v3067 = vpop.permute.xlu0 %3066
  %3068 = vrot.lane.b32.xlu0 %v1972, 36
  %v3069 = vpop.permute.xlu0 %3068
  %3070 = vrot.lane.b32.xlu0 %v1973, 36
  %v3071 = vpop.permute.xlu0 %3070
  %3072 = vrot.lane.b32.xlu0 %v1974, 36
  %v3073 = vpop.permute.xlu0 %3072
  %3074 = vrot.lane.b32.xlu0 %v1975, 36
  %v3075 = vpop.permute.xlu0 %3074
  %3076 = vrot.lane.b32.xlu0 %v1976, 36
  %v3077 = vpop.permute.xlu0 %3076
  %3078 = vrot.lane.b32.xlu0 %v1977, 36
  %v3079 = vpop.permute.xlu0 %3078
  %3080 = vrot.lane.b32.xlu0 %v1978, 36
  %v3081 = vpop.permute.xlu0 %3080
  %3082 = vrot.lane.b32.xlu0 %v1979, 36
  %v3083 = vpop.permute.xlu0 %3082
  %3084 = vrot.lane.b32.xlu0 %v1980, 36
  %v3085 = vpop.permute.xlu0 %3084
  %3086 = vrot.lane.b32.xlu0 %v1981, 36
  %v3087 = vpop.permute.xlu0 %3086
  %vm3112 = vcmask 162816
  %v3113 = vsel %vm3112, %v1477, %v2007
  %v3114 = vsel %vm3112, %v1478, %v2009
  %v3115 = vsel %vm3112, %v1479, %v2011
  %v3116 = vsel %vm3112, %v1480, %v2013
  %v3117 = vsel %vm3112, %v1481, %v2015
  %v3118 = vsel %vm3112, %v1482, %v2017
  %v3119 = vsel %vm3112, %v1483, %v2019
  %v3120 = vsel %vm3112, %v1484, %v2021
  %v3121 = vsel %vm3112, %v1485, %v2023
  %v3122 = vsel %vm3112, %v1486, %v2025
  %v3123 = vsel %vm3112, %v1487, %v2027
  %v3124 = vsel %vm3112, %v1488, %v2029
  %v3125 = vsel %vm3112, %v1489, %v2031
  %v3126 = vsel %vm3112, %v1490, %v2033
  %v3127 = vsel %vm3112, %v1491, %v2035
  %v3128 = vsel %vm3112, %v1492, %v2037
  %v3129 = vsel %vm3112, %v1493, %v2039
  %v3130 = vsel %vm3112, %v1494, %v2041
  %v3131 = vsel %vm3112, %v1495, %v2043
  %v3132 = vsel %vm3112, %v1496, %v2045
  %v3133 = vsel %vm3112, %v1497, %v2047
  %v3134 = vsel %vm3112, %v1498, %v2049
  %v3135 = vsel %vm3112, %v1499, %v2051
  %v3136 = vsel %vm3112, %v1500, %v2053
  %vm3137 = vcmask 326656
  %v3138 = vsel %vm3137, %v3113, %v2079
  %v3139 = vsel %vm3137, %v3114, %v2081
  %v3140 = vsel %vm3137, %v3115, %v2083
  %v3141 = vsel %vm3137, %v3116, %v2085
  %v3142 = vsel %vm3137, %v3117, %v2087
  %v3143 = vsel %vm3137, %v3118, %v2089
  %v3144 = vsel %vm3137, %v3119, %v2091
  %v3145 = vsel %vm3137, %v3120, %v2093
  %v3146 = vsel %vm3137, %v3121, %v2095
  %v3147 = vsel %vm3137, %v3122, %v2097
  %v3148 = vsel %vm3137, %v3123, %v2099
  %v3149 = vsel %vm3137, %v3124, %v2101
  %v3150 = vsel %vm3137, %v3125, %v2103
  %v3151 = vsel %vm3137, %v3126, %v2105
  %v3152 = vsel %vm3137, %v3127, %v2107
  %v3153 = vsel %vm3137, %v3128, %v2109
  %v3154 = vsel %vm3137, %v3129, %v2111
  %v3155 = vsel %vm3137, %v3130, %v2113
  %v3156 = vsel %vm3137, %v3131, %v2115
  %v3157 = vsel %vm3137, %v3132, %v2117
  %v3158 = vsel %vm3137, %v3133, %v2119
  %v3159 = vsel %vm3137, %v3134, %v2121
  %v3160 = vsel %vm3137, %v3135, %v2123
  %v3161 = vsel %vm3137, %v3136, %v2125
  %vm3162 = vcmask 490496
  %v3163 = vsel %vm3162, %v3138, %v2295
  %v3164 = vsel %vm3162, %v3139, %v2296
  %v3165 = vsel %vm3162, %v3140, %v2297
  %v3166 = vsel %vm3162, %v3141, %v2298
  %v3167 = vsel %vm3162, %v3142, %v2299
  %v3168 = vsel %vm3162, %v3143, %v2300
  %v3169 = vsel %vm3162, %v3144, %v2301
  %v3170 = vsel %vm3162, %v3145, %v2302
  %v3171 = vsel %vm3162, %v3146, %v2303
  %v3172 = vsel %vm3162, %v3147, %v2304
  %v3173 = vsel %vm3162, %v3148, %v2305
  %v3174 = vsel %vm3162, %v3149, %v2306
  %v3175 = vsel %vm3162, %v3150, %v2307
  %v3176 = vsel %vm3162, %v3151, %v2308
  %v3177 = vsel %vm3162, %v3152, %v2309
  %v3178 = vsel %vm3162, %v3153, %v2310
  %v3179 = vsel %vm3162, %v3154, %v2311
  %v3180 = vsel %vm3162, %v3155, %v2312
  %v3181 = vsel %vm3162, %v3156, %v2313
  %v3182 = vsel %vm3162, %v3157, %v2314
  %v3183 = vsel %vm3162, %v3158, %v2315
  %v3184 = vsel %vm3162, %v3159, %v2316
  %v3185 = vsel %vm3162, %v3160, %v2317
  %v3186 = vsel %vm3162, %v3161, %v2318
  %vm3187 = vcmask 654336
  %v3188 = vsel %vm3187, %v3163, %v2344
  %v3189 = vsel %vm3187, %v3164, %v2346
  %v3190 = vsel %vm3187, %v3165, %v2348
  %v3191 = vsel %vm3187, %v3166, %v2350
  %v3192 = vsel %vm3187, %v3167, %v2352
  %v3193 = vsel %vm3187, %v3168, %v2354
  %v3194 = vsel %vm3187, %v3169, %v2356
  %v3195 = vsel %vm3187, %v3170, %v2358
  %v3196 = vsel %vm3187, %v3171, %v2360
  %v3197 = vsel %vm3187, %v3172, %v2362
  %v3198 = vsel %vm3187, %v3173, %v2364
  %v3199 = vsel %vm3187, %v3174, %v2366
  %v3200 = vsel %vm3187, %v3175, %v2368
  %v3201 = vsel %vm3187, %v3176, %v2370
  %v3202 = vsel %vm3187, %v3177, %v2372
  %v3203 = vsel %vm3187, %v3178, %v2374
  %v3204 = vsel %vm3187, %v3179, %v2376
  %v3205 = vsel %vm3187, %v3180, %v2378
  %v3206 = vsel %vm3187, %v3181, %v2380
  %v3207 = vsel %vm3187, %v3182, %v2382
  %v3208 = vsel %vm3187, %v3183, %v2384
  %v3209 = vsel %vm3187, %v3184, %v2386
  %v3210 = vsel %vm3187, %v3185, %v2388
  %v3211 = vsel %vm3187, %v3186, %v2390
  %vm3212 = vcmask 818176
  %v3213 = vsel %vm3212, %v3188, %v2416
  %v3214 = vsel %vm3212, %v3189, %v2418
  %v3215 = vsel %vm3212, %v3190, %v2420
  %v3216 = vsel %vm3212, %v3191, %v2422
  %v3217 = vsel %vm3212, %v3192, %v2424
  %v3218 = vsel %vm3212, %v3193, %v2426
  %v3219 = vsel %vm3212, %v3194, %v2428
  %v3220 = vsel %vm3212, %v3195, %v2430
  %v3221 = vsel %vm3212, %v3196, %v2432
  %v3222 = vsel %vm3212, %v3197, %v2434
  %v3223 = vsel %vm3212, %v3198, %v2436
  %v3224 = vsel %vm3212, %v3199, %v2438
  %v3225 = vsel %vm3212, %v3200, %v2440
  %v3226 = vsel %vm3212, %v3201, %v2442
  %v3227 = vsel %vm3212, %v3202, %v2444
  %v3228 = vsel %vm3212, %v3203, %v2446
  %v3229 = vsel %vm3212, %v3204, %v2448
  %v3230 = vsel %vm3212, %v3205, %v2450
  %v3231 = vsel %vm3212, %v3206, %v2452
  %v3232 = vsel %vm3212, %v3207, %v2454
  %v3233 = vsel %vm3212, %v3208, %v2456
  %v3234 = vsel %vm3212, %v3209, %v2458
  %v3235 = vsel %vm3212, %v3210, %v2460
  %v3236 = vsel %vm3212, %v3211, %v2462
  %vm3237 = vcmask 982016
  %v3238 = vsel %vm3237, %v3213, %v2536
  %v3239 = vsel %vm3237, %v3214, %v2540
  %v3240 = vsel %vm3237, %v3215, %v2544
  %v3241 = vsel %vm3237, %v3216, %v2548
  %v3242 = vsel %vm3237, %v3217, %v2552
  %v3243 = vsel %vm3237, %v3218, %v2556
  %v3244 = vsel %vm3237, %v3219, %v2560
  %v3245 = vsel %vm3237, %v3220, %v2564
  %v3246 = vsel %vm3237, %v3221, %v2568
  %v3247 = vsel %vm3237, %v3222, %v2572
  %v3248 = vsel %vm3237, %v3223, %v2576
  %v3249 = vsel %vm3237, %v3224, %v2580
  %v3250 = vsel %vm3237, %v3225, %v2584
  %v3251 = vsel %vm3237, %v3226, %v2588
  %v3252 = vsel %vm3237, %v3227, %v2592
  %v3253 = vsel %vm3237, %v3228, %v2596
  %v3254 = vsel %vm3237, %v3229, %v2600
  %v3255 = vsel %vm3237, %v3230, %v2604
  %v3256 = vsel %vm3237, %v3231, %v2608
  %v3257 = vsel %vm3237, %v3232, %v2612
  %v3258 = vsel %vm3237, %v3233, %v2616
  %v3259 = vsel %vm3237, %v3234, %v2620
  %v3260 = vsel %vm3237, %v3235, %v2624
  %v3261 = vsel %vm3237, %v3236, %v2628
  %v3262 = vsel %vm806, %v2632, %v2705
  %v3263 = vsel %vm806, %v2633, %v2707
  %v3264 = vsel %vm806, %v2634, %v2709
  %v3265 = vsel %vm806, %v2635, %v2711
  %v3266 = vsel %vm806, %v2636, %v2713
  %v3267 = vsel %vm806, %v2637, %v2715
  %v3268 = vsel %vm806, %v2638, %v2717
  %v3269 = vsel %vm806, %v2639, %v2719
  %v3270 = vsel %vm806, %v2640, %v2721
  %v3271 = vsel %vm806, %v2641, %v2723
  %v3272 = vsel %vm806, %v2642, %v2725
  %v3273 = vsel %vm806, %v2643, %v2727
  %v3274 = vsel %vm806, %v2644, %v2729
  %v3275 = vsel %vm806, %v2645, %v2731
  %v3276 = vsel %vm806, %v2646, %v2733
  %v3277 = vsel %vm806, %v2647, %v2735
  %v3278 = vsel %vm806, %v2648, %v2737
  %v3279 = vsel %vm806, %v2649, %v2739
  %v3280 = vsel %vm806, %v2650, %v2741
  %v3281 = vsel %vm806, %v2651, %v2743
  %v3282 = vsel %vm806, %v2652, %v2745
  %v3283 = vsel %vm806, %v2653, %v2747
  %v3284 = vsel %vm806, %v2654, %v2749
  %v3285 = vsel %vm806, %v2655, %v2751
  %vm3286 = vcmask 261120
  %v3287 = vsel %vm3286, %v3262, %v2777
  %v3288 = vsel %vm3286, %v3263, %v2779
  %v3289 = vsel %vm3286, %v3264, %v2781
  %v3290 = vsel %vm3286, %v3265, %v2783
  %v3291 = vsel %vm3286, %v3266, %v2785
  %v3292 = vsel %vm3286, %v3267, %v2787
  %v3293 = vsel %vm3286, %v3268, %v2789
  %v3294 = vsel %vm3286, %v3269, %v2791
  %v3295 = vsel %vm3286, %v3270, %v2793
  %v3296 = vsel %vm3286, %v3271, %v2795
  %v3297 = vsel %vm3286, %v3272, %v2797
  %v3298 = vsel %vm3286, %v3273, %v2799
  %v3299 = vsel %vm3286, %v3274, %v2801
  %v3300 = vsel %vm3286, %v3275, %v2803
  %v3301 = vsel %vm3286, %v3276, %v2805
  %v3302 = vsel %vm3286, %v3277, %v2807
  %v3303 = vsel %vm3286, %v3278, %v2809
  %v3304 = vsel %vm3286, %v3279, %v2811
  %v3305 = vsel %vm3286, %v3280, %v2813
  %v3306 = vsel %vm3286, %v3281, %v2815
  %v3307 = vsel %vm3286, %v3282, %v2817
  %v3308 = vsel %vm3286, %v3283, %v2819
  %v3309 = vsel %vm3286, %v3284, %v2821
  %v3310 = vsel %vm3286, %v3285, %v2823
  %vm3311 = vcmask 424960
  %v3312 = vsel %vm3311, %v3287, %v2873
  %v3313 = vsel %vm3311, %v3288, %v2875
  %v3314 = vsel %vm3311, %v3289, %v2877
  %v3315 = vsel %vm3311, %v3290, %v2879
  %v3316 = vsel %vm3311, %v3291, %v2881
  %v3317 = vsel %vm3311, %v3292, %v2883
  %v3318 = vsel %vm3311, %v3293, %v2885
  %v3319 = vsel %vm3311, %v3294, %v2887
  %v3320 = vsel %vm3311, %v3295, %v2889
  %v3321 = vsel %vm3311, %v3296, %v2891
  %v3322 = vsel %vm3311, %v3297, %v2893
  %v3323 = vsel %vm3311, %v3298, %v2895
  %v3324 = vsel %vm3311, %v3299, %v2897
  %v3325 = vsel %vm3311, %v3300, %v2899
  %v3326 = vsel %vm3311, %v3301, %v2901
  %v3327 = vsel %vm3311, %v3302, %v2903
  %v3328 = vsel %vm3311, %v3303, %v2905
  %v3329 = vsel %vm3311, %v3304, %v2907
  %v3330 = vsel %vm3311, %v3305, %v2909
  %v3331 = vsel %vm3311, %v3306, %v2911
  %v3332 = vsel %vm3311, %v3307, %v2913
  %v3333 = vsel %vm3311, %v3308, %v2915
  %v3334 = vsel %vm3311, %v3309, %v2917
  %v3335 = vsel %vm3311, %v3310, %v2919
  %vm3336 = vcmask 588800
  %v3337 = vsel %vm3336, %v3312, %v2969
  %v3338 = vsel %vm3336, %v3313, %v2971
  %v3339 = vsel %vm3336, %v3314, %v2973
  %v3340 = vsel %vm3336, %v3315, %v2975
  %v3341 = vsel %vm3336, %v3316, %v2977
  %v3342 = vsel %vm3336, %v3317, %v2979
  %v3343 = vsel %vm3336, %v3318, %v2981
  %v3344 = vsel %vm3336, %v3319, %v2983
  %v3345 = vsel %vm3336, %v3320, %v2985
  %v3346 = vsel %vm3336, %v3321, %v2987
  %v3347 = vsel %vm3336, %v3322, %v2989
  %v3348 = vsel %vm3336, %v3323, %v2991
  %v3349 = vsel %vm3336, %v3324, %v2993
  %v3350 = vsel %vm3336, %v3325, %v2995
  %v3351 = vsel %vm3336, %v3326, %v2997
  %v3352 = vsel %vm3336, %v3327, %v2999
  %v3353 = vsel %vm3336, %v3328, %v3001
  %v3354 = vsel %vm3336, %v3329, %v3003
  %v3355 = vsel %vm3336, %v3330, %v3005
  %v3356 = vsel %vm3336, %v3331, %v3007
  %v3357 = vsel %vm3336, %v3332, %v3009
  %v3358 = vsel %vm3336, %v3333, %v3011
  %v3359 = vsel %vm3336, %v3334, %v3013
  %v3360 = vsel %vm3336, %v3335, %v3015
  %vm3361 = vcmask 752640
  %v3362 = vsel %vm3361, %v3337, %v3041
  %v3363 = vsel %vm3361, %v3338, %v3043
  %v3364 = vsel %vm3361, %v3339, %v3045
  %v3365 = vsel %vm3361, %v3340, %v3047
  %v3366 = vsel %vm3361, %v3341, %v3049
  %v3367 = vsel %vm3361, %v3342, %v3051
  %v3368 = vsel %vm3361, %v3343, %v3053
  %v3369 = vsel %vm3361, %v3344, %v3055
  %v3370 = vsel %vm3361, %v3345, %v3057
  %v3371 = vsel %vm3361, %v3346, %v3059
  %v3372 = vsel %vm3361, %v3347, %v3061
  %v3373 = vsel %vm3361, %v3348, %v3063
  %v3374 = vsel %vm3361, %v3349, %v3065
  %v3375 = vsel %vm3361, %v3350, %v3067
  %v3376 = vsel %vm3361, %v3351, %v3069
  %v3377 = vsel %vm3361, %v3352, %v3071
  %v3378 = vsel %vm3361, %v3353, %v3073
  %v3379 = vsel %vm3361, %v3354, %v3075
  %v3380 = vsel %vm3361, %v3355, %v3077
  %v3381 = vsel %vm3361, %v3356, %v3079
  %v3382 = vsel %vm3361, %v3357, %v3081
  %v3383 = vsel %vm3361, %v3358, %v3083
  %v3384 = vsel %vm3361, %v3359, %v3085
  %v3385 = vsel %vm3361, %v3360, %v3087
  %v3434 = vcombine.low %v3238, %v3362
  %v3435 = vcombine.high %v3238, %v3362
  %v3437 = vunpack.c.l.s4 1983009808
  %v3438 = vunpack.c.0.s8 %v3437
  %v3439 = vlaneseq
  %v3440 = vshrl.u32 %v3439, 7
  %v3441 = vsub.s32 %v3438, %v3440
  %v3442 = vrot.slane %v3434, %v3441
  %v3444 = vunpack.c.l.s4 1983009808
  %v3445 = vunpack.c.0.s8 %v3444
  %v3446 = vlaneseq
  %v3447 = vshrl.u32 %v3446, 7
  %v3448 = vsub.s32 %v3445, %v3447
  %v3449 = vrot.slane %v3435, %v3448
  %v3450 = vcombine.high %v3442, %v3442
  %v3451 = vcombine.high %v3449, %v3449
  %v3452 = vcombine.low %v3239, %v3363
  %v3453 = vcombine.high %v3239, %v3363
  %v3455 = vunpack.c.l.s4 1983009808
  %v3456 = vunpack.c.0.s8 %v3455
  %v3457 = vlaneseq
  %v3458 = vshrl.u32 %v3457, 7
  %v3459 = vsub.s32 %v3456, %v3458
  %v3460 = vrot.slane %v3452, %v3459
  %v3462 = vunpack.c.l.s4 1983009808
  %v3463 = vunpack.c.0.s8 %v3462
  %v3464 = vlaneseq
  %v3465 = vshrl.u32 %v3464, 7
  %v3466 = vsub.s32 %v3463, %v3465
  %v3467 = vrot.slane %v3453, %v3466
  %v3468 = vcombine.high %v3460, %v3460
  %v3469 = vcombine.high %v3467, %v3467
  %v3470 = vcombine.low %v3240, %v3364
  %v3471 = vcombine.high %v3240, %v3364
  %v3473 = vunpack.c.l.s4 1983009808
  %v3474 = vunpack.c.0.s8 %v3473
  %v3475 = vlaneseq
  %v3476 = vshrl.u32 %v3475, 7
  %v3477 = vsub.s32 %v3474, %v3476
  %v3478 = vrot.slane %v3470, %v3477
  %v3480 = vunpack.c.l.s4 1983009808
  %v3481 = vunpack.c.0.s8 %v3480
  %v3482 = vlaneseq
  %v3483 = vshrl.u32 %v3482, 7
  %v3484 = vsub.s32 %v3481, %v3483
  %v3485 = vrot.slane %v3471, %v3484
  %v3486 = vcombine.high %v3478, %v3478
  %v3487 = vcombine.high %v3485, %v3485
  %v3488 = vcombine.low %v3241, %v3365
  %v3489 = vcombine.high %v3241, %v3365
  %v3491 = vunpack.c.l.s4 1983009808
  %v3492 = vunpack.c.0.s8 %v3491
  %v3493 = vlaneseq
  %v3494 = vshrl.u32 %v3493, 7
  %v3495 = vsub.s32 %v3492, %v3494
  %v3496 = vrot.slane %v3488, %v3495
  %v3498 = vunpack.c.l.s4 1983009808
  %v3499 = vunpack.c.0.s8 %v3498
  %v3500 = vlaneseq
  %v3501 = vshrl.u32 %v3500, 7
  %v3502 = vsub.s32 %v3499, %v3501
  %v3503 = vrot.slane %v3489, %v3502
  %v3504 = vcombine.high %v3496, %v3496
  %v3505 = vcombine.high %v3503, %v3503
  %v3506 = vcombine.low %v3242, %v3366
  %v3507 = vcombine.high %v3242, %v3366
  %v3509 = vunpack.c.l.s4 1983009808
  %v3510 = vunpack.c.0.s8 %v3509
  %v3511 = vlaneseq
  %v3512 = vshrl.u32 %v3511, 7
  %v3513 = vsub.s32 %v3510, %v3512
  %v3514 = vrot.slane %v3506, %v3513
  %v3516 = vunpack.c.l.s4 1983009808
  %v3517 = vunpack.c.0.s8 %v3516
  %v3518 = vlaneseq
  %v3519 = vshrl.u32 %v3518, 7
  %v3520 = vsub.s32 %v3517, %v3519
  %v3521 = vrot.slane %v3507, %v3520
  %v3522 = vcombine.high %v3514, %v3514
  %v3523 = vcombine.high %v3521, %v3521
  %v3524 = vcombine.low %v3243, %v3367
  %v3525 = vcombine.high %v3243, %v3367
  %v3527 = vunpack.c.l.s4 1983009808
  %v3528 = vunpack.c.0.s8 %v3527
  %v3529 = vlaneseq
  %v3530 = vshrl.u32 %v3529, 7
  %v3531 = vsub.s32 %v3528, %v3530
  %v3532 = vrot.slane %v3524, %v3531
  %v3534 = vunpack.c.l.s4 1983009808
  %v3535 = vunpack.c.0.s8 %v3534
  %v3536 = vlaneseq
  %v3537 = vshrl.u32 %v3536, 7
  %v3538 = vsub.s32 %v3535, %v3537
  %v3539 = vrot.slane %v3525, %v3538
  %v3540 = vcombine.high %v3532, %v3532
  %v3541 = vcombine.high %v3539, %v3539
  %v3542 = vcombine.low %v3244, %v3368
  %v3543 = vcombine.high %v3244, %v3368
  %v3545 = vunpack.c.l.s4 1983009808
  %v3546 = vunpack.c.0.s8 %v3545
  %v3547 = vlaneseq
  %v3548 = vshrl.u32 %v3547, 7
  %v3549 = vsub.s32 %v3546, %v3548
  %v3550 = vrot.slane %v3542, %v3549
  %v3552 = vunpack.c.l.s4 1983009808
  %v3553 = vunpack.c.0.s8 %v3552
  %v3554 = vlaneseq
  %v3555 = vshrl.u32 %v3554, 7
  %v3556 = vsub.s32 %v3553, %v3555
  %v3557 = vrot.slane %v3543, %v3556
  %v3558 = vcombine.high %v3550, %v3550
  %v3559 = vcombine.high %v3557, %v3557
  %v3560 = vcombine.low %v3245, %v3369
  %v3561 = vcombine.high %v3245, %v3369
  %v3563 = vunpack.c.l.s4 1983009808
  %v3564 = vunpack.c.0.s8 %v3563
  %v3565 = vlaneseq
  %v3566 = vshrl.u32 %v3565, 7
  %v3567 = vsub.s32 %v3564, %v3566
  %v3568 = vrot.slane %v3560, %v3567
  %v3570 = vunpack.c.l.s4 1983009808
  %v3571 = vunpack.c.0.s8 %v3570
  %v3572 = vlaneseq
  %v3573 = vshrl.u32 %v3572, 7
  %v3574 = vsub.s32 %v3571, %v3573
  %v3575 = vrot.slane %v3561, %v3574
  %v3576 = vcombine.high %v3568, %v3568
  %v3577 = vcombine.high %v3575, %v3575
  %v3578 = vcombine.low %v3246, %v3370
  %v3579 = vcombine.high %v3246, %v3370
  %v3581 = vunpack.c.l.s4 1983009808
  %v3582 = vunpack.c.0.s8 %v3581
  %v3583 = vlaneseq
  %v3584 = vshrl.u32 %v3583, 7
  %v3585 = vsub.s32 %v3582, %v3584
  %v3586 = vrot.slane %v3578, %v3585
  %v3588 = vunpack.c.l.s4 1983009808
  %v3589 = vunpack.c.0.s8 %v3588
  %v3590 = vlaneseq
  %v3591 = vshrl.u32 %v3590, 7
  %v3592 = vsub.s32 %v3589, %v3591
  %v3593 = vrot.slane %v3579, %v3592
  %v3594 = vcombine.high %v3586, %v3586
  %v3595 = vcombine.high %v3593, %v3593
  %v3596 = vcombine.low %v3247, %v3371
  %v3597 = vcombine.high %v3247, %v3371
  %v3599 = vunpack.c.l.s4 1983009808
  %v3600 = vunpack.c.0.s8 %v3599
  %v3601 = vlaneseq
  %v3602 = vshrl.u32 %v3601, 7
  %v3603 = vsub.s32 %v3600, %v3602
  %v3604 = vrot.slane %v3596, %v3603
  %v3606 = vunpack.c.l.s4 1983009808
  %v3607 = vunpack.c.0.s8 %v3606
  %v3608 = vlaneseq
  %v3609 = vshrl.u32 %v3608, 7
  %v3610 = vsub.s32 %v3607, %v3609
  %v3611 = vrot.slane %v3597, %v3610
  %v3612 = vcombine.high %v3604, %v3604
  %v3613 = vcombine.high %v3611, %v3611
  %v3614 = vcombine.low %v3248, %v3372
  %v3615 = vcombine.high %v3248, %v3372
  %v3617 = vunpack.c.l.s4 1983009808
  %v3618 = vunpack.c.0.s8 %v3617
  %v3619 = vlaneseq
  %v3620 = vshrl.u32 %v3619, 7
  %v3621 = vsub.s32 %v3618, %v3620
  %v3622 = vrot.slane %v3614, %v3621
  %v3624 = vunpack.c.l.s4 1983009808
  %v3625 = vunpack.c.0.s8 %v3624
  %v3626 = vlaneseq
  %v3627 = vshrl.u32 %v3626, 7
  %v3628 = vsub.s32 %v3625, %v3627
  %v3629 = vrot.slane %v3615, %v3628
  %v3630 = vcombine.high %v3622, %v3622
  %v3631 = vcombine.high %v3629, %v3629
  %v3632 = vcombine.low %v3249, %v3373
  %v3633 = vcombine.high %v3249, %v3373
  %v3635 = vunpack.c.l.s4 1983009808
  %v3636 = vunpack.c.0.s8 %v3635
  %v3637 = vlaneseq
  %v3638 = vshrl.u32 %v3637, 7
  %v3639 = vsub.s32 %v3636, %v3638
  %v3640 = vrot.slane %v3632, %v3639
  %v3642 = vunpack.c.l.s4 1983009808
  %v3643 = vunpack.c.0.s8 %v3642
  %v3644 = vlaneseq
  %v3645 = vshrl.u32 %v3644, 7
  %v3646 = vsub.s32 %v3643, %v3645
  %v3647 = vrot.slane %v3633, %v3646
  %v3648 = vcombine.high %v3640, %v3640
  %v3649 = vcombine.high %v3647, %v3647
  %v3650 = vcombine.low %v3250, %v3374
  %v3651 = vcombine.high %v3250, %v3374
  %v3653 = vunpack.c.l.s4 1983009808
  %v3654 = vunpack.c.0.s8 %v3653
  %v3655 = vlaneseq
  %v3656 = vshrl.u32 %v3655, 7
  %v3657 = vsub.s32 %v3654, %v3656
  %v3658 = vrot.slane %v3650, %v3657
  %v3660 = vunpack.c.l.s4 1983009808
  %v3661 = vunpack.c.0.s8 %v3660
  %v3662 = vlaneseq
  %v3663 = vshrl.u32 %v3662, 7
  %v3664 = vsub.s32 %v3661, %v3663
  %v3665 = vrot.slane %v3651, %v3664
  %v3666 = vcombine.high %v3658, %v3658
  %v3667 = vcombine.high %v3665, %v3665
  %v3668 = vcombine.low %v3251, %v3375
  %v3669 = vcombine.high %v3251, %v3375
  %v3671 = vunpack.c.l.s4 1983009808
  %v3672 = vunpack.c.0.s8 %v3671
  %v3673 = vlaneseq
  %v3674 = vshrl.u32 %v3673, 7
  %v3675 = vsub.s32 %v3672, %v3674
  %v3676 = vrot.slane %v3668, %v3675
  %v3678 = vunpack.c.l.s4 1983009808
  %v3679 = vunpack.c.0.s8 %v3678
  %v3680 = vlaneseq
  %v3681 = vshrl.u32 %v3680, 7
  %v3682 = vsub.s32 %v3679, %v3681
  %v3683 = vrot.slane %v3669, %v3682
  %v3684 = vcombine.high %v3676, %v3676
  %v3685 = vcombine.high %v3683, %v3683
  %v3686 = vcombine.low %v3252, %v3376
  %v3687 = vcombine.high %v3252, %v3376
  %v3689 = vunpack.c.l.s4 1983009808
  %v3690 = vunpack.c.0.s8 %v3689
  %v3691 = vlaneseq
  %v3692 = vshrl.u32 %v3691, 7
  %v3693 = vsub.s32 %v3690, %v3692
  %v3694 = vrot.slane %v3686, %v3693
  %v3696 = vunpack.c.l.s4 1983009808
  %v3697 = vunpack.c.0.s8 %v3696
  %v3698 = vlaneseq
  %v3699 = vshrl.u32 %v3698, 7
  %v3700 = vsub.s32 %v3697, %v3699
  %v3701 = vrot.slane %v3687, %v3700
  %v3702 = vcombine.high %v3694, %v3694
  %v3703 = vcombine.high %v3701, %v3701
  %v3704 = vcombine.low %v3253, %v3377
  %v3705 = vcombine.high %v3253, %v3377
  %v3707 = vunpack.c.l.s4 1983009808
  %v3708 = vunpack.c.0.s8 %v3707
  %v3709 = vlaneseq
  %v3710 = vshrl.u32 %v3709, 7
  %v3711 = vsub.s32 %v3708, %v3710
  %v3712 = vrot.slane %v3704, %v3711
  %v3714 = vunpack.c.l.s4 1983009808
  %v3715 = vunpack.c.0.s8 %v3714
  %v3716 = vlaneseq
  %v3717 = vshrl.u32 %v3716, 7
  %v3718 = vsub.s32 %v3715, %v3717
  %v3719 = vrot.slane %v3705, %v3718
  %v3720 = vcombine.high %v3712, %v3712
  %v3721 = vcombine.high %v3719, %v3719
  %v3722 = vcombine.low %v3254, %v3378
  %v3723 = vcombine.high %v3254, %v3378
  %v3725 = vunpack.c.l.s4 1983009808
  %v3726 = vunpack.c.0.s8 %v3725
  %v3727 = vlaneseq
  %v3728 = vshrl.u32 %v3727, 7
  %v3729 = vsub.s32 %v3726, %v3728
  %v3730 = vrot.slane %v3722, %v3729
  %v3732 = vunpack.c.l.s4 1983009808
  %v3733 = vunpack.c.0.s8 %v3732
  %v3734 = vlaneseq
  %v3735 = vshrl.u32 %v3734, 7
  %v3736 = vsub.s32 %v3733, %v3735
  %v3737 = vrot.slane %v3723, %v3736
  %v3738 = vcombine.high %v3730, %v3730
  %v3739 = vcombine.high %v3737, %v3737
  %v3740 = vcombine.low %v3255, %v3379
  %v3741 = vcombine.high %v3255, %v3379
  %v3743 = vunpack.c.l.s4 1983009808
  %v3744 = vunpack.c.0.s8 %v3743
  %v3745 = vlaneseq
  %v3746 = vshrl.u32 %v3745, 7
  %v3747 = vsub.s32 %v3744, %v3746
  %v3748 = vrot.slane %v3740, %v3747
  %v3750 = vunpack.c.l.s4 1983009808
  %v3751 = vunpack.c.0.s8 %v3750
  %v3752 = vlaneseq
  %v3753 = vshrl.u32 %v3752, 7
  %v3754 = vsub.s32 %v3751, %v3753
  %v3755 = vrot.slane %v3741, %v3754
  %v3756 = vcombine.high %v3748, %v3748
  %v3757 = vcombine.high %v3755, %v3755
  %v3758 = vcombine.low %v3256, %v3380
  %v3759 = vcombine.high %v3256, %v3380
  %v3761 = vunpack.c.l.s4 1983009808
  %v3762 = vunpack.c.0.s8 %v3761
  %v3763 = vlaneseq
  %v3764 = vshrl.u32 %v3763, 7
  %v3765 = vsub.s32 %v3762, %v3764
  %v3766 = vrot.slane %v3758, %v3765
  %v3768 = vunpack.c.l.s4 1983009808
  %v3769 = vunpack.c.0.s8 %v3768
  %v3770 = vlaneseq
  %v3771 = vshrl.u32 %v3770, 7
  %v3772 = vsub.s32 %v3769, %v3771
  %v3773 = vrot.slane %v3759, %v3772
  %v3774 = vcombine.high %v3766, %v3766
  %v3775 = vcombine.high %v3773, %v3773
  %v3776 = vcombine.low %v3257, %v3381
  %v3777 = vcombine.high %v3257, %v3381
  %v3779 = vunpack.c.l.s4 1983009808
  %v3780 = vunpack.c.0.s8 %v3779
  %v3781 = vlaneseq
  %v3782 = vshrl.u32 %v3781, 7
  %v3783 = vsub.s32 %v3780, %v3782
  %v3784 = vrot.slane %v3776, %v3783
  %v3786 = vunpack.c.l.s4 1983009808
  %v3787 = vunpack.c.0.s8 %v3786
  %v3788 = vlaneseq
  %v3789 = vshrl.u32 %v3788, 7
  %v3790 = vsub.s32 %v3787, %v3789
  %v3791 = vrot.slane %v3777, %v3790
  %v3792 = vcombine.high %v3784, %v3784
  %v3793 = vcombine.high %v3791, %v3791
  %v3794 = vcombine.low %v3258, %v3382
  %v3795 = vcombine.high %v3258, %v3382
  %v3797 = vunpack.c.l.s4 1983009808
  %v3798 = vunpack.c.0.s8 %v3797
  %v3799 = vlaneseq
  %v3800 = vshrl.u32 %v3799, 7
  %v3801 = vsub.s32 %v3798, %v3800
  %v3802 = vrot.slane %v3794, %v3801
  %v3804 = vunpack.c.l.s4 1983009808
  %v3805 = vunpack.c.0.s8 %v3804
  %v3806 = vlaneseq
  %v3807 = vshrl.u32 %v3806, 7
  %v3808 = vsub.s32 %v3805, %v3807
  %v3809 = vrot.slane %v3795, %v3808
  %v3810 = vcombine.high %v3802, %v3802
  %v3811 = vcombine.high %v3809, %v3809
  %v3812 = vcombine.low %v3259, %v3383
  %v3813 = vcombine.high %v3259, %v3383
  %v3815 = vunpack.c.l.s4 1983009808
  %v3816 = vunpack.c.0.s8 %v3815
  %v3817 = vlaneseq
  %v3818 = vshrl.u32 %v3817, 7
  %v3819 = vsub.s32 %v3816, %v3818
  %v3820 = vrot.slane %v3812, %v3819
  %v3822 = vunpack.c.l.s4 1983009808
  %v3823 = vunpack.c.0.s8 %v3822
  %v3824 = vlaneseq
  %v3825 = vshrl.u32 %v3824, 7
  %v3826 = vsub.s32 %v3823, %v3825
  %v3827 = vrot.slane %v3813, %v3826
  %v3828 = vcombine.high %v3820, %v3820
  %v3829 = vcombine.high %v3827, %v3827
  %v3830 = vcombine.low %v3260, %v3384
  %v3831 = vcombine.high %v3260, %v3384
  %v3833 = vunpack.c.l.s4 1983009808
  %v3834 = vunpack.c.0.s8 %v3833
  %v3835 = vlaneseq
  %v3836 = vshrl.u32 %v3835, 7
  %v3837 = vsub.s32 %v3834, %v3836
  %v3838 = vrot.slane %v3830, %v3837
  %v3840 = vunpack.c.l.s4 1983009808
  %v3841 = vunpack.c.0.s8 %v3840
  %v3842 = vlaneseq
  %v3843 = vshrl.u32 %v3842, 7
  %v3844 = vsub.s32 %v3841, %v3843
  %v3845 = vrot.slane %v3831, %v3844
  %v3846 = vcombine.high %v3838, %v3838
  %v3847 = vcombine.high %v3845, %v3845
  %v3848 = vcombine.low %v3261, %v3385
  %v3849 = vcombine.high %v3261, %v3385
  %v3851 = vunpack.c.l.s4 1983009808
  %v3852 = vunpack.c.0.s8 %v3851
  %v3853 = vlaneseq
  %v3854 = vshrl.u32 %v3853, 7
  %v3855 = vsub.s32 %v3852, %v3854
  %v3856 = vrot.slane %v3848, %v3855
  %v3858 = vunpack.c.l.s4 1983009808
  %v3859 = vunpack.c.0.s8 %v3858
  %v3860 = vlaneseq
  %v3861 = vshrl.u32 %v3860, 7
  %v3862 = vsub.s32 %v3859, %v3861
  %v3863 = vrot.slane %v3849, %v3862
  %v3864 = vcombine.high %v3856, %v3856
  %v3865 = vcombine.high %v3863, %v3863
  %v3867 = vunpack.c.l.s4 1983009808
  %v3868 = vunpack.c.0.s8 %v3867
  %v3869 = vlaneseq
  %v3870 = vshrl.u32 %v3869, 7
  %v3871 = vsub.s32 %v3868, %v3870
  %v3872 = vrot.slane %v3442, %v3871
  %v3873 = vcombine.high %v3872, %v3872
  %v3875 = vunpack.c.l.s4 1983009808
  %v3876 = vunpack.c.0.s8 %v3875
  %v3877 = vlaneseq
  %v3878 = vshrl.u32 %v3877, 7
  %v3879 = vsub.s32 %v3876, %v3878
  %v3880 = vrot.slane %v3450, %v3879
  %v3881 = vcombine.high %v3880, %v3880
  %v3883 = vunpack.c.l.s4 1983009808
  %v3884 = vunpack.c.0.s8 %v3883
  %v3885 = vlaneseq
  %v3886 = vshrl.u32 %v3885, 7
  %v3887 = vsub.s32 %v3884, %v3886
  %v3888 = vrot.slane %v3449, %v3887
  %v3889 = vcombine.high %v3888, %v3888
  %v3891 = vunpack.c.l.s4 1983009808
  %v3892 = vunpack.c.0.s8 %v3891
  %v3893 = vlaneseq
  %v3894 = vshrl.u32 %v3893, 7
  %v3895 = vsub.s32 %v3892, %v3894
  %v3896 = vrot.slane %v3451, %v3895
  %v3897 = vcombine.high %v3896, %v3896
  %v3899 = vunpack.c.l.s4 1983009808
  %v3900 = vunpack.c.0.s8 %v3899
  %v3901 = vlaneseq
  %v3902 = vshrl.u32 %v3901, 7
  %v3903 = vsub.s32 %v3900, %v3902
  %v3904 = vrot.slane %v3460, %v3903
  %v3905 = vcombine.high %v3904, %v3904
  %v3907 = vunpack.c.l.s4 1983009808
  %v3908 = vunpack.c.0.s8 %v3907
  %v3909 = vlaneseq
  %v3910 = vshrl.u32 %v3909, 7
  %v3911 = vsub.s32 %v3908, %v3910
  %v3912 = vrot.slane %v3468, %v3911
  %v3913 = vcombine.high %v3912, %v3912
  %v3915 = vunpack.c.l.s4 1983009808
  %v3916 = vunpack.c.0.s8 %v3915
  %v3917 = vlaneseq
  %v3918 = vshrl.u32 %v3917, 7
  %v3919 = vsub.s32 %v3916, %v3918
  %v3920 = vrot.slane %v3467, %v3919
  %v3921 = vcombine.high %v3920, %v3920
  %v3923 = vunpack.c.l.s4 1983009808
  %v3924 = vunpack.c.0.s8 %v3923
  %v3925 = vlaneseq
  %v3926 = vshrl.u32 %v3925, 7
  %v3927 = vsub.s32 %v3924, %v3926
  %v3928 = vrot.slane %v3469, %v3927
  %v3929 = vcombine.high %v3928, %v3928
  %v3931 = vunpack.c.l.s4 1983009808
  %v3932 = vunpack.c.0.s8 %v3931
  %v3933 = vlaneseq
  %v3934 = vshrl.u32 %v3933, 7
  %v3935 = vsub.s32 %v3932, %v3934
  %v3936 = vrot.slane %v3478, %v3935
  %v3937 = vcombine.high %v3936, %v3936
  %v3939 = vunpack.c.l.s4 1983009808
  %v3940 = vunpack.c.0.s8 %v3939
  %v3941 = vlaneseq
  %v3942 = vshrl.u32 %v3941, 7
  %v3943 = vsub.s32 %v3940, %v3942
  %v3944 = vrot.slane %v3486, %v3943
  %v3945 = vcombine.high %v3944, %v3944
  %v3947 = vunpack.c.l.s4 1983009808
  %v3948 = vunpack.c.0.s8 %v3947
  %v3949 = vlaneseq
  %v3950 = vshrl.u32 %v3949, 7
  %v3951 = vsub.s32 %v3948, %v3950
  %v3952 = vrot.slane %v3485, %v3951
  %v3953 = vcombine.high %v3952, %v3952
  %v3955 = vunpack.c.l.s4 1983009808
  %v3956 = vunpack.c.0.s8 %v3955
  %v3957 = vlaneseq
  %v3958 = vshrl.u32 %v3957, 7
  %v3959 = vsub.s32 %v3956, %v3958
  %v3960 = vrot.slane %v3487, %v3959
  %v3961 = vcombine.high %v3960, %v3960
  %v3963 = vunpack.c.l.s4 1983009808
  %v3964 = vunpack.c.0.s8 %v3963
  %v3965 = vlaneseq
  %v3966 = vshrl.u32 %v3965, 7
  %v3967 = vsub.s32 %v3964, %v3966
  %v3968 = vrot.slane %v3496, %v3967
  %v3969 = vcombine.high %v3968, %v3968
  %v3971 = vunpack.c.l.s4 1983009808
  %v3972 = vunpack.c.0.s8 %v3971
  %v3973 = vlaneseq
  %v3974 = vshrl.u32 %v3973, 7
  %v3975 = vsub.s32 %v3972, %v3974
  %v3976 = vrot.slane %v3504, %v3975
  %v3977 = vcombine.high %v3976, %v3976
  %v3979 = vunpack.c.l.s4 1983009808
  %v3980 = vunpack.c.0.s8 %v3979
  %v3981 = vlaneseq
  %v3982 = vshrl.u32 %v3981, 7
  %v3983 = vsub.s32 %v3980, %v3982
  %v3984 = vrot.slane %v3503, %v3983
  %v3985 = vcombine.high %v3984, %v3984
  %v3987 = vunpack.c.l.s4 1983009808
  %v3988 = vunpack.c.0.s8 %v3987
  %v3989 = vlaneseq
  %v3990 = vshrl.u32 %v3989, 7
  %v3991 = vsub.s32 %v3988, %v3990
  %v3992 = vrot.slane %v3505, %v3991
  %v3993 = vcombine.high %v3992, %v3992
  %v3995 = vunpack.c.l.s4 1983009808
  %v3996 = vunpack.c.0.s8 %v3995
  %v3997 = vlaneseq
  %v3998 = vshrl.u32 %v3997, 7
  %v3999 = vsub.s32 %v3996, %v3998
  %v4000 = vrot.slane %v3514, %v3999
  %v4001 = vcombine.high %v4000, %v4000
  %v4003 = vunpack.c.l.s4 1983009808
  %v4004 = vunpack.c.0.s8 %v4003
  %v4005 = vlaneseq
  %v4006 = vshrl.u32 %v4005, 7
  %v4007 = vsub.s32 %v4004, %v4006
  %v4008 = vrot.slane %v3522, %v4007
  %v4009 = vcombine.high %v4008, %v4008
  %v4011 = vunpack.c.l.s4 1983009808
  %v4012 = vunpack.c.0.s8 %v4011
  %v4013 = vlaneseq
  %v4014 = vshrl.u32 %v4013, 7
  %v4015 = vsub.s32 %v4012, %v4014
  %v4016 = vrot.slane %v3521, %v4015
  %v4017 = vcombine.high %v4016, %v4016
  %v4019 = vunpack.c.l.s4 1983009808
  %v4020 = vunpack.c.0.s8 %v4019
  %v4021 = vlaneseq
  %v4022 = vshrl.u32 %v4021, 7
  %v4023 = vsub.s32 %v4020, %v4022
  %v4024 = vrot.slane %v3523, %v4023
  %v4025 = vcombine.high %v4024, %v4024
  %v4027 = vunpack.c.l.s4 1983009808
  %v4028 = vunpack.c.0.s8 %v4027
  %v4029 = vlaneseq
  %v4030 = vshrl.u32 %v4029, 7
  %v4031 = vsub.s32 %v4028, %v4030
  %v4032 = vrot.slane %v3532, %v4031
  %v4033 = vcombine.high %v4032, %v4032
  %v4035 = vunpack.c.l.s4 1983009808
  %v4036 = vunpack.c.0.s8 %v4035
  %v4037 = vlaneseq
  %v4038 = vshrl.u32 %v4037, 7
  %v4039 = vsub.s32 %v4036, %v4038
  %v4040 = vrot.slane %v3540, %v4039
  %v4041 = vcombine.high %v4040, %v4040
  %v4043 = vunpack.c.l.s4 1983009808
  %v4044 = vunpack.c.0.s8 %v4043
  %v4045 = vlaneseq
  %v4046 = vshrl.u32 %v4045, 7
  %v4047 = vsub.s32 %v4044, %v4046
  %v4048 = vrot.slane %v3539, %v4047
  %v4049 = vcombine.high %v4048, %v4048
  %v4051 = vunpack.c.l.s4 1983009808
  %v4052 = vunpack.c.0.s8 %v4051
  %v4053 = vlaneseq
  %v4054 = vshrl.u32 %v4053, 7
  %v4055 = vsub.s32 %v4052, %v4054
  %v4056 = vrot.slane %v3541, %v4055
  %v4057 = vcombine.high %v4056, %v4056
  %v4059 = vunpack.c.l.s4 1983009808
  %v4060 = vunpack.c.0.s8 %v4059
  %v4061 = vlaneseq
  %v4062 = vshrl.u32 %v4061, 7
  %v4063 = vsub.s32 %v4060, %v4062
  %v4064 = vrot.slane %v3550, %v4063
  %v4065 = vcombine.high %v4064, %v4064
  %v4067 = vunpack.c.l.s4 1983009808
  %v4068 = vunpack.c.0.s8 %v4067
  %v4069 = vlaneseq
  %v4070 = vshrl.u32 %v4069, 7
  %v4071 = vsub.s32 %v4068, %v4070
  %v4072 = vrot.slane %v3558, %v4071
  %v4073 = vcombine.high %v4072, %v4072
  %v4075 = vunpack.c.l.s4 1983009808
  %v4076 = vunpack.c.0.s8 %v4075
  %v4077 = vlaneseq
  %v4078 = vshrl.u32 %v4077, 7
  %v4079 = vsub.s32 %v4076, %v4078
  %v4080 = vrot.slane %v3557, %v4079
  %v4081 = vcombine.high %v4080, %v4080
  %v4083 = vunpack.c.l.s4 1983009808
  %v4084 = vunpack.c.0.s8 %v4083
  %v4085 = vlaneseq
  %v4086 = vshrl.u32 %v4085, 7
  %v4087 = vsub.s32 %v4084, %v4086
  %v4088 = vrot.slane %v3559, %v4087
  %v4089 = vcombine.high %v4088, %v4088
  %v4091 = vunpack.c.l.s4 1983009808
  %v4092 = vunpack.c.0.s8 %v4091
  %v4093 = vlaneseq
  %v4094 = vshrl.u32 %v4093, 7
  %v4095 = vsub.s32 %v4092, %v4094
  %v4096 = vrot.slane %v3568, %v4095
  %v4097 = vcombine.high %v4096, %v4096
  %v4099 = vunpack.c.l.s4 1983009808
  %v4100 = vunpack.c.0.s8 %v4099
  %v4101 = vlaneseq
  %v4102 = vshrl.u32 %v4101, 7
  %v4103 = vsub.s32 %v4100, %v4102
  %v4104 = vrot.slane %v3576, %v4103
  %v4105 = vcombine.high %v4104, %v4104
  %v4107 = vunpack.c.l.s4 1983009808
  %v4108 = vunpack.c.0.s8 %v4107
  %v4109 = vlaneseq
  %v4110 = vshrl.u32 %v4109, 7
  %v4111 = vsub.s32 %v4108, %v4110
  %v4112 = vrot.slane %v3575, %v4111
  %v4113 = vcombine.high %v4112, %v4112
  %v4115 = vunpack.c.l.s4 1983009808
  %v4116 = vunpack.c.0.s8 %v4115
  %v4117 = vlaneseq
  %v4118 = vshrl.u32 %v4117, 7
  %v4119 = vsub.s32 %v4116, %v4118
  %v4120 = vrot.slane %v3577, %v4119
  %v4121 = vcombine.high %v4120, %v4120
  %v4123 = vunpack.c.l.s4 1983009808
  %v4124 = vunpack.c.0.s8 %v4123
  %v4125 = vlaneseq
  %v4126 = vshrl.u32 %v4125, 7
  %v4127 = vsub.s32 %v4124, %v4126
  %v4128 = vrot.slane %v3586, %v4127
  %v4129 = vcombine.high %v4128, %v4128
  %v4131 = vunpack.c.l.s4 1983009808
  %v4132 = vunpack.c.0.s8 %v4131
  %v4133 = vlaneseq
  %v4134 = vshrl.u32 %v4133, 7
  %v4135 = vsub.s32 %v4132, %v4134
  %v4136 = vrot.slane %v3594, %v4135
  %v4137 = vcombine.high %v4136, %v4136
  %v4139 = vunpack.c.l.s4 1983009808
  %v4140 = vunpack.c.0.s8 %v4139
  %v4141 = vlaneseq
  %v4142 = vshrl.u32 %v4141, 7
  %v4143 = vsub.s32 %v4140, %v4142
  %v4144 = vrot.slane %v3593, %v4143
  %v4145 = vcombine.high %v4144, %v4144
  %v4147 = vunpack.c.l.s4 1983009808
  %v4148 = vunpack.c.0.s8 %v4147
  %v4149 = vlaneseq
  %v4150 = vshrl.u32 %v4149, 7
  %v4151 = vsub.s32 %v4148, %v4150
  %v4152 = vrot.slane %v3595, %v4151
  %v4153 = vcombine.high %v4152, %v4152
  %v4155 = vunpack.c.l.s4 1983009808
  %v4156 = vunpack.c.0.s8 %v4155
  %v4157 = vlaneseq
  %v4158 = vshrl.u32 %v4157, 7
  %v4159 = vsub.s32 %v4156, %v4158
  %v4160 = vrot.slane %v3604, %v4159
  %v4161 = vcombine.high %v4160, %v4160
  %v4163 = vunpack.c.l.s4 1983009808
  %v4164 = vunpack.c.0.s8 %v4163
  %v4165 = vlaneseq
  %v4166 = vshrl.u32 %v4165, 7
  %v4167 = vsub.s32 %v4164, %v4166
  %v4168 = vrot.slane %v3612, %v4167
  %v4169 = vcombine.high %v4168, %v4168
  %v4171 = vunpack.c.l.s4 1983009808
  %v4172 = vunpack.c.0.s8 %v4171
  %v4173 = vlaneseq
  %v4174 = vshrl.u32 %v4173, 7
  %v4175 = vsub.s32 %v4172, %v4174
  %v4176 = vrot.slane %v3611, %v4175
  %v4177 = vcombine.high %v4176, %v4176
  %v4179 = vunpack.c.l.s4 1983009808
  %v4180 = vunpack.c.0.s8 %v4179
  %v4181 = vlaneseq
  %v4182 = vshrl.u32 %v4181, 7
  %v4183 = vsub.s32 %v4180, %v4182
  %v4184 = vrot.slane %v3613, %v4183
  %v4185 = vcombine.high %v4184, %v4184
  %v4187 = vunpack.c.l.s4 1983009808
  %v4188 = vunpack.c.0.s8 %v4187
  %v4189 = vlaneseq
  %v4190 = vshrl.u32 %v4189, 7
  %v4191 = vsub.s32 %v4188, %v4190
  %v4192 = vrot.slane %v3622, %v4191
  %v4193 = vcombine.high %v4192, %v4192
  %v4195 = vunpack.c.l.s4 1983009808
  %v4196 = vunpack.c.0.s8 %v4195
  %v4197 = vlaneseq
  %v4198 = vshrl.u32 %v4197, 7
  %v4199 = vsub.s32 %v4196, %v4198
  %v4200 = vrot.slane %v3630, %v4199
  %v4201 = vcombine.high %v4200, %v4200
  %v4203 = vunpack.c.l.s4 1983009808
  %v4204 = vunpack.c.0.s8 %v4203
  %v4205 = vlaneseq
  %v4206 = vshrl.u32 %v4205, 7
  %v4207 = vsub.s32 %v4204, %v4206
  %v4208 = vrot.slane %v3629, %v4207
  %v4209 = vcombine.high %v4208, %v4208
  %v4211 = vunpack.c.l.s4 1983009808
  %v4212 = vunpack.c.0.s8 %v4211
  %v4213 = vlaneseq
  %v4214 = vshrl.u32 %v4213, 7
  %v4215 = vsub.s32 %v4212, %v4214
  %v4216 = vrot.slane %v3631, %v4215
  %v4217 = vcombine.high %v4216, %v4216
  %v4219 = vunpack.c.l.s4 1983009808
  %v4220 = vunpack.c.0.s8 %v4219
  %v4221 = vlaneseq
  %v4222 = vshrl.u32 %v4221, 7
  %v4223 = vsub.s32 %v4220, %v4222
  %v4224 = vrot.slane %v3640, %v4223
  %v4225 = vcombine.high %v4224, %v4224
  %v4227 = vunpack.c.l.s4 1983009808
  %v4228 = vunpack.c.0.s8 %v4227
  %v4229 = vlaneseq
  %v4230 = vshrl.u32 %v4229, 7
  %v4231 = vsub.s32 %v4228, %v4230
  %v4232 = vrot.slane %v3648, %v4231
  %v4233 = vcombine.high %v4232, %v4232
  %v4235 = vunpack.c.l.s4 1983009808
  %v4236 = vunpack.c.0.s8 %v4235
  %v4237 = vlaneseq
  %v4238 = vshrl.u32 %v4237, 7
  %v4239 = vsub.s32 %v4236, %v4238
  %v4240 = vrot.slane %v3647, %v4239
  %v4241 = vcombine.high %v4240, %v4240
  %v4243 = vunpack.c.l.s4 1983009808
  %v4244 = vunpack.c.0.s8 %v4243
  %v4245 = vlaneseq
  %v4246 = vshrl.u32 %v4245, 7
  %v4247 = vsub.s32 %v4244, %v4246
  %v4248 = vrot.slane %v3649, %v4247
  %v4249 = vcombine.high %v4248, %v4248
  %v4251 = vunpack.c.l.s4 1983009808
  %v4252 = vunpack.c.0.s8 %v4251
  %v4253 = vlaneseq
  %v4254 = vshrl.u32 %v4253, 7
  %v4255 = vsub.s32 %v4252, %v4254
  %v4256 = vrot.slane %v3658, %v4255
  %v4257 = vcombine.high %v4256, %v4256
  %v4259 = vunpack.c.l.s4 1983009808
  %v4260 = vunpack.c.0.s8 %v4259
  %v4261 = vlaneseq
  %v4262 = vshrl.u32 %v4261, 7
  %v4263 = vsub.s32 %v4260, %v4262
  %v4264 = vrot.slane %v3666, %v4263
  %v4265 = vcombine.high %v4264, %v4264
  %v4267 = vunpack.c.l.s4 1983009808
  %v4268 = vunpack.c.0.s8 %v4267
  %v4269 = vlaneseq
  %v4270 = vshrl.u32 %v4269, 7
  %v4271 = vsub.s32 %v4268, %v4270
  %v4272 = vrot.slane %v3665, %v4271
  %v4273 = vcombine.high %v4272, %v4272
  %v4275 = vunpack.c.l.s4 1983009808
  %v4276 = vunpack.c.0.s8 %v4275
  %v4277 = vlaneseq
  %v4278 = vshrl.u32 %v4277, 7
  %v4279 = vsub.s32 %v4276, %v4278
  %v4280 = vrot.slane %v3667, %v4279
  %v4281 = vcombine.high %v4280, %v4280
  %v4283 = vunpack.c.l.s4 1983009808
  %v4284 = vunpack.c.0.s8 %v4283
  %v4285 = vlaneseq
  %v4286 = vshrl.u32 %v4285, 7
  %v4287 = vsub.s32 %v4284, %v4286
  %v4288 = vrot.slane %v3676, %v4287
  %v4289 = vcombine.high %v4288, %v4288
  %v4291 = vunpack.c.l.s4 1983009808
  %v4292 = vunpack.c.0.s8 %v4291
  %v4293 = vlaneseq
  %v4294 = vshrl.u32 %v4293, 7
  %v4295 = vsub.s32 %v4292, %v4294
  %v4296 = vrot.slane %v3684, %v4295
  %v4297 = vcombine.high %v4296, %v4296
  %v4299 = vunpack.c.l.s4 1983009808
  %v4300 = vunpack.c.0.s8 %v4299
  %v4301 = vlaneseq
  %v4302 = vshrl.u32 %v4301, 7
  %v4303 = vsub.s32 %v4300, %v4302
  %v4304 = vrot.slane %v3683, %v4303
  %v4305 = vcombine.high %v4304, %v4304
  %v4307 = vunpack.c.l.s4 1983009808
  %v4308 = vunpack.c.0.s8 %v4307
  %v4309 = vlaneseq
  %v4310 = vshrl.u32 %v4309, 7
  %v4311 = vsub.s32 %v4308, %v4310
  %v4312 = vrot.slane %v3685, %v4311
  %v4313 = vcombine.high %v4312, %v4312
  %v4315 = vunpack.c.l.s4 1983009808
  %v4316 = vunpack.c.0.s8 %v4315
  %v4317 = vlaneseq
  %v4318 = vshrl.u32 %v4317, 7
  %v4319 = vsub.s32 %v4316, %v4318
  %v4320 = vrot.slane %v3694, %v4319
  %v4321 = vcombine.high %v4320, %v4320
  %v4323 = vunpack.c.l.s4 1983009808
  %v4324 = vunpack.c.0.s8 %v4323
  %v4325 = vlaneseq
  %v4326 = vshrl.u32 %v4325, 7
  %v4327 = vsub.s32 %v4324, %v4326
  %v4328 = vrot.slane %v3702, %v4327
  %v4329 = vcombine.high %v4328, %v4328
  %v4331 = vunpack.c.l.s4 1983009808
  %v4332 = vunpack.c.0.s8 %v4331
  %v4333 = vlaneseq
  %v4334 = vshrl.u32 %v4333, 7
  %v4335 = vsub.s32 %v4332, %v4334
  %v4336 = vrot.slane %v3701, %v4335
  %v4337 = vcombine.high %v4336, %v4336
  %v4339 = vunpack.c.l.s4 1983009808
  %v4340 = vunpack.c.0.s8 %v4339
  %v4341 = vlaneseq
  %v4342 = vshrl.u32 %v4341, 7
  %v4343 = vsub.s32 %v4340, %v4342
  %v4344 = vrot.slane %v3703, %v4343
  %v4345 = vcombine.high %v4344, %v4344
  %v4347 = vunpack.c.l.s4 1983009808
  %v4348 = vunpack.c.0.s8 %v4347
  %v4349 = vlaneseq
  %v4350 = vshrl.u32 %v4349, 7
  %v4351 = vsub.s32 %v4348, %v4350
  %v4352 = vrot.slane %v3712, %v4351
  %v4353 = vcombine.high %v4352, %v4352
  %v4355 = vunpack.c.l.s4 1983009808
  %v4356 = vunpack.c.0.s8 %v4355
  %v4357 = vlaneseq
  %v4358 = vshrl.u32 %v4357, 7
  %v4359 = vsub.s32 %v4356, %v4358
  %v4360 = vrot.slane %v3720, %v4359
  %v4361 = vcombine.high %v4360, %v4360
  %v4363 = vunpack.c.l.s4 1983009808
  %v4364 = vunpack.c.0.s8 %v4363
  %v4365 = vlaneseq
  %v4366 = vshrl.u32 %v4365, 7
  %v4367 = vsub.s32 %v4364, %v4366
  %v4368 = vrot.slane %v3719, %v4367
  %v4369 = vcombine.high %v4368, %v4368
  %v4371 = vunpack.c.l.s4 1983009808
  %v4372 = vunpack.c.0.s8 %v4371
  %v4373 = vlaneseq
  %v4374 = vshrl.u32 %v4373, 7
  %v4375 = vsub.s32 %v4372, %v4374
  %v4376 = vrot.slane %v3721, %v4375
  %v4377 = vcombine.high %v4376, %v4376
  %v4379 = vunpack.c.l.s4 1983009808
  %v4380 = vunpack.c.0.s8 %v4379
  %v4381 = vlaneseq
  %v4382 = vshrl.u32 %v4381, 7
  %v4383 = vsub.s32 %v4380, %v4382
  %v4384 = vrot.slane %v3730, %v4383
  %v4385 = vcombine.high %v4384, %v4384
  %v4387 = vunpack.c.l.s4 1983009808
  %v4388 = vunpack.c.0.s8 %v4387
  %v4389 = vlaneseq
  %v4390 = vshrl.u32 %v4389, 7
  %v4391 = vsub.s32 %v4388, %v4390
  %v4392 = vrot.slane %v3738, %v4391
  %v4393 = vcombine.high %v4392, %v4392
  %v4395 = vunpack.c.l.s4 1983009808
  %v4396 = vunpack.c.0.s8 %v4395
  %v4397 = vlaneseq
  %v4398 = vshrl.u32 %v4397, 7
  %v4399 = vsub.s32 %v4396, %v4398
  %v4400 = vrot.slane %v3737, %v4399
  %v4401 = vcombine.high %v4400, %v4400
  %v4403 = vunpack.c.l.s4 1983009808
  %v4404 = vunpack.c.0.s8 %v4403
  %v4405 = vlaneseq
  %v4406 = vshrl.u32 %v4405, 7
  %v4407 = vsub.s32 %v4404, %v4406
  %v4408 = vrot.slane %v3739, %v4407
  %v4409 = vcombine.high %v4408, %v4408
  %v4411 = vunpack.c.l.s4 1983009808
  %v4412 = vunpack.c.0.s8 %v4411
  %v4413 = vlaneseq
  %v4414 = vshrl.u32 %v4413, 7
  %v4415 = vsub.s32 %v4412, %v4414
  %v4416 = vrot.slane %v3748, %v4415
  %v4417 = vcombine.high %v4416, %v4416
  %v4419 = vunpack.c.l.s4 1983009808
  %v4420 = vunpack.c.0.s8 %v4419
  %v4421 = vlaneseq
  %v4422 = vshrl.u32 %v4421, 7
  %v4423 = vsub.s32 %v4420, %v4422
  %v4424 = vrot.slane %v3756, %v4423
  %v4425 = vcombine.high %v4424, %v4424
  %v4427 = vunpack.c.l.s4 1983009808
  %v4428 = vunpack.c.0.s8 %v4427
  %v4429 = vlaneseq
  %v4430 = vshrl.u32 %v4429, 7
  %v4431 = vsub.s32 %v4428, %v4430
  %v4432 = vrot.slane %v3755, %v4431
  %v4433 = vcombine.high %v4432, %v4432
  %v4435 = vunpack.c.l.s4 1983009808
  %v4436 = vunpack.c.0.s8 %v4435
  %v4437 = vlaneseq
  %v4438 = vshrl.u32 %v4437, 7
  %v4439 = vsub.s32 %v4436, %v4438
  %v4440 = vrot.slane %v3757, %v4439
  %v4441 = vcombine.high %v4440, %v4440
  %v4443 = vunpack.c.l.s4 1983009808
  %v4444 = vunpack.c.0.s8 %v4443
  %v4445 = vlaneseq
  %v4446 = vshrl.u32 %v4445, 7
  %v4447 = vsub.s32 %v4444, %v4446
  %v4448 = vrot.slane %v3766, %v4447
  %v4449 = vcombine.high %v4448, %v4448
  %v4451 = vunpack.c.l.s4 1983009808
  %v4452 = vunpack.c.0.s8 %v4451
  %v4453 = vlaneseq
  %v4454 = vshrl.u32 %v4453, 7
  %v4455 = vsub.s32 %v4452, %v4454
  %v4456 = vrot.slane %v3774, %v4455
  %v4457 = vcombine.high %v4456, %v4456
  %v4459 = vunpack.c.l.s4 1983009808
  %v4460 = vunpack.c.0.s8 %v4459
  %v4461 = vlaneseq
  %v4462 = vshrl.u32 %v4461, 7
  %v4463 = vsub.s32 %v4460, %v4462
  %v4464 = vrot.slane %v3773, %v4463
  %v4465 = vcombine.high %v4464, %v4464
  %v4467 = vunpack.c.l.s4 1983009808
  %v4468 = vunpack.c.0.s8 %v4467
  %v4469 = vlaneseq
  %v4470 = vshrl.u32 %v4469, 7
  %v4471 = vsub.s32 %v4468, %v4470
  %v4472 = vrot.slane %v3775, %v4471
  %v4473 = vcombine.high %v4472, %v4472
  %v4475 = vunpack.c.l.s4 1983009808
  %v4476 = vunpack.c.0.s8 %v4475
  %v4477 = vlaneseq
  %v4478 = vshrl.u32 %v4477, 7
  %v4479 = vsub.s32 %v4476, %v4478
  %v4480 = vrot.slane %v3784, %v4479
  %v4481 = vcombine.high %v4480, %v4480
  %v4483 = vunpack.c.l.s4 1983009808
  %v4484 = vunpack.c.0.s8 %v4483
  %v4485 = vlaneseq
  %v4486 = vshrl.u32 %v4485, 7
  %v4487 = vsub.s32 %v4484, %v4486
  %v4488 = vrot.slane %v3792, %v4487
  %v4489 = vcombine.high %v4488, %v4488
  %v4491 = vunpack.c.l.s4 1983009808
  %v4492 = vunpack.c.0.s8 %v4491
  %v4493 = vlaneseq
  %v4494 = vshrl.u32 %v4493, 7
  %v4495 = vsub.s32 %v4492, %v4494
  %v4496 = vrot.slane %v3791, %v4495
  %v4497 = vcombine.high %v4496, %v4496
  %v4499 = vunpack.c.l.s4 1983009808
  %v4500 = vunpack.c.0.s8 %v4499
  %v4501 = vlaneseq
  %v4502 = vshrl.u32 %v4501, 7
  %v4503 = vsub.s32 %v4500, %v4502
  %v4504 = vrot.slane %v3793, %v4503
  %v4505 = vcombine.high %v4504, %v4504
  %v4507 = vunpack.c.l.s4 1983009808
  %v4508 = vunpack.c.0.s8 %v4507
  %v4509 = vlaneseq
  %v4510 = vshrl.u32 %v4509, 7
  %v4511 = vsub.s32 %v4508, %v4510
  %v4512 = vrot.slane %v3802, %v4511
  %v4513 = vcombine.high %v4512, %v4512
  %v4515 = vunpack.c.l.s4 1983009808
  %v4516 = vunpack.c.0.s8 %v4515
  %v4517 = vlaneseq
  %v4518 = vshrl.u32 %v4517, 7
  %v4519 = vsub.s32 %v4516, %v4518
  %v4520 = vrot.slane %v3810, %v4519
  %v4521 = vcombine.high %v4520, %v4520
  %v4523 = vunpack.c.l.s4 1983009808
  %v4524 = vunpack.c.0.s8 %v4523
  %v4525 = vlaneseq
  %v4526 = vshrl.u32 %v4525, 7
  %v4527 = vsub.s32 %v4524, %v4526
  %v4528 = vrot.slane %v3809, %v4527
  %v4529 = vcombine.high %v4528, %v4528
  %v4531 = vunpack.c.l.s4 1983009808
  %v4532 = vunpack.c.0.s8 %v4531
  %v4533 = vlaneseq
  %v4534 = vshrl.u32 %v4533, 7
  %v4535 = vsub.s32 %v4532, %v4534
  %v4536 = vrot.slane %v3811, %v4535
  %v4537 = vcombine.high %v4536, %v4536
  %v4539 = vunpack.c.l.s4 1983009808
  %v4540 = vunpack.c.0.s8 %v4539
  %v4541 = vlaneseq
  %v4542 = vshrl.u32 %v4541, 7
  %v4543 = vsub.s32 %v4540, %v4542
  %v4544 = vrot.slane %v3820, %v4543
  %v4545 = vcombine.high %v4544, %v4544
  %v4547 = vunpack.c.l.s4 1983009808
  %v4548 = vunpack.c.0.s8 %v4547
  %v4549 = vlaneseq
  %v4550 = vshrl.u32 %v4549, 7
  %v4551 = vsub.s32 %v4548, %v4550
  %v4552 = vrot.slane %v3828, %v4551
  %v4553 = vcombine.high %v4552, %v4552
  %v4555 = vunpack.c.l.s4 1983009808
  %v4556 = vunpack.c.0.s8 %v4555
  %v4557 = vlaneseq
  %v4558 = vshrl.u32 %v4557, 7
  %v4559 = vsub.s32 %v4556, %v4558
  %v4560 = vrot.slane %v3827, %v4559
  %v4561 = vcombine.high %v4560, %v4560
  %v4563 = vunpack.c.l.s4 1983009808
  %v4564 = vunpack.c.0.s8 %v4563
  %v4565 = vlaneseq
  %v4566 = vshrl.u32 %v4565, 7
  %v4567 = vsub.s32 %v4564, %v4566
  %v4568 = vrot.slane %v3829, %v4567
  %v4569 = vcombine.high %v4568, %v4568
  %v4571 = vunpack.c.l.s4 1983009808
  %v4572 = vunpack.c.0.s8 %v4571
  %v4573 = vlaneseq
  %v4574 = vshrl.u32 %v4573, 7
  %v4575 = vsub.s32 %v4572, %v4574
  %v4576 = vrot.slane %v3838, %v4575
  %v4577 = vcombine.high %v4576, %v4576
  %v4579 = vunpack.c.l.s4 1983009808
  %v4580 = vunpack.c.0.s8 %v4579
  %v4581 = vlaneseq
  %v4582 = vshrl.u32 %v4581, 7
  %v4583 = vsub.s32 %v4580, %v4582
  %v4584 = vrot.slane %v3846, %v4583
  %v4585 = vcombine.high %v4584, %v4584
  %v4587 = vunpack.c.l.s4 1983009808
  %v4588 = vunpack.c.0.s8 %v4587
  %v4589 = vlaneseq
  %v4590 = vshrl.u32 %v4589, 7
  %v4591 = vsub.s32 %v4588, %v4590
  %v4592 = vrot.slane %v3845, %v4591
  %v4593 = vcombine.high %v4592, %v4592
  %v4595 = vunpack.c.l.s4 1983009808
  %v4596 = vunpack.c.0.s8 %v4595
  %v4597 = vlaneseq
  %v4598 = vshrl.u32 %v4597, 7
  %v4599 = vsub.s32 %v4596, %v4598
  %v4600 = vrot.slane %v3847, %v4599
  %v4601 = vcombine.high %v4600, %v4600
  %v4603 = vunpack.c.l.s4 1983009808
  %v4604 = vunpack.c.0.s8 %v4603
  %v4605 = vlaneseq
  %v4606 = vshrl.u32 %v4605, 7
  %v4607 = vsub.s32 %v4604, %v4606
  %v4608 = vrot.slane %v3856, %v4607
  %v4609 = vcombine.high %v4608, %v4608
  %v4611 = vunpack.c.l.s4 1983009808
  %v4612 = vunpack.c.0.s8 %v4611
  %v4613 = vlaneseq
  %v4614 = vshrl.u32 %v4613, 7
  %v4615 = vsub.s32 %v4612, %v4614
  %v4616 = vrot.slane %v3864, %v4615
  %v4617 = vcombine.high %v4616, %v4616
  %v4619 = vunpack.c.l.s4 1983009808
  %v4620 = vunpack.c.0.s8 %v4619
  %v4621 = vlaneseq
  %v4622 = vshrl.u32 %v4621, 7
  %v4623 = vsub.s32 %v4620, %v4622
  %v4624 = vrot.slane %v3863, %v4623
  %v4625 = vcombine.high %v4624, %v4624
  %v4627 = vunpack.c.l.s4 1983009808
  %v4628 = vunpack.c.0.s8 %v4627
  %v4629 = vlaneseq
  %v4630 = vshrl.u32 %v4629, 7
  %v4631 = vsub.s32 %v4628, %v4630
  %v4632 = vrot.slane %v3865, %v4631
  %v4633 = vcombine.high %v4632, %v4632
  %vm4826 = vcmask 1041408
  %v4827 = vsel %vm4826, %v3872, -inf
  %v4828 = vrot.slane %v4827, 4
  %v4829 = vmax.f32 %v4827, %v4828
  %v4830 = vrot.slane %v4829, 2
  %v4831 = vmax.f32 %v4829, %v4830
  %v4832 = vrot.slane %v4831, 1
  %v4833 = vmax.f32 %v4831, %v4832
  %vm4834 = vcmask 910336
  %v4835 = vsel %vm4834, %v3873, -inf
  %v4836 = vrot.slane %v4835, 4
  %v4837 = vmax.f32 %v4835, %v4836
  %v4838 = vrot.slane %v4837, 2
  %v4839 = vmax.f32 %v4837, %v4838
  %v4840 = vrot.slane %v4839, 1
  %v4841 = vmax.f32 %v4839, %v4840
  %v4842 = vsel %vm4826, %v3880, -inf
  %v4843 = vrot.slane %v4842, 4
  %v4844 = vmax.f32 %v4842, %v4843
  %v4845 = vrot.slane %v4844, 2
  %v4846 = vmax.f32 %v4844, %v4845
  %v4847 = vrot.slane %v4846, 1
  %v4848 = vmax.f32 %v4846, %v4847
  %v4849 = vsel %vm4834, %v3881, -inf
  %v4850 = vrot.slane %v4849, 4
  %v4851 = vmax.f32 %v4849, %v4850
  %v4852 = vrot.slane %v4851, 2
  %v4853 = vmax.f32 %v4851, %v4852
  %v4854 = vrot.slane %v4853, 1
  %v4855 = vmax.f32 %v4853, %v4854
  %v4856 = vsel %vm4826, %v3888, -inf
  %v4857 = vrot.slane %v4856, 4
  %v4858 = vmax.f32 %v4856, %v4857
  %v4859 = vrot.slane %v4858, 2
  %v4860 = vmax.f32 %v4858, %v4859
  %v4861 = vrot.slane %v4860, 1
  %v4862 = vmax.f32 %v4860, %v4861
  %v4863 = vsel %vm4834, %v3889, -inf
  %v4864 = vrot.slane %v4863, 4
  %v4865 = vmax.f32 %v4863, %v4864
  %v4866 = vrot.slane %v4865, 2
  %v4867 = vmax.f32 %v4865, %v4866
  %v4868 = vrot.slane %v4867, 1
  %v4869 = vmax.f32 %v4867, %v4868
  %v4870 = vsel %vm4826, %v3896, -inf
  %v4871 = vrot.slane %v4870, 4
  %v4872 = vmax.f32 %v4870, %v4871
  %v4873 = vrot.slane %v4872, 2
  %v4874 = vmax.f32 %v4872, %v4873
  %v4875 = vrot.slane %v4874, 1
  %v4876 = vmax.f32 %v4874, %v4875
  %v4877 = vsel %vm4834, %v3897, -inf
  %v4878 = vrot.slane %v4877, 4
  %v4879 = vmax.f32 %v4877, %v4878
  %v4880 = vrot.slane %v4879, 2
  %v4881 = vmax.f32 %v4879, %v4880
  %v4882 = vrot.slane %v4881, 1
  %v4883 = vmax.f32 %v4881, %v4882
  %v4884 = vsel %vm4826, %v3904, -inf
  %v4885 = vrot.slane %v4884, 4
  %v4886 = vmax.f32 %v4884, %v4885
  %v4887 = vrot.slane %v4886, 2
  %v4888 = vmax.f32 %v4886, %v4887
  %v4889 = vrot.slane %v4888, 1
  %v4890 = vmax.f32 %v4888, %v4889
  %v4891 = vsel %vm4834, %v3905, -inf
  %v4892 = vrot.slane %v4891, 4
  %v4893 = vmax.f32 %v4891, %v4892
  %v4894 = vrot.slane %v4893, 2
  %v4895 = vmax.f32 %v4893, %v4894
  %v4896 = vrot.slane %v4895, 1
  %v4897 = vmax.f32 %v4895, %v4896
  %v4898 = vsel %vm4826, %v3912, -inf
  %v4899 = vrot.slane %v4898, 4
  %v4900 = vmax.f32 %v4898, %v4899
  %v4901 = vrot.slane %v4900, 2
  %v4902 = vmax.f32 %v4900, %v4901
  %v4903 = vrot.slane %v4902, 1
  %v4904 = vmax.f32 %v4902, %v4903
  %v4905 = vsel %vm4834, %v3913, -inf
  %v4906 = vrot.slane %v4905, 4
  %v4907 = vmax.f32 %v4905, %v4906
  %v4908 = vrot.slane %v4907, 2
  %v4909 = vmax.f32 %v4907, %v4908
  %v4910 = vrot.slane %v4909, 1
  %v4911 = vmax.f32 %v4909, %v4910
  %v4912 = vsel %vm4826, %v3920, -inf
  %v4913 = vrot.slane %v4912, 4
  %v4914 = vmax.f32 %v4912, %v4913
  %v4915 = vrot.slane %v4914, 2
  %v4916 = vmax.f32 %v4914, %v4915
  %v4917 = vrot.slane %v4916, 1
  %v4918 = vmax.f32 %v4916, %v4917
  %v4919 = vsel %vm4834, %v3921, -inf
  %v4920 = vrot.slane %v4919, 4
  %v4921 = vmax.f32 %v4919, %v4920
  %v4922 = vrot.slane %v4921, 2
  %v4923 = vmax.f32 %v4921, %v4922
  %v4924 = vrot.slane %v4923, 1
  %v4925 = vmax.f32 %v4923, %v4924
  %v4926 = vsel %vm4826, %v3928, -inf
  %v4927 = vrot.slane %v4926, 4
  %v4928 = vmax.f32 %v4926, %v4927
  %v4929 = vrot.slane %v4928, 2
  %v4930 = vmax.f32 %v4928, %v4929
  %v4931 = vrot.slane %v4930, 1
  %v4932 = vmax.f32 %v4930, %v4931
  %v4933 = vsel %vm4834, %v3929, -inf
  %v4934 = vrot.slane %v4933, 4
  %v4935 = vmax.f32 %v4933, %v4934
  %v4936 = vrot.slane %v4935, 2
  %v4937 = vmax.f32 %v4935, %v4936
  %v4938 = vrot.slane %v4937, 1
  %v4939 = vmax.f32 %v4937, %v4938
  %v4940 = vsel %vm4826, %v3936, -inf
  %v4941 = vrot.slane %v4940, 4
  %v4942 = vmax.f32 %v4940, %v4941
  %v4943 = vrot.slane %v4942, 2
  %v4944 = vmax.f32 %v4942, %v4943
  %v4945 = vrot.slane %v4944, 1
  %v4946 = vmax.f32 %v4944, %v4945
  %v4947 = vsel %vm4834, %v3937, -inf
  %v4948 = vrot.slane %v4947, 4
  %v4949 = vmax.f32 %v4947, %v4948
  %v4950 = vrot.slane %v4949, 2
  %v4951 = vmax.f32 %v4949, %v4950
  %v4952 = vrot.slane %v4951, 1
  %v4953 = vmax.f32 %v4951, %v4952
  %v4954 = vsel %vm4826, %v3944, -inf
  %v4955 = vrot.slane %v4954, 4
  %v4956 = vmax.f32 %v4954, %v4955
  %v4957 = vrot.slane %v4956, 2
  %v4958 = vmax.f32 %v4956, %v4957
  %v4959 = vrot.slane %v4958, 1
  %v4960 = vmax.f32 %v4958, %v4959
  %v4961 = vsel %vm4834, %v3945, -inf
  %v4962 = vrot.slane %v4961, 4
  %v4963 = vmax.f32 %v4961, %v4962
  %v4964 = vrot.slane %v4963, 2
  %v4965 = vmax.f32 %v4963, %v4964
  %v4966 = vrot.slane %v4965, 1
  %v4967 = vmax.f32 %v4965, %v4966
  %v4968 = vsel %vm4826, %v3952, -inf
  %v4969 = vrot.slane %v4968, 4
  %v4970 = vmax.f32 %v4968, %v4969
  %v4971 = vrot.slane %v4970, 2
  %v4972 = vmax.f32 %v4970, %v4971
  %v4973 = vrot.slane %v4972, 1
  %v4974 = vmax.f32 %v4972, %v4973
  %v4975 = vsel %vm4834, %v3953, -inf
  %v4976 = vrot.slane %v4975, 4
  %v4977 = vmax.f32 %v4975, %v4976
  %v4978 = vrot.slane %v4977, 2
  %v4979 = vmax.f32 %v4977, %v4978
  %v4980 = vrot.slane %v4979, 1
  %v4981 = vmax.f32 %v4979, %v4980
  %v4982 = vsel %vm4826, %v3960, -inf
  %v4983 = vrot.slane %v4982, 4
  %v4984 = vmax.f32 %v4982, %v4983
  %v4985 = vrot.slane %v4984, 2
  %v4986 = vmax.f32 %v4984, %v4985
  %v4987 = vrot.slane %v4986, 1
  %v4988 = vmax.f32 %v4986, %v4987
  %v4989 = vsel %vm4834, %v3961, -inf
  %v4990 = vrot.slane %v4989, 4
  %v4991 = vmax.f32 %v4989, %v4990
  %v4992 = vrot.slane %v4991, 2
  %v4993 = vmax.f32 %v4991, %v4992
  %v4994 = vrot.slane %v4993, 1
  %v4995 = vmax.f32 %v4993, %v4994
  %v4996 = vsel %vm4826, %v3968, -inf
  %v4997 = vrot.slane %v4996, 4
  %v4998 = vmax.f32 %v4996, %v4997
  %v4999 = vrot.slane %v4998, 2
  %v5000 = vmax.f32 %v4998, %v4999
  %v5001 = vrot.slane %v5000, 1
  %v5002 = vmax.f32 %v5000, %v5001
  %v5003 = vsel %vm4834, %v3969, -inf
  %v5004 = vrot.slane %v5003, 4
  %v5005 = vmax.f32 %v5003, %v5004
  %v5006 = vrot.slane %v5005, 2
  %v5007 = vmax.f32 %v5005, %v5006
  %v5008 = vrot.slane %v5007, 1
  %v5009 = vmax.f32 %v5007, %v5008
  %v5010 = vsel %vm4826, %v3976, -inf
  %v5011 = vrot.slane %v5010, 4
  %v5012 = vmax.f32 %v5010, %v5011
  %v5013 = vrot.slane %v5012, 2
  %v5014 = vmax.f32 %v5012, %v5013
  %v5015 = vrot.slane %v5014, 1
  %v5016 = vmax.f32 %v5014, %v5015
  %v5017 = vsel %vm4834, %v3977, -inf
  %v5018 = vrot.slane %v5017, 4
  %v5019 = vmax.f32 %v5017, %v5018
  %v5020 = vrot.slane %v5019, 2
  %v5021 = vmax.f32 %v5019, %v5020
  %v5022 = vrot.slane %v5021, 1
  %v5023 = vmax.f32 %v5021, %v5022
  %v5024 = vsel %vm4826, %v3984, -inf
  %v5025 = vrot.slane %v5024, 4
  %v5026 = vmax.f32 %v5024, %v5025
  %v5027 = vrot.slane %v5026, 2
  %v5028 = vmax.f32 %v5026, %v5027
  %v5029 = vrot.slane %v5028, 1
  %v5030 = vmax.f32 %v5028, %v5029
  %v5031 = vsel %vm4834, %v3985, -inf
  %v5032 = vrot.slane %v5031, 4
  %v5033 = vmax.f32 %v5031, %v5032
  %v5034 = vrot.slane %v5033, 2
  %v5035 = vmax.f32 %v5033, %v5034
  %v5036 = vrot.slane %v5035, 1
  %v5037 = vmax.f32 %v5035, %v5036
  %v5038 = vsel %vm4826, %v3992, -inf
  %v5039 = vrot.slane %v5038, 4
  %v5040 = vmax.f32 %v5038, %v5039
  %v5041 = vrot.slane %v5040, 2
  %v5042 = vmax.f32 %v5040, %v5041
  %v5043 = vrot.slane %v5042, 1
  %v5044 = vmax.f32 %v5042, %v5043
  %v5045 = vsel %vm4834, %v3993, -inf
  %v5046 = vrot.slane %v5045, 4
  %v5047 = vmax.f32 %v5045, %v5046
  %v5048 = vrot.slane %v5047, 2
  %v5049 = vmax.f32 %v5047, %v5048
  %v5050 = vrot.slane %v5049, 1
  %v5051 = vmax.f32 %v5049, %v5050
  %v5052 = vsel %vm4826, %v4000, -inf
  %v5053 = vrot.slane %v5052, 4
  %v5054 = vmax.f32 %v5052, %v5053
  %v5055 = vrot.slane %v5054, 2
  %v5056 = vmax.f32 %v5054, %v5055
  %v5057 = vrot.slane %v5056, 1
  %v5058 = vmax.f32 %v5056, %v5057
  %v5059 = vsel %vm4834, %v4001, -inf
  %v5060 = vrot.slane %v5059, 4
  %v5061 = vmax.f32 %v5059, %v5060
  %v5062 = vrot.slane %v5061, 2
  %v5063 = vmax.f32 %v5061, %v5062
  %v5064 = vrot.slane %v5063, 1
  %v5065 = vmax.f32 %v5063, %v5064
  %v5066 = vsel %vm4826, %v4008, -inf
  %v5067 = vrot.slane %v5066, 4
  %v5068 = vmax.f32 %v5066, %v5067
  %v5069 = vrot.slane %v5068, 2
  %v5070 = vmax.f32 %v5068, %v5069
  %v5071 = vrot.slane %v5070, 1
  %v5072 = vmax.f32 %v5070, %v5071
  %v5073 = vsel %vm4834, %v4009, -inf
  %v5074 = vrot.slane %v5073, 4
  %v5075 = vmax.f32 %v5073, %v5074
  %v5076 = vrot.slane %v5075, 2
  %v5077 = vmax.f32 %v5075, %v5076
  %v5078 = vrot.slane %v5077, 1
  %v5079 = vmax.f32 %v5077, %v5078
  %v5080 = vsel %vm4826, %v4016, -inf
  %v5081 = vrot.slane %v5080, 4
  %v5082 = vmax.f32 %v5080, %v5081
  %v5083 = vrot.slane %v5082, 2
  %v5084 = vmax.f32 %v5082, %v5083
  %v5085 = vrot.slane %v5084, 1
  %v5086 = vmax.f32 %v5084, %v5085
  %v5087 = vsel %vm4834, %v4017, -inf
  %v5088 = vrot.slane %v5087, 4
  %v5089 = vmax.f32 %v5087, %v5088
  %v5090 = vrot.slane %v5089, 2
  %v5091 = vmax.f32 %v5089, %v5090
  %v5092 = vrot.slane %v5091, 1
  %v5093 = vmax.f32 %v5091, %v5092
  %v5094 = vsel %vm4826, %v4024, -inf
  %v5095 = vrot.slane %v5094, 4
  %v5096 = vmax.f32 %v5094, %v5095
  %v5097 = vrot.slane %v5096, 2
  %v5098 = vmax.f32 %v5096, %v5097
  %v5099 = vrot.slane %v5098, 1
  %v5100 = vmax.f32 %v5098, %v5099
  %v5101 = vsel %vm4834, %v4025, -inf
  %v5102 = vrot.slane %v5101, 4
  %v5103 = vmax.f32 %v5101, %v5102
  %v5104 = vrot.slane %v5103, 2
  %v5105 = vmax.f32 %v5103, %v5104
  %v5106 = vrot.slane %v5105, 1
  %v5107 = vmax.f32 %v5105, %v5106
  %v5108 = vsel %vm4826, %v4032, -inf
  %v5109 = vrot.slane %v5108, 4
  %v5110 = vmax.f32 %v5108, %v5109
  %v5111 = vrot.slane %v5110, 2
  %v5112 = vmax.f32 %v5110, %v5111
  %v5113 = vrot.slane %v5112, 1
  %v5114 = vmax.f32 %v5112, %v5113
  %v5115 = vsel %vm4834, %v4033, -inf
  %v5116 = vrot.slane %v5115, 4
  %v5117 = vmax.f32 %v5115, %v5116
  %v5118 = vrot.slane %v5117, 2
  %v5119 = vmax.f32 %v5117, %v5118
  %v5120 = vrot.slane %v5119, 1
  %v5121 = vmax.f32 %v5119, %v5120
  %v5122 = vsel %vm4826, %v4040, -inf
  %v5123 = vrot.slane %v5122, 4
  %v5124 = vmax.f32 %v5122, %v5123
  %v5125 = vrot.slane %v5124, 2
  %v5126 = vmax.f32 %v5124, %v5125
  %v5127 = vrot.slane %v5126, 1
  %v5128 = vmax.f32 %v5126, %v5127
  %v5129 = vsel %vm4834, %v4041, -inf
  %v5130 = vrot.slane %v5129, 4
  %v5131 = vmax.f32 %v5129, %v5130
  %v5132 = vrot.slane %v5131, 2
  %v5133 = vmax.f32 %v5131, %v5132
  %v5134 = vrot.slane %v5133, 1
  %v5135 = vmax.f32 %v5133, %v5134
  %v5136 = vsel %vm4826, %v4048, -inf
  %v5137 = vrot.slane %v5136, 4
  %v5138 = vmax.f32 %v5136, %v5137
  %v5139 = vrot.slane %v5138, 2
  %v5140 = vmax.f32 %v5138, %v5139
  %v5141 = vrot.slane %v5140, 1
  %v5142 = vmax.f32 %v5140, %v5141
  %v5143 = vsel %vm4834, %v4049, -inf
  %v5144 = vrot.slane %v5143, 4
  %v5145 = vmax.f32 %v5143, %v5144
  %v5146 = vrot.slane %v5145, 2
  %v5147 = vmax.f32 %v5145, %v5146
  %v5148 = vrot.slane %v5147, 1
  %v5149 = vmax.f32 %v5147, %v5148
  %v5150 = vsel %vm4826, %v4056, -inf
  %v5151 = vrot.slane %v5150, 4
  %v5152 = vmax.f32 %v5150, %v5151
  %v5153 = vrot.slane %v5152, 2
  %v5154 = vmax.f32 %v5152, %v5153
  %v5155 = vrot.slane %v5154, 1
  %v5156 = vmax.f32 %v5154, %v5155
  %v5157 = vsel %vm4834, %v4057, -inf
  %v5158 = vrot.slane %v5157, 4
  %v5159 = vmax.f32 %v5157, %v5158
  %v5160 = vrot.slane %v5159, 2
  %v5161 = vmax.f32 %v5159, %v5160
  %v5162 = vrot.slane %v5161, 1
  %v5163 = vmax.f32 %v5161, %v5162
  %v5164 = vsel %vm4826, %v4064, -inf
  %v5165 = vrot.slane %v5164, 4
  %v5166 = vmax.f32 %v5164, %v5165
  %v5167 = vrot.slane %v5166, 2
  %v5168 = vmax.f32 %v5166, %v5167
  %v5169 = vrot.slane %v5168, 1
  %v5170 = vmax.f32 %v5168, %v5169
  %v5171 = vsel %vm4834, %v4065, -inf
  %v5172 = vrot.slane %v5171, 4
  %v5173 = vmax.f32 %v5171, %v5172
  %v5174 = vrot.slane %v5173, 2
  %v5175 = vmax.f32 %v5173, %v5174
  %v5176 = vrot.slane %v5175, 1
  %v5177 = vmax.f32 %v5175, %v5176
  %v5178 = vsel %vm4826, %v4072, -inf
  %v5179 = vrot.slane %v5178, 4
  %v5180 = vmax.f32 %v5178, %v5179
  %v5181 = vrot.slane %v5180, 2
  %v5182 = vmax.f32 %v5180, %v5181
  %v5183 = vrot.slane %v5182, 1
  %v5184 = vmax.f32 %v5182, %v5183
  %v5185 = vsel %vm4834, %v4073, -inf
  %v5186 = vrot.slane %v5185, 4
  %v5187 = vmax.f32 %v5185, %v5186
  %v5188 = vrot.slane %v5187, 2
  %v5189 = vmax.f32 %v5187, %v5188
  %v5190 = vrot.slane %v5189, 1
  %v5191 = vmax.f32 %v5189, %v5190
  %v5192 = vsel %vm4826, %v4080, -inf
  %v5193 = vrot.slane %v5192, 4
  %v5194 = vmax.f32 %v5192, %v5193
  %v5195 = vrot.slane %v5194, 2
  %v5196 = vmax.f32 %v5194, %v5195
  %v5197 = vrot.slane %v5196, 1
  %v5198 = vmax.f32 %v5196, %v5197
  %v5199 = vsel %vm4834, %v4081, -inf
  %v5200 = vrot.slane %v5199, 4
  %v5201 = vmax.f32 %v5199, %v5200
  %v5202 = vrot.slane %v5201, 2
  %v5203 = vmax.f32 %v5201, %v5202
  %v5204 = vrot.slane %v5203, 1
  %v5205 = vmax.f32 %v5203, %v5204
  %v5206 = vsel %vm4826, %v4088, -inf
  %v5207 = vrot.slane %v5206, 4
  %v5208 = vmax.f32 %v5206, %v5207
  %v5209 = vrot.slane %v5208, 2
  %v5210 = vmax.f32 %v5208, %v5209
  %v5211 = vrot.slane %v5210, 1
  %v5212 = vmax.f32 %v5210, %v5211
  %v5213 = vsel %vm4834, %v4089, -inf
  %v5214 = vrot.slane %v5213, 4
  %v5215 = vmax.f32 %v5213, %v5214
  %v5216 = vrot.slane %v5215, 2
  %v5217 = vmax.f32 %v5215, %v5216
  %v5218 = vrot.slane %v5217, 1
  %v5219 = vmax.f32 %v5217, %v5218
  %v5220 = vsel %vm4826, %v4096, -inf
  %v5221 = vrot.slane %v5220, 4
  %v5222 = vmax.f32 %v5220, %v5221
  %v5223 = vrot.slane %v5222, 2
  %v5224 = vmax.f32 %v5222, %v5223
  %v5225 = vrot.slane %v5224, 1
  %v5226 = vmax.f32 %v5224, %v5225
  %v5227 = vsel %vm4834, %v4097, -inf
  %v5228 = vrot.slane %v5227, 4
  %v5229 = vmax.f32 %v5227, %v5228
  %v5230 = vrot.slane %v5229, 2
  %v5231 = vmax.f32 %v5229, %v5230
  %v5232 = vrot.slane %v5231, 1
  %v5233 = vmax.f32 %v5231, %v5232
  %v5234 = vsel %vm4826, %v4104, -inf
  %v5235 = vrot.slane %v5234, 4
  %v5236 = vmax.f32 %v5234, %v5235
  %v5237 = vrot.slane %v5236, 2
  %v5238 = vmax.f32 %v5236, %v5237
  %v5239 = vrot.slane %v5238, 1
  %v5240 = vmax.f32 %v5238, %v5239
  %v5241 = vsel %vm4834, %v4105, -inf
  %v5242 = vrot.slane %v5241, 4
  %v5243 = vmax.f32 %v5241, %v5242
  %v5244 = vrot.slane %v5243, 2
  %v5245 = vmax.f32 %v5243, %v5244
  %v5246 = vrot.slane %v5245, 1
  %v5247 = vmax.f32 %v5245, %v5246
  %v5248 = vsel %vm4826, %v4112, -inf
  %v5249 = vrot.slane %v5248, 4
  %v5250 = vmax.f32 %v5248, %v5249
  %v5251 = vrot.slane %v5250, 2
  %v5252 = vmax.f32 %v5250, %v5251
  %v5253 = vrot.slane %v5252, 1
  %v5254 = vmax.f32 %v5252, %v5253
  %v5255 = vsel %vm4834, %v4113, -inf
  %v5256 = vrot.slane %v5255, 4
  %v5257 = vmax.f32 %v5255, %v5256
  %v5258 = vrot.slane %v5257, 2
  %v5259 = vmax.f32 %v5257, %v5258
  %v5260 = vrot.slane %v5259, 1
  %v5261 = vmax.f32 %v5259, %v5260
  %v5262 = vsel %vm4826, %v4120, -inf
  %v5263 = vrot.slane %v5262, 4
  %v5264 = vmax.f32 %v5262, %v5263
  %v5265 = vrot.slane %v5264, 2
  %v5266 = vmax.f32 %v5264, %v5265
  %v5267 = vrot.slane %v5266, 1
  %v5268 = vmax.f32 %v5266, %v5267
  %v5269 = vsel %vm4834, %v4121, -inf
  %v5270 = vrot.slane %v5269, 4
  %v5271 = vmax.f32 %v5269, %v5270
  %v5272 = vrot.slane %v5271, 2
  %v5273 = vmax.f32 %v5271, %v5272
  %v5274 = vrot.slane %v5273, 1
  %v5275 = vmax.f32 %v5273, %v5274
  %v5276 = vsel %vm4826, %v4128, -inf
  %v5277 = vrot.slane %v5276, 4
  %v5278 = vmax.f32 %v5276, %v5277
  %v5279 = vrot.slane %v5278, 2
  %v5280 = vmax.f32 %v5278, %v5279
  %v5281 = vrot.slane %v5280, 1
  %v5282 = vmax.f32 %v5280, %v5281
  %v5283 = vsel %vm4834, %v4129, -inf
  %v5284 = vrot.slane %v5283, 4
  %v5285 = vmax.f32 %v5283, %v5284
  %v5286 = vrot.slane %v5285, 2
  %v5287 = vmax.f32 %v5285, %v5286
  %v5288 = vrot.slane %v5287, 1
  %v5289 = vmax.f32 %v5287, %v5288
  %v5290 = vsel %vm4826, %v4136, -inf
  %v5291 = vrot.slane %v5290, 4
  %v5292 = vmax.f32 %v5290, %v5291
  %v5293 = vrot.slane %v5292, 2
  %v5294 = vmax.f32 %v5292, %v5293
  %v5295 = vrot.slane %v5294, 1
  %v5296 = vmax.f32 %v5294, %v5295
  %v5297 = vsel %vm4834, %v4137, -inf
  %v5298 = vrot.slane %v5297, 4
  %v5299 = vmax.f32 %v5297, %v5298
  %v5300 = vrot.slane %v5299, 2
  %v5301 = vmax.f32 %v5299, %v5300
  %v5302 = vrot.slane %v5301, 1
  %v5303 = vmax.f32 %v5301, %v5302
  %v5304 = vsel %vm4826, %v4144, -inf
  %v5305 = vrot.slane %v5304, 4
  %v5306 = vmax.f32 %v5304, %v5305
  %v5307 = vrot.slane %v5306, 2
  %v5308 = vmax.f32 %v5306, %v5307
  %v5309 = vrot.slane %v5308, 1
  %v5310 = vmax.f32 %v5308, %v5309
  %v5311 = vsel %vm4834, %v4145, -inf
  %v5312 = vrot.slane %v5311, 4
  %v5313 = vmax.f32 %v5311, %v5312
  %v5314 = vrot.slane %v5313, 2
  %v5315 = vmax.f32 %v5313, %v5314
  %v5316 = vrot.slane %v5315, 1
  %v5317 = vmax.f32 %v5315, %v5316
  %v5318 = vsel %vm4826, %v4152, -inf
  %v5319 = vrot.slane %v5318, 4
  %v5320 = vmax.f32 %v5318, %v5319
  %v5321 = vrot.slane %v5320, 2
  %v5322 = vmax.f32 %v5320, %v5321
  %v5323 = vrot.slane %v5322, 1
  %v5324 = vmax.f32 %v5322, %v5323
  %v5325 = vsel %vm4834, %v4153, -inf
  %v5326 = vrot.slane %v5325, 4
  %v5327 = vmax.f32 %v5325, %v5326
  %v5328 = vrot.slane %v5327, 2
  %v5329 = vmax.f32 %v5327, %v5328
  %v5330 = vrot.slane %v5329, 1
  %v5331 = vmax.f32 %v5329, %v5330
  %v5332 = vsel %vm4826, %v4160, -inf
  %v5333 = vrot.slane %v5332, 4
  %v5334 = vmax.f32 %v5332, %v5333
  %v5335 = vrot.slane %v5334, 2
  %v5336 = vmax.f32 %v5334, %v5335
  %v5337 = vrot.slane %v5336, 1
  %v5338 = vmax.f32 %v5336, %v5337
  %v5339 = vsel %vm4834, %v4161, -inf
  %v5340 = vrot.slane %v5339, 4
  %v5341 = vmax.f32 %v5339, %v5340
  %v5342 = vrot.slane %v5341, 2
  %v5343 = vmax.f32 %v5341, %v5342
  %v5344 = vrot.slane %v5343, 1
  %v5345 = vmax.f32 %v5343, %v5344
  %v5346 = vsel %vm4826, %v4168, -inf
  %v5347 = vrot.slane %v5346, 4
  %v5348 = vmax.f32 %v5346, %v5347
  %v5349 = vrot.slane %v5348, 2
  %v5350 = vmax.f32 %v5348, %v5349
  %v5351 = vrot.slane %v5350, 1
  %v5352 = vmax.f32 %v5350, %v5351
  %v5353 = vsel %vm4834, %v4169, -inf
  %v5354 = vrot.slane %v5353, 4
  %v5355 = vmax.f32 %v5353, %v5354
  %v5356 = vrot.slane %v5355, 2
  %v5357 = vmax.f32 %v5355, %v5356
  %v5358 = vrot.slane %v5357, 1
  %v5359 = vmax.f32 %v5357, %v5358
  %v5360 = vsel %vm4826, %v4176, -inf
  %v5361 = vrot.slane %v5360, 4
  %v5362 = vmax.f32 %v5360, %v5361
  %v5363 = vrot.slane %v5362, 2
  %v5364 = vmax.f32 %v5362, %v5363
  %v5365 = vrot.slane %v5364, 1
  %v5366 = vmax.f32 %v5364, %v5365
  %v5367 = vsel %vm4834, %v4177, -inf
  %v5368 = vrot.slane %v5367, 4
  %v5369 = vmax.f32 %v5367, %v5368
  %v5370 = vrot.slane %v5369, 2
  %v5371 = vmax.f32 %v5369, %v5370
  %v5372 = vrot.slane %v5371, 1
  %v5373 = vmax.f32 %v5371, %v5372
  %v5374 = vsel %vm4826, %v4184, -inf
  %v5375 = vrot.slane %v5374, 4
  %v5376 = vmax.f32 %v5374, %v5375
  %v5377 = vrot.slane %v5376, 2
  %v5378 = vmax.f32 %v5376, %v5377
  %v5379 = vrot.slane %v5378, 1
  %v5380 = vmax.f32 %v5378, %v5379
  %v5381 = vsel %vm4834, %v4185, -inf
  %v5382 = vrot.slane %v5381, 4
  %v5383 = vmax.f32 %v5381, %v5382
  %v5384 = vrot.slane %v5383, 2
  %v5385 = vmax.f32 %v5383, %v5384
  %v5386 = vrot.slane %v5385, 1
  %v5387 = vmax.f32 %v5385, %v5386
  %v5388 = vsel %vm4826, %v4192, -inf
  %v5389 = vrot.slane %v5388, 4
  %v5390 = vmax.f32 %v5388, %v5389
  %v5391 = vrot.slane %v5390, 2
  %v5392 = vmax.f32 %v5390, %v5391
  %v5393 = vrot.slane %v5392, 1
  %v5394 = vmax.f32 %v5392, %v5393
  %v5395 = vsel %vm4834, %v4193, -inf
  %v5396 = vrot.slane %v5395, 4
  %v5397 = vmax.f32 %v5395, %v5396
  %v5398 = vrot.slane %v5397, 2
  %v5399 = vmax.f32 %v5397, %v5398
  %v5400 = vrot.slane %v5399, 1
  %v5401 = vmax.f32 %v5399, %v5400
  %v5402 = vsel %vm4826, %v4200, -inf
  %v5403 = vrot.slane %v5402, 4
  %v5404 = vmax.f32 %v5402, %v5403
  %v5405 = vrot.slane %v5404, 2
  %v5406 = vmax.f32 %v5404, %v5405
  %v5407 = vrot.slane %v5406, 1
  %v5408 = vmax.f32 %v5406, %v5407
  %v5409 = vsel %vm4834, %v4201, -inf
  %v5410 = vrot.slane %v5409, 4
  %v5411 = vmax.f32 %v5409, %v5410
  %v5412 = vrot.slane %v5411, 2
  %v5413 = vmax.f32 %v5411, %v5412
  %v5414 = vrot.slane %v5413, 1
  %v5415 = vmax.f32 %v5413, %v5414
  %v5416 = vsel %vm4826, %v4208, -inf
  %v5417 = vrot.slane %v5416, 4
  %v5418 = vmax.f32 %v5416, %v5417
  %v5419 = vrot.slane %v5418, 2
  %v5420 = vmax.f32 %v5418, %v5419
  %v5421 = vrot.slane %v5420, 1
  %v5422 = vmax.f32 %v5420, %v5421
  %v5423 = vsel %vm4834, %v4209, -inf
  %v5424 = vrot.slane %v5423, 4
  %v5425 = vmax.f32 %v5423, %v5424
  %v5426 = vrot.slane %v5425, 2
  %v5427 = vmax.f32 %v5425, %v5426
  %v5428 = vrot.slane %v5427, 1
  %v5429 = vmax.f32 %v5427, %v5428
  %v5430 = vsel %vm4826, %v4216, -inf
  %v5431 = vrot.slane %v5430, 4
  %v5432 = vmax.f32 %v5430, %v5431
  %v5433 = vrot.slane %v5432, 2
  %v5434 = vmax.f32 %v5432, %v5433
  %v5435 = vrot.slane %v5434, 1
  %v5436 = vmax.f32 %v5434, %v5435
  %v5437 = vsel %vm4834, %v4217, -inf
  %v5438 = vrot.slane %v5437, 4
  %v5439 = vmax.f32 %v5437, %v5438
  %v5440 = vrot.slane %v5439, 2
  %v5441 = vmax.f32 %v5439, %v5440
  %v5442 = vrot.slane %v5441, 1
  %v5443 = vmax.f32 %v5441, %v5442
  %v5444 = vsel %vm4826, %v4224, -inf
  %v5445 = vrot.slane %v5444, 4
  %v5446 = vmax.f32 %v5444, %v5445
  %v5447 = vrot.slane %v5446, 2
  %v5448 = vmax.f32 %v5446, %v5447
  %v5449 = vrot.slane %v5448, 1
  %v5450 = vmax.f32 %v5448, %v5449
  %v5451 = vsel %vm4834, %v4225, -inf
  %v5452 = vrot.slane %v5451, 4
  %v5453 = vmax.f32 %v5451, %v5452
  %v5454 = vrot.slane %v5453, 2
  %v5455 = vmax.f32 %v5453, %v5454
  %v5456 = vrot.slane %v5455, 1
  %v5457 = vmax.f32 %v5455, %v5456
  %v5458 = vsel %vm4826, %v4232, -inf
  %v5459 = vrot.slane %v5458, 4
  %v5460 = vmax.f32 %v5458, %v5459
  %v5461 = vrot.slane %v5460, 2
  %v5462 = vmax.f32 %v5460, %v5461
  %v5463 = vrot.slane %v5462, 1
  %v5464 = vmax.f32 %v5462, %v5463
  %v5465 = vsel %vm4834, %v4233, -inf
  %v5466 = vrot.slane %v5465, 4
  %v5467 = vmax.f32 %v5465, %v5466
  %v5468 = vrot.slane %v5467, 2
  %v5469 = vmax.f32 %v5467, %v5468
  %v5470 = vrot.slane %v5469, 1
  %v5471 = vmax.f32 %v5469, %v5470
  %v5472 = vsel %vm4826, %v4240, -inf
  %v5473 = vrot.slane %v5472, 4
  %v5474 = vmax.f32 %v5472, %v5473
  %v5475 = vrot.slane %v5474, 2
  %v5476 = vmax.f32 %v5474, %v5475
  %v5477 = vrot.slane %v5476, 1
  %v5478 = vmax.f32 %v5476, %v5477
  %v5479 = vsel %vm4834, %v4241, -inf
  %v5480 = vrot.slane %v5479, 4
  %v5481 = vmax.f32 %v5479, %v5480
  %v5482 = vrot.slane %v5481, 2
  %v5483 = vmax.f32 %v5481, %v5482
  %v5484 = vrot.slane %v5483, 1
  %v5485 = vmax.f32 %v5483, %v5484
  %v5486 = vsel %vm4826, %v4248, -inf
  %v5487 = vrot.slane %v5486, 4
  %v5488 = vmax.f32 %v5486, %v5487
  %v5489 = vrot.slane %v5488, 2
  %v5490 = vmax.f32 %v5488, %v5489
  %v5491 = vrot.slane %v5490, 1
  %v5492 = vmax.f32 %v5490, %v5491
  %v5493 = vsel %vm4834, %v4249, -inf
  %v5494 = vrot.slane %v5493, 4
  %v5495 = vmax.f32 %v5493, %v5494
  %v5496 = vrot.slane %v5495, 2
  %v5497 = vmax.f32 %v5495, %v5496
  %v5498 = vrot.slane %v5497, 1
  %v5499 = vmax.f32 %v5497, %v5498
  %v5500 = vsel %vm4826, %v4256, -inf
  %v5501 = vrot.slane %v5500, 4
  %v5502 = vmax.f32 %v5500, %v5501
  %v5503 = vrot.slane %v5502, 2
  %v5504 = vmax.f32 %v5502, %v5503
  %v5505 = vrot.slane %v5504, 1
  %v5506 = vmax.f32 %v5504, %v5505
  %v5507 = vsel %vm4834, %v4257, -inf
  %v5508 = vrot.slane %v5507, 4
  %v5509 = vmax.f32 %v5507, %v5508
  %v5510 = vrot.slane %v5509, 2
  %v5511 = vmax.f32 %v5509, %v5510
  %v5512 = vrot.slane %v5511, 1
  %v5513 = vmax.f32 %v5511, %v5512
  %v5514 = vsel %vm4826, %v4264, -inf
  %v5515 = vrot.slane %v5514, 4
  %v5516 = vmax.f32 %v5514, %v5515
  %v5517 = vrot.slane %v5516, 2
  %v5518 = vmax.f32 %v5516, %v5517
  %v5519 = vrot.slane %v5518, 1
  %v5520 = vmax.f32 %v5518, %v5519
  %v5521 = vsel %vm4834, %v4265, -inf
  %v5522 = vrot.slane %v5521, 4
  %v5523 = vmax.f32 %v5521, %v5522
  %v5524 = vrot.slane %v5523, 2
  %v5525 = vmax.f32 %v5523, %v5524
  %v5526 = vrot.slane %v5525, 1
  %v5527 = vmax.f32 %v5525, %v5526
  %v5528 = vsel %vm4826, %v4272, -inf
  %v5529 = vrot.slane %v5528, 4
  %v5530 = vmax.f32 %v5528, %v5529
  %v5531 = vrot.slane %v5530, 2
  %v5532 = vmax.f32 %v5530, %v5531
  %v5533 = vrot.slane %v5532, 1
  %v5534 = vmax.f32 %v5532, %v5533
  %v5535 = vsel %vm4834, %v4273, -inf
  %v5536 = vrot.slane %v5535, 4
  %v5537 = vmax.f32 %v5535, %v5536
  %v5538 = vrot.slane %v5537, 2
  %v5539 = vmax.f32 %v5537, %v5538
  %v5540 = vrot.slane %v5539, 1
  %v5541 = vmax.f32 %v5539, %v5540
  %v5542 = vsel %vm4826, %v4280, -inf
  %v5543 = vrot.slane %v5542, 4
  %v5544 = vmax.f32 %v5542, %v5543
  %v5545 = vrot.slane %v5544, 2
  %v5546 = vmax.f32 %v5544, %v5545
  %v5547 = vrot.slane %v5546, 1
  %v5548 = vmax.f32 %v5546, %v5547
  %v5549 = vsel %vm4834, %v4281, -inf
  %v5550 = vrot.slane %v5549, 4
  %v5551 = vmax.f32 %v5549, %v5550
  %v5552 = vrot.slane %v5551, 2
  %v5553 = vmax.f32 %v5551, %v5552
  %v5554 = vrot.slane %v5553, 1
  %v5555 = vmax.f32 %v5553, %v5554
  %v5556 = vsel %vm4826, %v4288, -inf
  %v5557 = vrot.slane %v5556, 4
  %v5558 = vmax.f32 %v5556, %v5557
  %v5559 = vrot.slane %v5558, 2
  %v5560 = vmax.f32 %v5558, %v5559
  %v5561 = vrot.slane %v5560, 1
  %v5562 = vmax.f32 %v5560, %v5561
  %v5563 = vsel %vm4834, %v4289, -inf
  %v5564 = vrot.slane %v5563, 4
  %v5565 = vmax.f32 %v5563, %v5564
  %v5566 = vrot.slane %v5565, 2
  %v5567 = vmax.f32 %v5565, %v5566
  %v5568 = vrot.slane %v5567, 1
  %v5569 = vmax.f32 %v5567, %v5568
  %v5570 = vsel %vm4826, %v4296, -inf
  %v5571 = vrot.slane %v5570, 4
  %v5572 = vmax.f32 %v5570, %v5571
  %v5573 = vrot.slane %v5572, 2
  %v5574 = vmax.f32 %v5572, %v5573
  %v5575 = vrot.slane %v5574, 1
  %v5576 = vmax.f32 %v5574, %v5575
  %v5577 = vsel %vm4834, %v4297, -inf
  %v5578 = vrot.slane %v5577, 4
  %v5579 = vmax.f32 %v5577, %v5578
  %v5580 = vrot.slane %v5579, 2
  %v5581 = vmax.f32 %v5579, %v5580
  %v5582 = vrot.slane %v5581, 1
  %v5583 = vmax.f32 %v5581, %v5582
  %v5584 = vsel %vm4826, %v4304, -inf
  %v5585 = vrot.slane %v5584, 4
  %v5586 = vmax.f32 %v5584, %v5585
  %v5587 = vrot.slane %v5586, 2
  %v5588 = vmax.f32 %v5586, %v5587
  %v5589 = vrot.slane %v5588, 1
  %v5590 = vmax.f32 %v5588, %v5589
  %v5591 = vsel %vm4834, %v4305, -inf
  %v5592 = vrot.slane %v5591, 4
  %v5593 = vmax.f32 %v5591, %v5592
  %v5594 = vrot.slane %v5593, 2
  %v5595 = vmax.f32 %v5593, %v5594
  %v5596 = vrot.slane %v5595, 1
  %v5597 = vmax.f32 %v5595, %v5596
  %v5598 = vsel %vm4826, %v4312, -inf
  %v5599 = vrot.slane %v5598, 4
  %v5600 = vmax.f32 %v5598, %v5599
  %v5601 = vrot.slane %v5600, 2
  %v5602 = vmax.f32 %v5600, %v5601
  %v5603 = vrot.slane %v5602, 1
  %v5604 = vmax.f32 %v5602, %v5603
  %v5605 = vsel %vm4834, %v4313, -inf
  %v5606 = vrot.slane %v5605, 4
  %v5607 = vmax.f32 %v5605, %v5606
  %v5608 = vrot.slane %v5607, 2
  %v5609 = vmax.f32 %v5607, %v5608
  %v5610 = vrot.slane %v5609, 1
  %v5611 = vmax.f32 %v5609, %v5610
  %v5612 = vsel %vm4826, %v4320, -inf
  %v5613 = vrot.slane %v5612, 4
  %v5614 = vmax.f32 %v5612, %v5613
  %v5615 = vrot.slane %v5614, 2
  %v5616 = vmax.f32 %v5614, %v5615
  %v5617 = vrot.slane %v5616, 1
  %v5618 = vmax.f32 %v5616, %v5617
  %v5619 = vsel %vm4834, %v4321, -inf
  %v5620 = vrot.slane %v5619, 4
  %v5621 = vmax.f32 %v5619, %v5620
  %v5622 = vrot.slane %v5621, 2
  %v5623 = vmax.f32 %v5621, %v5622
  %v5624 = vrot.slane %v5623, 1
  %v5625 = vmax.f32 %v5623, %v5624
  %v5626 = vsel %vm4826, %v4328, -inf
  %v5627 = vrot.slane %v5626, 4
  %v5628 = vmax.f32 %v5626, %v5627
  %v5629 = vrot.slane %v5628, 2
  %v5630 = vmax.f32 %v5628, %v5629
  %v5631 = vrot.slane %v5630, 1
  %v5632 = vmax.f32 %v5630, %v5631
  %v5633 = vsel %vm4834, %v4329, -inf
  %v5634 = vrot.slane %v5633, 4
  %v5635 = vmax.f32 %v5633, %v5634
  %v5636 = vrot.slane %v5635, 2
  %v5637 = vmax.f32 %v5635, %v5636
  %v5638 = vrot.slane %v5637, 1
  %v5639 = vmax.f32 %v5637, %v5638
  %v5640 = vsel %vm4826, %v4336, -inf
  %v5641 = vrot.slane %v5640, 4
  %v5642 = vmax.f32 %v5640, %v5641
  %v5643 = vrot.slane %v5642, 2
  %v5644 = vmax.f32 %v5642, %v5643
  %v5645 = vrot.slane %v5644, 1
  %v5646 = vmax.f32 %v5644, %v5645
  %v5647 = vsel %vm4834, %v4337, -inf
  %v5648 = vrot.slane %v5647, 4
  %v5649 = vmax.f32 %v5647, %v5648
  %v5650 = vrot.slane %v5649, 2
  %v5651 = vmax.f32 %v5649, %v5650
  %v5652 = vrot.slane %v5651, 1
  %v5653 = vmax.f32 %v5651, %v5652
  %v5654 = vsel %vm4826, %v4344, -inf
  %v5655 = vrot.slane %v5654, 4
  %v5656 = vmax.f32 %v5654, %v5655
  %v5657 = vrot.slane %v5656, 2
  %v5658 = vmax.f32 %v5656, %v5657
  %v5659 = vrot.slane %v5658, 1
  %v5660 = vmax.f32 %v5658, %v5659
  %v5661 = vsel %vm4834, %v4345, -inf
  %v5662 = vrot.slane %v5661, 4
  %v5663 = vmax.f32 %v5661, %v5662
  %v5664 = vrot.slane %v5663, 2
  %v5665 = vmax.f32 %v5663, %v5664
  %v5666 = vrot.slane %v5665, 1
  %v5667 = vmax.f32 %v5665, %v5666
  %v5668 = vsel %vm4826, %v4352, -inf
  %v5669 = vrot.slane %v5668, 4
  %v5670 = vmax.f32 %v5668, %v5669
  %v5671 = vrot.slane %v5670, 2
  %v5672 = vmax.f32 %v5670, %v5671
  %v5673 = vrot.slane %v5672, 1
  %v5674 = vmax.f32 %v5672, %v5673
  %v5675 = vsel %vm4834, %v4353, -inf
  %v5676 = vrot.slane %v5675, 4
  %v5677 = vmax.f32 %v5675, %v5676
  %v5678 = vrot.slane %v5677, 2
  %v5679 = vmax.f32 %v5677, %v5678
  %v5680 = vrot.slane %v5679, 1
  %v5681 = vmax.f32 %v5679, %v5680
  %v5682 = vsel %vm4826, %v4360, -inf
  %v5683 = vrot.slane %v5682, 4
  %v5684 = vmax.f32 %v5682, %v5683
  %v5685 = vrot.slane %v5684, 2
  %v5686 = vmax.f32 %v5684, %v5685
  %v5687 = vrot.slane %v5686, 1
  %v5688 = vmax.f32 %v5686, %v5687
  %v5689 = vsel %vm4834, %v4361, -inf
  %v5690 = vrot.slane %v5689, 4
  %v5691 = vmax.f32 %v5689, %v5690
  %v5692 = vrot.slane %v5691, 2
  %v5693 = vmax.f32 %v5691, %v5692
  %v5694 = vrot.slane %v5693, 1
  %v5695 = vmax.f32 %v5693, %v5694
  %v5696 = vsel %vm4826, %v4368, -inf
  %v5697 = vrot.slane %v5696, 4
  %v5698 = vmax.f32 %v5696, %v5697
  %v5699 = vrot.slane %v5698, 2
  %v5700 = vmax.f32 %v5698, %v5699
  %v5701 = vrot.slane %v5700, 1
  %v5702 = vmax.f32 %v5700, %v5701
  %v5703 = vsel %vm4834, %v4369, -inf
  %v5704 = vrot.slane %v5703, 4
  %v5705 = vmax.f32 %v5703, %v5704
  %v5706 = vrot.slane %v5705, 2
  %v5707 = vmax.f32 %v5705, %v5706
  %v5708 = vrot.slane %v5707, 1
  %v5709 = vmax.f32 %v5707, %v5708
  %v5710 = vsel %vm4826, %v4376, -inf
  %v5711 = vrot.slane %v5710, 4
  %v5712 = vmax.f32 %v5710, %v5711
  %v5713 = vrot.slane %v5712, 2
  %v5714 = vmax.f32 %v5712, %v5713
  %v5715 = vrot.slane %v5714, 1
  %v5716 = vmax.f32 %v5714, %v5715
  %v5717 = vsel %vm4834, %v4377, -inf
  %v5718 = vrot.slane %v5717, 4
  %v5719 = vmax.f32 %v5717, %v5718
  %v5720 = vrot.slane %v5719, 2
  %v5721 = vmax.f32 %v5719, %v5720
  %v5722 = vrot.slane %v5721, 1
  %v5723 = vmax.f32 %v5721, %v5722
  %v5724 = vsel %vm4826, %v4384, -inf
  %v5725 = vrot.slane %v5724, 4
  %v5726 = vmax.f32 %v5724, %v5725
  %v5727 = vrot.slane %v5726, 2
  %v5728 = vmax.f32 %v5726, %v5727
  %v5729 = vrot.slane %v5728, 1
  %v5730 = vmax.f32 %v5728, %v5729
  %v5731 = vsel %vm4834, %v4385, -inf
  %v5732 = vrot.slane %v5731, 4
  %v5733 = vmax.f32 %v5731, %v5732
  %v5734 = vrot.slane %v5733, 2
  %v5735 = vmax.f32 %v5733, %v5734
  %v5736 = vrot.slane %v5735, 1
  %v5737 = vmax.f32 %v5735, %v5736
  %v5738 = vsel %vm4826, %v4392, -inf
  %v5739 = vrot.slane %v5738, 4
  %v5740 = vmax.f32 %v5738, %v5739
  %v5741 = vrot.slane %v5740, 2
  %v5742 = vmax.f32 %v5740, %v5741
  %v5743 = vrot.slane %v5742, 1
  %v5744 = vmax.f32 %v5742, %v5743
  %v5745 = vsel %vm4834, %v4393, -inf
  %v5746 = vrot.slane %v5745, 4
  %v5747 = vmax.f32 %v5745, %v5746
  %v5748 = vrot.slane %v5747, 2
  %v5749 = vmax.f32 %v5747, %v5748
  %v5750 = vrot.slane %v5749, 1
  %v5751 = vmax.f32 %v5749, %v5750
  %v5752 = vsel %vm4826, %v4400, -inf
  %v5753 = vrot.slane %v5752, 4
  %v5754 = vmax.f32 %v5752, %v5753
  %v5755 = vrot.slane %v5754, 2
  %v5756 = vmax.f32 %v5754, %v5755
  %v5757 = vrot.slane %v5756, 1
  %v5758 = vmax.f32 %v5756, %v5757
  %v5759 = vsel %vm4834, %v4401, -inf
  %v5760 = vrot.slane %v5759, 4
  %v5761 = vmax.f32 %v5759, %v5760
  %v5762 = vrot.slane %v5761, 2
  %v5763 = vmax.f32 %v5761, %v5762
  %v5764 = vrot.slane %v5763, 1
  %v5765 = vmax.f32 %v5763, %v5764
  %v5766 = vsel %vm4826, %v4408, -inf
  %v5767 = vrot.slane %v5766, 4
  %v5768 = vmax.f32 %v5766, %v5767
  %v5769 = vrot.slane %v5768, 2
  %v5770 = vmax.f32 %v5768, %v5769
  %v5771 = vrot.slane %v5770, 1
  %v5772 = vmax.f32 %v5770, %v5771
  %v5773 = vsel %vm4834, %v4409, -inf
  %v5774 = vrot.slane %v5773, 4
  %v5775 = vmax.f32 %v5773, %v5774
  %v5776 = vrot.slane %v5775, 2
  %v5777 = vmax.f32 %v5775, %v5776
  %v5778 = vrot.slane %v5777, 1
  %v5779 = vmax.f32 %v5777, %v5778
  %v5780 = vsel %vm4826, %v4416, -inf
  %v5781 = vrot.slane %v5780, 4
  %v5782 = vmax.f32 %v5780, %v5781
  %v5783 = vrot.slane %v5782, 2
  %v5784 = vmax.f32 %v5782, %v5783
  %v5785 = vrot.slane %v5784, 1
  %v5786 = vmax.f32 %v5784, %v5785
  %v5787 = vsel %vm4834, %v4417, -inf
  %v5788 = vrot.slane %v5787, 4
  %v5789 = vmax.f32 %v5787, %v5788
  %v5790 = vrot.slane %v5789, 2
  %v5791 = vmax.f32 %v5789, %v5790
  %v5792 = vrot.slane %v5791, 1
  %v5793 = vmax.f32 %v5791, %v5792
  %v5794 = vsel %vm4826, %v4424, -inf
  %v5795 = vrot.slane %v5794, 4
  %v5796 = vmax.f32 %v5794, %v5795
  %v5797 = vrot.slane %v5796, 2
  %v5798 = vmax.f32 %v5796, %v5797
  %v5799 = vrot.slane %v5798, 1
  %v5800 = vmax.f32 %v5798, %v5799
  %v5801 = vsel %vm4834, %v4425, -inf
  %v5802 = vrot.slane %v5801, 4
  %v5803 = vmax.f32 %v5801, %v5802
  %v5804 = vrot.slane %v5803, 2
  %v5805 = vmax.f32 %v5803, %v5804
  %v5806 = vrot.slane %v5805, 1
  %v5807 = vmax.f32 %v5805, %v5806
  %v5808 = vsel %vm4826, %v4432, -inf
  %v5809 = vrot.slane %v5808, 4
  %v5810 = vmax.f32 %v5808, %v5809
  %v5811 = vrot.slane %v5810, 2
  %v5812 = vmax.f32 %v5810, %v5811
  %v5813 = vrot.slane %v5812, 1
  %v5814 = vmax.f32 %v5812, %v5813
  %v5815 = vsel %vm4834, %v4433, -inf
  %v5816 = vrot.slane %v5815, 4
  %v5817 = vmax.f32 %v5815, %v5816
  %v5818 = vrot.slane %v5817, 2
  %v5819 = vmax.f32 %v5817, %v5818
  %v5820 = vrot.slane %v5819, 1
  %v5821 = vmax.f32 %v5819, %v5820
  %v5822 = vsel %vm4826, %v4440, -inf
  %v5823 = vrot.slane %v5822, 4
  %v5824 = vmax.f32 %v5822, %v5823
  %v5825 = vrot.slane %v5824, 2
  %v5826 = vmax.f32 %v5824, %v5825
  %v5827 = vrot.slane %v5826, 1
  %v5828 = vmax.f32 %v5826, %v5827
  %v5829 = vsel %vm4834, %v4441, -inf
  %v5830 = vrot.slane %v5829, 4
  %v5831 = vmax.f32 %v5829, %v5830
  %v5832 = vrot.slane %v5831, 2
  %v5833 = vmax.f32 %v5831, %v5832
  %v5834 = vrot.slane %v5833, 1
  %v5835 = vmax.f32 %v5833, %v5834
  %v5836 = vsel %vm4826, %v4448, -inf
  %v5837 = vrot.slane %v5836, 4
  %v5838 = vmax.f32 %v5836, %v5837
  %v5839 = vrot.slane %v5838, 2
  %v5840 = vmax.f32 %v5838, %v5839
  %v5841 = vrot.slane %v5840, 1
  %v5842 = vmax.f32 %v5840, %v5841
  %v5843 = vsel %vm4834, %v4449, -inf
  %v5844 = vrot.slane %v5843, 4
  %v5845 = vmax.f32 %v5843, %v5844
  %v5846 = vrot.slane %v5845, 2
  %v5847 = vmax.f32 %v5845, %v5846
  %v5848 = vrot.slane %v5847, 1
  %v5849 = vmax.f32 %v5847, %v5848
  %v5850 = vsel %vm4826, %v4456, -inf
  %v5851 = vrot.slane %v5850, 4
  %v5852 = vmax.f32 %v5850, %v5851
  %v5853 = vrot.slane %v5852, 2
  %v5854 = vmax.f32 %v5852, %v5853
  %v5855 = vrot.slane %v5854, 1
  %v5856 = vmax.f32 %v5854, %v5855
  %v5857 = vsel %vm4834, %v4457, -inf
  %v5858 = vrot.slane %v5857, 4
  %v5859 = vmax.f32 %v5857, %v5858
  %v5860 = vrot.slane %v5859, 2
  %v5861 = vmax.f32 %v5859, %v5860
  %v5862 = vrot.slane %v5861, 1
  %v5863 = vmax.f32 %v5861, %v5862
  %v5864 = vsel %vm4826, %v4464, -inf
  %v5865 = vrot.slane %v5864, 4
  %v5866 = vmax.f32 %v5864, %v5865
  %v5867 = vrot.slane %v5866, 2
  %v5868 = vmax.f32 %v5866, %v5867
  %v5869 = vrot.slane %v5868, 1
  %v5870 = vmax.f32 %v5868, %v5869
  %v5871 = vsel %vm4834, %v4465, -inf
  %v5872 = vrot.slane %v5871, 4
  %v5873 = vmax.f32 %v5871, %v5872
  %v5874 = vrot.slane %v5873, 2
  %v5875 = vmax.f32 %v5873, %v5874
  %v5876 = vrot.slane %v5875, 1
  %v5877 = vmax.f32 %v5875, %v5876
  %v5878 = vsel %vm4826, %v4472, -inf
  %v5879 = vrot.slane %v5878, 4
  %v5880 = vmax.f32 %v5878, %v5879
  %v5881 = vrot.slane %v5880, 2
  %v5882 = vmax.f32 %v5880, %v5881
  %v5883 = vrot.slane %v5882, 1
  %v5884 = vmax.f32 %v5882, %v5883
  %v5885 = vsel %vm4834, %v4473, -inf
  %v5886 = vrot.slane %v5885, 4
  %v5887 = vmax.f32 %v5885, %v5886
  %v5888 = vrot.slane %v5887, 2
  %v5889 = vmax.f32 %v5887, %v5888
  %v5890 = vrot.slane %v5889, 1
  %v5891 = vmax.f32 %v5889, %v5890
  %v5892 = vsel %vm4826, %v4480, -inf
  %v5893 = vrot.slane %v5892, 4
  %v5894 = vmax.f32 %v5892, %v5893
  %v5895 = vrot.slane %v5894, 2
  %v5896 = vmax.f32 %v5894, %v5895
  %v5897 = vrot.slane %v5896, 1
  %v5898 = vmax.f32 %v5896, %v5897
  %v5899 = vsel %vm4834, %v4481, -inf
  %v5900 = vrot.slane %v5899, 4
  %v5901 = vmax.f32 %v5899, %v5900
  %v5902 = vrot.slane %v5901, 2
  %v5903 = vmax.f32 %v5901, %v5902
  %v5904 = vrot.slane %v5903, 1
  %v5905 = vmax.f32 %v5903, %v5904
  %v5906 = vsel %vm4826, %v4488, -inf
  %v5907 = vrot.slane %v5906, 4
  %v5908 = vmax.f32 %v5906, %v5907
  %v5909 = vrot.slane %v5908, 2
  %v5910 = vmax.f32 %v5908, %v5909
  %v5911 = vrot.slane %v5910, 1
  %v5912 = vmax.f32 %v5910, %v5911
  %v5913 = vsel %vm4834, %v4489, -inf
  %v5914 = vrot.slane %v5913, 4
  %v5915 = vmax.f32 %v5913, %v5914
  %v5916 = vrot.slane %v5915, 2
  %v5917 = vmax.f32 %v5915, %v5916
  %v5918 = vrot.slane %v5917, 1
  %v5919 = vmax.f32 %v5917, %v5918
  %v5920 = vsel %vm4826, %v4496, -inf
  %v5921 = vrot.slane %v5920, 4
  %v5922 = vmax.f32 %v5920, %v5921
  %v5923 = vrot.slane %v5922, 2
  %v5924 = vmax.f32 %v5922, %v5923
  %v5925 = vrot.slane %v5924, 1
  %v5926 = vmax.f32 %v5924, %v5925
  %v5927 = vsel %vm4834, %v4497, -inf
  %v5928 = vrot.slane %v5927, 4
  %v5929 = vmax.f32 %v5927, %v5928
  %v5930 = vrot.slane %v5929, 2
  %v5931 = vmax.f32 %v5929, %v5930
  %v5932 = vrot.slane %v5931, 1
  %v5933 = vmax.f32 %v5931, %v5932
  %v5934 = vsel %vm4826, %v4504, -inf
  %v5935 = vrot.slane %v5934, 4
  %v5936 = vmax.f32 %v5934, %v5935
  %v5937 = vrot.slane %v5936, 2
  %v5938 = vmax.f32 %v5936, %v5937
  %v5939 = vrot.slane %v5938, 1
  %v5940 = vmax.f32 %v5938, %v5939
  %v5941 = vsel %vm4834, %v4505, -inf
  %v5942 = vrot.slane %v5941, 4
  %v5943 = vmax.f32 %v5941, %v5942
  %v5944 = vrot.slane %v5943, 2
  %v5945 = vmax.f32 %v5943, %v5944
  %v5946 = vrot.slane %v5945, 1
  %v5947 = vmax.f32 %v5945, %v5946
  %v5948 = vsel %vm4826, %v4512, -inf
  %v5949 = vrot.slane %v5948, 4
  %v5950 = vmax.f32 %v5948, %v5949
  %v5951 = vrot.slane %v5950, 2
  %v5952 = vmax.f32 %v5950, %v5951
  %v5953 = vrot.slane %v5952, 1
  %v5954 = vmax.f32 %v5952, %v5953
  %v5955 = vsel %vm4834, %v4513, -inf
  %v5956 = vrot.slane %v5955, 4
  %v5957 = vmax.f32 %v5955, %v5956
  %v5958 = vrot.slane %v5957, 2
  %v5959 = vmax.f32 %v5957, %v5958
  %v5960 = vrot.slane %v5959, 1
  %v5961 = vmax.f32 %v5959, %v5960
  %v5962 = vsel %vm4826, %v4520, -inf
  %v5963 = vrot.slane %v5962, 4
  %v5964 = vmax.f32 %v5962, %v5963
  %v5965 = vrot.slane %v5964, 2
  %v5966 = vmax.f32 %v5964, %v5965
  %v5967 = vrot.slane %v5966, 1
  %v5968 = vmax.f32 %v5966, %v5967
  %v5969 = vsel %vm4834, %v4521, -inf
  %v5970 = vrot.slane %v5969, 4
  %v5971 = vmax.f32 %v5969, %v5970
  %v5972 = vrot.slane %v5971, 2
  %v5973 = vmax.f32 %v5971, %v5972
  %v5974 = vrot.slane %v5973, 1
  %v5975 = vmax.f32 %v5973, %v5974
  %v5976 = vsel %vm4826, %v4528, -inf
  %v5977 = vrot.slane %v5976, 4
  %v5978 = vmax.f32 %v5976, %v5977
  %v5979 = vrot.slane %v5978, 2
  %v5980 = vmax.f32 %v5978, %v5979
  %v5981 = vrot.slane %v5980, 1
  %v5982 = vmax.f32 %v5980, %v5981
  %v5983 = vsel %vm4834, %v4529, -inf
  %v5984 = vrot.slane %v5983, 4
  %v5985 = vmax.f32 %v5983, %v5984
  %v5986 = vrot.slane %v5985, 2
  %v5987 = vmax.f32 %v5985, %v5986
  %v5988 = vrot.slane %v5987, 1
  %v5989 = vmax.f32 %v5987, %v5988
  %v5990 = vsel %vm4826, %v4536, -inf
  %v5991 = vrot.slane %v5990, 4
  %v5992 = vmax.f32 %v5990, %v5991
  %v5993 = vrot.slane %v5992, 2
  %v5994 = vmax.f32 %v5992, %v5993
  %v5995 = vrot.slane %v5994, 1
  %v5996 = vmax.f32 %v5994, %v5995
  %v5997 = vsel %vm4834, %v4537, -inf
  %v5998 = vrot.slane %v5997, 4
  %v5999 = vmax.f32 %v5997, %v5998
  %v6000 = vrot.slane %v5999, 2
  %v6001 = vmax.f32 %v5999, %v6000
  %v6002 = vrot.slane %v6001, 1
  %v6003 = vmax.f32 %v6001, %v6002
  %v6004 = vsel %vm4826, %v4544, -inf
  %v6005 = vrot.slane %v6004, 4
  %v6006 = vmax.f32 %v6004, %v6005
  %v6007 = vrot.slane %v6006, 2
  %v6008 = vmax.f32 %v6006, %v6007
  %v6009 = vrot.slane %v6008, 1
  %v6010 = vmax.f32 %v6008, %v6009
  %v6011 = vsel %vm4834, %v4545, -inf
  %v6012 = vrot.slane %v6011, 4
  %v6013 = vmax.f32 %v6011, %v6012
  %v6014 = vrot.slane %v6013, 2
  %v6015 = vmax.f32 %v6013, %v6014
  %v6016 = vrot.slane %v6015, 1
  %v6017 = vmax.f32 %v6015, %v6016
  %v6018 = vsel %vm4826, %v4552, -inf
  %v6019 = vrot.slane %v6018, 4
  %v6020 = vmax.f32 %v6018, %v6019
  %v6021 = vrot.slane %v6020, 2
  %v6022 = vmax.f32 %v6020, %v6021
  %v6023 = vrot.slane %v6022, 1
  %v6024 = vmax.f32 %v6022, %v6023
  %v6025 = vsel %vm4834, %v4553, -inf
  %v6026 = vrot.slane %v6025, 4
  %v6027 = vmax.f32 %v6025, %v6026
  %v6028 = vrot.slane %v6027, 2
  %v6029 = vmax.f32 %v6027, %v6028
  %v6030 = vrot.slane %v6029, 1
  %v6031 = vmax.f32 %v6029, %v6030
  %v6032 = vsel %vm4826, %v4560, -inf
  %v6033 = vrot.slane %v6032, 4
  %v6034 = vmax.f32 %v6032, %v6033
  %v6035 = vrot.slane %v6034, 2
  %v6036 = vmax.f32 %v6034, %v6035
  %v6037 = vrot.slane %v6036, 1
  %v6038 = vmax.f32 %v6036, %v6037
  %v6039 = vsel %vm4834, %v4561, -inf
  %v6040 = vrot.slane %v6039, 4
  %v6041 = vmax.f32 %v6039, %v6040
  %v6042 = vrot.slane %v6041, 2
  %v6043 = vmax.f32 %v6041, %v6042
  %v6044 = vrot.slane %v6043, 1
  %v6045 = vmax.f32 %v6043, %v6044
  %v6046 = vsel %vm4826, %v4568, -inf
  %v6047 = vrot.slane %v6046, 4
  %v6048 = vmax.f32 %v6046, %v6047
  %v6049 = vrot.slane %v6048, 2
  %v6050 = vmax.f32 %v6048, %v6049
  %v6051 = vrot.slane %v6050, 1
  %v6052 = vmax.f32 %v6050, %v6051
  %v6053 = vsel %vm4834, %v4569, -inf
  %v6054 = vrot.slane %v6053, 4
  %v6055 = vmax.f32 %v6053, %v6054
  %v6056 = vrot.slane %v6055, 2
  %v6057 = vmax.f32 %v6055, %v6056
  %v6058 = vrot.slane %v6057, 1
  %v6059 = vmax.f32 %v6057, %v6058
  %v6060 = vsel %vm4826, %v4576, -inf
  %v6061 = vrot.slane %v6060, 4
  %v6062 = vmax.f32 %v6060, %v6061
  %v6063 = vrot.slane %v6062, 2
  %v6064 = vmax.f32 %v6062, %v6063
  %v6065 = vrot.slane %v6064, 1
  %v6066 = vmax.f32 %v6064, %v6065
  %v6067 = vsel %vm4834, %v4577, -inf
  %v6068 = vrot.slane %v6067, 4
  %v6069 = vmax.f32 %v6067, %v6068
  %v6070 = vrot.slane %v6069, 2
  %v6071 = vmax.f32 %v6069, %v6070
  %v6072 = vrot.slane %v6071, 1
  %v6073 = vmax.f32 %v6071, %v6072
  %v6074 = vsel %vm4826, %v4584, -inf
  %v6075 = vrot.slane %v6074, 4
  %v6076 = vmax.f32 %v6074, %v6075
  %v6077 = vrot.slane %v6076, 2
  %v6078 = vmax.f32 %v6076, %v6077
  %v6079 = vrot.slane %v6078, 1
  %v6080 = vmax.f32 %v6078, %v6079
  %v6081 = vsel %vm4834, %v4585, -inf
  %v6082 = vrot.slane %v6081, 4
  %v6083 = vmax.f32 %v6081, %v6082
  %v6084 = vrot.slane %v6083, 2
  %v6085 = vmax.f32 %v6083, %v6084
  %v6086 = vrot.slane %v6085, 1
  %v6087 = vmax.f32 %v6085, %v6086
  %v6088 = vsel %vm4826, %v4592, -inf
  %v6089 = vrot.slane %v6088, 4
  %v6090 = vmax.f32 %v6088, %v6089
  %v6091 = vrot.slane %v6090, 2
  %v6092 = vmax.f32 %v6090, %v6091
  %v6093 = vrot.slane %v6092, 1
  %v6094 = vmax.f32 %v6092, %v6093
  %v6095 = vsel %vm4834, %v4593, -inf
  %v6096 = vrot.slane %v6095, 4
  %v6097 = vmax.f32 %v6095, %v6096
  %v6098 = vrot.slane %v6097, 2
  %v6099 = vmax.f32 %v6097, %v6098
  %v6100 = vrot.slane %v6099, 1
  %v6101 = vmax.f32 %v6099, %v6100
  %v6102 = vsel %vm4826, %v4600, -inf
  %v6103 = vrot.slane %v6102, 4
  %v6104 = vmax.f32 %v6102, %v6103
  %v6105 = vrot.slane %v6104, 2
  %v6106 = vmax.f32 %v6104, %v6105
  %v6107 = vrot.slane %v6106, 1
  %v6108 = vmax.f32 %v6106, %v6107
  %v6109 = vsel %vm4834, %v4601, -inf
  %v6110 = vrot.slane %v6109, 4
  %v6111 = vmax.f32 %v6109, %v6110
  %v6112 = vrot.slane %v6111, 2
  %v6113 = vmax.f32 %v6111, %v6112
  %v6114 = vrot.slane %v6113, 1
  %v6115 = vmax.f32 %v6113, %v6114
  %v6116 = vsel %vm4826, %v4608, -inf
  %v6117 = vrot.slane %v6116, 4
  %v6118 = vmax.f32 %v6116, %v6117
  %v6119 = vrot.slane %v6118, 2
  %v6120 = vmax.f32 %v6118, %v6119
  %v6121 = vrot.slane %v6120, 1
  %v6122 = vmax.f32 %v6120, %v6121
  %v6123 = vsel %vm4834, %v4609, -inf
  %v6124 = vrot.slane %v6123, 4
  %v6125 = vmax.f32 %v6123, %v6124
  %v6126 = vrot.slane %v6125, 2
  %v6127 = vmax.f32 %v6125, %v6126
  %v6128 = vrot.slane %v6127, 1
  %v6129 = vmax.f32 %v6127, %v6128
  %v6130 = vsel %vm4826, %v4616, -inf
  %v6131 = vrot.slane %v6130, 4
  %v6132 = vmax.f32 %v6130, %v6131
  %v6133 = vrot.slane %v6132, 2
  %v6134 = vmax.f32 %v6132, %v6133
  %v6135 = vrot.slane %v6134, 1
  %v6136 = vmax.f32 %v6134, %v6135
  %v6137 = vsel %vm4834, %v4617, -inf
  %v6138 = vrot.slane %v6137, 4
  %v6139 = vmax.f32 %v6137, %v6138
  %v6140 = vrot.slane %v6139, 2
  %v6141 = vmax.f32 %v6139, %v6140
  %v6142 = vrot.slane %v6141, 1
  %v6143 = vmax.f32 %v6141, %v6142
  %v6144 = vsel %vm4826, %v4624, -inf
  %v6145 = vrot.slane %v6144, 4
  %v6146 = vmax.f32 %v6144, %v6145
  %v6147 = vrot.slane %v6146, 2
  %v6148 = vmax.f32 %v6146, %v6147
  %v6149 = vrot.slane %v6148, 1
  %v6150 = vmax.f32 %v6148, %v6149
  %v6151 = vsel %vm4834, %v4625, -inf
  %v6152 = vrot.slane %v6151, 4
  %v6153 = vmax.f32 %v6151, %v6152
  %v6154 = vrot.slane %v6153, 2
  %v6155 = vmax.f32 %v6153, %v6154
  %v6156 = vrot.slane %v6155, 1
  %v6157 = vmax.f32 %v6155, %v6156
  %v6158 = vsel %vm4826, %v4632, -inf
  %v6159 = vrot.slane %v6158, 4
  %v6160 = vmax.f32 %v6158, %v6159
  %v6161 = vrot.slane %v6160, 2
  %v6162 = vmax.f32 %v6160, %v6161
  %v6163 = vrot.slane %v6162, 1
  %v6164 = vmax.f32 %v6162, %v6163
  %v6165 = vsel %vm4834, %v4633, -inf
  %v6166 = vrot.slane %v6165, 4
  %v6167 = vmax.f32 %v6165, %v6166
  %v6168 = vrot.slane %v6167, 2
  %v6169 = vmax.f32 %v6167, %v6168
  %v6170 = vrot.slane %v6169, 1
  %v6171 = vmax.f32 %v6169, %v6170
  %vm6300 = vcmask 1041409
  %v6301 = vsel %vm6300, %v4848, %v4833
  %vm6302 = vcmask 1042434
  %v6303 = vsel %vm6302, %v4862, %v6301
  %vm6304 = vcmask 1043459
  %v6305 = vsel %vm6304, %v4876, %v6303
  %vm6306 = vcmask 1044484
  %v6307 = vsel %vm6306, %v4890, %v6305
  %vm6308 = vcmask 1045509
  %v6309 = vsel %vm6308, %v4904, %v6307
  %vm6310 = vcmask 1046534
  %v6311 = vsel %vm6310, %v4918, %v6309
  %vm6312 = vcmask 1047559
  %v6313 = vsel %vm6312, %v4932, %v6311
  %v6314 = vsel %vm6300, %v4855, %v4841
  %v6315 = vsel %vm6302, %v4869, %v6314
  %v6316 = vsel %vm6304, %v4883, %v6315
  %v6317 = vsel %vm6306, %v4897, %v6316
  %v6318 = vsel %vm6308, %v4911, %v6317
  %v6319 = vsel %vm6310, %v4925, %v6318
  %v6320 = vsel %vm6312, %v4939, %v6319
  %v6321 = vsel %vm6300, %v5016, %v5002
  %v6322 = vsel %vm6302, %v5030, %v6321
  %v6323 = vsel %vm6304, %v5044, %v6322
  %v6324 = vsel %vm6306, %v5058, %v6323
  %v6325 = vsel %vm6308, %v5072, %v6324
  %v6326 = vsel %vm6310, %v5086, %v6325
  %v6327 = vsel %vm6312, %v5100, %v6326
  %v6328 = vsel %vm6300, %v5023, %v5009
  %v6329 = vsel %vm6302, %v5037, %v6328
  %v6330 = vsel %vm6304, %v5051, %v6329
  %v6331 = vsel %vm6306, %v5065, %v6330
  %v6332 = vsel %vm6308, %v5079, %v6331
  %v6333 = vsel %vm6310, %v5093, %v6332
  %v6334 = vsel %vm6312, %v5107, %v6333
  %v6335 = vsel %vm6300, %v5184, %v5170
  %v6336 = vsel %vm6302, %v5198, %v6335
  %v6337 = vsel %vm6304, %v5212, %v6336
  %v6338 = vsel %vm6306, %v5226, %v6337
  %v6339 = vsel %vm6308, %v5240, %v6338
  %v6340 = vsel %vm6310, %v5254, %v6339
  %v6341 = vsel %vm6312, %v5268, %v6340
  %v6342 = vsel %vm6300, %v5191, %v5177
  %v6343 = vsel %vm6302, %v5205, %v6342
  %v6344 = vsel %vm6304, %v5219, %v6343
  %v6345 = vsel %vm6306, %v5233, %v6344
  %v6346 = vsel %vm6308, %v5247, %v6345
  %v6347 = vsel %vm6310, %v5261, %v6346
  %v6348 = vsel %vm6312, %v5275, %v6347
  %v6349 = vsel %vm6300, %v5352, %v5338
  %v6350 = vsel %vm6302, %v5366, %v6349
  %v6351 = vsel %vm6304, %v5380, %v6350
  %v6352 = vsel %vm6306, %v5394, %v6351
  %v6353 = vsel %vm6308, %v5408, %v6352
  %v6354 = vsel %vm6310, %v5422, %v6353
  %v6355 = vsel %vm6312, %v5436, %v6354
  %v6356 = vsel %vm6300, %v5359, %v5345
  %v6357 = vsel %vm6302, %v5373, %v6356
  %v6358 = vsel %vm6304, %v5387, %v6357
  %v6359 = vsel %vm6306, %v5401, %v6358
  %v6360 = vsel %vm6308, %v5415, %v6359
  %v6361 = vsel %vm6310, %v5429, %v6360
  %v6362 = vsel %vm6312, %v5443, %v6361
  %v6363 = vsel %vm6300, %v5520, %v5506
  %v6364 = vsel %vm6302, %v5534, %v6363
  %v6365 = vsel %vm6304, %v5548, %v6364
  %v6366 = vsel %vm6306, %v5562, %v6365
  %v6367 = vsel %vm6308, %v5576, %v6366
  %v6368 = vsel %vm6310, %v5590, %v6367
  %v6369 = vsel %vm6312, %v5604, %v6368
  %v6370 = vsel %vm6300, %v5527, %v5513
  %v6371 = vsel %vm6302, %v5541, %v6370
  %v6372 = vsel %vm6304, %v5555, %v6371
  %v6373 = vsel %vm6306, %v5569, %v6372
  %v6374 = vsel %vm6308, %v5583, %v6373
  %v6375 = vsel %vm6310, %v5597, %v6374
  %v6376 = vsel %vm6312, %v5611, %v6375
  %v6377 = vsel %vm6300, %v5688, %v5674
  %v6378 = vsel %vm6302, %v5702, %v6377
  %v6379 = vsel %vm6304, %v5716, %v6378
  %v6380 = vsel %vm6306, %v5730, %v6379
  %v6381 = vsel %vm6308, %v5744, %v6380
  %v6382 = vsel %vm6310, %v5758, %v6381
  %v6383 = vsel %vm6312, %v5772, %v6382
  %v6384 = vsel %vm6300, %v5695, %v5681
  %v6385 = vsel %vm6302, %v5709, %v6384
  %v6386 = vsel %vm6304, %v5723, %v6385
  %v6387 = vsel %vm6306, %v5737, %v6386
  %v6388 = vsel %vm6308, %v5751, %v6387
  %v6389 = vsel %vm6310, %v5765, %v6388
  %v6390 = vsel %vm6312, %v5779, %v6389
  %v6391 = vsel %vm6300, %v5856, %v5842
  %v6392 = vsel %vm6302, %v5870, %v6391
  %v6393 = vsel %vm6304, %v5884, %v6392
  %v6394 = vsel %vm6306, %v5898, %v6393
  %v6395 = vsel %vm6308, %v5912, %v6394
  %v6396 = vsel %vm6310, %v5926, %v6395
  %v6397 = vsel %vm6312, %v5940, %v6396
  %v6398 = vsel %vm6300, %v5863, %v5849
  %v6399 = vsel %vm6302, %v5877, %v6398
  %v6400 = vsel %vm6304, %v5891, %v6399
  %v6401 = vsel %vm6306, %v5905, %v6400
  %v6402 = vsel %vm6308, %v5919, %v6401
  %v6403 = vsel %vm6310, %v5933, %v6402
  %v6404 = vsel %vm6312, %v5947, %v6403
  %v6405 = vsel %vm6300, %v6024, %v6010
  %v6406 = vsel %vm6302, %v6038, %v6405
  %v6407 = vsel %vm6304, %v6052, %v6406
  %v6408 = vsel %vm6306, %v6066, %v6407
  %v6409 = vsel %vm6308, %v6080, %v6408
  %v6410 = vsel %vm6310, %v6094, %v6409
  %v6411 = vsel %vm6312, %v6108, %v6410
  %v6412 = vsel %vm6300, %v6031, %v6017
  %v6413 = vsel %vm6302, %v6045, %v6412
  %v6414 = vsel %vm6304, %v6059, %v6413
  %v6415 = vsel %vm6306, %v6073, %v6414
  %v6416 = vsel %vm6308, %v6087, %v6415
  %v6417 = vsel %vm6310, %v6101, %v6416
  %v6418 = vsel %vm6312, %v6115, %v6417
  %v6451 = vsel %vm6300, %v4862, %v4848
  %v6452 = vsel %vm6302, %v4876, %v6451
  %v6453 = vsel %vm6304, %v4890, %v6452
  %v6454 = vsel %vm6306, %v4904, %v6453
  %v6455 = vsel %vm6308, %v4918, %v6454
  %v6456 = vsel %vm6310, %v4932, %v6455
  %v6457 = vsel %vm6312, %v4946, %v6456
  %v6458 = vsel %vm6300, %v4869, %v4855
  %v6459 = vsel %vm6302, %v4883, %v6458
  %v6460 = vsel %vm6304, %v4897, %v6459
  %v6461 = vsel %vm6306, %v4911, %v6460
  %v6462 = vsel %vm6308, %v4925, %v6461
  %v6463 = vsel %vm6310, %v4939, %v6462
  %v6464 = vsel %vm6312, %v4953, %v6463
  %v6465 = vsel %vm6300, %v5030, %v5016
  %v6466 = vsel %vm6302, %v5044, %v6465
  %v6467 = vsel %vm6304, %v5058, %v6466
  %v6468 = vsel %vm6306, %v5072, %v6467
  %v6469 = vsel %vm6308, %v5086, %v6468
  %v6470 = vsel %vm6310, %v5100, %v6469
  %v6471 = vsel %vm6312, %v5114, %v6470
  %v6472 = vsel %vm6300, %v5037, %v5023
  %v6473 = vsel %vm6302, %v5051, %v6472
  %v6474 = vsel %vm6304, %v5065, %v6473
  %v6475 = vsel %vm6306, %v5079, %v6474
  %v6476 = vsel %vm6308, %v5093, %v6475
  %v6477 = vsel %vm6310, %v5107, %v6476
  %v6478 = vsel %vm6312, %v5121, %v6477
  %v6479 = vsel %vm6300, %v5198, %v5184
  %v6480 = vsel %vm6302, %v5212, %v6479
  %v6481 = vsel %vm6304, %v5226, %v6480
  %v6482 = vsel %vm6306, %v5240, %v6481
  %v6483 = vsel %vm6308, %v5254, %v6482
  %v6484 = vsel %vm6310, %v5268, %v6483
  %v6485 = vsel %vm6312, %v5282, %v6484
  %v6486 = vsel %vm6300, %v5205, %v5191
  %v6487 = vsel %vm6302, %v5219, %v6486
  %v6488 = vsel %vm6304, %v5233, %v6487
  %v6489 = vsel %vm6306, %v5247, %v6488
  %v6490 = vsel %vm6308, %v5261, %v6489
  %v6491 = vsel %vm6310, %v5275, %v6490
  %v6492 = vsel %vm6312, %v5289, %v6491
  %v6493 = vsel %vm6300, %v5366, %v5352
  %v6494 = vsel %vm6302, %v5380, %v6493
  %v6495 = vsel %vm6304, %v5394, %v6494
  %v6496 = vsel %vm6306, %v5408, %v6495
  %v6497 = vsel %vm6308, %v5422, %v6496
  %v6498 = vsel %vm6310, %v5436, %v6497
  %v6499 = vsel %vm6312, %v5450, %v6498
  %v6500 = vsel %vm6300, %v5373, %v5359
  %v6501 = vsel %vm6302, %v5387, %v6500
  %v6502 = vsel %vm6304, %v5401, %v6501
  %v6503 = vsel %vm6306, %v5415, %v6502
  %v6504 = vsel %vm6308, %v5429, %v6503
  %v6505 = vsel %vm6310, %v5443, %v6504
  %v6506 = vsel %vm6312, %v5457, %v6505
  %v6507 = vsel %vm6300, %v5534, %v5520
  %v6508 = vsel %vm6302, %v5548, %v6507
  %v6509 = vsel %vm6304, %v5562, %v6508
  %v6510 = vsel %vm6306, %v5576, %v6509
  %v6511 = vsel %vm6308, %v5590, %v6510
  %v6512 = vsel %vm6310, %v5604, %v6511
  %v6513 = vsel %vm6312, %v5618, %v6512
  %v6514 = vsel %vm6300, %v5541, %v5527
  %v6515 = vsel %vm6302, %v5555, %v6514
  %v6516 = vsel %vm6304, %v5569, %v6515
  %v6517 = vsel %vm6306, %v5583, %v6516
  %v6518 = vsel %vm6308, %v5597, %v6517
  %v6519 = vsel %vm6310, %v5611, %v6518
  %v6520 = vsel %vm6312, %v5625, %v6519
  %v6521 = vsel %vm6300, %v5702, %v5688
  %v6522 = vsel %vm6302, %v5716, %v6521
  %v6523 = vsel %vm6304, %v5730, %v6522
  %v6524 = vsel %vm6306, %v5744, %v6523
  %v6525 = vsel %vm6308, %v5758, %v6524
  %v6526 = vsel %vm6310, %v5772, %v6525
  %v6527 = vsel %vm6312, %v5786, %v6526
  %v6528 = vsel %vm6300, %v5709, %v5695
  %v6529 = vsel %vm6302, %v5723, %v6528
  %v6530 = vsel %vm6304, %v5737, %v6529
  %v6531 = vsel %vm6306, %v5751, %v6530
  %v6532 = vsel %vm6308, %v5765, %v6531
  %v6533 = vsel %vm6310, %v5779, %v6532
  %v6534 = vsel %vm6312, %v5793, %v6533
  %v6535 = vsel %vm6300, %v5870, %v5856
  %v6536 = vsel %vm6302, %v5884, %v6535
  %v6537 = vsel %vm6304, %v5898, %v6536
  %v6538 = vsel %vm6306, %v5912, %v6537
  %v6539 = vsel %vm6308, %v5926, %v6538
  %v6540 = vsel %vm6310, %v5940, %v6539
  %v6541 = vsel %vm6312, %v5954, %v6540
  %v6542 = vsel %vm6300, %v5877, %v5863
  %v6543 = vsel %vm6302, %v5891, %v6542
  %v6544 = vsel %vm6304, %v5905, %v6543
  %v6545 = vsel %vm6306, %v5919, %v6544
  %v6546 = vsel %vm6308, %v5933, %v6545
  %v6547 = vsel %vm6310, %v5947, %v6546
  %v6548 = vsel %vm6312, %v5961, %v6547
  %v6549 = vsel %vm6300, %v6038, %v6024
  %v6550 = vsel %vm6302, %v6052, %v6549
  %v6551 = vsel %vm6304, %v6066, %v6550
  %v6552 = vsel %vm6306, %v6080, %v6551
  %v6553 = vsel %vm6308, %v6094, %v6552
  %v6554 = vsel %vm6310, %v6108, %v6553
  %v6555 = vsel %vm6312, %v6122, %v6554
  %v6556 = vsel %vm6300, %v6045, %v6031
  %v6557 = vsel %vm6302, %v6059, %v6556
  %v6558 = vsel %vm6304, %v6073, %v6557
  %v6559 = vsel %vm6306, %v6087, %v6558
  %v6560 = vsel %vm6308, %v6101, %v6559
  %v6561 = vsel %vm6310, %v6115, %v6560
  %v6562 = vsel %vm6312, %v6129, %v6561
  %6563 = vrot.lane.b32.xlu0 %v6457, 112
  %v6564 = vpop.permute.xlu0 %6563
  %6565 = vrot.lane.b32.xlu0 %v6464, 112
  %v6566 = vpop.permute.xlu0 %6565
  %6567 = vrot.lane.b32.xlu0 %v6471, 112
  %v6568 = vpop.permute.xlu0 %6567
  %6569 = vrot.lane.b32.xlu0 %v6478, 112
  %v6570 = vpop.permute.xlu0 %6569
  %6571 = vrot.lane.b32.xlu0 %v6485, 112
  %v6572 = vpop.permute.xlu0 %6571
  %6573 = vrot.lane.b32.xlu0 %v6492, 112
  %v6574 = vpop.permute.xlu0 %6573
  %6575 = vrot.lane.b32.xlu0 %v6499, 112
  %v6576 = vpop.permute.xlu0 %6575
  %6577 = vrot.lane.b32.xlu0 %v6506, 112
  %v6578 = vpop.permute.xlu0 %6577
  %6579 = vrot.lane.b32.xlu0 %v6513, 112
  %v6580 = vpop.permute.xlu0 %6579
  %6581 = vrot.lane.b32.xlu0 %v6520, 112
  %v6582 = vpop.permute.xlu0 %6581
  %6583 = vrot.lane.b32.xlu0 %v6527, 112
  %v6584 = vpop.permute.xlu0 %6583
  %6585 = vrot.lane.b32.xlu0 %v6534, 112
  %v6586 = vpop.permute.xlu0 %6585
  %6587 = vrot.lane.b32.xlu0 %v6541, 112
  %v6588 = vpop.permute.xlu0 %6587
  %6589 = vrot.lane.b32.xlu0 %v6548, 112
  %v6590 = vpop.permute.xlu0 %6589
  %6591 = vrot.lane.b32.xlu0 %v6555, 112
  %v6592 = vpop.permute.xlu0 %6591
  %6593 = vrot.lane.b32.xlu0 %v6562, 112
  %v6594 = vpop.permute.xlu0 %6593
  %v6595 = vsel %vm687, %v6564, %v6566
  %v6596 = vsel %vm687, %v6568, %v6570
  %v6597 = vsel %vm687, %v6572, %v6574
  %v6598 = vsel %vm687, %v6576, %v6578
  %v6599 = vsel %vm687, %v6580, %v6582
  %v6600 = vsel %vm687, %v6584, %v6586
  %v6601 = vsel %vm687, %v6588, %v6590
  %v6602 = vsel %vm687, %v6592, %v6594
  %v6643 = vsel %vm6300, %v4876, %v4862
  %v6644 = vsel %vm6302, %v4890, %v6643
  %v6645 = vsel %vm6304, %v4904, %v6644
  %v6646 = vsel %vm6306, %v4918, %v6645
  %v6647 = vsel %vm6308, %v4932, %v6646
  %v6648 = vsel %vm6310, %v4946, %v6647
  %v6649 = vsel %vm6312, %v4960, %v6648
  %v6650 = vsel %vm6300, %v4883, %v4869
  %v6651 = vsel %vm6302, %v4897, %v6650
  %v6652 = vsel %vm6304, %v4911, %v6651
  %v6653 = vsel %vm6306, %v4925, %v6652
  %v6654 = vsel %vm6308, %v4939, %v6653
  %v6655 = vsel %vm6310, %v4953, %v6654
  %v6656 = vsel %vm6312, %v4967, %v6655
  %v6657 = vsel %vm6300, %v5044, %v5030
  %v6658 = vsel %vm6302, %v5058, %v6657
  %v6659 = vsel %vm6304, %v5072, %v6658
  %v6660 = vsel %vm6306, %v5086, %v6659
  %v6661 = vsel %vm6308, %v5100, %v6660
  %v6662 = vsel %vm6310, %v5114, %v6661
  %v6663 = vsel %vm6312, %v5128, %v6662
  %v6664 = vsel %vm6300, %v5051, %v5037
  %v6665 = vsel %vm6302, %v5065, %v6664
  %v6666 = vsel %vm6304, %v5079, %v6665
  %v6667 = vsel %vm6306, %v5093, %v6666
  %v6668 = vsel %vm6308, %v5107, %v6667
  %v6669 = vsel %vm6310, %v5121, %v6668
  %v6670 = vsel %vm6312, %v5135, %v6669
  %v6671 = vsel %vm6300, %v5212, %v5198
  %v6672 = vsel %vm6302, %v5226, %v6671
  %v6673 = vsel %vm6304, %v5240, %v6672
  %v6674 = vsel %vm6306, %v5254, %v6673
  %v6675 = vsel %vm6308, %v5268, %v6674
  %v6676 = vsel %vm6310, %v5282, %v6675
  %v6677 = vsel %vm6312, %v5296, %v6676
  %v6678 = vsel %vm6300, %v5219, %v5205
  %v6679 = vsel %vm6302, %v5233, %v6678
  %v6680 = vsel %vm6304, %v5247, %v6679
  %v6681 = vsel %vm6306, %v5261, %v6680
  %v6682 = vsel %vm6308, %v5275, %v6681
  %v6683 = vsel %vm6310, %v5289, %v6682
  %v6684 = vsel %vm6312, %v5303, %v6683
  %v6685 = vsel %vm6300, %v5380, %v5366
  %v6686 = vsel %vm6302, %v5394, %v6685
  %v6687 = vsel %vm6304, %v5408, %v6686
  %v6688 = vsel %vm6306, %v5422, %v6687
  %v6689 = vsel %vm6308, %v5436, %v6688
  %v6690 = vsel %vm6310, %v5450, %v6689
  %v6691 = vsel %vm6312, %v5464, %v6690
  %v6692 = vsel %vm6300, %v5387, %v5373
  %v6693 = vsel %vm6302, %v5401, %v6692
  %v6694 = vsel %vm6304, %v5415, %v6693
  %v6695 = vsel %vm6306, %v5429, %v6694
  %v6696 = vsel %vm6308, %v5443, %v6695
  %v6697 = vsel %vm6310, %v5457, %v6696
  %v6698 = vsel %vm6312, %v5471, %v6697
  %v6699 = vsel %vm6300, %v5548, %v5534
  %v6700 = vsel %vm6302, %v5562, %v6699
  %v6701 = vsel %vm6304, %v5576, %v6700
  %v6702 = vsel %vm6306, %v5590, %v6701
  %v6703 = vsel %vm6308, %v5604, %v6702
  %v6704 = vsel %vm6310, %v5618, %v6703
  %v6705 = vsel %vm6312, %v5632, %v6704
  %v6706 = vsel %vm6300, %v5555, %v5541
  %v6707 = vsel %vm6302, %v5569, %v6706
  %v6708 = vsel %vm6304, %v5583, %v6707
  %v6709 = vsel %vm6306, %v5597, %v6708
  %v6710 = vsel %vm6308, %v5611, %v6709
  %v6711 = vsel %vm6310, %v5625, %v6710
  %v6712 = vsel %vm6312, %v5639, %v6711
  %v6713 = vsel %vm6300, %v5716, %v5702
  %v6714 = vsel %vm6302, %v5730, %v6713
  %v6715 = vsel %vm6304, %v5744, %v6714
  %v6716 = vsel %vm6306, %v5758, %v6715
  %v6717 = vsel %vm6308, %v5772, %v6716
  %v6718 = vsel %vm6310, %v5786, %v6717
  %v6719 = vsel %vm6312, %v5800, %v6718
  %v6720 = vsel %vm6300, %v5723, %v5709
  %v6721 = vsel %vm6302, %v5737, %v6720
  %v6722 = vsel %vm6304, %v5751, %v6721
  %v6723 = vsel %vm6306, %v5765, %v6722
  %v6724 = vsel %vm6308, %v5779, %v6723
  %v6725 = vsel %vm6310, %v5793, %v6724
  %v6726 = vsel %vm6312, %v5807, %v6725
  %v6727 = vsel %vm6300, %v5884, %v5870
  %v6728 = vsel %vm6302, %v5898, %v6727
  %v6729 = vsel %vm6304, %v5912, %v6728
  %v6730 = vsel %vm6306, %v5926, %v6729
  %v6731 = vsel %vm6308, %v5940, %v6730
  %v6732 = vsel %vm6310, %v5954, %v6731
  %v6733 = vsel %vm6312, %v5968, %v6732
  %v6734 = vsel %vm6300, %v5891, %v5877
  %v6735 = vsel %vm6302, %v5905, %v6734
  %v6736 = vsel %vm6304, %v5919, %v6735
  %v6737 = vsel %vm6306, %v5933, %v6736
  %v6738 = vsel %vm6308, %v5947, %v6737
  %v6739 = vsel %vm6310, %v5961, %v6738
  %v6740 = vsel %vm6312, %v5975, %v6739
  %v6741 = vsel %vm6300, %v6052, %v6038
  %v6742 = vsel %vm6302, %v6066, %v6741
  %v6743 = vsel %vm6304, %v6080, %v6742
  %v6744 = vsel %vm6306, %v6094, %v6743
  %v6745 = vsel %vm6308, %v6108, %v6744
  %v6746 = vsel %vm6310, %v6122, %v6745
  %v6747 = vsel %vm6312, %v6136, %v6746
  %v6748 = vsel %vm6300, %v6059, %v6045
  %v6749 = vsel %vm6302, %v6073, %v6748
  %v6750 = vsel %vm6304, %v6087, %v6749
  %v6751 = vsel %vm6306, %v6101, %v6750
  %v6752 = vsel %vm6308, %v6115, %v6751
  %v6753 = vsel %vm6310, %v6129, %v6752
  %v6754 = vsel %vm6312, %v6143, %v6753
  %6755 = vrot.lane.b32.xlu0 %v6649, 96
  %v6756 = vpop.permute.xlu0 %6755
  %6757 = vrot.lane.b32.xlu0 %v6656, 96
  %v6758 = vpop.permute.xlu0 %6757
  %6759 = vrot.lane.b32.xlu0 %v6663, 96
  %v6760 = vpop.permute.xlu0 %6759
  %6761 = vrot.lane.b32.xlu0 %v6670, 96
  %v6762 = vpop.permute.xlu0 %6761
  %6763 = vrot.lane.b32.xlu0 %v6677, 96
  %v6764 = vpop.permute.xlu0 %6763
  %6765 = vrot.lane.b32.xlu0 %v6684, 96
  %v6766 = vpop.permute.xlu0 %6765
  %6767 = vrot.lane.b32.xlu0 %v6691, 96
  %v6768 = vpop.permute.xlu0 %6767
  %6769 = vrot.lane.b32.xlu0 %v6698, 96
  %v6770 = vpop.permute.xlu0 %6769
  %6771 = vrot.lane.b32.xlu0 %v6705, 96
  %v6772 = vpop.permute.xlu0 %6771
  %6773 = vrot.lane.b32.xlu0 %v6712, 96
  %v6774 = vpop.permute.xlu0 %6773
  %6775 = vrot.lane.b32.xlu0 %v6719, 96
  %v6776 = vpop.permute.xlu0 %6775
  %6777 = vrot.lane.b32.xlu0 %v6726, 96
  %v6778 = vpop.permute.xlu0 %6777
  %6779 = vrot.lane.b32.xlu0 %v6733, 96
  %v6780 = vpop.permute.xlu0 %6779
  %6781 = vrot.lane.b32.xlu0 %v6740, 96
  %v6782 = vpop.permute.xlu0 %6781
  %6783 = vrot.lane.b32.xlu0 %v6747, 96
  %v6784 = vpop.permute.xlu0 %6783
  %6785 = vrot.lane.b32.xlu0 %v6754, 96
  %v6786 = vpop.permute.xlu0 %6785
  %vm6787 = vcmask 785408
  %v6788 = vsel %vm6787, %v6756, %v6758
  %v6789 = vsel %vm6787, %v6760, %v6762
  %v6790 = vsel %vm6787, %v6764, %v6766
  %v6791 = vsel %vm6787, %v6768, %v6770
  %v6792 = vsel %vm6787, %v6772, %v6774
  %v6793 = vsel %vm6787, %v6776, %v6778
  %v6794 = vsel %vm6787, %v6780, %v6782
  %v6795 = vsel %vm6787, %v6784, %v6786
  %v6836 = vsel %vm6300, %v4890, %v4876
  %v6837 = vsel %vm6302, %v4904, %v6836
  %v6838 = vsel %vm6304, %v4918, %v6837
  %v6839 = vsel %vm6306, %v4932, %v6838
  %v6840 = vsel %vm6308, %v4946, %v6839
  %v6841 = vsel %vm6310, %v4960, %v6840
  %v6842 = vsel %vm6312, %v4974, %v6841
  %v6843 = vsel %vm6300, %v4897, %v4883
  %v6844 = vsel %vm6302, %v4911, %v6843
  %v6845 = vsel %vm6304, %v4925, %v6844
  %v6846 = vsel %vm6306, %v4939, %v6845
  %v6847 = vsel %vm6308, %v4953, %v6846
  %v6848 = vsel %vm6310, %v4967, %v6847
  %v6849 = vsel %vm6312, %v4981, %v6848
  %v6850 = vsel %vm6300, %v5058, %v5044
  %v6851 = vsel %vm6302, %v5072, %v6850
  %v6852 = vsel %vm6304, %v5086, %v6851
  %v6853 = vsel %vm6306, %v5100, %v6852
  %v6854 = vsel %vm6308, %v5114, %v6853
  %v6855 = vsel %vm6310, %v5128, %v6854
  %v6856 = vsel %vm6312, %v5142, %v6855
  %v6857 = vsel %vm6300, %v5065, %v5051
  %v6858 = vsel %vm6302, %v5079, %v6857
  %v6859 = vsel %vm6304, %v5093, %v6858
  %v6860 = vsel %vm6306, %v5107, %v6859
  %v6861 = vsel %vm6308, %v5121, %v6860
  %v6862 = vsel %vm6310, %v5135, %v6861
  %v6863 = vsel %vm6312, %v5149, %v6862
  %v6864 = vsel %vm6300, %v5226, %v5212
  %v6865 = vsel %vm6302, %v5240, %v6864
  %v6866 = vsel %vm6304, %v5254, %v6865
  %v6867 = vsel %vm6306, %v5268, %v6866
  %v6868 = vsel %vm6308, %v5282, %v6867
  %v6869 = vsel %vm6310, %v5296, %v6868
  %v6870 = vsel %vm6312, %v5310, %v6869
  %v6871 = vsel %vm6300, %v5233, %v5219
  %v6872 = vsel %vm6302, %v5247, %v6871
  %v6873 = vsel %vm6304, %v5261, %v6872
  %v6874 = vsel %vm6306, %v5275, %v6873
  %v6875 = vsel %vm6308, %v5289, %v6874
  %v6876 = vsel %vm6310, %v5303, %v6875
  %v6877 = vsel %vm6312, %v5317, %v6876
  %v6878 = vsel %vm6300, %v5394, %v5380
  %v6879 = vsel %vm6302, %v5408, %v6878
  %v6880 = vsel %vm6304, %v5422, %v6879
  %v6881 = vsel %vm6306, %v5436, %v6880
  %v6882 = vsel %vm6308, %v5450, %v6881
  %v6883 = vsel %vm6310, %v5464, %v6882
  %v6884 = vsel %vm6312, %v5478, %v6883
  %v6885 = vsel %vm6300, %v5401, %v5387
  %v6886 = vsel %vm6302, %v5415, %v6885
  %v6887 = vsel %vm6304, %v5429, %v6886
  %v6888 = vsel %vm6306, %v5443, %v6887
  %v6889 = vsel %vm6308, %v5457, %v6888
  %v6890 = vsel %vm6310, %v5471, %v6889
  %v6891 = vsel %vm6312, %v5485, %v6890
  %v6892 = vsel %vm6300, %v5562, %v5548
  %v6893 = vsel %vm6302, %v5576, %v6892
  %v6894 = vsel %vm6304, %v5590, %v6893
  %v6895 = vsel %vm6306, %v5604, %v6894
  %v6896 = vsel %vm6308, %v5618, %v6895
  %v6897 = vsel %vm6310, %v5632, %v6896
  %v6898 = vsel %vm6312, %v5646, %v6897
  %v6899 = vsel %vm6300, %v5569, %v5555
  %v6900 = vsel %vm6302, %v5583, %v6899
  %v6901 = vsel %vm6304, %v5597, %v6900
  %v6902 = vsel %vm6306, %v5611, %v6901
  %v6903 = vsel %vm6308, %v5625, %v6902
  %v6904 = vsel %vm6310, %v5639, %v6903
  %v6905 = vsel %vm6312, %v5653, %v6904
  %v6906 = vsel %vm6300, %v5730, %v5716
  %v6907 = vsel %vm6302, %v5744, %v6906
  %v6908 = vsel %vm6304, %v5758, %v6907
  %v6909 = vsel %vm6306, %v5772, %v6908
  %v6910 = vsel %vm6308, %v5786, %v6909
  %v6911 = vsel %vm6310, %v5800, %v6910
  %v6912 = vsel %vm6312, %v5814, %v6911
  %v6913 = vsel %vm6300, %v5737, %v5723
  %v6914 = vsel %vm6302, %v5751, %v6913
  %v6915 = vsel %vm6304, %v5765, %v6914
  %v6916 = vsel %vm6306, %v5779, %v6915
  %v6917 = vsel %vm6308, %v5793, %v6916
  %v6918 = vsel %vm6310, %v5807, %v6917
  %v6919 = vsel %vm6312, %v5821, %v6918
  %v6920 = vsel %vm6300, %v5898, %v5884
  %v6921 = vsel %vm6302, %v5912, %v6920
  %v6922 = vsel %vm6304, %v5926, %v6921
  %v6923 = vsel %vm6306, %v5940, %v6922
  %v6924 = vsel %vm6308, %v5954, %v6923
  %v6925 = vsel %vm6310, %v5968, %v6924
  %v6926 = vsel %vm6312, %v5982, %v6925
  %v6927 = vsel %vm6300, %v5905, %v5891
  %v6928 = vsel %vm6302, %v5919, %v6927
  %v6929 = vsel %vm6304, %v5933, %v6928
  %v6930 = vsel %vm6306, %v5947, %v6929
  %v6931 = vsel %vm6308, %v5961, %v6930
  %v6932 = vsel %vm6310, %v5975, %v6931
  %v6933 = vsel %vm6312, %v5989, %v6932
  %v6934 = vsel %vm6300, %v6066, %v6052
  %v6935 = vsel %vm6302, %v6080, %v6934
  %v6936 = vsel %vm6304, %v6094, %v6935
  %v6937 = vsel %vm6306, %v6108, %v6936
  %v6938 = vsel %vm6308, %v6122, %v6937
  %v6939 = vsel %vm6310, %v6136, %v6938
  %v6940 = vsel %vm6312, %v6150, %v6939
  %v6941 = vsel %vm6300, %v6073, %v6059
  %v6942 = vsel %vm6302, %v6087, %v6941
  %v6943 = vsel %vm6304, %v6101, %v6942
  %v6944 = vsel %vm6306, %v6115, %v6943
  %v6945 = vsel %vm6308, %v6129, %v6944
  %v6946 = vsel %vm6310, %v6143, %v6945
  %v6947 = vsel %vm6312, %v6157, %v6946
  %6948 = vrot.lane.b32.xlu0 %v6842, 80
  %v6949 = vpop.permute.xlu0 %6948
  %6950 = vrot.lane.b32.xlu0 %v6849, 80
  %v6951 = vpop.permute.xlu0 %6950
  %6952 = vrot.lane.b32.xlu0 %v6856, 80
  %v6953 = vpop.permute.xlu0 %6952
  %6954 = vrot.lane.b32.xlu0 %v6863, 80
  %v6955 = vpop.permute.xlu0 %6954
  %6956 = vrot.lane.b32.xlu0 %v6870, 80
  %v6957 = vpop.permute.xlu0 %6956
  %6958 = vrot.lane.b32.xlu0 %v6877, 80
  %v6959 = vpop.permute.xlu0 %6958
  %6960 = vrot.lane.b32.xlu0 %v6884, 80
  %v6961 = vpop.permute.xlu0 %6960
  %6962 = vrot.lane.b32.xlu0 %v6891, 80
  %v6963 = vpop.permute.xlu0 %6962
  %6964 = vrot.lane.b32.xlu0 %v6898, 80
  %v6965 = vpop.permute.xlu0 %6964
  %6966 = vrot.lane.b32.xlu0 %v6905, 80
  %v6967 = vpop.permute.xlu0 %6966
  %6968 = vrot.lane.b32.xlu0 %v6912, 80
  %v6969 = vpop.permute.xlu0 %6968
  %6970 = vrot.lane.b32.xlu0 %v6919, 80
  %v6971 = vpop.permute.xlu0 %6970
  %6972 = vrot.lane.b32.xlu0 %v6926, 80
  %v6973 = vpop.permute.xlu0 %6972
  %6974 = vrot.lane.b32.xlu0 %v6933, 80
  %v6975 = vpop.permute.xlu0 %6974
  %6976 = vrot.lane.b32.xlu0 %v6940, 80
  %v6977 = vpop.permute.xlu0 %6976
  %6978 = vrot.lane.b32.xlu0 %v6947, 80
  %v6979 = vpop.permute.xlu0 %6978
  %v6980 = vsel %vm3187, %v6949, %v6951
  %v6981 = vsel %vm3187, %v6953, %v6955
  %v6982 = vsel %vm3187, %v6957, %v6959
  %v6983 = vsel %vm3187, %v6961, %v6963
  %v6984 = vsel %vm3187, %v6965, %v6967
  %v6985 = vsel %vm3187, %v6969, %v6971
  %v6986 = vsel %vm3187, %v6973, %v6975
  %v6987 = vsel %vm3187, %v6977, %v6979
  %v7028 = vsel %vm6300, %v4904, %v4890
  %v7029 = vsel %vm6302, %v4918, %v7028
  %v7030 = vsel %vm6304, %v4932, %v7029
  %v7031 = vsel %vm6306, %v4946, %v7030
  %v7032 = vsel %vm6308, %v4960, %v7031
  %v7033 = vsel %vm6310, %v4974, %v7032
  %v7034 = vsel %vm6312, %v4988, %v7033
  %v7035 = vsel %vm6300, %v4911, %v4897
  %v7036 = vsel %vm6302, %v4925, %v7035
  %v7037 = vsel %vm6304, %v4939, %v7036
  %v7038 = vsel %vm6306, %v4953, %v7037
  %v7039 = vsel %vm6308, %v4967, %v7038
  %v7040 = vsel %vm6310, %v4981, %v7039
  %v7041 = vsel %vm6312, %v4995, %v7040
  %v7042 = vsel %vm6300, %v5072, %v5058
  %v7043 = vsel %vm6302, %v5086, %v7042
  %v7044 = vsel %vm6304, %v5100, %v7043
  %v7045 = vsel %vm6306, %v5114, %v7044
  %v7046 = vsel %vm6308, %v5128, %v7045
  %v7047 = vsel %vm6310, %v5142, %v7046
  %v7048 = vsel %vm6312, %v5156, %v7047
  %v7049 = vsel %vm6300, %v5079, %v5065
  %v7050 = vsel %vm6302, %v5093, %v7049
  %v7051 = vsel %vm6304, %v5107, %v7050
  %v7052 = vsel %vm6306, %v5121, %v7051
  %v7053 = vsel %vm6308, %v5135, %v7052
  %v7054 = vsel %vm6310, %v5149, %v7053
  %v7055 = vsel %vm6312, %v5163, %v7054
  %v7056 = vsel %vm6300, %v5240, %v5226
  %v7057 = vsel %vm6302, %v5254, %v7056
  %v7058 = vsel %vm6304, %v5268, %v7057
  %v7059 = vsel %vm6306, %v5282, %v7058
  %v7060 = vsel %vm6308, %v5296, %v7059
  %v7061 = vsel %vm6310, %v5310, %v7060
  %v7062 = vsel %vm6312, %v5324, %v7061
  %v7063 = vsel %vm6300, %v5247, %v5233
  %v7064 = vsel %vm6302, %v5261, %v7063
  %v7065 = vsel %vm6304, %v5275, %v7064
  %v7066 = vsel %vm6306, %v5289, %v7065
  %v7067 = vsel %vm6308, %v5303, %v7066
  %v7068 = vsel %vm6310, %v5317, %v7067
  %v7069 = vsel %vm6312, %v5331, %v7068
  %v7070 = vsel %vm6300, %v5408, %v5394
  %v7071 = vsel %vm6302, %v5422, %v7070
  %v7072 = vsel %vm6304, %v5436, %v7071
  %v7073 = vsel %vm6306, %v5450, %v7072
  %v7074 = vsel %vm6308, %v5464, %v7073
  %v7075 = vsel %vm6310, %v5478, %v7074
  %v7076 = vsel %vm6312, %v5492, %v7075
  %v7077 = vsel %vm6300, %v5415, %v5401
  %v7078 = vsel %vm6302, %v5429, %v7077
  %v7079 = vsel %vm6304, %v5443, %v7078
  %v7080 = vsel %vm6306, %v5457, %v7079
  %v7081 = vsel %vm6308, %v5471, %v7080
  %v7082 = vsel %vm6310, %v5485, %v7081
  %v7083 = vsel %vm6312, %v5499, %v7082
  %v7084 = vsel %vm6300, %v5576, %v5562
  %v7085 = vsel %vm6302, %v5590, %v7084
  %v7086 = vsel %vm6304, %v5604, %v7085
  %v7087 = vsel %vm6306, %v5618, %v7086
  %v7088 = vsel %vm6308, %v5632, %v7087
  %v7089 = vsel %vm6310, %v5646, %v7088
  %v7090 = vsel %vm6312, %v5660, %v7089
  %v7091 = vsel %vm6300, %v5583, %v5569
  %v7092 = vsel %vm6302, %v5597, %v7091
  %v7093 = vsel %vm6304, %v5611, %v7092
  %v7094 = vsel %vm6306, %v5625, %v7093
  %v7095 = vsel %vm6308, %v5639, %v7094
  %v7096 = vsel %vm6310, %v5653, %v7095
  %v7097 = vsel %vm6312, %v5667, %v7096
  %v7098 = vsel %vm6300, %v5744, %v5730
  %v7099 = vsel %vm6302, %v5758, %v7098
  %v7100 = vsel %vm6304, %v5772, %v7099
  %v7101 = vsel %vm6306, %v5786, %v7100
  %v7102 = vsel %vm6308, %v5800, %v7101
  %v7103 = vsel %vm6310, %v5814, %v7102
  %v7104 = vsel %vm6312, %v5828, %v7103
  %v7105 = vsel %vm6300, %v5751, %v5737
  %v7106 = vsel %vm6302, %v5765, %v7105
  %v7107 = vsel %vm6304, %v5779, %v7106
  %v7108 = vsel %vm6306, %v5793, %v7107
  %v7109 = vsel %vm6308, %v5807, %v7108
  %v7110 = vsel %vm6310, %v5821, %v7109
  %v7111 = vsel %vm6312, %v5835, %v7110
  %v7112 = vsel %vm6300, %v5912, %v5898
  %v7113 = vsel %vm6302, %v5926, %v7112
  %v7114 = vsel %vm6304, %v5940, %v7113
  %v7115 = vsel %vm6306, %v5954, %v7114
  %v7116 = vsel %vm6308, %v5968, %v7115
  %v7117 = vsel %vm6310, %v5982, %v7116
  %v7118 = vsel %vm6312, %v5996, %v7117
  %v7119 = vsel %vm6300, %v5919, %v5905
  %v7120 = vsel %vm6302, %v5933, %v7119
  %v7121 = vsel %vm6304, %v5947, %v7120
  %v7122 = vsel %vm6306, %v5961, %v7121
  %v7123 = vsel %vm6308, %v5975, %v7122
  %v7124 = vsel %vm6310, %v5989, %v7123
  %v7125 = vsel %vm6312, %v6003, %v7124
  %v7126 = vsel %vm6300, %v6080, %v6066
  %v7127 = vsel %vm6302, %v6094, %v7126
  %v7128 = vsel %vm6304, %v6108, %v7127
  %v7129 = vsel %vm6306, %v6122, %v7128
  %v7130 = vsel %vm6308, %v6136, %v7129
  %v7131 = vsel %vm6310, %v6150, %v7130
  %v7132 = vsel %vm6312, %v6164, %v7131
  %v7133 = vsel %vm6300, %v6087, %v6073
  %v7134 = vsel %vm6302, %v6101, %v7133
  %v7135 = vsel %vm6304, %v6115, %v7134
  %v7136 = vsel %vm6306, %v6129, %v7135
  %v7137 = vsel %vm6308, %v6143, %v7136
  %v7138 = vsel %vm6310, %v6157, %v7137
  %v7139 = vsel %vm6312, %v6171, %v7138
  %7140 = vrot.lane.b32.xlu0 %v7034, 64
  %v7141 = vpop.permute.xlu0 %7140
  %7142 = vrot.lane.b32.xlu0 %v7041, 64
  %v7143 = vpop.permute.xlu0 %7142
  %7144 = vrot.lane.b32.xlu0 %v7048, 64
  %v7145 = vpop.permute.xlu0 %7144
  %7146 = vrot.lane.b32.xlu0 %v7055, 64
  %v7147 = vpop.permute.xlu0 %7146
  %7148 = vrot.lane.b32.xlu0 %v7062, 64
  %v7149 = vpop.permute.xlu0 %7148
  %7150 = vrot.lane.b32.xlu0 %v7069, 64
  %v7151 = vpop.permute.xlu0 %7150
  %7152 = vrot.lane.b32.xlu0 %v7076, 64
  %v7153 = vpop.permute.xlu0 %7152
  %7154 = vrot.lane.b32.xlu0 %v7083, 64
  %v7155 = vpop.permute.xlu0 %7154
  %7156 = vrot.lane.b32.xlu0 %v7090, 64
  %v7157 = vpop.permute.xlu0 %7156
  %7158 = vrot.lane.b32.xlu0 %v7097, 64
  %v7159 = vpop.permute.xlu0 %7158
  %7160 = vrot.lane.b32.xlu0 %v7104, 64
  %v7161 = vpop.permute.xlu0 %7160
  %7162 = vrot.lane.b32.xlu0 %v7111, 64
  %v7163 = vpop.permute.xlu0 %7162
  %7164 = vrot.lane.b32.xlu0 %v7118, 64
  %v7165 = vpop.permute.xlu0 %7164
  %7166 = vrot.lane.b32.xlu0 %v7125, 64
  %v7167 = vpop.permute.xlu0 %7166
  %7168 = vrot.lane.b32.xlu0 %v7132, 64
  %v7169 = vpop.permute.xlu0 %7168
  %7170 = vrot.lane.b32.xlu0 %v7139, 64
  %v7171 = vpop.permute.xlu0 %7170
  %vm7172 = vcmask 523264
  %v7173 = vsel %vm7172, %v7141, %v7143
  %v7174 = vsel %vm7172, %v7145, %v7147
  %v7175 = vsel %vm7172, %v7149, %v7151
  %v7176 = vsel %vm7172, %v7153, %v7155
  %v7177 = vsel %vm7172, %v7157, %v7159
  %v7178 = vsel %vm7172, %v7161, %v7163
  %v7179 = vsel %vm7172, %v7165, %v7167
  %v7180 = vsel %vm7172, %v7169, %v7171
  %v7197 = vsel %vm687, %v6320, %v6564
  %v7198 = vsel %vm687, %v6334, %v6568
  %v7199 = vsel %vm687, %v6348, %v6572
  %v7200 = vsel %vm687, %v6362, %v6576
  %v7201 = vsel %vm687, %v6376, %v6580
  %v7202 = vsel %vm687, %v6390, %v6584
  %v7203 = vsel %vm687, %v6404, %v6588
  %v7204 = vsel %vm687, %v6418, %v6592
  %v7205 = vsel %vm6787, %v6566, %v6756
  %v7206 = vsel %vm6787, %v6570, %v6760
  %v7207 = vsel %vm6787, %v6574, %v6764
  %v7208 = vsel %vm6787, %v6578, %v6768
  %v7209 = vsel %vm6787, %v6582, %v6772
  %v7210 = vsel %vm6787, %v6586, %v6776
  %v7211 = vsel %vm6787, %v6590, %v6780
  %v7212 = vsel %vm6787, %v6594, %v6784
  %v7213 = vsel %vm3187, %v6758, %v6949
  %v7214 = vsel %vm3187, %v6762, %v6953
  %v7215 = vsel %vm3187, %v6766, %v6957
  %v7216 = vsel %vm3187, %v6770, %v6961
  %v7217 = vsel %vm3187, %v6774, %v6965
  %v7218 = vsel %vm3187, %v6778, %v6969
  %v7219 = vsel %vm3187, %v6782, %v6973
  %v7220 = vsel %vm3187, %v6786, %v6977
  %v7221 = vsel %vm7172, %v6951, %v7141
  %v7222 = vsel %vm7172, %v6955, %v7145
  %v7223 = vsel %vm7172, %v6959, %v7149
  %v7224 = vsel %vm7172, %v6963, %v7153
  %v7225 = vsel %vm7172, %v6967, %v7157
  %v7226 = vsel %vm7172, %v6971, %v7161
  %v7227 = vsel %vm7172, %v6975, %v7165
  %v7228 = vsel %vm7172, %v6979, %v7169
  %v7229 = vld [vmem:[%s3] sm:$0xff]
  %v7230 = vld [vmem:[%s3 + $0x8] sm:$0xff]
  %v7231 = vld [vmem:[%s3 + $0x10] sm:$0xff]
  %v7232 = vld [vmem:[%s3 + $0x18] sm:$0xff]
  %v7233 = vld [vmem:[%s3 + $0x20] sm:$0xff]
  %v7234 = vld [vmem:[%s3 + $0x28] sm:$0xff]
  %v7235 = vld [vmem:[%s3 + $0x30] sm:$0xff]
  %v7236 = vld [vmem:[%s3 + $0x38] sm:$0xff]
  %v7237 = vld [vmem:[%s3 + $0x40] sm:$0xff]
  %v7238 = vld [vmem:[%s3 + $0x48] sm:$0xff]
  %v7239 = vld [vmem:[%s3 + $0x50] sm:$0xff]
  %v7240 = vld [vmem:[%s3 + $0x58] sm:$0xff]
  %v7241 = vld [vmem:[%s3 + $0x60] sm:$0xff]
  %v7242 = vld [vmem:[%s3 + $0x68] sm:$0xff]
  %v7243 = vld [vmem:[%s3 + $0x70] sm:$0xff]
  %v7244 = vld [vmem:[%s3 + $0x78] sm:$0xff]
  %v7245 = vld [vmem:[%s3 + $0x80] sm:$0xff]
  %v7246 = vld [vmem:[%s3 + $0x88] sm:$0xff]
  %v7247 = vld [vmem:[%s3 + $0x90] sm:$0xff]
  %v7248 = vld [vmem:[%s3 + $0x98] sm:$0xff]
  %v7249 = vld [vmem:[%s3 + $0xa0] sm:$0xff]
  %v7250 = vld [vmem:[%s3 + $0xa8] sm:$0xff]
  %v7251 = vld [vmem:[%s3 + $0xb0] sm:$0xff]
  %v7252 = vld [vmem:[%s3 + $0xb8] sm:$0xff]
  %v7253 = vld [vmem:[%s3 + $0xc0] sm:$0xff]
  %v7254 = vld [vmem:[%s3 + $0xc8] sm:$0xff]
  %v7255 = vld [vmem:[%s3 + $0xd0] sm:$0xff]
  %v7256 = vld [vmem:[%s3 + $0xd8] sm:$0xff]
  %v7257 = vld [vmem:[%s3 + $0xe0] sm:$0xff]
  %v7258 = vld [vmem:[%s3 + $0xe8] sm:$0xff]
  %v7259 = vld [vmem:[%s3 + $0xf0] sm:$0xff]
  %v7260 = vld [vmem:[%s3 + $0xf8] sm:$0xff]
  %v7261 = vld [vmem:[%s3 + $0x100] sm:$0xff]
  %v7262 = vld [vmem:[%s3 + $0x108] sm:$0xff]
  %v7263 = vld [vmem:[%s3 + $0x110] sm:$0xff]
  %v7264 = vld [vmem:[%s3 + $0x118] sm:$0xff]
  %v7265 = vld [vmem:[%s3 + $0x120] sm:$0xff]
  %v7266 = vld [vmem:[%s3 + $0x128] sm:$0xff]
  %v7267 = vld [vmem:[%s3 + $0x130] sm:$0xff]
  %v7268 = vld [vmem:[%s3 + $0x138] sm:$0xff]
  %v7269 = vld [vmem:[%s3 + $0x140] sm:$0xff]
  %v7270 = vld [vmem:[%s3 + $0x148] sm:$0xff]
  %v7271 = vld [vmem:[%s3 + $0x150] sm:$0xff]
  %v7272 = vld [vmem:[%s3 + $0x158] sm:$0xff]
  %v7273 = vld [vmem:[%s3 + $0x160] sm:$0xff]
  %v7274 = vld [vmem:[%s3 + $0x168] sm:$0xff]
  %v7275 = vld [vmem:[%s3 + $0x170] sm:$0xff]
  %v7276 = vld [vmem:[%s3 + $0x178] sm:$0xff]
  %v7277 = vld [vmem:[%s3 + $0x180] sm:$0xff]
  %v7278 = vld [vmem:[%s3 + $0x188] sm:$0xff]
  %v7279 = vld [vmem:[%s3 + $0x190] sm:$0xff]
  %v7280 = vld [vmem:[%s3 + $0x198] sm:$0xff]
  %v7281 = vld [vmem:[%s3 + $0x1a0] sm:$0xff]
  %v7282 = vld [vmem:[%s3 + $0x1a8] sm:$0xff]
  %v7283 = vld [vmem:[%s3 + $0x1b0] sm:$0xff]
  %v7284 = vld [vmem:[%s3 + $0x1b8] sm:$0xff]
  %v7285 = vld [vmem:[%s3 + $0x1c0] sm:$0xff]
  %v7286 = vld [vmem:[%s3 + $0x1c8] sm:$0xff]
  %v7287 = vld [vmem:[%s3 + $0x1d0] sm:$0xff]
  %v7288 = vld [vmem:[%s3 + $0x1d8] sm:$0xff]
  %v7289 = vld [vmem:[%s3 + $0x1e0] sm:$0xff]
  %v7290 = vld [vmem:[%s3 + $0x1e8] sm:$0xff]
  %v7291 = vld [vmem:[%s3 + $0x1f0] sm:$0xff]
  %v7292 = vld [vmem:[%s3 + $0x1f8] sm:$0xff]
  %v7293 = vld [vmem:[%s3 + $0x200] sm:$0xff]
  %v7294 = vld [vmem:[%s3 + $0x208] sm:$0xff]
  %v7295 = vld [vmem:[%s3 + $0x210] sm:$0xff]
  %v7296 = vld [vmem:[%s3 + $0x218] sm:$0xff]
  %v7297 = vld [vmem:[%s3 + $0x220] sm:$0xff]
  %v7298 = vld [vmem:[%s3 + $0x228] sm:$0xff]
  %v7299 = vld [vmem:[%s3 + $0x230] sm:$0xff]
  %v7300 = vld [vmem:[%s3 + $0x238] sm:$0xff]
  %v7301 = vld [vmem:[%s3 + $0x240] sm:$0xff]
  %v7302 = vld [vmem:[%s3 + $0x248] sm:$0xff]
  %v7303 = vld [vmem:[%s3 + $0x250] sm:$0xff]
  %v7304 = vld [vmem:[%s3 + $0x258] sm:$0xff]
  %v7305 = vld [vmem:[%s3 + $0x260] sm:$0xff]
  %v7306 = vld [vmem:[%s3 + $0x268] sm:$0xff]
  %v7307 = vld [vmem:[%s3 + $0x270] sm:$0xff]
  %v7308 = vld [vmem:[%s3 + $0x278] sm:$0xff]
  %v7309 = vld [vmem:[%s3 + $0x280] sm:$0xff]
  %v7310 = vld [vmem:[%s3 + $0x288] sm:$0xff]
  %v7311 = vld [vmem:[%s3 + $0x290] sm:$0xff]
  %v7312 = vld [vmem:[%s3 + $0x298] sm:$0xff]
  %v7313 = vld [vmem:[%s3 + $0x2a0] sm:$0xff]
  %v7314 = vld [vmem:[%s3 + $0x2a8] sm:$0xff]
  %v7315 = vld [vmem:[%s3 + $0x2b0] sm:$0xff]
  %v7316 = vld [vmem:[%s3 + $0x2b8] sm:$0xff]
  %v7317 = vld [vmem:[%s3 + $0x2c0] sm:$0xff]
  %v7318 = vld [vmem:[%s3 + $0x2c8] sm:$0xff]
  %v7319 = vld [vmem:[%s3 + $0x2d0] sm:$0xff]
  %v7320 = vld [vmem:[%s3 + $0x2d8] sm:$0xff]
  %v7321 = vld [vmem:[%s3 + $0x2e0] sm:$0xff]
  %v7322 = vld [vmem:[%s3 + $0x2e8] sm:$0xff]
  %v7323 = vld [vmem:[%s3 + $0x2f0] sm:$0xff]
  %v7324 = vld [vmem:[%s3 + $0x2f8] sm:$0xff]
  %v7325 = vld [vmem:[%s3 + $0x300] sm:$0xff]
  %v7326 = vld [vmem:[%s3 + $0x308] sm:$0xff]
  %v7327 = vld [vmem:[%s3 + $0x310] sm:$0xff]
  %v7328 = vld [vmem:[%s3 + $0x318] sm:$0xff]
  %v7329 = vld [vmem:[%s3 + $0x320] sm:$0xff]
  %v7330 = vld [vmem:[%s3 + $0x328] sm:$0xff]
  %v7331 = vld [vmem:[%s3 + $0x330] sm:$0xff]
  %v7332 = vld [vmem:[%s3 + $0x338] sm:$0xff]
  %v7333 = vld [vmem:[%s3 + $0x340] sm:$0xff]
  %v7334 = vld [vmem:[%s3 + $0x348] sm:$0xff]
  %v7335 = vld [vmem:[%s3 + $0x350] sm:$0xff]
  %v7336 = vld [vmem:[%s3 + $0x358] sm:$0xff]
  %v7337 = vld [vmem:[%s3 + $0x360] sm:$0xff]
  %v7338 = vld [vmem:[%s3 + $0x368] sm:$0xff]
  %v7339 = vld [vmem:[%s3 + $0x370] sm:$0xff]
  %v7340 = vld [vmem:[%s3 + $0x378] sm:$0xff]
  %v7341 = vld [vmem:[%s3 + $0x380] sm:$0xff]
  %v7342 = vld [vmem:[%s3 + $0x388] sm:$0xff]
  %v7343 = vld [vmem:[%s3 + $0x390] sm:$0xff]
  %v7344 = vld [vmem:[%s3 + $0x398] sm:$0xff]
  %v7345 = vld [vmem:[%s3 + $0x3a0] sm:$0xff]
  %v7346 = vld [vmem:[%s3 + $0x3a8] sm:$0xff]
  %v7347 = vld [vmem:[%s3 + $0x3b0] sm:$0xff]
  %v7348 = vld [vmem:[%s3 + $0x3b8] sm:$0xff]
  %v7349 = vld [vmem:[%s3 + $0x3c0] sm:$0xff]
  %v7350 = vld [vmem:[%s3 + $0x3c8] sm:$0xff]
  %v7351 = vld [vmem:[%s3 + $0x3d0] sm:$0xff]
  %v7352 = vld [vmem:[%s3 + $0x3d8] sm:$0xff]
  %v7353 = vld [vmem:[%s3 + $0x3e0] sm:$0xff]
  %v7354 = vld [vmem:[%s3 + $0x3e8] sm:$0xff]
  %v7355 = vld [vmem:[%s3 + $0x3f0] sm:$0xff]
  %v7356 = vld [vmem:[%s3 + $0x3f8] sm:$0xff]
  %v7357 = vld [vmem:[%s3 + $0x400] sm:$0xff]
  %v7358 = vld [vmem:[%s3 + $0x408] sm:$0xff]
  %v7359 = vld [vmem:[%s3 + $0x410] sm:$0xff]
  %v7360 = vld [vmem:[%s3 + $0x418] sm:$0xff]
  %v7361 = vld [vmem:[%s3 + $0x420] sm:$0xff]
  %v7362 = vld [vmem:[%s3 + $0x428] sm:$0xff]
  %v7363 = vld [vmem:[%s3 + $0x430] sm:$0xff]
  %v7364 = vld [vmem:[%s3 + $0x438] sm:$0xff]
  %v7365 = vld [vmem:[%s3 + $0x440] sm:$0xff]
  %v7366 = vld [vmem:[%s3 + $0x448] sm:$0xff]
  %v7367 = vld [vmem:[%s3 + $0x450] sm:$0xff]
  %v7368 = vld [vmem:[%s3 + $0x458] sm:$0xff]
  %v7369 = vld [vmem:[%s3 + $0x460] sm:$0xff]
  %v7370 = vld [vmem:[%s3 + $0x468] sm:$0xff]
  %v7371 = vld [vmem:[%s3 + $0x470] sm:$0xff]
  %v7372 = vld [vmem:[%s3 + $0x478] sm:$0xff]
  %v7373 = vld [vmem:[%s3 + $0x480] sm:$0xff]
  %v7374 = vld [vmem:[%s3 + $0x488] sm:$0xff]
  %v7375 = vld [vmem:[%s3 + $0x490] sm:$0xff]
  %v7376 = vld [vmem:[%s3 + $0x498] sm:$0xff]
  %v7377 = vld [vmem:[%s3 + $0x4a0] sm:$0xff]
  %v7378 = vld [vmem:[%s3 + $0x4a8] sm:$0xff]
  %v7379 = vld [vmem:[%s3 + $0x4b0] sm:$0xff]
  %v7380 = vld [vmem:[%s3 + $0x4b8] sm:$0xff]
  %v7381 = vld [vmem:[%s3 + $0x4c0] sm:$0xff]
  %v7382 = vld [vmem:[%s3 + $0x4c8] sm:$0xff]
  %v7383 = vld [vmem:[%s3 + $0x4d0] sm:$0xff]
  %v7384 = vld [vmem:[%s3 + $0x4d8] sm:$0xff]
  %v7385 = vld [vmem:[%s3 + $0x4e0] sm:$0xff]
  %v7386 = vld [vmem:[%s3 + $0x4e8] sm:$0xff]
  %v7387 = vld [vmem:[%s3 + $0x4f0] sm:$0xff]
  %v7388 = vld [vmem:[%s3 + $0x4f8] sm:$0xff]
  %v7389 = vld [vmem:[%s3 + $0x500] sm:$0xff]
  %v7390 = vld [vmem:[%s3 + $0x508] sm:$0xff]
  %v7391 = vld [vmem:[%s3 + $0x510] sm:$0xff]
  %v7392 = vld [vmem:[%s3 + $0x518] sm:$0xff]
  %v7393 = vld [vmem:[%s3 + $0x520] sm:$0xff]
  %v7394 = vld [vmem:[%s3 + $0x528] sm:$0xff]
  %v7395 = vld [vmem:[%s3 + $0x530] sm:$0xff]
  %v7396 = vld [vmem:[%s3 + $0x538] sm:$0xff]
  %v7397 = vld [vmem:[%s3 + $0x540] sm:$0xff]
  %v7398 = vld [vmem:[%s3 + $0x548] sm:$0xff]
  %v7399 = vld [vmem:[%s3 + $0x550] sm:$0xff]
  %v7400 = vld [vmem:[%s3 + $0x558] sm:$0xff]
  %v7401 = vld [vmem:[%s3 + $0x560] sm:$0xff]
  %v7402 = vld [vmem:[%s3 + $0x568] sm:$0xff]
  %v7403 = vld [vmem:[%s3 + $0x570] sm:$0xff]
  %v7404 = vld [vmem:[%s3 + $0x578] sm:$0xff]
  %v7405 = vld [vmem:[%s3 + $0x580] sm:$0xff]
  %v7406 = vld [vmem:[%s3 + $0x588] sm:$0xff]
  %v7407 = vld [vmem:[%s3 + $0x590] sm:$0xff]
  %v7408 = vld [vmem:[%s3 + $0x598] sm:$0xff]
  %v7409 = vld [vmem:[%s3 + $0x5a0] sm:$0xff]
  %v7410 = vld [vmem:[%s3 + $0x5a8] sm:$0xff]
  %v7411 = vld [vmem:[%s3 + $0x5b0] sm:$0xff]
  %v7412 = vld [vmem:[%s3 + $0x5b8] sm:$0xff]
  %v7413 = vld [vmem:[%s3 + $0x5c0] sm:$0xff]
  %v7414 = vld [vmem:[%s3 + $0x5c8] sm:$0xff]
  %v7415 = vld [vmem:[%s3 + $0x5d0] sm:$0xff]
  %v7416 = vld [vmem:[%s3 + $0x5d8] sm:$0xff]
  %v7417 = vld [vmem:[%s3 + $0x5e0] sm:$0xff]
  %v7418 = vld [vmem:[%s3 + $0x5e8] sm:$0xff]
  %v7419 = vld [vmem:[%s3 + $0x5f0] sm:$0xff]
  %v7420 = vld [vmem:[%s3 + $0x5f8] sm:$0xff]
  %v7421 = vld [vmem:[%s3 + $0x600] sm:$0xff]
  %v7422 = vld [vmem:[%s3 + $0x608] sm:$0xff]
  %v7423 = vld [vmem:[%s3 + $0x610] sm:$0xff]
  %v7424 = vld [vmem:[%s3 + $0x618] sm:$0xff]
  %v7425 = vld [vmem:[%s3 + $0x620] sm:$0xff]
  %v7426 = vld [vmem:[%s3 + $0x628] sm:$0xff]
  %v7427 = vld [vmem:[%s3 + $0x630] sm:$0xff]
  %v7428 = vld [vmem:[%s3 + $0x638] sm:$0xff]
  %v7429 = vld [vmem:[%s3 + $0x640] sm:$0xff]
  %v7430 = vld [vmem:[%s3 + $0x648] sm:$0xff]
  %v7431 = vld [vmem:[%s3 + $0x650] sm:$0xff]
  %v7432 = vld [vmem:[%s3 + $0x658] sm:$0xff]
  %v7433 = vld [vmem:[%s3 + $0x660] sm:$0xff]
  %v7434 = vld [vmem:[%s3 + $0x668] sm:$0xff]
  %v7435 = vld [vmem:[%s3 + $0x670] sm:$0xff]
  %v7436 = vld [vmem:[%s3 + $0x678] sm:$0xff]
  %v7437 = vld [vmem:[%s3 + $0x680] sm:$0xff]
  %v7438 = vld [vmem:[%s3 + $0x688] sm:$0xff]
  %v7439 = vld [vmem:[%s3 + $0x690] sm:$0xff]
  %v7440 = vld [vmem:[%s3 + $0x698] sm:$0xff]
  %v7441 = vld [vmem:[%s3 + $0x6a0] sm:$0xff]
  %v7442 = vld [vmem:[%s3 + $0x6a8] sm:$0xff]
  %v7443 = vld [vmem:[%s3 + $0x6b0] sm:$0xff]
  %v7444 = vld [vmem:[%s3 + $0x6b8] sm:$0xff]
  %v7445 = vld [vmem:[%s3 + $0x6c0] sm:$0xff]
  %v7446 = vld [vmem:[%s3 + $0x6c8] sm:$0xff]
  %v7447 = vld [vmem:[%s3 + $0x6d0] sm:$0xff]
  %v7448 = vld [vmem:[%s3 + $0x6d8] sm:$0xff]
  %v7449 = vld [vmem:[%s3 + $0x6e0] sm:$0xff]
  %v7450 = vld [vmem:[%s3 + $0x6e8] sm:$0xff]
  %v7451 = vld [vmem:[%s3 + $0x6f0] sm:$0xff]
  %v7452 = vld [vmem:[%s3 + $0x6f8] sm:$0xff]
  %v7453 = vld [vmem:[%s3 + $0x700] sm:$0xff]
  %v7454 = vld [vmem:[%s3 + $0x708] sm:$0xff]
  %v7455 = vld [vmem:[%s3 + $0x710] sm:$0xff]
  %v7456 = vld [vmem:[%s3 + $0x718] sm:$0xff]
  %v7457 = vld [vmem:[%s3 + $0x720] sm:$0xff]
  %v7458 = vld [vmem:[%s3 + $0x728] sm:$0xff]
  %v7459 = vld [vmem:[%s3 + $0x730] sm:$0xff]
  %v7460 = vld [vmem:[%s3 + $0x738] sm:$0xff]
  %v7461 = vld [vmem:[%s3 + $0x740] sm:$0xff]
  %v7462 = vld [vmem:[%s3 + $0x748] sm:$0xff]
  %v7463 = vld [vmem:[%s3 + $0x750] sm:$0xff]
  %v7464 = vld [vmem:[%s3 + $0x758] sm:$0xff]
  %v7465 = vld [vmem:[%s3 + $0x760] sm:$0xff]
  %v7466 = vld [vmem:[%s3 + $0x768] sm:$0xff]
  %v7467 = vld [vmem:[%s3 + $0x770] sm:$0xff]
  %v7468 = vld [vmem:[%s3 + $0x778] sm:$0xff]
  %v7469 = vld [vmem:[%s3 + $0x780] sm:$0xff]
  %v7470 = vld [vmem:[%s3 + $0x788] sm:$0xff]
  %v7471 = vld [vmem:[%s3 + $0x790] sm:$0xff]
  %v7472 = vld [vmem:[%s3 + $0x798] sm:$0xff]
  %v7473 = vld [vmem:[%s3 + $0x7a0] sm:$0xff]
  %v7474 = vld [vmem:[%s3 + $0x7a8] sm:$0xff]
  %v7475 = vld [vmem:[%s3 + $0x7b0] sm:$0xff]
  %v7476 = vld [vmem:[%s3 + $0x7b8] sm:$0xff]
  %v7477 = vld [vmem:[%s3 + $0x7c0] sm:$0xff]
  %v7478 = vld [vmem:[%s3 + $0x7c8] sm:$0xff]
  %v7479 = vld [vmem:[%s3 + $0x7d0] sm:$0xff]
  %v7480 = vld [vmem:[%s3 + $0x7d8] sm:$0xff]
  %v7481 = vld [vmem:[%s3 + $0x7e0] sm:$0xff]
  %v7482 = vld [vmem:[%s3 + $0x7e8] sm:$0xff]
  %v7483 = vld [vmem:[%s3 + $0x7f0] sm:$0xff]
  %v7484 = vld [vmem:[%s3 + $0x7f8] sm:$0xff]
  %v7485 = vld [vmem:[%s3 + $0x800] sm:$0xff]
  %v7486 = vld [vmem:[%s3 + $0x808] sm:$0xff]
  %v7487 = vld [vmem:[%s3 + $0x810] sm:$0xff]
  %v7488 = vld [vmem:[%s3 + $0x818] sm:$0xff]
  %v7489 = vld [vmem:[%s3 + $0x820] sm:$0xff]
  %v7490 = vld [vmem:[%s3 + $0x828] sm:$0xff]
  %v7491 = vld [vmem:[%s3 + $0x830] sm:$0xff]
  %v7492 = vld [vmem:[%s3 + $0x838] sm:$0xff]
  %v7493 = vld [vmem:[%s3 + $0x840] sm:$0xff]
  %v7494 = vld [vmem:[%s3 + $0x848] sm:$0xff]
  %v7495 = vld [vmem:[%s3 + $0x850] sm:$0xff]
  %v7496 = vld [vmem:[%s3 + $0x858] sm:$0xff]
  %v7497 = vld [vmem:[%s3 + $0x860] sm:$0xff]
  %v7498 = vld [vmem:[%s3 + $0x868] sm:$0xff]
  %v7499 = vld [vmem:[%s3 + $0x870] sm:$0xff]
  %v7500 = vld [vmem:[%s3 + $0x878] sm:$0xff]
  %v7501 = vld [vmem:[%s3 + $0x880] sm:$0xff]
  %v7502 = vld [vmem:[%s3 + $0x888] sm:$0xff]
  %v7503 = vld [vmem:[%s3 + $0x890] sm:$0xff]
  %v7504 = vld [vmem:[%s3 + $0x898] sm:$0xff]
  %v7505 = vld [vmem:[%s3 + $0x8a0] sm:$0xff]
  %v7506 = vld [vmem:[%s3 + $0x8a8] sm:$0xff]
  %v7507 = vld [vmem:[%s3 + $0x8b0] sm:$0xff]
  %v7508 = vld [vmem:[%s3 + $0x8b8] sm:$0xff]
  %v7509 = vld [vmem:[%s3 + $0x8c0] sm:$0xff]
  %v7510 = vld [vmem:[%s3 + $0x8c8] sm:$0xff]
  %v7511 = vld [vmem:[%s3 + $0x8d0] sm:$0xff]
  %v7512 = vld [vmem:[%s3 + $0x8d8] sm:$0xff]
  %v7513 = vld [vmem:[%s3 + $0x8e0] sm:$0xff]
  %v7514 = vld [vmem:[%s3 + $0x8e8] sm:$0xff]
  %v7515 = vld [vmem:[%s3 + $0x8f0] sm:$0xff]
  %v7516 = vld [vmem:[%s3 + $0x8f8] sm:$0xff]
  %v7517 = vld [vmem:[%s3 + $0x900] sm:$0xff]
  %v7518 = vld [vmem:[%s3 + $0x908] sm:$0xff]
  %v7519 = vld [vmem:[%s3 + $0x910] sm:$0xff]
  %v7520 = vld [vmem:[%s3 + $0x918] sm:$0xff]
  %v7521 = vld [vmem:[%s3 + $0x920] sm:$0xff]
  %v7522 = vld [vmem:[%s3 + $0x928] sm:$0xff]
  %v7523 = vld [vmem:[%s3 + $0x930] sm:$0xff]
  %v7524 = vld [vmem:[%s3 + $0x938] sm:$0xff]
  %v7525 = vld [vmem:[%s3 + $0x940] sm:$0xff]
  %v7526 = vld [vmem:[%s3 + $0x948] sm:$0xff]
  %v7527 = vld [vmem:[%s3 + $0x950] sm:$0xff]
  %v7528 = vld [vmem:[%s3 + $0x958] sm:$0xff]
  %v7529 = vld [vmem:[%s3 + $0x960] sm:$0xff]
  %v7530 = vld [vmem:[%s3 + $0x968] sm:$0xff]
  %v7531 = vld [vmem:[%s3 + $0x970] sm:$0xff]
  %v7532 = vld [vmem:[%s3 + $0x978] sm:$0xff]
  %v7533 = vld [vmem:[%s3 + $0x980] sm:$0xff]
  %v7534 = vld [vmem:[%s3 + $0x988] sm:$0xff]
  %v7535 = vld [vmem:[%s3 + $0x990] sm:$0xff]
  %v7536 = vld [vmem:[%s3 + $0x998] sm:$0xff]
  %v7537 = vld [vmem:[%s3 + $0x9a0] sm:$0xff]
  %v7538 = vld [vmem:[%s3 + $0x9a8] sm:$0xff]
  %v7539 = vld [vmem:[%s3 + $0x9b0] sm:$0xff]
  %v7540 = vld [vmem:[%s3 + $0x9b8] sm:$0xff]
  %v7541 = vld [vmem:[%s3 + $0x9c0] sm:$0xff]
  %v7542 = vld [vmem:[%s3 + $0x9c8] sm:$0xff]
  %v7543 = vld [vmem:[%s3 + $0x9d0] sm:$0xff]
  %v7544 = vld [vmem:[%s3 + $0x9d8] sm:$0xff]
  %v7545 = vld [vmem:[%s3 + $0x9e0] sm:$0xff]
  %v7546 = vld [vmem:[%s3 + $0x9e8] sm:$0xff]
  %v7547 = vld [vmem:[%s3 + $0x9f0] sm:$0xff]
  %v7548 = vld [vmem:[%s3 + $0x9f8] sm:$0xff]
  %v7549 = vld [vmem:[%s3 + $0xa00] sm:$0xff]
  %v7550 = vld [vmem:[%s3 + $0xa08] sm:$0xff]
  %v7551 = vld [vmem:[%s3 + $0xa10] sm:$0xff]
  %v7552 = vld [vmem:[%s3 + $0xa18] sm:$0xff]
  %v7553 = vld [vmem:[%s3 + $0xa20] sm:$0xff]
  %v7554 = vld [vmem:[%s3 + $0xa28] sm:$0xff]
  %v7555 = vld [vmem:[%s3 + $0xa30] sm:$0xff]
  %v7556 = vld [vmem:[%s3 + $0xa38] sm:$0xff]
  %v7557 = vld [vmem:[%s3 + $0xa40] sm:$0xff]
  %v7558 = vld [vmem:[%s3 + $0xa48] sm:$0xff]
  %v7559 = vld [vmem:[%s3 + $0xa50] sm:$0xff]
  %v7560 = vld [vmem:[%s3 + $0xa58] sm:$0xff]
  %v7561 = vld [vmem:[%s3 + $0xa60] sm:$0xff]
  %v7562 = vld [vmem:[%s3 + $0xa68] sm:$0xff]
  %v7563 = vld [vmem:[%s3 + $0xa70] sm:$0xff]
  %v7564 = vld [vmem:[%s3 + $0xa78] sm:$0xff]
  %v7565 = vld [vmem:[%s3 + $0xa80] sm:$0xff]
  %v7566 = vld [vmem:[%s3 + $0xa88] sm:$0xff]
  %v7567 = vld [vmem:[%s3 + $0xa90] sm:$0xff]
  %v7568 = vld [vmem:[%s3 + $0xa98] sm:$0xff]
  %v7569 = vld [vmem:[%s3 + $0xaa0] sm:$0xff]
  %v7570 = vld [vmem:[%s3 + $0xaa8] sm:$0xff]
  %v7571 = vld [vmem:[%s3 + $0xab0] sm:$0xff]
  %v7572 = vld [vmem:[%s3 + $0xab8] sm:$0xff]
  %v7573 = vld [vmem:[%s3 + $0xac0] sm:$0xff]
  %v7574 = vld [vmem:[%s3 + $0xac8] sm:$0xff]
  %v7575 = vld [vmem:[%s3 + $0xad0] sm:$0xff]
  %v7576 = vld [vmem:[%s3 + $0xad8] sm:$0xff]
  %v7577 = vld [vmem:[%s3 + $0xae0] sm:$0xff]
  %v7578 = vld [vmem:[%s3 + $0xae8] sm:$0xff]
  %v7579 = vld [vmem:[%s3 + $0xaf0] sm:$0xff]
  %v7580 = vld [vmem:[%s3 + $0xaf8] sm:$0xff]
  %v7581 = vld [vmem:[%s3 + $0xb00] sm:$0xff]
  %v7582 = vld [vmem:[%s3 + $0xb08] sm:$0xff]
  %v7583 = vld [vmem:[%s3 + $0xb10] sm:$0xff]
  %v7584 = vld [vmem:[%s3 + $0xb18] sm:$0xff]
  %v7585 = vld [vmem:[%s3 + $0xb20] sm:$0xff]
  %v7586 = vld [vmem:[%s3 + $0xb28] sm:$0xff]
  %v7587 = vld [vmem:[%s3 + $0xb30] sm:$0xff]
  %v7588 = vld [vmem:[%s3 + $0xb38] sm:$0xff]
  %v7589 = vld [vmem:[%s3 + $0xb40] sm:$0xff]
  %v7590 = vld [vmem:[%s3 + $0xb48] sm:$0xff]
  %v7591 = vld [vmem:[%s3 + $0xb50] sm:$0xff]
  %v7592 = vld [vmem:[%s3 + $0xb58] sm:$0xff]
  %v7593 = vld [vmem:[%s3 + $0xb60] sm:$0xff]
  %v7594 = vld [vmem:[%s3 + $0xb68] sm:$0xff]
  %v7595 = vld [vmem:[%s3 + $0xb70] sm:$0xff]
  %v7596 = vld [vmem:[%s3 + $0xb78] sm:$0xff]
  %v7597 = vld [vmem:[%s3 + $0xb80] sm:$0xff]
  %v7598 = vld [vmem:[%s3 + $0xb88] sm:$0xff]
  %v7599 = vld [vmem:[%s3 + $0xb90] sm:$0xff]
  %v7600 = vld [vmem:[%s3 + $0xb98] sm:$0xff]
  %v7601 = vld [vmem:[%s3 + $0xba0] sm:$0xff]
  %v7602 = vld [vmem:[%s3 + $0xba8] sm:$0xff]
  %v7603 = vld [vmem:[%s3 + $0xbb0] sm:$0xff]
  %v7604 = vld [vmem:[%s3 + $0xbb8] sm:$0xff]
  %v7605 = vld [vmem:[%s3 + $0xbc0] sm:$0xff]
  %v7606 = vld [vmem:[%s3 + $0xbc8] sm:$0xff]
  %v7607 = vld [vmem:[%s3 + $0xbd0] sm:$0xff]
  %v7608 = vld [vmem:[%s3 + $0xbd8] sm:$0xff]
  %v7609 = vld [vmem:[%s3 + $0xbe0] sm:$0xff]
  %v7610 = vld [vmem:[%s3 + $0xbe8] sm:$0xff]
  %v7611 = vld [vmem:[%s3 + $0xbf0] sm:$0xff]
  %v7612 = vld [vmem:[%s3 + $0xbf8] sm:$0xff]
  %v7613 = vld [vmem:[%s3 + $0xc00] sm:$0xff]
  %v7614 = vld [vmem:[%s3 + $0xc08] sm:$0xff]
  %v7615 = vld [vmem:[%s3 + $0xc10] sm:$0xff]
  %v7616 = vld [vmem:[%s3 + $0xc18] sm:$0xff]
  %v7617 = vld [vmem:[%s3 + $0xc20] sm:$0xff]
  %v7618 = vld [vmem:[%s3 + $0xc28] sm:$0xff]
  %v7619 = vld [vmem:[%s3 + $0xc30] sm:$0xff]
  %v7620 = vld [vmem:[%s3 + $0xc38] sm:$0xff]
  %v7621 = vld [vmem:[%s3 + $0xc40] sm:$0xff]
  %v7622 = vld [vmem:[%s3 + $0xc48] sm:$0xff]
  %v7623 = vld [vmem:[%s3 + $0xc50] sm:$0xff]
  %v7624 = vld [vmem:[%s3 + $0xc58] sm:$0xff]
  %v7625 = vld [vmem:[%s3 + $0xc60] sm:$0xff]
  %v7626 = vld [vmem:[%s3 + $0xc68] sm:$0xff]
  %v7627 = vld [vmem:[%s3 + $0xc70] sm:$0xff]
  %v7628 = vld [vmem:[%s3 + $0xc78] sm:$0xff]
  %v7629 = vld [vmem:[%s3 + $0xc80] sm:$0xff]
  %v7630 = vld [vmem:[%s3 + $0xc88] sm:$0xff]
  %v7631 = vld [vmem:[%s3 + $0xc90] sm:$0xff]
  %v7632 = vld [vmem:[%s3 + $0xc98] sm:$0xff]
  %v7633 = vld [vmem:[%s3 + $0xca0] sm:$0xff]
  %v7634 = vld [vmem:[%s3 + $0xca8] sm:$0xff]
  %v7635 = vld [vmem:[%s3 + $0xcb0] sm:$0xff]
  %v7636 = vld [vmem:[%s3 + $0xcb8] sm:$0xff]
  %v7637 = vld [vmem:[%s3 + $0xcc0] sm:$0xff]
  %v7638 = vld [vmem:[%s3 + $0xcc8] sm:$0xff]
  %v7639 = vld [vmem:[%s3 + $0xcd0] sm:$0xff]
  %v7640 = vld [vmem:[%s3 + $0xcd8] sm:$0xff]
  %v7641 = vld [vmem:[%s3 + $0xce0] sm:$0xff]
  %v7642 = vld [vmem:[%s3 + $0xce8] sm:$0xff]
  %v7643 = vld [vmem:[%s3 + $0xcf0] sm:$0xff]
  %v7644 = vld [vmem:[%s3 + $0xcf8] sm:$0xff]
  %v7645 = vld [vmem:[%s3 + $0xd00] sm:$0xff]
  %v7646 = vld [vmem:[%s3 + $0xd08] sm:$0xff]
  %v7647 = vld [vmem:[%s3 + $0xd10] sm:$0xff]
  %v7648 = vld [vmem:[%s3 + $0xd18] sm:$0xff]
  %v7649 = vld [vmem:[%s3 + $0xd20] sm:$0xff]
  %v7650 = vld [vmem:[%s3 + $0xd28] sm:$0xff]
  %v7651 = vld [vmem:[%s3 + $0xd30] sm:$0xff]
  %v7652 = vld [vmem:[%s3 + $0xd38] sm:$0xff]
  %v7653 = vld [vmem:[%s3 + $0xd40] sm:$0xff]
  %v7654 = vld [vmem:[%s3 + $0xd48] sm:$0xff]
  %v7655 = vld [vmem:[%s3 + $0xd50] sm:$0xff]
  %v7656 = vld [vmem:[%s3 + $0xd58] sm:$0xff]
  %v7657 = vld [vmem:[%s3 + $0xd60] sm:$0xff]
  %v7658 = vld [vmem:[%s3 + $0xd68] sm:$0xff]
  %v7659 = vld [vmem:[%s3 + $0xd70] sm:$0xff]
  %v7660 = vld [vmem:[%s3 + $0xd78] sm:$0xff]
  %v7661 = vld [vmem:[%s3 + $0xd80] sm:$0xff]
  %v7662 = vld [vmem:[%s3 + $0xd88] sm:$0xff]
  %v7663 = vld [vmem:[%s3 + $0xd90] sm:$0xff]
  %v7664 = vld [vmem:[%s3 + $0xd98] sm:$0xff]
  %v7665 = vld [vmem:[%s3 + $0xda0] sm:$0xff]
  %v7666 = vld [vmem:[%s3 + $0xda8] sm:$0xff]
  %v7667 = vld [vmem:[%s3 + $0xdb0] sm:$0xff]
  %v7668 = vld [vmem:[%s3 + $0xdb8] sm:$0xff]
  %v7669 = vld [vmem:[%s3 + $0xdc0] sm:$0xff]
  %v7670 = vld [vmem:[%s3 + $0xdc8] sm:$0xff]
  %v7671 = vld [vmem:[%s3 + $0xdd0] sm:$0xff]
  %v7672 = vld [vmem:[%s3 + $0xdd8] sm:$0xff]
  %v7673 = vld [vmem:[%s3 + $0xde0] sm:$0xff]
  %v7674 = vld [vmem:[%s3 + $0xde8] sm:$0xff]
  %v7675 = vld [vmem:[%s3 + $0xdf0] sm:$0xff]
  %v7676 = vld [vmem:[%s3 + $0xdf8] sm:$0xff]
  %v7677 = vld [vmem:[%s3 + $0xe00] sm:$0xff]
  %v7678 = vld [vmem:[%s3 + $0xe08] sm:$0xff]
  %v7679 = vld [vmem:[%s3 + $0xe10] sm:$0xff]
  %v7680 = vld [vmem:[%s3 + $0xe18] sm:$0xff]
  %v7681 = vld [vmem:[%s3 + $0xe20] sm:$0xff]
  %v7682 = vld [vmem:[%s3 + $0xe28] sm:$0xff]
  %v7683 = vld [vmem:[%s3 + $0xe30] sm:$0xff]
  %v7684 = vld [vmem:[%s3 + $0xe38] sm:$0xff]
  %v7685 = vld [vmem:[%s3 + $0xe40] sm:$0xff]
  %v7686 = vld [vmem:[%s3 + $0xe48] sm:$0xff]
  %v7687 = vld [vmem:[%s3 + $0xe50] sm:$0xff]
  %v7688 = vld [vmem:[%s3 + $0xe58] sm:$0xff]
  %v7689 = vld [vmem:[%s3 + $0xe60] sm:$0xff]
  %v7690 = vld [vmem:[%s3 + $0xe68] sm:$0xff]
  %v7691 = vld [vmem:[%s3 + $0xe70] sm:$0xff]
  %v7692 = vld [vmem:[%s3 + $0xe78] sm:$0xff]
  %v7693 = vld [vmem:[%s3 + $0xe80] sm:$0xff]
  %v7694 = vld [vmem:[%s3 + $0xe88] sm:$0xff]
  %v7695 = vld [vmem:[%s3 + $0xe90] sm:$0xff]
  %v7696 = vld [vmem:[%s3 + $0xe98] sm:$0xff]
  %v7697 = vld [vmem:[%s3 + $0xea0] sm:$0xff]
  %v7698 = vld [vmem:[%s3 + $0xea8] sm:$0xff]
  %v7699 = vld [vmem:[%s3 + $0xeb0] sm:$0xff]
  %v7700 = vld [vmem:[%s3 + $0xeb8] sm:$0xff]
  %v7701 = vld [vmem:[%s3 + $0xec0] sm:$0xff]
  %v7702 = vld [vmem:[%s3 + $0xec8] sm:$0xff]
  %v7703 = vld [vmem:[%s3 + $0xed0] sm:$0xff]
  %v7704 = vld [vmem:[%s3 + $0xed8] sm:$0xff]
  %v7705 = vld [vmem:[%s3 + $0xee0] sm:$0xff]
  %v7706 = vld [vmem:[%s3 + $0xee8] sm:$0xff]
  %v7707 = vld [vmem:[%s3 + $0xef0] sm:$0xff]
  %v7708 = vld [vmem:[%s3 + $0xef8] sm:$0xff]
  %v7709 = vld [vmem:[%s3 + $0xf00] sm:$0xff]
  %v7710 = vld [vmem:[%s3 + $0xf08] sm:$0xff]
  %v7711 = vld [vmem:[%s3 + $0xf10] sm:$0xff]
  %v7712 = vld [vmem:[%s3 + $0xf18] sm:$0xff]
  %v7713 = vld [vmem:[%s3 + $0xf20] sm:$0xff]
  %v7714 = vld [vmem:[%s3 + $0xf28] sm:$0xff]
  %v7715 = vld [vmem:[%s3 + $0xf30] sm:$0xff]
  %v7716 = vld [vmem:[%s3 + $0xf38] sm:$0xff]
  %v7717 = vld [vmem:[%s3 + $0xf40] sm:$0xff]
  %v7718 = vld [vmem:[%s3 + $0xf48] sm:$0xff]
  %v7719 = vld [vmem:[%s3 + $0xf50] sm:$0xff]
  %v7720 = vld [vmem:[%s3 + $0xf58] sm:$0xff]
  %v7721 = vld [vmem:[%s3 + $0xf60] sm:$0xff]
  %v7722 = vld [vmem:[%s3 + $0xf68] sm:$0xff]
  %v7723 = vld [vmem:[%s3 + $0xf70] sm:$0xff]
  %v7724 = vld [vmem:[%s3 + $0xf78] sm:$0xff]
  %v7725 = vld [vmem:[%s3 + $0xf80] sm:$0xff]
  %v7726 = vld [vmem:[%s3 + $0xf88] sm:$0xff]
  %v7727 = vld [vmem:[%s3 + $0xf90] sm:$0xff]
  %v7728 = vld [vmem:[%s3 + $0xf98] sm:$0xff]
  %v7729 = vld [vmem:[%s3 + $0xfa0] sm:$0xff]
  %v7730 = vld [vmem:[%s3 + $0xfa8] sm:$0xff]
  %v7731 = vld [vmem:[%s3 + $0xfb0] sm:$0xff]
  %v7732 = vld [vmem:[%s3 + $0xfb8] sm:$0xff]
  %v7733 = vld [vmem:[%s3 + $0xfc0] sm:$0xff]
  %v7734 = vld [vmem:[%s3 + $0xfc8] sm:$0xff]
  %v7735 = vld [vmem:[%s3 + $0xfd0] sm:$0xff]
  %v7736 = vld [vmem:[%s3 + $0xfd8] sm:$0xff]
  %v7737 = vld [vmem:[%s3 + $0xfe0] sm:$0xff]
  %v7738 = vld [vmem:[%s3 + $0xfe8] sm:$0xff]
  %v7739 = vld [vmem:[%s3 + $0xff0] sm:$0xff]
  %v7740 = vld [vmem:[%s3 + $0xff8] sm:$0xff]
  %v7741 = vld [vmem:[%s3 + $0x1000] sm:$0xff]
  %v7742 = vld [vmem:[%s3 + $0x1008] sm:$0xff]
  %v7743 = vld [vmem:[%s3 + $0x1010] sm:$0xff]
  %v7744 = vld [vmem:[%s3 + $0x1018] sm:$0xff]
  %v7745 = vld [vmem:[%s3 + $0x1020] sm:$0xff]
  %v7746 = vld [vmem:[%s3 + $0x1028] sm:$0xff]
  %v7747 = vld [vmem:[%s3 + $0x1030] sm:$0xff]
  %v7748 = vld [vmem:[%s3 + $0x1038] sm:$0xff]
  %v7749 = vld [vmem:[%s3 + $0x1040] sm:$0xff]
  %v7750 = vld [vmem:[%s3 + $0x1048] sm:$0xff]
  %v7751 = vld [vmem:[%s3 + $0x1050] sm:$0xff]
  %v7752 = vld [vmem:[%s3 + $0x1058] sm:$0xff]
  %v7753 = vld [vmem:[%s3 + $0x1060] sm:$0xff]
  %v7754 = vld [vmem:[%s3 + $0x1068] sm:$0xff]
  %v7755 = vld [vmem:[%s3 + $0x1070] sm:$0xff]
  %v7756 = vld [vmem:[%s3 + $0x1078] sm:$0xff]
  %v7757 = vld [vmem:[%s3 + $0x1080] sm:$0xff]
  %v7758 = vld [vmem:[%s3 + $0x1088] sm:$0xff]
  %v7759 = vld [vmem:[%s3 + $0x1090] sm:$0xff]
  %v7760 = vld [vmem:[%s3 + $0x1098] sm:$0xff]
  %v7761 = vld [vmem:[%s3 + $0x10a0] sm:$0xff]
  %v7762 = vld [vmem:[%s3 + $0x10a8] sm:$0xff]
  %v7763 = vld [vmem:[%s3 + $0x10b0] sm:$0xff]
  %v7764 = vld [vmem:[%s3 + $0x10b8] sm:$0xff]
  %v7765 = vld [vmem:[%s3 + $0x10c0] sm:$0xff]
  %v7766 = vld [vmem:[%s3 + $0x10c8] sm:$0xff]
  %v7767 = vld [vmem:[%s3 + $0x10d0] sm:$0xff]
  %v7768 = vld [vmem:[%s3 + $0x10d8] sm:$0xff]
  %v7769 = vld [vmem:[%s3 + $0x10e0] sm:$0xff]
  %v7770 = vld [vmem:[%s3 + $0x10e8] sm:$0xff]
  %v7771 = vld [vmem:[%s3 + $0x10f0] sm:$0xff]
  %v7772 = vld [vmem:[%s3 + $0x10f8] sm:$0xff]
  %v7773 = vld [vmem:[%s3 + $0x1100] sm:$0xff]
  %v7774 = vld [vmem:[%s3 + $0x1108] sm:$0xff]
  %v7775 = vld [vmem:[%s3 + $0x1110] sm:$0xff]
  %v7776 = vld [vmem:[%s3 + $0x1118] sm:$0xff]
  %v7777 = vld [vmem:[%s3 + $0x1120] sm:$0xff]
  %v7778 = vld [vmem:[%s3 + $0x1128] sm:$0xff]
  %v7779 = vld [vmem:[%s3 + $0x1130] sm:$0xff]
  %v7780 = vld [vmem:[%s3 + $0x1138] sm:$0xff]
  %v7781 = vld [vmem:[%s3 + $0x1140] sm:$0xff]
  %v7782 = vld [vmem:[%s3 + $0x1148] sm:$0xff]
  %v7783 = vld [vmem:[%s3 + $0x1150] sm:$0xff]
  %v7784 = vld [vmem:[%s3 + $0x1158] sm:$0xff]
  %v7785 = vld [vmem:[%s3 + $0x1160] sm:$0xff]
  %v7786 = vld [vmem:[%s3 + $0x1168] sm:$0xff]
  %v7787 = vld [vmem:[%s3 + $0x1170] sm:$0xff]
  %v7788 = vld [vmem:[%s3 + $0x1178] sm:$0xff]
  %v7789 = vld [vmem:[%s3 + $0x1180] sm:$0xff]
  %v7790 = vld [vmem:[%s3 + $0x1188] sm:$0xff]
  %v7791 = vld [vmem:[%s3 + $0x1190] sm:$0xff]
  %v7792 = vld [vmem:[%s3 + $0x1198] sm:$0xff]
  %v7793 = vld [vmem:[%s3 + $0x11a0] sm:$0xff]
  %v7794 = vld [vmem:[%s3 + $0x11a8] sm:$0xff]
  %v7795 = vld [vmem:[%s3 + $0x11b0] sm:$0xff]
  %v7796 = vld [vmem:[%s3 + $0x11b8] sm:$0xff]
  %v7797 = vld [vmem:[%s3 + $0x11c0] sm:$0xff]
  %v7798 = vld [vmem:[%s3 + $0x11c8] sm:$0xff]
  %v7799 = vld [vmem:[%s3 + $0x11d0] sm:$0xff]
  %v7800 = vld [vmem:[%s3 + $0x11d8] sm:$0xff]
  %v7801 = vld [vmem:[%s3 + $0x11e0] sm:$0xff]
  %v7802 = vld [vmem:[%s3 + $0x11e8] sm:$0xff]
  %v7803 = vld [vmem:[%s3 + $0x11f0] sm:$0xff]
  %v7804 = vld [vmem:[%s3 + $0x11f8] sm:$0xff]
  %v7805 = vld [vmem:[%s3 + $0x1200] sm:$0xff]
  %v7806 = vld [vmem:[%s3 + $0x1208] sm:$0xff]
  %v7807 = vld [vmem:[%s3 + $0x1210] sm:$0xff]
  %v7808 = vld [vmem:[%s3 + $0x1218] sm:$0xff]
  %v7809 = vld [vmem:[%s3 + $0x1220] sm:$0xff]
  %v7810 = vld [vmem:[%s3 + $0x1228] sm:$0xff]
  %v7811 = vld [vmem:[%s3 + $0x1230] sm:$0xff]
  %v7812 = vld [vmem:[%s3 + $0x1238] sm:$0xff]
  %v7813 = vld [vmem:[%s3 + $0x1240] sm:$0xff]
  %v7814 = vld [vmem:[%s3 + $0x1248] sm:$0xff]
  %v7815 = vld [vmem:[%s3 + $0x1250] sm:$0xff]
  %v7816 = vld [vmem:[%s3 + $0x1258] sm:$0xff]
  %v7817 = vld [vmem:[%s3 + $0x1260] sm:$0xff]
  %v7818 = vld [vmem:[%s3 + $0x1268] sm:$0xff]
  %v7819 = vld [vmem:[%s3 + $0x1270] sm:$0xff]
  %v7820 = vld [vmem:[%s3 + $0x1278] sm:$0xff]
  %v7821 = vld [vmem:[%s3 + $0x1280] sm:$0xff]
  %v7822 = vld [vmem:[%s3 + $0x1288] sm:$0xff]
  %v7823 = vld [vmem:[%s3 + $0x1290] sm:$0xff]
  %v7824 = vld [vmem:[%s3 + $0x1298] sm:$0xff]
  %v7825 = vld [vmem:[%s3 + $0x12a0] sm:$0xff]
  %v7826 = vld [vmem:[%s3 + $0x12a8] sm:$0xff]
  %v7827 = vld [vmem:[%s3 + $0x12b0] sm:$0xff]
  %v7828 = vld [vmem:[%s3 + $0x12b8] sm:$0xff]
  %v7829 = vld [vmem:[%s4] sm:$0xf]
  %v7831 = vlaneseq
  %v7832 = vshrl.u32 %v7831, 7
  %v7833 = vsub.s32 0, %v7832
  %v7834 = vrot.slane %v7829, %v7833
  %v7835 = vlaneseq
  %v7836 = vshrl.u32 %v7835, 7
  %v7837 = vsub.s32 1, %v7836
  %v7838 = vrot.slane %v7829, %v7837
  %v7839 = vlaneseq
  %v7840 = vshrl.u32 %v7839, 7
  %v7841 = vsub.s32 2, %v7840
  %v7842 = vrot.slane %v7829, %v7841
  %v7843 = vlaneseq
  %v7844 = vshrl.u32 %v7843, 7
  %v7845 = vsub.s32 3, %v7844
  %v7846 = vrot.slane %v7829, %v7845
  %vm7851 = vcmask 392192
  %v7852 = vsel %vm7851, %v7143, 0
  %v7854 = vsel %vm7851, %v7147, 0
  %v7856 = vsel %vm7851, %v7151, 0
  %v7858 = vsel %vm7851, %v7155, 0
  %v7860 = vsel %vm7851, %v7159, 0
  %v7862 = vsel %vm7851, %v7163, 0
  %v7864 = vsel %vm7851, %v7167, 0
  %v7866 = vsel %vm7851, %v7171, 0
  %7868 = vmatprep.subr.mxu0 %v7230
  %7869 = vmatpush1.msra.mxu0 %v7229
  %7870 = vmatprep.subr.mxu0 %v7234
  %7871 = vmatpush1.msra.mxu0 %v7233
  %7872 = vmatprep.subr.mxu0 %v7238
  %7873 = vmatpush1.msra.mxu0 %v7237
  %7874 = vmatprep.subr.mxu0 %v7242
  %7875 = vmatpush1.msra.mxu0 %v7241
  %7876 = vmatprep.subr.mxu0 %v7246
  %7877 = vmatpush1.msra.mxu0 %v7245
  %7878 = vmatprep.subr.mxu0 %v7250
  %7879 = vmatpush1.msra.mxu0 %v7249
  %7880 = vmatprep.subr.mxu0 %v7254
  %7881 = vmatpush1.msra.mxu0 %v7253
  %7882 = vmatprep.subr.mxu0 %v7258
  %7883 = vmatpush1.msra.mxu0 %v7257
  %7884 = vmatprep.subr.mxu0 %v7262
  %7885 = vmatpush1.msra.mxu0 %v7261
  %7886 = vmatprep.subr.mxu0 %v7266
  %7887 = vmatpush1.msra.mxu0 %v7265
  %7888 = vmatprep.subr.mxu0 %v7270
  %7889 = vmatpush1.msra.mxu0 %v7269
  %7890 = vmatprep.subr.mxu0 %v7274
  %7891 = vmatpush1.msra.mxu0 %v7273
  %7892 = vmatprep.subr.mxu0 %v7278
  %7893 = vmatpush1.msra.mxu0 %v7277
  %7894 = vmatprep.subr.mxu0 %v7282
  %7895 = vmatpush1.msra.mxu0 %v7281
  %7896 = vmatprep.subr.mxu0 %v7286
  %7897 = vmatpush1.msra.mxu0 %v7285
  %7898 = vmatprep.subr.mxu0 %v7290
  %7899 = vmatpush1.msra.mxu0 %v7289
  %7900 = vmatprep.subr.mxu0 %v7294
  %7901 = vmatpush1.msra.mxu0 %v7293
  %7902 = vmatprep.subr.mxu0 %v7298
  %7903 = vmatpush1.msra.mxu0 %v7297
  %7904 = vmatprep.subr.mxu0 %v7302
  %7905 = vmatpush1.msra.mxu0 %v7301
  %7906 = vmatprep.subr.mxu0 %v7306
  %7907 = vmatpush1.msra.mxu0 %v7305
  %7908 = vmatprep.subr.mxu0 %v7310
  %7909 = vmatpush1.msra.mxu0 %v7309
  %7910 = vmatprep.subr.mxu0 %v7314
  %7911 = vmatpush1.msra.mxu0 %v7313
  %7912 = vmatprep.subr.mxu0 %v7318
  %7913 = vmatpush1.msra.mxu0 %v7317
  %7914 = vmatprep.subr.mxu0 %v7322
  %7915 = vmatpush1.msra.mxu0 %v7321
  %7916 = vmatprep.subr.mxu0 %v7326
  %7917 = vmatpush1.msra.mxu0 %v7325
  %7918 = vmatprep.subr.mxu0 %v7330
  %7919 = vmatpush1.msra.mxu0 %v7329
  %7920 = vmatprep.subr.mxu0 %v7334
  %7921 = vmatpush1.msra.mxu0 %v7333
  %7922 = vmatprep.subr.mxu0 %v7338
  %7923 = vmatpush1.msra.mxu0 %v7337
  %7924 = vmatprep.subr.mxu0 %v7342
  %7925 = vmatpush1.msra.mxu0 %v7341
  %7926 = vmatprep.subr.mxu0 %v7346
  %7927 = vmatpush1.msra.mxu0 %v7345
  %7928 = vmatprep.subr.mxu0 %v7350
  %7929 = vmatpush1.msra.mxu0 %v7349
  %7930 = vmatprep.subr.mxu0 %v7354
  %7931 = vmatpush1.msra.mxu0 %v7353
  %7932 = vmatprep.mubr.f32.mxu0 %v7197
  %7933 = vmatmul.mubr.f32.gmra.mrb[0].mxu0 %v6313
  %v7934 = vpop.f32.mrb[0].mxu0
  %v7935 = vadd.f32 %v7834, %v7934
  %v7936 = vpop.f32.mrb[0].mxu0
  %v7937 = vadd.f32 %v7838, %v7936
  %7938 = vmatprep.mubr.f32.mxu0 %v7198
  %7939 = vmatmul.mubr.f32.gmra.mrb[0].mxu0 %v6327
  %v7940 = vpop.f32.mrb[0].mxu0
  %v7941 = vadd.f32 %v7834, %v7940
  %v7942 = vpop.f32.mrb[0].mxu0
  %v7943 = vadd.f32 %v7838, %v7942
  %7944 = vmatprep.mubr.f32.mxu0 %v7199
  %7945 = vmatmul.mubr.f32.gmra.mrb[0].mxu0 %v6341
  %v7946 = vpop.f32.mrb[0].mxu0
  %v7947 = vadd.f32 %v7834, %v7946
  %v7948 = vpop.f32.mrb[0].mxu0
  %v7949 = vadd.f32 %v7838, %v7948
  %7950 = vmatprep.mubr.f32.mxu0 %v7200
  %7951 = vmatmul.mubr.f32.gmra.mrb[0].mxu0 %v6355
  %v7952 = vpop.f32.mrb[0].mxu0
  %v7953 = vadd.f32 %v7834, %v7952
  %v7954 = vpop.f32.mrb[0].mxu0
  %v7955 = vadd.f32 %v7838, %v7954
  %7956 = vmatprep.mubr.f32.mxu0 %v7201
  %7957 = vmatmul.mubr.f32.gmra.mrb[0].mxu0 %v6369
  %v7958 = vpop.f32.mrb[0].mxu0
  %v7959 = vadd.f32 %v7834, %v7958
  %v7960 = vpop.f32.mrb[0].mxu0
  %v7961 = vadd.f32 %v7838, %v7960
  %7962 = vmatprep.mubr.f32.mxu0 %v7202
  %7963 = vmatmul.mubr.f32.gmra.mrb[0].mxu0 %v6383
  %v7964 = vpop.f32.mrb[0].mxu0
  %v7965 = vadd.f32 %v7834, %v7964
  %v7966 = vpop.f32.mrb[0].mxu0
  %v7967 = vadd.f32 %v7838, %v7966
  %7968 = vmatprep.mubr.f32.mxu0 %v7203
  %7969 = vmatmul.mubr.f32.gmra.mrb[0].mxu0 %v6397
  %v7970 = vpop.f32.mrb[0].mxu0
  %v7971 = vadd.f32 %v7834, %v7970
  %v7972 = vpop.f32.mrb[0].mxu0
  %v7973 = vadd.f32 %v7838, %v7972
  %7974 = vmatprep.mubr.f32.mxu0 %v7204
  %7975 = vmatmul.mubr.f32.gmra.mrb[0].mxu0 %v6411
  %v7976 = vpop.f32.mrb[0].mxu0
  %v7977 = vadd.f32 %v7834, %v7976
  %v7978 = vpop.f32.mrb[0].mxu0
  %v7979 = vadd.f32 %v7838, %v7978
  %7980 = vdwg.mxu0
  %7981 = vmatprep.subr.mxu0 %v7358
  %7982 = vmatpush1.msra.mxu0 %v7357
  %7983 = vmatprep.subr.mxu0 %v7362
  %7984 = vmatpush1.msra.mxu0 %v7361
  %7985 = vmatprep.subr.mxu0 %v7366
  %7986 = vmatpush1.msra.mxu0 %v7365
  %7987 = vmatprep.subr.mxu0 %v7370
  %7988 = vmatpush1.msra.mxu0 %v7369
  %7989 = vmatprep.subr.mxu0 %v7374
  %7990 = vmatpush1.msra.mxu0 %v7373
  %7991 = vmatprep.subr.mxu0 %v7378
  %7992 = vmatpush1.msra.mxu0 %v7377
  %7993 = vmatprep.subr.mxu0 %v7382
  %7994 = vmatpush1.msra.mxu0 %v7381
  %7995 = vmatprep.subr.mxu0 %v7386
  %7996 = vmatpush1.msra.mxu0 %v7385
  %7997 = vmatprep.subr.mxu0 %v7390
  %7998 = vmatpush1.msra.mxu0 %v7389
  %7999 = vmatprep.subr.mxu0 %v7394
  %8000 = vmatpush1.msra.mxu0 %v7393
  %8001 = vmatprep.subr.mxu0 %v7398
  %8002 = vmatpush1.msra.mxu0 %v7397
  %8003 = vmatprep.subr.mxu0 %v7402
  %8004 = vmatpush1.msra.mxu0 %v7401
  %8005 = vmatprep.subr.mxu0 %v7406
  %8006 = vmatpush1.msra.mxu0 %v7405
  %8007 = vmatprep.subr.mxu0 %v7410
  %8008 = vmatpush1.msra.mxu0 %v7409
  %8009 = vmatprep.subr.mxu0 %v7414
  %8010 = vmatpush1.msra.mxu0 %v7413
  %8011 = vmatprep.subr.mxu0 %v7418
  %8012 = vmatpush1.msra.mxu0 %v7417
  %8013 = vmatprep.subr.mxu0 %v7422
  %8014 = vmatpush1.msra.mxu0 %v7421
  %8015 = vmatprep.subr.mxu0 %v7426
  %8016 = vmatpush1.msra.mxu0 %v7425
  %8017 = vmatprep.subr.mxu0 %v7430
  %8018 = vmatpush1.msra.mxu0 %v7429
  %8019 = vmatprep.subr.mxu0 %v7434
  %8020 = vmatpush1.msra.mxu0 %v7433
  %8021 = vmatprep.subr.mxu0 %v7438
  %8022 = vmatpush1.msra.mxu0 %v7437
  %8023 = vmatprep.subr.mxu0 %v7442
  %8024 = vmatpush1.msra.mxu0 %v7441
  %8025 = vmatprep.subr.mxu0 %v7446
  %8026 = vmatpush1.msra.mxu0 %v7445
  %8027 = vmatprep.subr.mxu0 %v7450
  %8028 = vmatpush1.msra.mxu0 %v7449
  %8029 = vmatprep.subr.mxu0 %v7454
  %8030 = vmatpush1.msra.mxu0 %v7453
  %8031 = vmatprep.subr.mxu0 %v7458
  %8032 = vmatpush1.msra.mxu0 %v7457
  %8033 = vmatprep.subr.mxu0 %v7462
  %8034 = vmatpush1.msra.mxu0 %v7461
  %8035 = vmatprep.subr.mxu0 %v7466
  %8036 = vmatpush1.msra.mxu0 %v7465
  %8037 = vmatprep.subr.mxu0 %v7470
  %8038 = vmatpush1.msra.mxu0 %v7469
  %8039 = vmatprep.subr.mxu0 %v7474
  %8040 = vmatpush1.msra.mxu0 %v7473
  %8041 = vmatprep.subr.mxu0 %v7478
  %8042 = vmatpush1.msra.mxu0 %v7477
  %8043 = vmatprep.subr.mxu0 %v7482
  %8044 = vmatpush1.msra.mxu0 %v7481
  %8045 = vmatprep.mubr.f32.mxu0 %v7205
  %8046 = vmatmul.mubr.f32.gmra.mrb[0].mxu0 %v6595
  %v8047 = vpop.f32.mrb[0].mxu0
  %v8048 = vadd.f32 %v7935, %v8047
  %v8049 = vpop.f32.mrb[0].mxu0
  %v8050 = vadd.f32 %v7937, %v8049
  %8051 = vmatprep.mubr.f32.mxu0 %v7206
  %8052 = vmatmul.mubr.f32.gmra.mrb[0].mxu0 %v6596
  %v8053 = vpop.f32.mrb[0].mxu0
  %v8054 = vadd.f32 %v7941, %v8053
  %v8055 = vpop.f32.mrb[0].mxu0
  %v8056 = vadd.f32 %v7943, %v8055
  %8057 = vmatprep.mubr.f32.mxu0 %v7207
  %8058 = vmatmul.mubr.f32.gmra.mrb[0].mxu0 %v6597
  %v8059 = vpop.f32.mrb[0].mxu0
  %v8060 = vadd.f32 %v7947, %v8059
  %v8061 = vpop.f32.mrb[0].mxu0
  %v8062 = vadd.f32 %v7949, %v8061
  %8063 = vmatprep.mubr.f32.mxu0 %v7208
  %8064 = vmatmul.mubr.f32.gmra.mrb[0].mxu0 %v6598
  %v8065 = vpop.f32.mrb[0].mxu0
  %v8066 = vadd.f32 %v7953, %v8065
  %v8067 = vpop.f32.mrb[0].mxu0
  %v8068 = vadd.f32 %v7955, %v8067
  %8069 = vmatprep.mubr.f32.mxu0 %v7209
  %8070 = vmatmul.mubr.f32.gmra.mrb[0].mxu0 %v6599
  %v8071 = vpop.f32.mrb[0].mxu0
  %v8072 = vadd.f32 %v7959, %v8071
  %v8073 = vpop.f32.mrb[0].mxu0
  %v8074 = vadd.f32 %v7961, %v8073
  %8075 = vmatprep.mubr.f32.mxu0 %v7210
  %8076 = vmatmul.mubr.f32.gmra.mrb[0].mxu0 %v6600
  %v8077 = vpop.f32.mrb[0].mxu0
  %v8078 = vadd.f32 %v7965, %v8077
  %v8079 = vpop.f32.mrb[0].mxu0
  %v8080 = vadd.f32 %v7967, %v8079
  %8081 = vmatprep.mubr.f32.mxu0 %v7211
  %8082 = vmatmul.mubr.f32.gmra.mrb[0].mxu0 %v6601
  %v8083 = vpop.f32.mrb[0].mxu0
  %v8084 = vadd.f32 %v7971, %v8083
  %v8085 = vpop.f32.mrb[0].mxu0
  %v8086 = vadd.f32 %v7973, %v8085
  %8087 = vmatprep.mubr.f32.mxu0 %v7212
  %8088 = vmatmul.mubr.f32.gmra.mrb[0].mxu0 %v6602
  %v8089 = vpop.f32.mrb[0].mxu0
  %v8090 = vadd.f32 %v7977, %v8089
  %v8091 = vpop.f32.mrb[0].mxu0
  %v8092 = vadd.f32 %v7979, %v8091
  %8093 = vdwg.mxu0
  %8094 = vmatprep.subr.mxu0 %v7486
  %8095 = vmatpush1.msra.mxu0 %v7485
  %8096 = vmatprep.subr.mxu0 %v7490
  %8097 = vmatpush1.msra.mxu0 %v7489
  %8098 = vmatprep.subr.mxu0 %v7494
  %8099 = vmatpush1.msra.mxu0 %v7493
  %8100 = vmatprep.subr.mxu0 %v7498
  %8101 = vmatpush1.msra.mxu0 %v7497
  %8102 = vmatprep.subr.mxu0 %v7502
  %8103 = vmatpush1.msra.mxu0 %v7501
  %8104 = vmatprep.subr.mxu0 %v7506
  %8105 = vmatpush1.msra.mxu0 %v7505
  %8106 = vmatprep.subr.mxu0 %v7510
  %8107 = vmatpush1.msra.mxu0 %v7509
  %8108 = vmatprep.subr.mxu0 %v7514
  %8109 = vmatpush1.msra.mxu0 %v7513
  %8110 = vmatprep.subr.mxu0 %v7518
  %8111 = vmatpush1.msra.mxu0 %v7517
  %8112 = vmatprep.subr.mxu0 %v7522
  %8113 = vmatpush1.msra.mxu0 %v7521
  %8114 = vmatprep.subr.mxu0 %v7526
  %8115 = vmatpush1.msra.mxu0 %v7525
  %8116 = vmatprep.subr.mxu0 %v7530
  %8117 = vmatpush1.msra.mxu0 %v7529
  %8118 = vmatprep.subr.mxu0 %v7534
  %8119 = vmatpush1.msra.mxu0 %v7533
  %8120 = vmatprep.subr.mxu0 %v7538
  %8121 = vmatpush1.msra.mxu0 %v7537
  %8122 = vmatprep.subr.mxu0 %v7542
  %8123 = vmatpush1.msra.mxu0 %v7541
  %8124 = vmatprep.subr.mxu0 %v7546
  %8125 = vmatpush1.msra.mxu0 %v7545
  %8126 = vmatprep.subr.mxu0 %v7550
  %8127 = vmatpush1.msra.mxu0 %v7549
  %8128 = vmatprep.subr.mxu0 %v7554
  %8129 = vmatpush1.msra.mxu0 %v7553
  %8130 = vmatprep.subr.mxu0 %v7558
  %8131 = vmatpush1.msra.mxu0 %v7557
  %8132 = vmatprep.subr.mxu0 %v7562
  %8133 = vmatpush1.msra.mxu0 %v7561
  %8134 = vmatprep.subr.mxu0 %v7566
  %8135 = vmatpush1.msra.mxu0 %v7565
  %8136 = vmatprep.subr.mxu0 %v7570
  %8137 = vmatpush1.msra.mxu0 %v7569
  %8138 = vmatprep.subr.mxu0 %v7574
  %8139 = vmatpush1.msra.mxu0 %v7573
  %8140 = vmatprep.subr.mxu0 %v7578
  %8141 = vmatpush1.msra.mxu0 %v7577
  %8142 = vmatprep.subr.mxu0 %v7582
  %8143 = vmatpush1.msra.mxu0 %v7581
  %8144 = vmatprep.subr.mxu0 %v7586
  %8145 = vmatpush1.msra.mxu0 %v7585
  %8146 = vmatprep.subr.mxu0 %v7590
  %8147 = vmatpush1.msra.mxu0 %v7589
  %8148 = vmatprep.subr.mxu0 %v7594
  %8149 = vmatpush1.msra.mxu0 %v7593
  %8150 = vmatprep.subr.mxu0 %v7598
  %8151 = vmatpush1.msra.mxu0 %v7597
  %8152 = vmatprep.subr.mxu0 %v7602
  %8153 = vmatpush1.msra.mxu0 %v7601
  %8154 = vmatprep.subr.mxu0 %v7606
  %8155 = vmatpush1.msra.mxu0 %v7605
  %8156 = vmatprep.subr.mxu0 %v7610
  %8157 = vmatpush1.msra.mxu0 %v7609
  %8158 = vmatprep.mubr.f32.mxu0 %v7213
  %8159 = vmatmul.mubr.f32.gmra.mrb[0].mxu0 %v6788
  %v8160 = vpop.f32.mrb[0].mxu0
  %v8161 = vadd.f32 %v8048, %v8160
  %v8162 = vpop.f32.mrb[0].mxu0
  %v8163 = vadd.f32 %v8050, %v8162
  %8164 = vmatprep.mubr.f32.mxu0 %v7214
  %8165 = vmatmul.mubr.f32.gmra.mrb[0].mxu0 %v6789
  %v8166 = vpop.f32.mrb[0].mxu0
  %v8167 = vadd.f32 %v8054, %v8166
  %v8168 = vpop.f32.mrb[0].mxu0
  %v8169 = vadd.f32 %v8056, %v8168
  %8170 = vmatprep.mubr.f32.mxu0 %v7215
  %8171 = vmatmul.mubr.f32.gmra.mrb[0].mxu0 %v6790
  %v8172 = vpop.f32.mrb[0].mxu0
  %v8173 = vadd.f32 %v8060, %v8172
  %v8174 = vpop.f32.mrb[0].mxu0
  %v8175 = vadd.f32 %v8062, %v8174
  %8176 = vmatprep.mubr.f32.mxu0 %v7216
  %8177 = vmatmul.mubr.f32.gmra.mrb[0].mxu0 %v6791
  %v8178 = vpop.f32.mrb[0].mxu0
  %v8179 = vadd.f32 %v8066, %v8178
  %v8180 = vpop.f32.mrb[0].mxu0
  %v8181 = vadd.f32 %v8068, %v8180
  %8182 = vmatprep.mubr.f32.mxu0 %v7217
  %8183 = vmatmul.mubr.f32.gmra.mrb[0].mxu0 %v6792
  %v8184 = vpop.f32.mrb[0].mxu0
  %v8185 = vadd.f32 %v8072, %v8184
  %v8186 = vpop.f32.mrb[0].mxu0
  %v8187 = vadd.f32 %v8074, %v8186
  %8188 = vmatprep.mubr.f32.mxu0 %v7218
  %8189 = vmatmul.mubr.f32.gmra.mrb[0].mxu0 %v6793
  %v8190 = vpop.f32.mrb[0].mxu0
  %v8191 = vadd.f32 %v8078, %v8190
  %v8192 = vpop.f32.mrb[0].mxu0
  %v8193 = vadd.f32 %v8080, %v8192
  %8194 = vmatprep.mubr.f32.mxu0 %v7219
  %8195 = vmatmul.mubr.f32.gmra.mrb[0].mxu0 %v6794
  %v8196 = vpop.f32.mrb[0].mxu0
  %v8197 = vadd.f32 %v8084, %v8196
  %v8198 = vpop.f32.mrb[0].mxu0
  %v8199 = vadd.f32 %v8086, %v8198
  %8200 = vmatprep.mubr.f32.mxu0 %v7220
  %8201 = vmatmul.mubr.f32.gmra.mrb[0].mxu0 %v6795
  %v8202 = vpop.f32.mrb[0].mxu0
  %v8203 = vadd.f32 %v8090, %v8202
  %v8204 = vpop.f32.mrb[0].mxu0
  %v8205 = vadd.f32 %v8092, %v8204
  %8206 = vdwg.mxu0
  %8207 = vmatprep.subr.mxu0 %v7614
  %8208 = vmatpush1.msra.mxu0 %v7613
  %8209 = vmatprep.subr.mxu0 %v7618
  %8210 = vmatpush1.msra.mxu0 %v7617
  %8211 = vmatprep.subr.mxu0 %v7622
  %8212 = vmatpush1.msra.mxu0 %v7621
  %8213 = vmatprep.subr.mxu0 %v7626
  %8214 = vmatpush1.msra.mxu0 %v7625
  %8215 = vmatprep.subr.mxu0 %v7630
  %8216 = vmatpush1.msra.mxu0 %v7629
  %8217 = vmatprep.subr.mxu0 %v7634
  %8218 = vmatpush1.msra.mxu0 %v7633
  %8219 = vmatprep.subr.mxu0 %v7638
  %8220 = vmatpush1.msra.mxu0 %v7637
  %8221 = vmatprep.subr.mxu0 %v7642
  %8222 = vmatpush1.msra.mxu0 %v7641
  %8223 = vmatprep.subr.mxu0 %v7646
  %8224 = vmatpush1.msra.mxu0 %v7645
  %8225 = vmatprep.subr.mxu0 %v7650
  %8226 = vmatpush1.msra.mxu0 %v7649
  %8227 = vmatprep.subr.mxu0 %v7654
  %8228 = vmatpush1.msra.mxu0 %v7653
  %8229 = vmatprep.subr.mxu0 %v7658
  %8230 = vmatpush1.msra.mxu0 %v7657
  %8231 = vmatprep.subr.mxu0 %v7662
  %8232 = vmatpush1.msra.mxu0 %v7661
  %8233 = vmatprep.subr.mxu0 %v7666
  %8234 = vmatpush1.msra.mxu0 %v7665
  %8235 = vmatprep.subr.mxu0 %v7670
  %8236 = vmatpush1.msra.mxu0 %v7669
  %8237 = vmatprep.subr.mxu0 %v7674
  %8238 = vmatpush1.msra.mxu0 %v7673
  %8239 = vmatprep.subr.mxu0 %v7678
  %8240 = vmatpush1.msra.mxu0 %v7677
  %8241 = vmatprep.subr.mxu0 %v7682
  %8242 = vmatpush1.msra.mxu0 %v7681
  %8243 = vmatprep.subr.mxu0 %v7686
  %8244 = vmatpush1.msra.mxu0 %v7685
  %8245 = vmatprep.subr.mxu0 %v7690
  %8246 = vmatpush1.msra.mxu0 %v7689
  %8247 = vmatprep.subr.mxu0 %v7694
  %8248 = vmatpush1.msra.mxu0 %v7693
  %8249 = vmatprep.subr.mxu0 %v7698
  %8250 = vmatpush1.msra.mxu0 %v7697
  %8251 = vmatprep.subr.mxu0 %v7702
  %8252 = vmatpush1.msra.mxu0 %v7701
  %8253 = vmatprep.subr.mxu0 %v7706
  %8254 = vmatpush1.msra.mxu0 %v7705
  %8255 = vmatprep.subr.mxu0 %v7710
  %8256 = vmatpush1.msra.mxu0 %v7709
  %8257 = vmatprep.subr.mxu0 %v7714
  %8258 = vmatpush1.msra.mxu0 %v7713
  %8259 = vmatprep.subr.mxu0 %v7718
  %8260 = vmatpush1.msra.mxu0 %v7717
  %8261 = vmatprep.subr.mxu0 %v7722
  %8262 = vmatpush1.msra.mxu0 %v7721
  %8263 = vmatprep.subr.mxu0 %v7726
  %8264 = vmatpush1.msra.mxu0 %v7725
  %8265 = vmatprep.subr.mxu0 %v7730
  %8266 = vmatpush1.msra.mxu0 %v7729
  %8267 = vmatprep.subr.mxu0 %v7734
  %8268 = vmatpush1.msra.mxu0 %v7733
  %8269 = vmatprep.subr.mxu0 %v7738
  %8270 = vmatpush1.msra.mxu0 %v7737
  %8271 = vmatprep.mubr.f32.mxu0 %v7221
  %8272 = vmatmul.mubr.f32.gmra.mrb[0].mxu0 %v6980
  %v8273 = vpop.f32.mrb[0].mxu0
  %v8274 = vadd.f32 %v8161, %v8273
  %v8275 = vpop.f32.mrb[0].mxu0
  %v8276 = vadd.f32 %v8163, %v8275
  %8277 = vmatprep.mubr.f32.mxu0 %v7222
  %8278 = vmatmul.mubr.f32.gmra.mrb[0].mxu0 %v6981
  %v8279 = vpop.f32.mrb[0].mxu0
  %v8280 = vadd.f32 %v8167, %v8279
  %v8281 = vpop.f32.mrb[0].mxu0
  %v8282 = vadd.f32 %v8169, %v8281
  %8283 = vmatprep.mubr.f32.mxu0 %v7223
  %8284 = vmatmul.mubr.f32.gmra.mrb[0].mxu0 %v6982
  %v8285 = vpop.f32.mrb[0].mxu0
  %v8286 = vadd.f32 %v8173, %v8285
  %v8287 = vpop.f32.mrb[0].mxu0
  %v8288 = vadd.f32 %v8175, %v8287
  %8289 = vmatprep.mubr.f32.mxu0 %v7224
  %8290 = vmatmul.mubr.f32.gmra.mrb[0].mxu0 %v6983
  %v8291 = vpop.f32.mrb[0].mxu0
  %v8292 = vadd.f32 %v8179, %v8291
  %v8293 = vpop.f32.mrb[0].mxu0
  %v8294 = vadd.f32 %v8181, %v8293
  %8295 = vmatprep.mubr.f32.mxu0 %v7225
  %8296 = vmatmul.mubr.f32.gmra.mrb[0].mxu0 %v6984
  %v8297 = vpop.f32.mrb[0].mxu0
  %v8298 = vadd.f32 %v8185, %v8297
  %v8299 = vpop.f32.mrb[0].mxu0
  %v8300 = vadd.f32 %v8187, %v8299
  %8301 = vmatprep.mubr.f32.mxu0 %v7226
  %8302 = vmatmul.mubr.f32.gmra.mrb[0].mxu0 %v6985
  %v8303 = vpop.f32.mrb[0].mxu0
  %v8304 = vadd.f32 %v8191, %v8303
  %v8305 = vpop.f32.mrb[0].mxu0
  %v8306 = vadd.f32 %v8193, %v8305
  %8307 = vmatprep.mubr.f32.mxu0 %v7227
  %8308 = vmatmul.mubr.f32.gmra.mrb[0].mxu0 %v6986
  %v8309 = vpop.f32.mrb[0].mxu0
  %v8310 = vadd.f32 %v8197, %v8309
  %v8311 = vpop.f32.mrb[0].mxu0
  %v8312 = vadd.f32 %v8199, %v8311
  %8313 = vmatprep.mubr.f32.mxu0 %v7228
  %8314 = vmatmul.mubr.f32.gmra.mrb[0].mxu0 %v6987
  %v8315 = vpop.f32.mrb[0].mxu0
  %v8316 = vadd.f32 %v8203, %v8315
  %v8317 = vpop.f32.mrb[0].mxu0
  %v8318 = vadd.f32 %v8205, %v8317
  %8319 = vdwg.mxu0
  %8320 = vmatprep.subr.mxu0 %v7742
  %8321 = vmatpush1.msra.mxu0 %v7741
  %8322 = vmatprep.subr.mxu0 %v7746
  %8323 = vmatpush1.msra.mxu0 %v7745
  %8324 = vmatprep.subr.mxu0 %v7750
  %8325 = vmatpush1.msra.mxu0 %v7749
  %8326 = vmatprep.subr.mxu0 %v7754
  %8327 = vmatpush1.msra.mxu0 %v7753
  %8328 = vmatprep.subr.mxu0 %v7758
  %8329 = vmatpush1.msra.mxu0 %v7757
  %8330 = vmatprep.subr.mxu0 %v7762
  %8331 = vmatpush1.msra.mxu0 %v7761
  %8332 = vmatprep.subr.mxu0 %v7766
  %8333 = vmatpush1.msra.mxu0 %v7765
  %8334 = vmatprep.subr.mxu0 %v7770
  %8335 = vmatpush1.msra.mxu0 %v7769
  %8336 = vmatprep.subr.mxu0 %v7774
  %8337 = vmatpush1.msra.mxu0 %v7773
  %8338 = vmatprep.subr.mxu0 %v7778
  %8339 = vmatpush1.msra.mxu0 %v7777
  %8340 = vmatprep.subr.mxu0 %v7782
  %8341 = vmatpush1.msra.mxu0 %v7781
  %8342 = vmatprep.subr.mxu0 %v7786
  %8343 = vmatpush1.msra.mxu0 %v7785
  %8344 = vmatprep.subr.mxu0 %v7790
  %8345 = vmatpush1.msra.mxu0 %v7789
  %8346 = vmatprep.subr.mxu0 %v7794
  %8347 = vmatpush1.msra.mxu0 %v7793
  %8348 = vmatprep.subr.mxu0 %v7798
  %8349 = vmatpush1.msra.mxu0 %v7797
  %8350 = vmatprep.subr.mxu0 %v7802
  %8351 = vmatpush1.msra.mxu0 %v7801
  %8352 = vmatprep.subr.mxu0 %v7806
  %8353 = vmatpush1.msra.mxu0 %v7805
  %8354 = vmatprep.subr.mxu0 %v7810
  %8355 = vmatpush1.msra.mxu0 %v7809
  %8356 = vmatprep.subr.mxu0 %v7814
  %8357 = vmatpush1.msra.mxu0 %v7813
  %8358 = vmatprep.subr.mxu0 %v7818
  %8359 = vmatpush1.msra.mxu0 %v7817
  %8360 = vmatprep.subr.mxu0 %v7822
  %8361 = vmatpush1.msra.mxu0 %v7821
  %8362 = vmatprep.subr.mxu0 %v7826
  %8363 = vmatpush1.msra.mxu0 %v7825
  %8364 = vmatprep.subr.mxu0 0.0
  %8365 = vmatpush1.msra.mxu0 0.0
  %8366 = vmatprep.subr.mxu0 0.0
  %8367 = vmatpush1.msra.mxu0 0.0
  %8368 = vmatprep.subr.mxu0 0.0
  %8369 = vmatpush1.msra.mxu0 0.0
  %8370 = vmatprep.subr.mxu0 0.0
  %8371 = vmatpush1.msra.mxu0 0.0
  %8372 = vmatprep.subr.mxu0 0.0
  %8373 = vmatpush1.msra.mxu0 0.0
  %8374 = vmatprep.subr.mxu0 0.0
  %8375 = vmatpush1.msra.mxu0 0.0
  %8376 = vmatprep.subr.mxu0 0.0
  %8377 = vmatpush1.msra.mxu0 0.0
  %8378 = vmatprep.subr.mxu0 0.0
  %8379 = vmatpush1.msra.mxu0 0.0
  %8380 = vmatprep.subr.mxu0 0.0
  %8381 = vmatpush1.msra.mxu0 0.0
  %8382 = vmatprep.subr.mxu0 0.0
  %8383 = vmatpush1.msra.mxu0 0.0
  %8384 = vmatprep.mubr.f32.mxu0 %v7852
  %8385 = vmatmul.mubr.f32.gmra.mrb[0].mxu0 %v7173
  %v8386 = vpop.f32.mrb[0].mxu0
  %v8387 = vadd.f32 %v8274, %v8386
  %v8388 = vpop.f32.mrb[0].mxu0
  %v8389 = vadd.f32 %v8276, %v8388
  %8390 = vmatprep.mubr.f32.mxu0 %v7854
  %8391 = vmatmul.mubr.f32.gmra.mrb[0].mxu0 %v7174
  %v8392 = vpop.f32.mrb[0].mxu0
  %v8393 = vadd.f32 %v8280, %v8392
  %v8394 = vpop.f32.mrb[0].mxu0
  %v8395 = vadd.f32 %v8282, %v8394
  %8396 = vmatprep.mubr.f32.mxu0 %v7856
  %8397 = vmatmul.mubr.f32.gmra.mrb[0].mxu0 %v7175
  %v8398 = vpop.f32.mrb[0].mxu0
  %v8399 = vadd.f32 %v8286, %v8398
  %v8400 = vpop.f32.mrb[0].mxu0
  %v8401 = vadd.f32 %v8288, %v8400
  %8402 = vmatprep.mubr.f32.mxu0 %v7858
  %8403 = vmatmul.mubr.f32.gmra.mrb[0].mxu0 %v7176
  %v8404 = vpop.f32.mrb[0].mxu0
  %v8405 = vadd.f32 %v8292, %v8404
  %v8406 = vpop.f32.mrb[0].mxu0
  %v8407 = vadd.f32 %v8294, %v8406
  %8408 = vmatprep.mubr.f32.mxu0 %v7860
  %8409 = vmatmul.mubr.f32.gmra.mrb[0].mxu0 %v7177
  %v8410 = vpop.f32.mrb[0].mxu0
  %v8411 = vadd.f32 %v8298, %v8410
  %v8412 = vpop.f32.mrb[0].mxu0
  %v8413 = vadd.f32 %v8300, %v8412
  %8414 = vmatprep.mubr.f32.mxu0 %v7862
  %8415 = vmatmul.mubr.f32.gmra.mrb[0].mxu0 %v7178
  %v8416 = vpop.f32.mrb[0].mxu0
  %v8417 = vadd.f32 %v8304, %v8416
  %v8418 = vpop.f32.mrb[0].mxu0
  %v8419 = vadd.f32 %v8306, %v8418
  %8420 = vmatprep.mubr.f32.mxu0 %v7864
  %8421 = vmatmul.mubr.f32.gmra.mrb[0].mxu0 %v7179
  %v8422 = vpop.f32.mrb[0].mxu0
  %v8423 = vadd.f32 %v8310, %v8422
  %v8424 = vpop.f32.mrb[0].mxu0
  %v8425 = vadd.f32 %v8312, %v8424
  %8426 = vmatprep.mubr.f32.mxu0 %v7866
  %8427 = vmatmul.mubr.f32.gmra.mrb[0].mxu0 %v7180
  %v8428 = vpop.f32.mrb[0].mxu0
  %v8429 = vadd.f32 %v8316, %v8428
  %v8430 = vpop.f32.mrb[0].mxu0
  %v8431 = vadd.f32 %v8318, %v8430
  %8432 = vdwg.mxu0
  %8433 = vmatprep.subr.mxu0 %v7232
  %8434 = vmatpush1.msra.mxu0 %v7231
  %8435 = vmatprep.subr.mxu0 %v7236
  %8436 = vmatpush1.msra.mxu0 %v7235
  %8437 = vmatprep.subr.mxu0 %v7240
  %8438 = vmatpush1.msra.mxu0 %v7239
  %8439 = vmatprep.subr.mxu0 %v7244
  %8440 = vmatpush1.msra.mxu0 %v7243
  %8441 = vmatprep.subr.mxu0 %v7248
  %8442 = vmatpush1.msra.mxu0 %v7247
  %8443 = vmatprep.subr.mxu0 %v7252
  %8444 = vmatpush1.msra.mxu0 %v7251
  %8445 = vmatprep.subr.mxu0 %v7256
  %8446 = vmatpush1.msra.mxu0 %v7255
  %8447 = vmatprep.subr.mxu0 %v7260
  %8448 = vmatpush1.msra.mxu0 %v7259
  %8449 = vmatprep.subr.mxu0 %v7264
  %8450 = vmatpush1.msra.mxu0 %v7263
  %8451 = vmatprep.subr.mxu0 %v7268
  %8452 = vmatpush1.msra.mxu0 %v7267
  %8453 = vmatprep.subr.mxu0 %v7272
  %8454 = vmatpush1.msra.mxu0 %v7271
  %8455 = vmatprep.subr.mxu0 %v7276
  %8456 = vmatpush1.msra.mxu0 %v7275
  %8457 = vmatprep.subr.mxu0 %v7280
  %8458 = vmatpush1.msra.mxu0 %v7279
  %8459 = vmatprep.subr.mxu0 %v7284
  %8460 = vmatpush1.msra.mxu0 %v7283
  %8461 = vmatprep.subr.mxu0 %v7288
  %8462 = vmatpush1.msra.mxu0 %v7287
  %8463 = vmatprep.subr.mxu0 %v7292
  %8464 = vmatpush1.msra.mxu0 %v7291
  %8465 = vmatprep.subr.mxu0 %v7296
  %8466 = vmatpush1.msra.mxu0 %v7295
  %8467 = vmatprep.subr.mxu0 %v7300
  %8468 = vmatpush1.msra.mxu0 %v7299
  %8469 = vmatprep.subr.mxu0 %v7304
  %8470 = vmatpush1.msra.mxu0 %v7303
  %8471 = vmatprep.subr.mxu0 %v7308
  %8472 = vmatpush1.msra.mxu0 %v7307
  %8473 = vmatprep.subr.mxu0 %v7312
  %8474 = vmatpush1.msra.mxu0 %v7311
  %8475 = vmatprep.subr.mxu0 %v7316
  %8476 = vmatpush1.msra.mxu0 %v7315
  %8477 = vmatprep.subr.mxu0 %v7320
  %8478 = vmatpush1.msra.mxu0 %v7319
  %8479 = vmatprep.subr.mxu0 %v7324
  %8480 = vmatpush1.msra.mxu0 %v7323
  %8481 = vmatprep.subr.mxu0 %v7328
  %8482 = vmatpush1.msra.mxu0 %v7327
  %8483 = vmatprep.subr.mxu0 %v7332
  %8484 = vmatpush1.msra.mxu0 %v7331
  %8485 = vmatprep.subr.mxu0 %v7336
  %8486 = vmatpush1.msra.mxu0 %v7335
  %8487 = vmatprep.subr.mxu0 %v7340
  %8488 = vmatpush1.msra.mxu0 %v7339
  %8489 = vmatprep.subr.mxu0 %v7344
  %8490 = vmatpush1.msra.mxu0 %v7343
  %8491 = vmatprep.subr.mxu0 %v7348
  %8492 = vmatpush1.msra.mxu0 %v7347
  %8493 = vmatprep.subr.mxu0 %v7352
  %8494 = vmatpush1.msra.mxu0 %v7351
  %8495 = vmatprep.subr.mxu0 %v7356
  %8496 = vmatpush1.msra.mxu0 %v7355
  %8497 = vmatprep.mubr.f32.mxu0 %v7197
  %8498 = vmatmul.mubr.f32.gmra.mrb[0].mxu0 %v6313
  %v8499 = vpop.f32.mrb[0].mxu0
  %v8500 = vadd.f32 %v7842, %v8499
  %v8501 = vpop.f32.mrb[0].mxu0
  %v8502 = vadd.f32 %v7846, %v8501
  %8503 = vmatprep.mubr.f32.mxu0 %v7198
  %8504 = vmatmul.mubr.f32.gmra.mrb[0].mxu0 %v6327
  %v8505 = vpop.f32.mrb[0].mxu0
  %v8506 = vadd.f32 %v7842, %v8505
  %v8507 = vpop.f32.mrb[0].mxu0
  %v8508 = vadd.f32 %v7846, %v8507
  %8509 = vmatprep.mubr.f32.mxu0 %v7199
  %8510 = vmatmul.mubr.f32.gmra.mrb[0].mxu0 %v6341
  %v8511 = vpop.f32.mrb[0].mxu0
  %v8512 = vadd.f32 %v7842, %v8511
  %v8513 = vpop.f32.mrb[0].mxu0
  %v8514 = vadd.f32 %v7846, %v8513
  %8515 = vmatprep.mubr.f32.mxu0 %v7200
  %8516 = vmatmul.mubr.f32.gmra.mrb[0].mxu0 %v6355
  %v8517 = vpop.f32.mrb[0].mxu0
  %v8518 = vadd.f32 %v7842, %v8517
  %v8519 = vpop.f32.mrb[0].mxu0
  %v8520 = vadd.f32 %v7846, %v8519
  %8521 = vmatprep.mubr.f32.mxu0 %v7201
  %8522 = vmatmul.mubr.f32.gmra.mrb[0].mxu0 %v6369
  %v8523 = vpop.f32.mrb[0].mxu0
  %v8524 = vadd.f32 %v7842, %v8523
  %v8525 = vpop.f32.mrb[0].mxu0
  %v8526 = vadd.f32 %v7846, %v8525
  %8527 = vmatprep.mubr.f32.mxu0 %v7202
  %8528 = vmatmul.mubr.f32.gmra.mrb[0].mxu0 %v6383
  %v8529 = vpop.f32.mrb[0].mxu0
  %v8530 = vadd.f32 %v7842, %v8529
  %v8531 = vpop.f32.mrb[0].mxu0
  %v8532 = vadd.f32 %v7846, %v8531
  %8533 = vmatprep.mubr.f32.mxu0 %v7203
  %8534 = vmatmul.mubr.f32.gmra.mrb[0].mxu0 %v6397
  %v8535 = vpop.f32.mrb[0].mxu0
  %v8536 = vadd.f32 %v7842, %v8535
  %v8537 = vpop.f32.mrb[0].mxu0
  %v8538 = vadd.f32 %v7846, %v8537
  %8539 = vmatprep.mubr.f32.mxu0 %v7204
  %8540 = vmatmul.mubr.f32.gmra.mrb[0].mxu0 %v6411
  %v8541 = vpop.f32.mrb[0].mxu0
  %v8542 = vadd.f32 %v7842, %v8541
  %v8543 = vpop.f32.mrb[0].mxu0
  %v8544 = vadd.f32 %v7846, %v8543
  %8545 = vdwg.mxu0
  %8546 = vmatprep.subr.mxu0 %v7360
  %8547 = vmatpush1.msra.mxu0 %v7359
  %8548 = vmatprep.subr.mxu0 %v7364
  %8549 = vmatpush1.msra.mxu0 %v7363
  %8550 = vmatprep.subr.mxu0 %v7368
  %8551 = vmatpush1.msra.mxu0 %v7367
  %8552 = vmatprep.subr.mxu0 %v7372
  %8553 = vmatpush1.msra.mxu0 %v7371
  %8554 = vmatprep.subr.mxu0 %v7376
  %8555 = vmatpush1.msra.mxu0 %v7375
  %8556 = vmatprep.subr.mxu0 %v7380
  %8557 = vmatpush1.msra.mxu0 %v7379
  %8558 = vmatprep.subr.mxu0 %v7384
  %8559 = vmatpush1.msra.mxu0 %v7383
  %8560 = vmatprep.subr.mxu0 %v7388
  %8561 = vmatpush1.msra.mxu0 %v7387
  %8562 = vmatprep.subr.mxu0 %v7392
  %8563 = vmatpush1.msra.mxu0 %v7391
  %8564 = vmatprep.subr.mxu0 %v7396
  %8565 = vmatpush1.msra.mxu0 %v7395
  %8566 = vmatprep.subr.mxu0 %v7400
  %8567 = vmatpush1.msra.mxu0 %v7399
  %8568 = vmatprep.subr.mxu0 %v7404
  %8569 = vmatpush1.msra.mxu0 %v7403
  %8570 = vmatprep.subr.mxu0 %v7408
  %8571 = vmatpush1.msra.mxu0 %v7407
  %8572 = vmatprep.subr.mxu0 %v7412
  %8573 = vmatpush1.msra.mxu0 %v7411
  %8574 = vmatprep.subr.mxu0 %v7416
  %8575 = vmatpush1.msra.mxu0 %v7415
  %8576 = vmatprep.subr.mxu0 %v7420
  %8577 = vmatpush1.msra.mxu0 %v7419
  %8578 = vmatprep.subr.mxu0 %v7424
  %8579 = vmatpush1.msra.mxu0 %v7423
  %8580 = vmatprep.subr.mxu0 %v7428
  %8581 = vmatpush1.msra.mxu0 %v7427
  %8582 = vmatprep.subr.mxu0 %v7432
  %8583 = vmatpush1.msra.mxu0 %v7431
  %8584 = vmatprep.subr.mxu0 %v7436
  %8585 = vmatpush1.msra.mxu0 %v7435
  %8586 = vmatprep.subr.mxu0 %v7440
  %8587 = vmatpush1.msra.mxu0 %v7439
  %8588 = vmatprep.subr.mxu0 %v7444
  %8589 = vmatpush1.msra.mxu0 %v7443
  %8590 = vmatprep.subr.mxu0 %v7448
  %8591 = vmatpush1.msra.mxu0 %v7447
  %8592 = vmatprep.subr.mxu0 %v7452
  %8593 = vmatpush1.msra.mxu0 %v7451
  %8594 = vmatprep.subr.mxu0 %v7456
  %8595 = vmatpush1.msra.mxu0 %v7455
  %8596 = vmatprep.subr.mxu0 %v7460
  %8597 = vmatpush1.msra.mxu0 %v7459
  %8598 = vmatprep.subr.mxu0 %v7464
  %8599 = vmatpush1.msra.mxu0 %v7463
  %8600 = vmatprep.subr.mxu0 %v7468
  %8601 = vmatpush1.msra.mxu0 %v7467
  %8602 = vmatprep.subr.mxu0 %v7472
  %8603 = vmatpush1.msra.mxu0 %v7471
  %8604 = vmatprep.subr.mxu0 %v7476
  %8605 = vmatpush1.msra.mxu0 %v7475
  %8606 = vmatprep.subr.mxu0 %v7480
  %8607 = vmatpush1.msra.mxu0 %v7479
  %8608 = vmatprep.subr.mxu0 %v7484
  %8609 = vmatpush1.msra.mxu0 %v7483
  %8610 = vmatprep.mubr.f32.mxu0 %v7205
  %8611 = vmatmul.mubr.f32.gmra.mrb[0].mxu0 %v6595
  %v8612 = vpop.f32.mrb[0].mxu0
  %v8613 = vadd.f32 %v8500, %v8612
  %v8614 = vpop.f32.mrb[0].mxu0
  %v8615 = vadd.f32 %v8502, %v8614
  %8616 = vmatprep.mubr.f32.mxu0 %v7206
  %8617 = vmatmul.mubr.f32.gmra.mrb[0].mxu0 %v6596
  %v8618 = vpop.f32.mrb[0].mxu0
  %v8619 = vadd.f32 %v8506, %v8618
  %v8620 = vpop.f32.mrb[0].mxu0
  %v8621 = vadd.f32 %v8508, %v8620
  %8622 = vmatprep.mubr.f32.mxu0 %v7207
  %8623 = vmatmul.mubr.f32.gmra.mrb[0].mxu0 %v6597
  %v8624 = vpop.f32.mrb[0].mxu0
  %v8625 = vadd.f32 %v8512, %v8624
  %v8626 = vpop.f32.mrb[0].mxu0
  %v8627 = vadd.f32 %v8514, %v8626
  %8628 = vmatprep.mubr.f32.mxu0 %v7208
  %8629 = vmatmul.mubr.f32.gmra.mrb[0].mxu0 %v6598
  %v8630 = vpop.f32.mrb[0].mxu0
  %v8631 = vadd.f32 %v8518, %v8630
  %v8632 = vpop.f32.mrb[0].mxu0
  %v8633 = vadd.f32 %v8520, %v8632
  %8634 = vmatprep.mubr.f32.mxu0 %v7209
  %8635 = vmatmul.mubr.f32.gmra.mrb[0].mxu0 %v6599
  %v8636 = vpop.f32.mrb[0].mxu0
  %v8637 = vadd.f32 %v8524, %v8636
  %v8638 = vpop.f32.mrb[0].mxu0
  %v8639 = vadd.f32 %v8526, %v8638
  %8640 = vmatprep.mubr.f32.mxu0 %v7210
  %8641 = vmatmul.mubr.f32.gmra.mrb[0].mxu0 %v6600
  %v8642 = vpop.f32.mrb[0].mxu0
  %v8643 = vadd.f32 %v8530, %v8642
  %v8644 = vpop.f32.mrb[0].mxu0
  %v8645 = vadd.f32 %v8532, %v8644
  %8646 = vmatprep.mubr.f32.mxu0 %v7211
  %8647 = vmatmul.mubr.f32.gmra.mrb[0].mxu0 %v6601
  %v8648 = vpop.f32.mrb[0].mxu0
  %v8649 = vadd.f32 %v8536, %v8648
  %v8650 = vpop.f32.mrb[0].mxu0
  %v8651 = vadd.f32 %v8538, %v8650
  %8652 = vmatprep.mubr.f32.mxu0 %v7212
  %8653 = vmatmul.mubr.f32.gmra.mrb[0].mxu0 %v6602
  %v8654 = vpop.f32.mrb[0].mxu0
  %v8655 = vadd.f32 %v8542, %v8654
  %v8656 = vpop.f32.mrb[0].mxu0
  %v8657 = vadd.f32 %v8544, %v8656
  %8658 = vdwg.mxu0
  %8659 = vmatprep.subr.mxu0 %v7488
  %8660 = vmatpush1.msra.mxu0 %v7487
  %8661 = vmatprep.subr.mxu0 %v7492
  %8662 = vmatpush1.msra.mxu0 %v7491
  %8663 = vmatprep.subr.mxu0 %v7496
  %8664 = vmatpush1.msra.mxu0 %v7495
  %8665 = vmatprep.subr.mxu0 %v7500
  %8666 = vmatpush1.msra.mxu0 %v7499
  %8667 = vmatprep.subr.mxu0 %v7504
  %8668 = vmatpush1.msra.mxu0 %v7503
  %8669 = vmatprep.subr.mxu0 %v7508
  %8670 = vmatpush1.msra.mxu0 %v7507
  %8671 = vmatprep.subr.mxu0 %v7512
  %8672 = vmatpush1.msra.mxu0 %v7511
  %8673 = vmatprep.subr.mxu0 %v7516
  %8674 = vmatpush1.msra.mxu0 %v7515
  %8675 = vmatprep.subr.mxu0 %v7520
  %8676 = vmatpush1.msra.mxu0 %v7519
  %8677 = vmatprep.subr.mxu0 %v7524
  %8678 = vmatpush1.msra.mxu0 %v7523
  %8679 = vmatprep.subr.mxu0 %v7528
  %8680 = vmatpush1.msra.mxu0 %v7527
  %8681 = vmatprep.subr.mxu0 %v7532
  %8682 = vmatpush1.msra.mxu0 %v7531
  %8683 = vmatprep.subr.mxu0 %v7536
  %8684 = vmatpush1.msra.mxu0 %v7535
  %8685 = vmatprep.subr.mxu0 %v7540
  %8686 = vmatpush1.msra.mxu0 %v7539
  %8687 = vmatprep.subr.mxu0 %v7544
  %8688 = vmatpush1.msra.mxu0 %v7543
  %8689 = vmatprep.subr.mxu0 %v7548
  %8690 = vmatpush1.msra.mxu0 %v7547
  %8691 = vmatprep.subr.mxu0 %v7552
  %8692 = vmatpush1.msra.mxu0 %v7551
  %8693 = vmatprep.subr.mxu0 %v7556
  %8694 = vmatpush1.msra.mxu0 %v7555
  %8695 = vmatprep.subr.mxu0 %v7560
  %8696 = vmatpush1.msra.mxu0 %v7559
  %8697 = vmatprep.subr.mxu0 %v7564
  %8698 = vmatpush1.msra.mxu0 %v7563
  %8699 = vmatprep.subr.mxu0 %v7568
  %8700 = vmatpush1.msra.mxu0 %v7567
  %8701 = vmatprep.subr.mxu0 %v7572
  %8702 = vmatpush1.msra.mxu0 %v7571
  %8703 = vmatprep.subr.mxu0 %v7576
  %8704 = vmatpush1.msra.mxu0 %v7575
  %8705 = vmatprep.subr.mxu0 %v7580
  %8706 = vmatpush1.msra.mxu0 %v7579
  %8707 = vmatprep.subr.mxu0 %v7584
  %8708 = vmatpush1.msra.mxu0 %v7583
  %8709 = vmatprep.subr.mxu0 %v7588
  %8710 = vmatpush1.msra.mxu0 %v7587
  %8711 = vmatprep.subr.mxu0 %v7592
  %8712 = vmatpush1.msra.mxu0 %v7591
  %8713 = vmatprep.subr.mxu0 %v7596
  %8714 = vmatpush1.msra.mxu0 %v7595
  %8715 = vmatprep.subr.mxu0 %v7600
  %8716 = vmatpush1.msra.mxu0 %v7599
  %8717 = vmatprep.subr.mxu0 %v7604
  %8718 = vmatpush1.msra.mxu0 %v7603
  %8719 = vmatprep.subr.mxu0 %v7608
  %8720 = vmatpush1.msra.mxu0 %v7607
  %8721 = vmatprep.subr.mxu0 %v7612
  %8722 = vmatpush1.msra.mxu0 %v7611
  %8723 = vmatprep.mubr.f32.mxu0 %v7213
  %8724 = vmatmul.mubr.f32.gmra.mrb[0].mxu0 %v6788
  %v8725 = vpop.f32.mrb[0].mxu0
  %v8726 = vadd.f32 %v8613, %v8725
  %v8727 = vpop.f32.mrb[0].mxu0
  %v8728 = vadd.f32 %v8615, %v8727
  %8729 = vmatprep.mubr.f32.mxu0 %v7214
  %8730 = vmatmul.mubr.f32.gmra.mrb[0].mxu0 %v6789
  %v8731 = vpop.f32.mrb[0].mxu0
  %v8732 = vadd.f32 %v8619, %v8731
  %v8733 = vpop.f32.mrb[0].mxu0
  %v8734 = vadd.f32 %v8621, %v8733
  %8735 = vmatprep.mubr.f32.mxu0 %v7215
  %8736 = vmatmul.mubr.f32.gmra.mrb[0].mxu0 %v6790
  %v8737 = vpop.f32.mrb[0].mxu0
  %v8738 = vadd.f32 %v8625, %v8737
  %v8739 = vpop.f32.mrb[0].mxu0
  %v8740 = vadd.f32 %v8627, %v8739
  %8741 = vmatprep.mubr.f32.mxu0 %v7216
  %8742 = vmatmul.mubr.f32.gmra.mrb[0].mxu0 %v6791
  %v8743 = vpop.f32.mrb[0].mxu0
  %v8744 = vadd.f32 %v8631, %v8743
  %v8745 = vpop.f32.mrb[0].mxu0
  %v8746 = vadd.f32 %v8633, %v8745
  %8747 = vmatprep.mubr.f32.mxu0 %v7217
  %8748 = vmatmul.mubr.f32.gmra.mrb[0].mxu0 %v6792
  %v8749 = vpop.f32.mrb[0].mxu0
  %v8750 = vadd.f32 %v8637, %v8749
  %v8751 = vpop.f32.mrb[0].mxu0
  %v8752 = vadd.f32 %v8639, %v8751
  %8753 = vmatprep.mubr.f32.mxu0 %v7218
  %8754 = vmatmul.mubr.f32.gmra.mrb[0].mxu0 %v6793
  %v8755 = vpop.f32.mrb[0].mxu0
  %v8756 = vadd.f32 %v8643, %v8755
  %v8757 = vpop.f32.mrb[0].mxu0
  %v8758 = vadd.f32 %v8645, %v8757
  %8759 = vmatprep.mubr.f32.mxu0 %v7219
  %8760 = vmatmul.mubr.f32.gmra.mrb[0].mxu0 %v6794
  %v8761 = vpop.f32.mrb[0].mxu0
  %v8762 = vadd.f32 %v8649, %v8761
  %v8763 = vpop.f32.mrb[0].mxu0
  %v8764 = vadd.f32 %v8651, %v8763
  %8765 = vmatprep.mubr.f32.mxu0 %v7220
  %8766 = vmatmul.mubr.f32.gmra.mrb[0].mxu0 %v6795
  %v8767 = vpop.f32.mrb[0].mxu0
  %v8768 = vadd.f32 %v8655, %v8767
  %v8769 = vpop.f32.mrb[0].mxu0
  %v8770 = vadd.f32 %v8657, %v8769
  %8771 = vdwg.mxu0
  %8772 = vmatprep.subr.mxu0 %v7616
  %8773 = vmatpush1.msra.mxu0 %v7615
  %8774 = vmatprep.subr.mxu0 %v7620
  %8775 = vmatpush1.msra.mxu0 %v7619
  %8776 = vmatprep.subr.mxu0 %v7624
  %8777 = vmatpush1.msra.mxu0 %v7623
  %8778 = vmatprep.subr.mxu0 %v7628
  %8779 = vmatpush1.msra.mxu0 %v7627
  %8780 = vmatprep.subr.mxu0 %v7632
  %8781 = vmatpush1.msra.mxu0 %v7631
  %8782 = vmatprep.subr.mxu0 %v7636
  %8783 = vmatpush1.msra.mxu0 %v7635
  %8784 = vmatprep.subr.mxu0 %v7640
  %8785 = vmatpush1.msra.mxu0 %v7639
  %8786 = vmatprep.subr.mxu0 %v7644
  %8787 = vmatpush1.msra.mxu0 %v7643
  %8788 = vmatprep.subr.mxu0 %v7648
  %8789 = vmatpush1.msra.mxu0 %v7647
  %8790 = vmatprep.subr.mxu0 %v7652
  %8791 = vmatpush1.msra.mxu0 %v7651
  %8792 = vmatprep.subr.mxu0 %v7656
  %8793 = vmatpush1.msra.mxu0 %v7655
  %8794 = vmatprep.subr.mxu0 %v7660
  %8795 = vmatpush1.msra.mxu0 %v7659
  %8796 = vmatprep.subr.mxu0 %v7664
  %8797 = vmatpush1.msra.mxu0 %v7663
  %8798 = vmatprep.subr.mxu0 %v7668
  %8799 = vmatpush1.msra.mxu0 %v7667
  %8800 = vmatprep.subr.mxu0 %v7672
  %8801 = vmatpush1.msra.mxu0 %v7671
  %8802 = vmatprep.subr.mxu0 %v7676
  %8803 = vmatpush1.msra.mxu0 %v7675
  %8804 = vmatprep.subr.mxu0 %v7680
  %8805 = vmatpush1.msra.mxu0 %v7679
  %8806 = vmatprep.subr.mxu0 %v7684
  %8807 = vmatpush1.msra.mxu0 %v7683
  %8808 = vmatprep.subr.mxu0 %v7688
  %8809 = vmatpush1.msra.mxu0 %v7687
  %8810 = vmatprep.subr.mxu0 %v7692
  %8811 = vmatpush1.msra.mxu0 %v7691
  %8812 = vmatprep.subr.mxu0 %v7696
  %8813 = vmatpush1.msra.mxu0 %v7695
  %8814 = vmatprep.subr.mxu0 %v7700
  %8815 = vmatpush1.msra.mxu0 %v7699
  %8816 = vmatprep.subr.mxu0 %v7704
  %8817 = vmatpush1.msra.mxu0 %v7703
  %8818 = vmatprep.subr.mxu0 %v7708
  %8819 = vmatpush1.msra.mxu0 %v7707
  %8820 = vmatprep.subr.mxu0 %v7712
  %8821 = vmatpush1.msra.mxu0 %v7711
  %8822 = vmatprep.subr.mxu0 %v7716
  %8823 = vmatpush1.msra.mxu0 %v7715
  %8824 = vmatprep.subr.mxu0 %v7720
  %8825 = vmatpush1.msra.mxu0 %v7719
  %8826 = vmatprep.subr.mxu0 %v7724
  %8827 = vmatpush1.msra.mxu0 %v7723
  %8828 = vmatprep.subr.mxu0 %v7728
  %8829 = vmatpush1.msra.mxu0 %v7727
  %8830 = vmatprep.subr.mxu0 %v7732
  %8831 = vmatpush1.msra.mxu0 %v7731
  %8832 = vmatprep.subr.mxu0 %v7736
  %8833 = vmatpush1.msra.mxu0 %v7735
  %8834 = vmatprep.subr.mxu0 %v7740
  %8835 = vmatpush1.msra.mxu0 %v7739
  %8836 = vmatprep.mubr.f32.mxu0 %v7221
  %8837 = vmatmul.mubr.f32.gmra.mrb[0].mxu0 %v6980
  %v8838 = vpop.f32.mrb[0].mxu0
  %v8839 = vadd.f32 %v8726, %v8838
  %v8840 = vpop.f32.mrb[0].mxu0
  %v8841 = vadd.f32 %v8728, %v8840
  %8842 = vmatprep.mubr.f32.mxu0 %v7222
  %8843 = vmatmul.mubr.f32.gmra.mrb[0].mxu0 %v6981
  %v8844 = vpop.f32.mrb[0].mxu0
  %v8845 = vadd.f32 %v8732, %v8844
  %v8846 = vpop.f32.mrb[0].mxu0
  %v8847 = vadd.f32 %v8734, %v8846
  %8848 = vmatprep.mubr.f32.mxu0 %v7223
  %8849 = vmatmul.mubr.f32.gmra.mrb[0].mxu0 %v6982
  %v8850 = vpop.f32.mrb[0].mxu0
  %v8851 = vadd.f32 %v8738, %v8850
  %v8852 = vpop.f32.mrb[0].mxu0
  %v8853 = vadd.f32 %v8740, %v8852
  %8854 = vmatprep.mubr.f32.mxu0 %v7224
  %8855 = vmatmul.mubr.f32.gmra.mrb[0].mxu0 %v6983
  %v8856 = vpop.f32.mrb[0].mxu0
  %v8857 = vadd.f32 %v8744, %v8856
  %v8858 = vpop.f32.mrb[0].mxu0
  %v8859 = vadd.f32 %v8746, %v8858
  %8860 = vmatprep.mubr.f32.mxu0 %v7225
  %8861 = vmatmul.mubr.f32.gmra.mrb[0].mxu0 %v6984
  %v8862 = vpop.f32.mrb[0].mxu0
  %v8863 = vadd.f32 %v8750, %v8862
  %v8864 = vpop.f32.mrb[0].mxu0
  %v8865 = vadd.f32 %v8752, %v8864
  %8866 = vmatprep.mubr.f32.mxu0 %v7226
  %8867 = vmatmul.mubr.f32.gmra.mrb[0].mxu0 %v6985
  %v8868 = vpop.f32.mrb[0].mxu0
  %v8869 = vadd.f32 %v8756, %v8868
  %v8870 = vpop.f32.mrb[0].mxu0
  %v8871 = vadd.f32 %v8758, %v8870
  %8872 = vmatprep.mubr.f32.mxu0 %v7227
  %8873 = vmatmul.mubr.f32.gmra.mrb[0].mxu0 %v6986
  %v8874 = vpop.f32.mrb[0].mxu0
  %v8875 = vadd.f32 %v8762, %v8874
  %v8876 = vpop.f32.mrb[0].mxu0
  %v8877 = vadd.f32 %v8764, %v8876
  %8878 = vmatprep.mubr.f32.mxu0 %v7228
  %8879 = vmatmul.mubr.f32.gmra.mrb[0].mxu0 %v6987
  %v8880 = vpop.f32.mrb[0].mxu0
  %v8881 = vadd.f32 %v8768, %v8880
  %v8882 = vpop.f32.mrb[0].mxu0
  %v8883 = vadd.f32 %v8770, %v8882
  %8884 = vdwg.mxu0
  %8885 = vmatprep.subr.mxu0 %v7744
  %8886 = vmatpush1.msra.mxu0 %v7743
  %8887 = vmatprep.subr.mxu0 %v7748
  %8888 = vmatpush1.msra.mxu0 %v7747
  %8889 = vmatprep.subr.mxu0 %v7752
  %8890 = vmatpush1.msra.mxu0 %v7751
  %8891 = vmatprep.subr.mxu0 %v7756
  %8892 = vmatpush1.msra.mxu0 %v7755
  %8893 = vmatprep.subr.mxu0 %v7760
  %8894 = vmatpush1.msra.mxu0 %v7759
  %8895 = vmatprep.subr.mxu0 %v7764
  %8896 = vmatpush1.msra.mxu0 %v7763
  %8897 = vmatprep.subr.mxu0 %v7768
  %8898 = vmatpush1.msra.mxu0 %v7767
  %8899 = vmatprep.subr.mxu0 %v7772
  %8900 = vmatpush1.msra.mxu0 %v7771
  %8901 = vmatprep.subr.mxu0 %v7776
  %8902 = vmatpush1.msra.mxu0 %v7775
  %8903 = vmatprep.subr.mxu0 %v7780
  %8904 = vmatpush1.msra.mxu0 %v7779
  %8905 = vmatprep.subr.mxu0 %v7784
  %8906 = vmatpush1.msra.mxu0 %v7783
  %8907 = vmatprep.subr.mxu0 %v7788
  %8908 = vmatpush1.msra.mxu0 %v7787
  %8909 = vmatprep.subr.mxu0 %v7792
  %8910 = vmatpush1.msra.mxu0 %v7791
  %8911 = vmatprep.subr.mxu0 %v7796
  %8912 = vmatpush1.msra.mxu0 %v7795
  %8913 = vmatprep.subr.mxu0 %v7800
  %8914 = vmatpush1.msra.mxu0 %v7799
  %8915 = vmatprep.subr.mxu0 %v7804
  %8916 = vmatpush1.msra.mxu0 %v7803
  %8917 = vmatprep.subr.mxu0 %v7808
  %8918 = vmatpush1.msra.mxu0 %v7807
  %8919 = vmatprep.subr.mxu0 %v7812
  %8920 = vmatpush1.msra.mxu0 %v7811
  %8921 = vmatprep.subr.mxu0 %v7816
  %8922 = vmatpush1.msra.mxu0 %v7815
  %8923 = vmatprep.subr.mxu0 %v7820
  %8924 = vmatpush1.msra.mxu0 %v7819
  %8925 = vmatprep.subr.mxu0 %v7824
  %8926 = vmatpush1.msra.mxu0 %v7823
  %8927 = vmatprep.subr.mxu0 %v7828
  %8928 = vmatpush1.msra.mxu0 %v7827
  %8929 = vmatprep.subr.mxu0 0.0
  %8930 = vmatpush1.msra.mxu0 0.0
  %8931 = vmatprep.subr.mxu0 0.0
  %8932 = vmatpush1.msra.mxu0 0.0
  %8933 = vmatprep.subr.mxu0 0.0
  %8934 = vmatpush1.msra.mxu0 0.0
  %8935 = vmatprep.subr.mxu0 0.0
  %8936 = vmatpush1.msra.mxu0 0.0
  %8937 = vmatprep.subr.mxu0 0.0
  %8938 = vmatpush1.msra.mxu0 0.0
  %8939 = vmatprep.subr.mxu0 0.0
  %8940 = vmatpush1.msra.mxu0 0.0
  %8941 = vmatprep.subr.mxu0 0.0
  %8942 = vmatpush1.msra.mxu0 0.0
  %8943 = vmatprep.subr.mxu0 0.0
  %8944 = vmatpush1.msra.mxu0 0.0
  %8945 = vmatprep.subr.mxu0 0.0
  %8946 = vmatpush1.msra.mxu0 0.0
  %8947 = vmatprep.subr.mxu0 0.0
  %8948 = vmatpush1.msra.mxu0 0.0
  %8949 = vmatprep.mubr.f32.mxu0 %v7852
  %8950 = vmatmul.mubr.f32.gmra.mrb[0].mxu0 %v7173
  %v8951 = vpop.f32.mrb[0].mxu0
  %v8952 = vadd.f32 %v8839, %v8951
  %v8953 = vpop.f32.mrb[0].mxu0
  %v8954 = vadd.f32 %v8841, %v8953
  %8955 = vmatprep.mubr.f32.mxu0 %v7854
  %8956 = vmatmul.mubr.f32.gmra.mrb[0].mxu0 %v7174
  %v8957 = vpop.f32.mrb[0].mxu0
  %v8958 = vadd.f32 %v8845, %v8957
  %v8959 = vpop.f32.mrb[0].mxu0
  %v8960 = vadd.f32 %v8847, %v8959
  %8961 = vmatprep.mubr.f32.mxu0 %v7856
  %8962 = vmatmul.mubr.f32.gmra.mrb[0].mxu0 %v7175
  %v8963 = vpop.f32.mrb[0].mxu0
  %v8964 = vadd.f32 %v8851, %v8963
  %v8965 = vpop.f32.mrb[0].mxu0
  %v8966 = vadd.f32 %v8853, %v8965
  %8967 = vmatprep.mubr.f32.mxu0 %v7858
  %8968 = vmatmul.mubr.f32.gmra.mrb[0].mxu0 %v7176
  %v8969 = vpop.f32.mrb[0].mxu0
  %v8970 = vadd.f32 %v8857, %v8969
  %v8971 = vpop.f32.mrb[0].mxu0
  %v8972 = vadd.f32 %v8859, %v8971
  %8973 = vmatprep.mubr.f32.mxu0 %v7860
  %8974 = vmatmul.mubr.f32.gmra.mrb[0].mxu0 %v7177
  %v8975 = vpop.f32.mrb[0].mxu0
  %v8976 = vadd.f32 %v8863, %v8975
  %v8977 = vpop.f32.mrb[0].mxu0
  %v8978 = vadd.f32 %v8865, %v8977
  %8979 = vmatprep.mubr.f32.mxu0 %v7862
  %8980 = vmatmul.mubr.f32.gmra.mrb[0].mxu0 %v7178
  %v8981 = vpop.f32.mrb[0].mxu0
  %v8982 = vadd.f32 %v8869, %v8981
  %v8983 = vpop.f32.mrb[0].mxu0
  %v8984 = vadd.f32 %v8871, %v8983
  %8985 = vmatprep.mubr.f32.mxu0 %v7864
  %8986 = vmatmul.mubr.f32.gmra.mrb[0].mxu0 %v7179
  %v8987 = vpop.f32.mrb[0].mxu0
  %v8988 = vadd.f32 %v8875, %v8987
  %v8989 = vpop.f32.mrb[0].mxu0
  %v8990 = vadd.f32 %v8877, %v8989
  %8991 = vmatprep.mubr.f32.mxu0 %v7866
  %8992 = vmatmul.mubr.f32.gmra.mrb[0].mxu0 %v7180
  %v8993 = vpop.f32.mrb[0].mxu0
  %v8994 = vadd.f32 %v8881, %v8993
  %v8995 = vpop.f32.mrb[0].mxu0
  %v8996 = vadd.f32 %v8883, %v8995
  %8997 = vdwg.mxu0
  %v8998 = vmax.f32 %v8387, 0.0
  %v8999 = vmax.f32 %v8389, 0.0
  %v9000 = vmax.f32 %v8952, 0.0
  %v9001 = vmax.f32 %v8954, 0.0
  %v9002 = vmax.f32 %v8393, 0.0
  %v9003 = vmax.f32 %v8395, 0.0
  %v9004 = vmax.f32 %v8958, 0.0
  %v9005 = vmax.f32 %v8960, 0.0
  %v9006 = vmax.f32 %v8399, 0.0
  %v9007 = vmax.f32 %v8401, 0.0
  %v9008 = vmax.f32 %v8964, 0.0
  %v9009 = vmax.f32 %v8966, 0.0
  %v9010 = vmax.f32 %v8405, 0.0
  %v9011 = vmax.f32 %v8407, 0.0
  %v9012 = vmax.f32 %v8970, 0.0
  %v9013 = vmax.f32 %v8972, 0.0
  %v9014 = vmax.f32 %v8411, 0.0
  %v9015 = vmax.f32 %v8413, 0.0
  %v9016 = vmax.f32 %v8976, 0.0
  %v9017 = vmax.f32 %v8978, 0.0
  %v9018 = vmax.f32 %v8417, 0.0
  %v9019 = vmax.f32 %v8419, 0.0
  %v9020 = vmax.f32 %v8982, 0.0
  %v9021 = vmax.f32 %v8984, 0.0
  %v9022 = vmax.f32 %v8423, 0.0
  %v9023 = vmax.f32 %v8425, 0.0
  %v9024 = vmax.f32 %v8988, 0.0
  %v9025 = vmax.f32 %v8990, 0.0
  %v9026 = vmax.f32 %v8429, 0.0
  %v9027 = vmax.f32 %v8431, 0.0
  %v9028 = vmax.f32 %v8994, 0.0
  %v9029 = vmax.f32 %v8996, 0.0
  %9038 = vrot.lane.b32.xlu0 %v8998, 78
  %v9039 = vpop.permute.xlu0 %9038
  %9040 = vrot.lane.b32.xlu0 %v9002, 78
  %v9041 = vpop.permute.xlu0 %9040
  %9042 = vrot.lane.b32.xlu0 %v9006, 78
  %v9043 = vpop.permute.xlu0 %9042
  %9044 = vrot.lane.b32.xlu0 %v9010, 78
  %v9045 = vpop.permute.xlu0 %9044
  %9046 = vrot.lane.b32.xlu0 %v9014, 78
  %v9047 = vpop.permute.xlu0 %9046
  %9048 = vrot.lane.b32.xlu0 %v9018, 78
  %v9049 = vpop.permute.xlu0 %9048
  %9050 = vrot.lane.b32.xlu0 %v9022, 78
  %v9051 = vpop.permute.xlu0 %9050
  %9052 = vrot.lane.b32.xlu0 %v9026, 78
  %v9053 = vpop.permute.xlu0 %9052
  %v9062 = vmax.f32 %v8998, %v9039
  %v9063 = vmax.f32 %v9002, %v9041
  %v9064 = vmax.f32 %v9006, %v9043
  %v9065 = vmax.f32 %v9010, %v9045
  %v9066 = vmax.f32 %v9014, %v9047
  %v9067 = vmax.f32 %v9018, %v9049
  %v9068 = vmax.f32 %v9022, %v9051
  %v9069 = vmax.f32 %v9026, %v9053
  %9078 = vrot.lane.b32.xlu0 %v8999, 78
  %v9079 = vpop.permute.xlu0 %9078
  %9080 = vrot.lane.b32.xlu0 %v9003, 78
  %v9081 = vpop.permute.xlu0 %9080
  %9082 = vrot.lane.b32.xlu0 %v9007, 78
  %v9083 = vpop.permute.xlu0 %9082
  %9084 = vrot.lane.b32.xlu0 %v9011, 78
  %v9085 = vpop.permute.xlu0 %9084
  %9086 = vrot.lane.b32.xlu0 %v9015, 78
  %v9087 = vpop.permute.xlu0 %9086
  %9088 = vrot.lane.b32.xlu0 %v9019, 78
  %v9089 = vpop.permute.xlu0 %9088
  %9090 = vrot.lane.b32.xlu0 %v9023, 78
  %v9091 = vpop.permute.xlu0 %9090
  %9092 = vrot.lane.b32.xlu0 %v9027, 78
  %v9093 = vpop.permute.xlu0 %9092
  %v9102 = vmax.f32 %v8998, %v9079
  %v9103 = vmax.f32 %v8999, %v9079
  %v9104 = vmax.f32 %v9002, %v9081
  %v9105 = vmax.f32 %v9003, %v9081
  %v9106 = vmax.f32 %v9006, %v9083
  %v9107 = vmax.f32 %v9007, %v9083
  %v9108 = vmax.f32 %v9010, %v9085
  %v9109 = vmax.f32 %v9011, %v9085
  %v9110 = vmax.f32 %v9014, %v9087
  %v9111 = vmax.f32 %v9015, %v9087
  %v9112 = vmax.f32 %v9018, %v9089
  %v9113 = vmax.f32 %v9019, %v9089
  %v9114 = vmax.f32 %v9022, %v9091
  %v9115 = vmax.f32 %v9023, %v9091
  %v9116 = vmax.f32 %v9026, %v9093
  %v9117 = vmax.f32 %v9027, %v9093
  %9126 = vrot.lane.b32.xlu0 %v9000, 78
  %v9127 = vpop.permute.xlu0 %9126
  %9128 = vrot.lane.b32.xlu0 %v9004, 78
  %v9129 = vpop.permute.xlu0 %9128
  %9130 = vrot.lane.b32.xlu0 %v9008, 78
  %v9131 = vpop.permute.xlu0 %9130
  %9132 = vrot.lane.b32.xlu0 %v9012, 78
  %v9133 = vpop.permute.xlu0 %9132
  %9134 = vrot.lane.b32.xlu0 %v9016, 78
  %v9135 = vpop.permute.xlu0 %9134
  %9136 = vrot.lane.b32.xlu0 %v9020, 78
  %v9137 = vpop.permute.xlu0 %9136
  %9138 = vrot.lane.b32.xlu0 %v9024, 78
  %v9139 = vpop.permute.xlu0 %9138
  %9140 = vrot.lane.b32.xlu0 %v9028, 78
  %v9141 = vpop.permute.xlu0 %9140
  %vm9142 = vcmask 637952
  %v9143 = vsel %vm9142, %v9079, %v9127
  %v9144 = vsel %vm9142, %v9081, %v9129
  %v9145 = vsel %vm9142, %v9083, %v9131
  %v9146 = vsel %vm9142, %v9085, %v9133
  %v9147 = vsel %vm9142, %v9087, %v9135
  %v9148 = vsel %vm9142, %v9089, %v9137
  %v9149 = vsel %vm9142, %v9091, %v9139
  %v9150 = vsel %vm9142, %v9093, %v9141
  %v9159 = vmax.f32 %v8999, %v9143
  %v9160 = vmax.f32 %v9003, %v9144
  %v9161 = vmax.f32 %v9007, %v9145
  %v9162 = vmax.f32 %v9011, %v9146
  %v9163 = vmax.f32 %v9015, %v9147
  %v9164 = vmax.f32 %v9019, %v9148
  %v9165 = vmax.f32 %v9023, %v9149
  %v9166 = vmax.f32 %v9027, %v9150
  %9175 = vrot.lane.b32.xlu0 %v9001, 78
  %v9176 = vpop.permute.xlu0 %9175
  %9177 = vrot.lane.b32.xlu0 %v9005, 78
  %v9178 = vpop.permute.xlu0 %9177
  %9179 = vrot.lane.b32.xlu0 %v9009, 78
  %v9180 = vpop.permute.xlu0 %9179
  %9181 = vrot.lane.b32.xlu0 %v9013, 78
  %v9182 = vpop.permute.xlu0 %9181
  %9183 = vrot.lane.b32.xlu0 %v9017, 78
  %v9184 = vpop.permute.xlu0 %9183
  %9185 = vrot.lane.b32.xlu0 %v9021, 78
  %v9186 = vpop.permute.xlu0 %9185
  %9187 = vrot.lane.b32.xlu0 %v9025, 78
  %v9188 = vpop.permute.xlu0 %9187
  %9189 = vrot.lane.b32.xlu0 %v9029, 78
  %v9190 = vpop.permute.xlu0 %9189
  %v9191 = vsel %vm9142, %v9127, %v9176
  %v9192 = vsel %vm9142, %v9129, %v9178
  %v9193 = vsel %vm9142, %v9131, %v9180
  %v9194 = vsel %vm9142, %v9133, %v9182
  %v9195 = vsel %vm9142, %v9135, %v9184
  %v9196 = vsel %vm9142, %v9137, %v9186
  %v9197 = vsel %vm9142, %v9139, %v9188
  %v9198 = vsel %vm9142, %v9141, %v9190
  %v9207 = vmax.f32 %v9000, %v9191
  %v9208 = vmax.f32 %v9004, %v9192
  %v9209 = vmax.f32 %v9008, %v9193
  %v9210 = vmax.f32 %v9012, %v9194
  %v9211 = vmax.f32 %v9016, %v9195
  %v9212 = vmax.f32 %v9020, %v9196
  %v9213 = vmax.f32 %v9024, %v9197
  %v9214 = vmax.f32 %v9028, %v9198
  %9231 = vrot.lane.b32.xlu0 %v9102, 78
  %v9232 = vpop.permute.xlu0 %9231
  %9233 = vrot.lane.b32.xlu0 %v9103, 78
  %v9234 = vpop.permute.xlu0 %9233
  %9235 = vrot.lane.b32.xlu0 %v9104, 78
  %v9236 = vpop.permute.xlu0 %9235
  %9237 = vrot.lane.b32.xlu0 %v9105, 78
  %v9238 = vpop.permute.xlu0 %9237
  %9239 = vrot.lane.b32.xlu0 %v9106, 78
  %v9240 = vpop.permute.xlu0 %9239
  %9241 = vrot.lane.b32.xlu0 %v9107, 78
  %v9242 = vpop.permute.xlu0 %9241
  %9243 = vrot.lane.b32.xlu0 %v9108, 78
  %v9244 = vpop.permute.xlu0 %9243
  %9245 = vrot.lane.b32.xlu0 %v9109, 78
  %v9246 = vpop.permute.xlu0 %9245
  %9247 = vrot.lane.b32.xlu0 %v9110, 78
  %v9248 = vpop.permute.xlu0 %9247
  %9249 = vrot.lane.b32.xlu0 %v9111, 78
  %v9250 = vpop.permute.xlu0 %9249
  %9251 = vrot.lane.b32.xlu0 %v9112, 78
  %v9252 = vpop.permute.xlu0 %9251
  %9253 = vrot.lane.b32.xlu0 %v9113, 78
  %v9254 = vpop.permute.xlu0 %9253
  %9255 = vrot.lane.b32.xlu0 %v9114, 78
  %v9256 = vpop.permute.xlu0 %9255
  %9257 = vrot.lane.b32.xlu0 %v9115, 78
  %v9258 = vpop.permute.xlu0 %9257
  %9259 = vrot.lane.b32.xlu0 %v9116, 78
  %v9260 = vpop.permute.xlu0 %9259
  %9261 = vrot.lane.b32.xlu0 %v9117, 78
  %v9262 = vpop.permute.xlu0 %9261
  %v9263 = vsel %vm9142, %v9232, %v9234
  %v9264 = vsel %vm9142, %v9236, %v9238
  %v9265 = vsel %vm9142, %v9240, %v9242
  %v9266 = vsel %vm9142, %v9244, %v9246
  %v9267 = vsel %vm9142, %v9248, %v9250
  %v9268 = vsel %vm9142, %v9252, %v9254
  %v9269 = vsel %vm9142, %v9256, %v9258
  %v9270 = vsel %vm9142, %v9260, %v9262
  %9287 = vrot.lane.b32.xlu0 %v9159, 28
  %v9288 = vpop.permute.xlu0 %9287
  %9289 = vrot.lane.b32.xlu0 %v9160, 28
  %v9290 = vpop.permute.xlu0 %9289
  %9291 = vrot.lane.b32.xlu0 %v9161, 28
  %v9292 = vpop.permute.xlu0 %9291
  %9293 = vrot.lane.b32.xlu0 %v9162, 28
  %v9294 = vpop.permute.xlu0 %9293
  %9295 = vrot.lane.b32.xlu0 %v9163, 28
  %v9296 = vpop.permute.xlu0 %9295
  %9297 = vrot.lane.b32.xlu0 %v9164, 28
  %v9298 = vpop.permute.xlu0 %9297
  %9299 = vrot.lane.b32.xlu0 %v9165, 28
  %v9300 = vpop.permute.xlu0 %9299
  %9301 = vrot.lane.b32.xlu0 %v9166, 28
  %v9302 = vpop.permute.xlu0 %9301
  %9319 = vrot.lane.b32.xlu0 %v9207, 106
  %v9320 = vpop.permute.xlu0 %9319
  %9321 = vrot.lane.b32.xlu0 %v9208, 106
  %v9322 = vpop.permute.xlu0 %9321
  %9323 = vrot.lane.b32.xlu0 %v9209, 106
  %v9324 = vpop.permute.xlu0 %9323
  %9325 = vrot.lane.b32.xlu0 %v9210, 106
  %v9326 = vpop.permute.xlu0 %9325
  %9327 = vrot.lane.b32.xlu0 %v9211, 106
  %v9328 = vpop.permute.xlu0 %9327
  %9329 = vrot.lane.b32.xlu0 %v9212, 106
  %v9330 = vpop.permute.xlu0 %9329
  %9331 = vrot.lane.b32.xlu0 %v9213, 106
  %v9332 = vpop.permute.xlu0 %9331
  %9333 = vrot.lane.b32.xlu0 %v9214, 106
  %v9334 = vpop.permute.xlu0 %9333
  %vm9343 = vcmask 408576
  %v9344 = vsel %vm9343, %v9062, %v9263
  %v9345 = vsel %vm9343, %v9063, %v9264
  %v9346 = vsel %vm9343, %v9064, %v9265
  %v9347 = vsel %vm9343, %v9065, %v9266
  %v9348 = vsel %vm9343, %v9066, %v9267
  %v9349 = vsel %vm9343, %v9067, %v9268
  %v9350 = vsel %vm9343, %v9068, %v9269
  %v9351 = vsel %vm9343, %v9069, %v9270
  %v9352 = vsel %vm3212, %v9344, %v9288
  %v9353 = vsel %vm3212, %v9345, %v9290
  %v9354 = vsel %vm3212, %v9346, %v9292
  %v9355 = vsel %vm3212, %v9347, %v9294
  %v9356 = vsel %vm3212, %v9348, %v9296
  %v9357 = vsel %vm3212, %v9349, %v9298
  %v9358 = vsel %vm3212, %v9350, %v9300
  %v9359 = vsel %vm3212, %v9351, %v9302
  %vm9360 = vcmask 179200
  %v9361 = vsel %vm9360, %v9288, %v9320
  %v9362 = vsel %vm9360, %v9290, %v9322
  %v9363 = vsel %vm9360, %v9292, %v9324
  %v9364 = vsel %vm9360, %v9294, %v9326
  %v9365 = vsel %vm9360, %v9296, %v9328
  %v9366 = vsel %vm9360, %v9298, %v9330
  %v9367 = vsel %vm9360, %v9300, %v9332
  %v9368 = vsel %vm9360, %v9302, %v9334
  %v9385 = vrot.slane %v9352, 1
  %v9386 = vrot.slane %v9361, 1
  %v9387 = vrot.slane %v9353, 1
  %v9388 = vrot.slane %v9362, 1
  %v9389 = vrot.slane %v9354, 1
  %v9390 = vrot.slane %v9363, 1
  %v9391 = vrot.slane %v9355, 1
  %v9392 = vrot.slane %v9364, 1
  %v9393 = vrot.slane %v9356, 1
  %v9394 = vrot.slane %v9365, 1
  %v9395 = vrot.slane %v9357, 1
  %v9396 = vrot.slane %v9366, 1
  %v9397 = vrot.slane %v9358, 1
  %v9398 = vrot.slane %v9367, 1
  %v9399 = vrot.slane %v9359, 1
  %v9400 = vrot.slane %v9368, 1
  %v9417 = vmax.f32 %v9352, %v9385
  %v9418 = vmax.f32 %v9361, %v9386
  %v9419 = vmax.f32 %v9353, %v9387
  %v9420 = vmax.f32 %v9362, %v9388
  %v9421 = vmax.f32 %v9354, %v9389
  %v9422 = vmax.f32 %v9363, %v9390
  %v9423 = vmax.f32 %v9355, %v9391
  %v9424 = vmax.f32 %v9364, %v9392
  %v9425 = vmax.f32 %v9356, %v9393
  %v9426 = vmax.f32 %v9365, %v9394
  %v9427 = vmax.f32 %v9357, %v9395
  %v9428 = vmax.f32 %v9366, %v9396
  %v9429 = vmax.f32 %v9358, %v9397
  %v9430 = vmax.f32 %v9367, %v9398
  %v9431 = vmax.f32 %v9359, %v9399
  %v9432 = vmax.f32 %v9368, %v9400
  %v9449 = vrot.slane %v9419, 7
  %v9450 = vsel %vm6300, %v9449, %v9417
  %v9451 = vrot.slane %v9421, 6
  %v9452 = vsel %vm6302, %v9451, %v9450
  %v9453 = vrot.slane %v9423, 5
  %v9454 = vsel %vm6304, %v9453, %v9452
  %v9455 = vrot.slane %v9425, 4
  %v9456 = vsel %vm6306, %v9455, %v9454
  %v9457 = vrot.slane %v9427, 3
  %v9458 = vsel %vm6308, %v9457, %v9456
  %v9459 = vrot.slane %v9429, 2
  %v9460 = vsel %vm6310, %v9459, %v9458
  %v9461 = vrot.slane %v9431, 1
  %v9462 = vsel %vm6312, %v9461, %v9460
  %v9463 = vrot.slane %v9420, 7
  %v9464 = vsel %vm6300, %v9463, %v9418
  %v9465 = vrot.slane %v9422, 6
  %v9466 = vsel %vm6302, %v9465, %v9464
  %v9467 = vrot.slane %v9424, 5
  %v9468 = vsel %vm6304, %v9467, %v9466
  %v9469 = vrot.slane %v9426, 4
  %v9470 = vsel %vm6306, %v9469, %v9468
  %v9471 = vrot.slane %v9428, 3
  %v9472 = vsel %vm6308, %v9471, %v9470
  %v9473 = vrot.slane %v9430, 2
  %v9474 = vsel %vm6310, %v9473, %v9472
  %v9475 = vrot.slane %v9432, 1
  %v9476 = vsel %vm6312, %v9475, %v9474
  %v9479 = vrot.slane %v9417, 2
  %v9480 = vrot.slane %v9419, 1
  %v9481 = vsel %vm6300, %v9480, %v9479
  %v9482 = vsel %vm6302, %v9421, %v9481
  %v9483 = vrot.slane %v9423, 7
  %v9484 = vsel %vm6304, %v9483, %v9482
  %v9485 = vrot.slane %v9425, 6
  %v9486 = vsel %vm6306, %v9485, %v9484
  %v9487 = vrot.slane %v9427, 5
  %v9488 = vsel %vm6308, %v9487, %v9486
  %v9489 = vrot.slane %v9429, 4
  %v9490 = vsel %vm6310, %v9489, %v9488
  %v9491 = vrot.slane %v9431, 3
  %v9492 = vsel %vm6312, %v9491, %v9490
  %v9493 = vrot.slane %v9418, 2
  %v9494 = vrot.slane %v9420, 1
  %v9495 = vsel %vm6300, %v9494, %v9493
  %v9496 = vsel %vm6302, %v9422, %v9495
  %v9497 = vrot.slane %v9424, 7
  %v9498 = vsel %vm6304, %v9497, %v9496
  %v9499 = vrot.slane %v9426, 6
  %v9500 = vsel %vm6306, %v9499, %v9498
  %v9501 = vrot.slane %v9428, 5
  %v9502 = vsel %vm6308, %v9501, %v9500
  %v9503 = vrot.slane %v9430, 4
  %v9504 = vsel %vm6310, %v9503, %v9502
  %v9505 = vrot.slane %v9432, 3
  %v9506 = vsel %vm6312, %v9505, %v9504
  %9507 = vrot.lane.b32.xlu0 %v9492, 72
  %v9508 = vpop.permute.xlu0 %9507
  %9509 = vrot.lane.b32.xlu0 %v9506, 72
  %v9510 = vpop.permute.xlu0 %9509
  %v9511 = vsel %vm3336, %v9508, %v9510
  %v9515 = vrot.slane %v9417, 4
  %v9516 = vrot.slane %v9419, 3
  %v9517 = vsel %vm6300, %v9516, %v9515
  %v9518 = vrot.slane %v9421, 2
  %v9519 = vsel %vm6302, %v9518, %v9517
  %v9520 = vrot.slane %v9423, 1
  %v9521 = vsel %vm6304, %v9520, %v9519
  %v9522 = vsel %vm6306, %v9425, %v9521
  %v9523 = vrot.slane %v9427, 7
  %v9524 = vsel %vm6308, %v9523, %v9522
  %v9525 = vrot.slane %v9429, 6
  %v9526 = vsel %vm6310, %v9525, %v9524
  %v9527 = vrot.slane %v9431, 5
  %v9528 = vsel %vm6312, %v9527, %v9526
  %v9529 = vrot.slane %v9418, 4
  %v9530 = vrot.slane %v9420, 3
  %v9531 = vsel %vm6300, %v9530, %v9529
  %v9532 = vrot.slane %v9422, 2
  %v9533 = vsel %vm6302, %v9532, %v9531
  %v9534 = vrot.slane %v9424, 1
  %v9535 = vsel %vm6304, %v9534, %v9533
  %v9536 = vsel %vm6306, %v9426, %v9535
  %v9537 = vrot.slane %v9428, 7
  %v9538 = vsel %vm6308, %v9537, %v9536
  %v9539 = vrot.slane %v9430, 6
  %v9540 = vsel %vm6310, %v9539, %v9538
  %v9541 = vrot.slane %v9432, 5
  %v9542 = vsel %vm6312, %v9541, %v9540
  %9543 = vrot.lane.b32.xlu0 %v9528, 16
  %v9544 = vpop.permute.xlu0 %9543
  %9545 = vrot.lane.b32.xlu0 %v9542, 16
  %v9546 = vpop.permute.xlu0 %9545
  %vm9547 = vcmask 130048
  %v9548 = vsel %vm9547, %v9544, %v9546
  %v9551 = vrot.slane %v9417, 6
  %v9552 = vrot.slane %v9419, 5
  %v9553 = vsel %vm6300, %v9552, %v9551
  %v9554 = vrot.slane %v9421, 4
  %v9555 = vsel %vm6302, %v9554, %v9553
  %v9556 = vrot.slane %v9423, 3
  %v9557 = vsel %vm6304, %v9556, %v9555
  %v9558 = vrot.slane %v9425, 2
  %v9559 = vsel %vm6306, %v9558, %v9557
  %v9560 = vrot.slane %v9427, 1
  %v9561 = vsel %vm6308, %v9560, %v9559
  %v9562 = vsel %vm6310, %v9429, %v9561
  %v9563 = vrot.slane %v9431, 7
  %v9564 = vsel %vm6312, %v9563, %v9562
  %v9565 = vrot.slane %v9418, 6
  %v9566 = vrot.slane %v9420, 5
  %v9567 = vsel %vm6300, %v9566, %v9565
  %v9568 = vrot.slane %v9422, 4
  %v9569 = vsel %vm6302, %v9568, %v9567
  %v9570 = vrot.slane %v9424, 3
  %v9571 = vsel %vm6304, %v9570, %v9569
  %v9572 = vrot.slane %v9426, 2
  %v9573 = vsel %vm6306, %v9572, %v9571
  %v9574 = vrot.slane %v9428, 1
  %v9575 = vsel %vm6308, %v9574, %v9573
  %v9576 = vsel %vm6310, %v9430, %v9575
  %v9577 = vrot.slane %v9432, 7
  %v9578 = vsel %vm6312, %v9577, %v9576
  %9579 = vrot.lane.b32.xlu0 %v9564, 88
  %v9580 = vpop.permute.xlu0 %9579
  %9581 = vrot.lane.b32.xlu0 %v9578, 88
  %v9582 = vpop.permute.xlu0 %9581
  %vm9583 = vcmask 719872
  %v9584 = vsel %vm9583, %v9580, %v9582
  %v9587 = vsel %vm3336, %v9476, %v9508
  %v9588 = vsel %vm9547, %v9510, %v9544
  %v9589 = vsel %vm9583, %v9548, %v9580
  %v9590 = vld [vmem:[%s5] sm:$0xff]
  %v9591 = vld [vmem:[%s5 + $0x8] sm:$0xff]
  %v9592 = vld [vmem:[%s5 + $0x10] sm:$0xff]
  %v9593 = vld [vmem:[%s5 + $0x18] sm:$0xff]
  %v9594 = vld [vmem:[%s5 + $0x20] sm:$0xff]
  %v9595 = vld [vmem:[%s5 + $0x28] sm:$0xff]
  %v9596 = vld [vmem:[%s5 + $0x30] sm:$0xff]
  %v9597 = vld [vmem:[%s5 + $0x38] sm:$0xff]
  %v9598 = vld [vmem:[%s5 + $0x40] sm:$0xff]
  %v9599 = vld [vmem:[%s5 + $0x48] sm:$0xff]
  %v9600 = vld [vmem:[%s5 + $0x50] sm:$0xff]
  %v9601 = vld [vmem:[%s5 + $0x58] sm:$0xff]
  %v9602 = vld [vmem:[%s5 + $0x60] sm:$0xff]
  %v9603 = vld [vmem:[%s5 + $0x68] sm:$0xff]
  %v9604 = vld [vmem:[%s5 + $0x70] sm:$0xff]
  %v9605 = vld [vmem:[%s5 + $0x78] sm:$0xff]
  %v9606 = vld [vmem:[%s5 + $0x80] sm:$0xff]
  %v9607 = vld [vmem:[%s5 + $0x88] sm:$0xff]
  %v9608 = vld [vmem:[%s5 + $0x90] sm:$0xff]
  %v9609 = vld [vmem:[%s5 + $0x98] sm:$0xff]
  %v9610 = vld [vmem:[%s5 + $0xa0] sm:$0xff]
  %v9611 = vld [vmem:[%s5 + $0xa8] sm:$0xff]
  %v9612 = vld [vmem:[%s5 + $0xb0] sm:$0xff]
  %v9613 = vld [vmem:[%s5 + $0xb8] sm:$0xff]
  %v9614 = vld [vmem:[%s5 + $0xc0] sm:$0xff]
  %v9615 = vld [vmem:[%s5 + $0xc8] sm:$0xff]
  %v9616 = vld [vmem:[%s5 + $0xd0] sm:$0xff]
  %v9617 = vld [vmem:[%s5 + $0xd8] sm:$0xff]
  %v9618 = vld [vmem:[%s5 + $0xe0] sm:$0xff]
  %v9619 = vld [vmem:[%s5 + $0xe8] sm:$0xff]
  %v9620 = vld [vmem:[%s5 + $0xf0] sm:$0xff]
  %v9621 = vld [vmem:[%s5 + $0xf8] sm:$0xff]
  %v9622 = vld [vmem:[%s5 + $0x100] sm:$0xff]
  %v9623 = vld [vmem:[%s5 + $0x108] sm:$0xff]
  %v9624 = vld [vmem:[%s5 + $0x110] sm:$0xff]
  %v9625 = vld [vmem:[%s5 + $0x118] sm:$0xff]
  %v9626 = vld [vmem:[%s5 + $0x120] sm:$0xff]
  %v9627 = vld [vmem:[%s5 + $0x128] sm:$0xff]
  %v9628 = vld [vmem:[%s5 + $0x130] sm:$0xff]
  %v9629 = vld [vmem:[%s5 + $0x138] sm:$0xff]
  %v9630 = vld [vmem:[%s5 + $0x140] sm:$0xff]
  %v9631 = vld [vmem:[%s5 + $0x148] sm:$0xff]
  %v9632 = vld [vmem:[%s5 + $0x150] sm:$0xff]
  %v9633 = vld [vmem:[%s5 + $0x158] sm:$0xff]
  %v9634 = vld [vmem:[%s5 + $0x160] sm:$0xff]
  %v9635 = vld [vmem:[%s5 + $0x168] sm:$0xff]
  %v9636 = vld [vmem:[%s5 + $0x170] sm:$0xff]
  %v9637 = vld [vmem:[%s5 + $0x178] sm:$0xff]
  %v9638 = vld [vmem:[%s5 + $0x180] sm:$0xff]
  %v9639 = vld [vmem:[%s5 + $0x188] sm:$0xff]
  %v9640 = vld [vmem:[%s5 + $0x190] sm:$0xff]
  %v9641 = vld [vmem:[%s5 + $0x198] sm:$0xff]
  %v9642 = vld [vmem:[%s5 + $0x1a0] sm:$0xff]
  %v9643 = vld [vmem:[%s5 + $0x1a8] sm:$0xff]
  %v9644 = vld [vmem:[%s5 + $0x1b0] sm:$0xff]
  %v9645 = vld [vmem:[%s5 + $0x1b8] sm:$0xff]
  %v9646 = vld [vmem:[%s5 + $0x1c0] sm:$0xff]
  %v9647 = vld [vmem:[%s5 + $0x1c8] sm:$0xff]
  %v9648 = vld [vmem:[%s5 + $0x1d0] sm:$0xff]
  %v9649 = vld [vmem:[%s5 + $0x1d8] sm:$0xff]
  %v9650 = vld [vmem:[%s5 + $0x1e0] sm:$0xff]
  %v9651 = vld [vmem:[%s5 + $0x1e8] sm:$0xff]
  %v9652 = vld [vmem:[%s5 + $0x1f0] sm:$0xff]
  %v9653 = vld [vmem:[%s5 + $0x1f8] sm:$0xff]
  %v9654 = vld [vmem:[%s5 + $0x200] sm:$0xff]
  %v9655 = vld [vmem:[%s5 + $0x208] sm:$0xff]
  %v9656 = vld [vmem:[%s5 + $0x210] sm:$0xff]
  %v9657 = vld [vmem:[%s5 + $0x218] sm:$0xff]
  %v9658 = vld [vmem:[%s5 + $0x220] sm:$0xff]
  %v9659 = vld [vmem:[%s5 + $0x228] sm:$0xff]
  %v9660 = vld [vmem:[%s5 + $0x230] sm:$0xff]
  %v9661 = vld [vmem:[%s5 + $0x238] sm:$0xff]
  %v9662 = vld [vmem:[%s5 + $0x240] sm:$0xff]
  %v9663 = vld [vmem:[%s5 + $0x248] sm:$0xff]
  %v9664 = vld [vmem:[%s5 + $0x250] sm:$0xff]
  %v9665 = vld [vmem:[%s5 + $0x258] sm:$0xff]
  %v9666 = vld [vmem:[%s5 + $0x260] sm:$0xff]
  %v9667 = vld [vmem:[%s5 + $0x268] sm:$0xff]
  %v9668 = vld [vmem:[%s5 + $0x270] sm:$0xff]
  %v9669 = vld [vmem:[%s5 + $0x278] sm:$0xff]
  %v9670 = vld [vmem:[%s5 + $0x280] sm:$0xff]
  %v9671 = vld [vmem:[%s5 + $0x288] sm:$0xff]
  %v9672 = vld [vmem:[%s5 + $0x290] sm:$0xff]
  %v9673 = vld [vmem:[%s5 + $0x298] sm:$0xff]
  %v9674 = vld [vmem:[%s5 + $0x2a0] sm:$0xff]
  %v9675 = vld [vmem:[%s5 + $0x2a8] sm:$0xff]
  %v9676 = vld [vmem:[%s5 + $0x2b0] sm:$0xff]
  %v9677 = vld [vmem:[%s5 + $0x2b8] sm:$0xff]
  %v9678 = vld [vmem:[%s5 + $0x2c0] sm:$0xff]
  %v9679 = vld [vmem:[%s5 + $0x2c8] sm:$0xff]
  %v9680 = vld [vmem:[%s5 + $0x2d0] sm:$0xff]
  %v9681 = vld [vmem:[%s5 + $0x2d8] sm:$0xff]
  %v9682 = vld [vmem:[%s5 + $0x2e0] sm:$0xff]
  %v9683 = vld [vmem:[%s5 + $0x2e8] sm:$0xff]
  %v9684 = vld [vmem:[%s5 + $0x2f0] sm:$0xff]
  %v9685 = vld [vmem:[%s5 + $0x2f8] sm:$0xff]
  %v9686 = vld [vmem:[%s5 + $0x300] sm:$0xff]
  %v9687 = vld [vmem:[%s5 + $0x308] sm:$0xff]
  %v9688 = vld [vmem:[%s5 + $0x310] sm:$0xff]
  %v9689 = vld [vmem:[%s5 + $0x318] sm:$0xff]
  %v9690 = vld [vmem:[%s5 + $0x320] sm:$0xff]
  %v9691 = vld [vmem:[%s5 + $0x328] sm:$0xff]
  %v9692 = vld [vmem:[%s5 + $0x330] sm:$0xff]
  %v9693 = vld [vmem:[%s5 + $0x338] sm:$0xff]
  %v9694 = vld [vmem:[%s5 + $0x340] sm:$0xff]
  %v9695 = vld [vmem:[%s5 + $0x348] sm:$0xff]
  %v9696 = vld [vmem:[%s5 + $0x350] sm:$0xff]
  %v9697 = vld [vmem:[%s5 + $0x358] sm:$0xff]
  %v9698 = vld [vmem:[%s5 + $0x360] sm:$0xff]
  %v9699 = vld [vmem:[%s5 + $0x368] sm:$0xff]
  %v9700 = vld [vmem:[%s5 + $0x370] sm:$0xff]
  %v9701 = vld [vmem:[%s5 + $0x378] sm:$0xff]
  %v9702 = vld [vmem:[%s5 + $0x380] sm:$0xff]
  %v9703 = vld [vmem:[%s5 + $0x388] sm:$0xff]
  %v9704 = vld [vmem:[%s5 + $0x390] sm:$0xff]
  %v9705 = vld [vmem:[%s5 + $0x398] sm:$0xff]
  %v9706 = vld [vmem:[%s5 + $0x3a0] sm:$0xff]
  %v9707 = vld [vmem:[%s5 + $0x3a8] sm:$0xff]
  %v9708 = vld [vmem:[%s5 + $0x3b0] sm:$0xff]
  %v9709 = vld [vmem:[%s5 + $0x3b8] sm:$0xff]
  %v9710 = vld [vmem:[%s5 + $0x3c0] sm:$0xff]
  %v9711 = vld [vmem:[%s5 + $0x3c8] sm:$0xff]
  %v9712 = vld [vmem:[%s5 + $0x3d0] sm:$0xff]
  %v9713 = vld [vmem:[%s5 + $0x3d8] sm:$0xff]
  %v9714 = vld [vmem:[%s5 + $0x3e0] sm:$0xff]
  %v9715 = vld [vmem:[%s5 + $0x3e8] sm:$0xff]
  %v9716 = vld [vmem:[%s5 + $0x3f0] sm:$0xff]
  %v9717 = vld [vmem:[%s5 + $0x3f8] sm:$0xff]
  %v9718 = vld [vmem:[%s5 + $0x400] sm:$0xff]
  %v9719 = vld [vmem:[%s5 + $0x408] sm:$0xff]
  %v9720 = vld [vmem:[%s5 + $0x410] sm:$0xff]
  %v9721 = vld [vmem:[%s5 + $0x418] sm:$0xff]
  %v9722 = vld [vmem:[%s5 + $0x420] sm:$0xff]
  %v9723 = vld [vmem:[%s5 + $0x428] sm:$0xff]
  %v9724 = vld [vmem:[%s5 + $0x430] sm:$0xff]
  %v9725 = vld [vmem:[%s5 + $0x438] sm:$0xff]
  %v9726 = vld [vmem:[%s5 + $0x440] sm:$0xff]
  %v9727 = vld [vmem:[%s5 + $0x448] sm:$0xff]
  %v9728 = vld [vmem:[%s5 + $0x450] sm:$0xff]
  %v9729 = vld [vmem:[%s5 + $0x458] sm:$0xff]
  %v9730 = vld [vmem:[%s5 + $0x460] sm:$0xff]
  %v9731 = vld [vmem:[%s5 + $0x468] sm:$0xff]
  %v9732 = vld [vmem:[%s5 + $0x470] sm:$0xff]
  %v9733 = vld [vmem:[%s5 + $0x478] sm:$0xff]
  %v9734 = vld [vmem:[%s5 + $0x480] sm:$0xff]
  %v9735 = vld [vmem:[%s5 + $0x488] sm:$0xff]
  %v9736 = vld [vmem:[%s5 + $0x490] sm:$0xff]
  %v9737 = vld [vmem:[%s5 + $0x498] sm:$0xff]
  %v9738 = vld [vmem:[%s5 + $0x4a0] sm:$0xff]
  %v9739 = vld [vmem:[%s5 + $0x4a8] sm:$0xff]
  %v9740 = vld [vmem:[%s5 + $0x4b0] sm:$0xff]
  %v9741 = vld [vmem:[%s5 + $0x4b8] sm:$0xff]
  %v9742 = vld [vmem:[%s5 + $0x4c0] sm:$0xff]
  %v9743 = vld [vmem:[%s5 + $0x4c8] sm:$0xff]
  %v9744 = vld [vmem:[%s5 + $0x4d0] sm:$0xff]
  %v9745 = vld [vmem:[%s5 + $0x4d8] sm:$0xff]
  %v9746 = vld [vmem:[%s5 + $0x4e0] sm:$0xff]
  %v9747 = vld [vmem:[%s5 + $0x4e8] sm:$0xff]
  %v9748 = vld [vmem:[%s5 + $0x4f0] sm:$0xff]
  %v9749 = vld [vmem:[%s5 + $0x4f8] sm:$0xff]
  %v9750 = vld [vmem:[%s5 + $0x500] sm:$0xff]
  %v9751 = vld [vmem:[%s5 + $0x508] sm:$0xff]
  %v9752 = vld [vmem:[%s5 + $0x510] sm:$0xff]
  %v9753 = vld [vmem:[%s5 + $0x518] sm:$0xff]
  %v9754 = vld [vmem:[%s5 + $0x520] sm:$0xff]
  %v9755 = vld [vmem:[%s5 + $0x528] sm:$0xff]
  %v9756 = vld [vmem:[%s5 + $0x530] sm:$0xff]
  %v9757 = vld [vmem:[%s5 + $0x538] sm:$0xff]
  %v9758 = vld [vmem:[%s5 + $0x540] sm:$0xff]
  %v9759 = vld [vmem:[%s5 + $0x548] sm:$0xff]
  %v9760 = vld [vmem:[%s5 + $0x550] sm:$0xff]
  %v9761 = vld [vmem:[%s5 + $0x558] sm:$0xff]
  %v9762 = vld [vmem:[%s5 + $0x560] sm:$0xff]
  %v9763 = vld [vmem:[%s5 + $0x568] sm:$0xff]
  %v9764 = vld [vmem:[%s5 + $0x570] sm:$0xff]
  %v9765 = vld [vmem:[%s5 + $0x578] sm:$0xff]
  %v9766 = vld [vmem:[%s5 + $0x580] sm:$0xff]
  %v9767 = vld [vmem:[%s5 + $0x588] sm:$0xff]
  %v9768 = vld [vmem:[%s5 + $0x590] sm:$0xff]
  %v9769 = vld [vmem:[%s5 + $0x598] sm:$0xff]
  %v9770 = vld [vmem:[%s5 + $0x5a0] sm:$0xff]
  %v9771 = vld [vmem:[%s5 + $0x5a8] sm:$0xff]
  %v9772 = vld [vmem:[%s5 + $0x5b0] sm:$0xff]
  %v9773 = vld [vmem:[%s5 + $0x5b8] sm:$0xff]
  %v9774 = vld [vmem:[%s5 + $0x5c0] sm:$0xff]
  %v9775 = vld [vmem:[%s5 + $0x5c8] sm:$0xff]
  %v9776 = vld [vmem:[%s5 + $0x5d0] sm:$0xff]
  %v9777 = vld [vmem:[%s5 + $0x5d8] sm:$0xff]
  %v9778 = vld [vmem:[%s5 + $0x5e0] sm:$0xff]
  %v9779 = vld [vmem:[%s5 + $0x5e8] sm:$0xff]
  %v9780 = vld [vmem:[%s5 + $0x5f0] sm:$0xff]
  %v9781 = vld [vmem:[%s5 + $0x5f8] sm:$0xff]
  %v9782 = vld [vmem:[%s5 + $0x600] sm:$0xff]
  %v9783 = vld [vmem:[%s5 + $0x608] sm:$0xff]
  %v9784 = vld [vmem:[%s5 + $0x610] sm:$0xff]
  %v9785 = vld [vmem:[%s5 + $0x618] sm:$0xff]
  %v9786 = vld [vmem:[%s5 + $0x620] sm:$0xff]
  %v9787 = vld [vmem:[%s5 + $0x628] sm:$0xff]
  %v9788 = vld [vmem:[%s5 + $0x630] sm:$0xff]
  %v9789 = vld [vmem:[%s5 + $0x638] sm:$0xff]
  %v9790 = vld [vmem:[%s5 + $0x640] sm:$0xff]
  %v9791 = vld [vmem:[%s5 + $0x648] sm:$0xff]
  %v9792 = vld [vmem:[%s5 + $0x650] sm:$0xff]
  %v9793 = vld [vmem:[%s5 + $0x658] sm:$0xff]
  %v9794 = vld [vmem:[%s5 + $0x660] sm:$0xff]
  %v9795 = vld [vmem:[%s5 + $0x668] sm:$0xff]
  %v9796 = vld [vmem:[%s5 + $0x670] sm:$0xff]
  %v9797 = vld [vmem:[%s5 + $0x678] sm:$0xff]
  %v9798 = vld [vmem:[%s5 + $0x680] sm:$0xff]
  %v9799 = vld [vmem:[%s5 + $0x688] sm:$0xff]
  %v9800 = vld [vmem:[%s5 + $0x690] sm:$0xff]
  %v9801 = vld [vmem:[%s5 + $0x698] sm:$0xff]
  %v9802 = vld [vmem:[%s5 + $0x6a0] sm:$0xff]
  %v9803 = vld [vmem:[%s5 + $0x6a8] sm:$0xff]
  %v9804 = vld [vmem:[%s5 + $0x6b0] sm:$0xff]
  %v9805 = vld [vmem:[%s5 + $0x6b8] sm:$0xff]
  %v9806 = vld [vmem:[%s5 + $0x6c0] sm:$0xff]
  %v9807 = vld [vmem:[%s5 + $0x6c8] sm:$0xff]
  %v9808 = vld [vmem:[%s5 + $0x6d0] sm:$0xff]
  %v9809 = vld [vmem:[%s5 + $0x6d8] sm:$0xff]
  %v9810 = vld [vmem:[%s5 + $0x6e0] sm:$0xff]
  %v9811 = vld [vmem:[%s5 + $0x6e8] sm:$0xff]
  %v9812 = vld [vmem:[%s5 + $0x6f0] sm:$0xff]
  %v9813 = vld [vmem:[%s5 + $0x6f8] sm:$0xff]
  %v9814 = vld [vmem:[%s5 + $0x700] sm:$0xff]
  %v9815 = vld [vmem:[%s5 + $0x708] sm:$0xff]
  %v9816 = vld [vmem:[%s5 + $0x710] sm:$0xff]
  %v9817 = vld [vmem:[%s5 + $0x718] sm:$0xff]
  %v9818 = vld [vmem:[%s5 + $0x720] sm:$0xff]
  %v9819 = vld [vmem:[%s5 + $0x728] sm:$0xff]
  %v9820 = vld [vmem:[%s5 + $0x730] sm:$0xff]
  %v9821 = vld [vmem:[%s5 + $0x738] sm:$0xff]
  %v9822 = vld [vmem:[%s5 + $0x740] sm:$0xff]
  %v9823 = vld [vmem:[%s5 + $0x748] sm:$0xff]
  %v9824 = vld [vmem:[%s5 + $0x750] sm:$0xff]
  %v9825 = vld [vmem:[%s5 + $0x758] sm:$0xff]
  %v9826 = vld [vmem:[%s5 + $0x760] sm:$0xff]
  %v9827 = vld [vmem:[%s5 + $0x768] sm:$0xff]
  %v9828 = vld [vmem:[%s5 + $0x770] sm:$0xff]
  %v9829 = vld [vmem:[%s5 + $0x778] sm:$0xff]
  %v9830 = vld [vmem:[%s5 + $0x780] sm:$0xff]
  %v9831 = vld [vmem:[%s5 + $0x788] sm:$0xff]
  %v9832 = vld [vmem:[%s5 + $0x790] sm:$0xff]
  %v9833 = vld [vmem:[%s5 + $0x798] sm:$0xff]
  %v9834 = vld [vmem:[%s5 + $0x7a0] sm:$0xff]
  %v9835 = vld [vmem:[%s5 + $0x7a8] sm:$0xff]
  %v9836 = vld [vmem:[%s5 + $0x7b0] sm:$0xff]
  %v9837 = vld [vmem:[%s5 + $0x7b8] sm:$0xff]
  %v9838 = vld [vmem:[%s5 + $0x7c0] sm:$0xff]
  %v9839 = vld [vmem:[%s5 + $0x7c8] sm:$0xff]
  %v9840 = vld [vmem:[%s5 + $0x7d0] sm:$0xff]
  %v9841 = vld [vmem:[%s5 + $0x7d8] sm:$0xff]
  %v9842 = vld [vmem:[%s5 + $0x7e0] sm:$0xff]
  %v9843 = vld [vmem:[%s5 + $0x7e8] sm:$0xff]
  %v9844 = vld [vmem:[%s5 + $0x7f0] sm:$0xff]
  %v9845 = vld [vmem:[%s5 + $0x7f8] sm:$0xff]
  %v9846 = vld [vmem:[%s5 + $0x800] sm:$0xff]
  %v9847 = vld [vmem:[%s5 + $0x808] sm:$0xff]
  %v9848 = vld [vmem:[%s5 + $0x810] sm:$0xff]
  %v9849 = vld [vmem:[%s5 + $0x818] sm:$0xff]
  %v9850 = vld [vmem:[%s5 + $0x820] sm:$0xff]
  %v9851 = vld [vmem:[%s5 + $0x828] sm:$0xff]
  %v9852 = vld [vmem:[%s5 + $0x830] sm:$0xff]
  %v9853 = vld [vmem:[%s5 + $0x838] sm:$0xff]
  %v9854 = vld [vmem:[%s5 + $0x840] sm:$0xff]
  %v9855 = vld [vmem:[%s5 + $0x848] sm:$0xff]
  %v9856 = vld [vmem:[%s5 + $0x850] sm:$0xff]
  %v9857 = vld [vmem:[%s5 + $0x858] sm:$0xff]
  %v9858 = vld [vmem:[%s5 + $0x860] sm:$0xff]
  %v9859 = vld [vmem:[%s5 + $0x868] sm:$0xff]
  %v9860 = vld [vmem:[%s5 + $0x870] sm:$0xff]
  %v9861 = vld [vmem:[%s5 + $0x878] sm:$0xff]
  %v9862 = vld [vmem:[%s5 + $0x880] sm:$0xff]
  %v9863 = vld [vmem:[%s5 + $0x888] sm:$0xff]
  %v9864 = vld [vmem:[%s5 + $0x890] sm:$0xff]
  %v9865 = vld [vmem:[%s5 + $0x898] sm:$0xff]
  %v9866 = vld [vmem:[%s5 + $0x8a0] sm:$0xff]
  %v9867 = vld [vmem:[%s5 + $0x8a8] sm:$0xff]
  %v9868 = vld [vmem:[%s5 + $0x8b0] sm:$0xff]
  %v9869 = vld [vmem:[%s5 + $0x8b8] sm:$0xff]
  %v9870 = vld [vmem:[%s5 + $0x8c0] sm:$0xff]
  %v9871 = vld [vmem:[%s5 + $0x8c8] sm:$0xff]
  %v9872 = vld [vmem:[%s5 + $0x8d0] sm:$0xff]
  %v9873 = vld [vmem:[%s5 + $0x8d8] sm:$0xff]
  %v9874 = vld [vmem:[%s5 + $0x8e0] sm:$0xff]
  %v9875 = vld [vmem:[%s5 + $0x8e8] sm:$0xff]
  %v9876 = vld [vmem:[%s5 + $0x8f0] sm:$0xff]
  %v9877 = vld [vmem:[%s5 + $0x8f8] sm:$0xff]
  %v9878 = vld [vmem:[%s5 + $0x900] sm:$0xff]
  %v9879 = vld [vmem:[%s5 + $0x908] sm:$0xff]
  %v9880 = vld [vmem:[%s5 + $0x910] sm:$0xff]
  %v9881 = vld [vmem:[%s5 + $0x918] sm:$0xff]
  %v9882 = vld [vmem:[%s5 + $0x920] sm:$0xff]
  %v9883 = vld [vmem:[%s5 + $0x928] sm:$0xff]
  %v9884 = vld [vmem:[%s5 + $0x930] sm:$0xff]
  %v9885 = vld [vmem:[%s5 + $0x938] sm:$0xff]
  %v9886 = vld [vmem:[%s5 + $0x940] sm:$0xff]
  %v9887 = vld [vmem:[%s5 + $0x948] sm:$0xff]
  %v9888 = vld [vmem:[%s5 + $0x950] sm:$0xff]
  %v9889 = vld [vmem:[%s5 + $0x958] sm:$0xff]
  %v9890 = vld [vmem:[%s5 + $0x960] sm:$0xff]
  %v9891 = vld [vmem:[%s5 + $0x968] sm:$0xff]
  %v9892 = vld [vmem:[%s5 + $0x970] sm:$0xff]
  %v9893 = vld [vmem:[%s5 + $0x978] sm:$0xff]
  %v9894 = vld [vmem:[%s5 + $0x980] sm:$0xff]
  %v9895 = vld [vmem:[%s5 + $0x988] sm:$0xff]
  %v9896 = vld [vmem:[%s5 + $0x990] sm:$0xff]
  %v9897 = vld [vmem:[%s5 + $0x998] sm:$0xff]
  %v9898 = vld [vmem:[%s5 + $0x9a0] sm:$0xff]
  %v9899 = vld [vmem:[%s5 + $0x9a8] sm:$0xff]
  %v9900 = vld [vmem:[%s5 + $0x9b0] sm:$0xff]
  %v9901 = vld [vmem:[%s5 + $0x9b8] sm:$0xff]
  %v9902 = vld [vmem:[%s5 + $0x9c0] sm:$0xff]
  %v9903 = vld [vmem:[%s5 + $0x9c8] sm:$0xff]
  %v9904 = vld [vmem:[%s5 + $0x9d0] sm:$0xff]
  %v9905 = vld [vmem:[%s5 + $0x9d8] sm:$0xff]
  %v9906 = vld [vmem:[%s5 + $0x9e0] sm:$0xff]
  %v9907 = vld [vmem:[%s5 + $0x9e8] sm:$0xff]
  %v9908 = vld [vmem:[%s5 + $0x9f0] sm:$0xff]
  %v9909 = vld [vmem:[%s5 + $0x9f8] sm:$0xff]
  %v9910 = vld [vmem:[%s5 + $0xa00] sm:$0xff]
  %v9911 = vld [vmem:[%s5 + $0xa08] sm:$0xff]
  %v9912 = vld [vmem:[%s5 + $0xa10] sm:$0xff]
  %v9913 = vld [vmem:[%s5 + $0xa18] sm:$0xff]
  %v9914 = vld [vmem:[%s5 + $0xa20] sm:$0xff]
  %v9915 = vld [vmem:[%s5 + $0xa28] sm:$0xff]
  %v9916 = vld [vmem:[%s5 + $0xa30] sm:$0xff]
  %v9917 = vld [vmem:[%s5 + $0xa38] sm:$0xff]
  %v9918 = vld [vmem:[%s5 + $0xa40] sm:$0xff]
  %v9919 = vld [vmem:[%s5 + $0xa48] sm:$0xff]
  %v9920 = vld [vmem:[%s5 + $0xa50] sm:$0xff]
  %v9921 = vld [vmem:[%s5 + $0xa58] sm:$0xff]
  %v9922 = vld [vmem:[%s5 + $0xa60] sm:$0xff]
  %v9923 = vld [vmem:[%s5 + $0xa68] sm:$0xff]
  %v9924 = vld [vmem:[%s5 + $0xa70] sm:$0xff]
  %v9925 = vld [vmem:[%s5 + $0xa78] sm:$0xff]
  %v9926 = vld [vmem:[%s5 + $0xa80] sm:$0xff]
  %v9927 = vld [vmem:[%s5 + $0xa88] sm:$0xff]
  %v9928 = vld [vmem:[%s5 + $0xa90] sm:$0xff]
  %v9929 = vld [vmem:[%s5 + $0xa98] sm:$0xff]
  %v9930 = vld [vmem:[%s5 + $0xaa0] sm:$0xff]
  %v9931 = vld [vmem:[%s5 + $0xaa8] sm:$0xff]
  %v9932 = vld [vmem:[%s5 + $0xab0] sm:$0xff]
  %v9933 = vld [vmem:[%s5 + $0xab8] sm:$0xff]
  %v9934 = vld [vmem:[%s5 + $0xac0] sm:$0xff]
  %v9935 = vld [vmem:[%s5 + $0xac8] sm:$0xff]
  %v9936 = vld [vmem:[%s5 + $0xad0] sm:$0xff]
  %v9937 = vld [vmem:[%s5 + $0xad8] sm:$0xff]
  %v9938 = vld [vmem:[%s5 + $0xae0] sm:$0xff]
  %v9939 = vld [vmem:[%s5 + $0xae8] sm:$0xff]
  %v9940 = vld [vmem:[%s5 + $0xaf0] sm:$0xff]
  %v9941 = vld [vmem:[%s5 + $0xaf8] sm:$0xff]
  %v9942 = vld [vmem:[%s5 + $0xb00] sm:$0xff]
  %v9943 = vld [vmem:[%s5 + $0xb08] sm:$0xff]
  %v9944 = vld [vmem:[%s5 + $0xb10] sm:$0xff]
  %v9945 = vld [vmem:[%s5 + $0xb18] sm:$0xff]
  %v9946 = vld [vmem:[%s5 + $0xb20] sm:$0xff]
  %v9947 = vld [vmem:[%s5 + $0xb28] sm:$0xff]
  %v9948 = vld [vmem:[%s5 + $0xb30] sm:$0xff]
  %v9949 = vld [vmem:[%s5 + $0xb38] sm:$0xff]
  %v9950 = vld [vmem:[%s5 + $0xb40] sm:$0xff]
  %v9951 = vld [vmem:[%s5 + $0xb48] sm:$0xff]
  %v9952 = vld [vmem:[%s5 + $0xb50] sm:$0xff]
  %v9953 = vld [vmem:[%s5 + $0xb58] sm:$0xff]
  %v9954 = vld [vmem:[%s5 + $0xb60] sm:$0xff]
  %v9955 = vld [vmem:[%s5 + $0xb68] sm:$0xff]
  %v9956 = vld [vmem:[%s5 + $0xb70] sm:$0xff]
  %v9957 = vld [vmem:[%s5 + $0xb78] sm:$0xff]
  %v9958 = vld [vmem:[%s5 + $0xb80] sm:$0xff]
  %v9959 = vld [vmem:[%s5 + $0xb88] sm:$0xff]
  %v9960 = vld [vmem:[%s5 + $0xb90] sm:$0xff]
  %v9961 = vld [vmem:[%s5 + $0xb98] sm:$0xff]
  %v9962 = vld [vmem:[%s5 + $0xba0] sm:$0xff]
  %v9963 = vld [vmem:[%s5 + $0xba8] sm:$0xff]
  %v9964 = vld [vmem:[%s5 + $0xbb0] sm:$0xff]
  %v9965 = vld [vmem:[%s5 + $0xbb8] sm:$0xff]
  %v9966 = vld [vmem:[%s5 + $0xbc0] sm:$0xff]
  %v9967 = vld [vmem:[%s5 + $0xbc8] sm:$0xff]
  %v9968 = vld [vmem:[%s5 + $0xbd0] sm:$0xff]
  %v9969 = vld [vmem:[%s5 + $0xbd8] sm:$0xff]
  %v9970 = vld [vmem:[%s5 + $0xbe0] sm:$0xff]
  %v9971 = vld [vmem:[%s5 + $0xbe8] sm:$0xff]
  %v9972 = vld [vmem:[%s5 + $0xbf0] sm:$0xff]
  %v9973 = vld [vmem:[%s5 + $0xbf8] sm:$0xff]
  %v9974 = vld [vmem:[%s5 + $0xc00] sm:$0xff]
  %v9975 = vld [vmem:[%s5 + $0xc08] sm:$0xff]
  %v9976 = vld [vmem:[%s5 + $0xc10] sm:$0xff]
  %v9977 = vld [vmem:[%s5 + $0xc18] sm:$0xff]
  %v9978 = vld [vmem:[%s5 + $0xc20] sm:$0xff]
  %v9979 = vld [vmem:[%s5 + $0xc28] sm:$0xff]
  %v9980 = vld [vmem:[%s5 + $0xc30] sm:$0xff]
  %v9981 = vld [vmem:[%s5 + $0xc38] sm:$0xff]
  %v9982 = vld [vmem:[%s5 + $0xc40] sm:$0xff]
  %v9983 = vld [vmem:[%s5 + $0xc48] sm:$0xff]
  %v9984 = vld [vmem:[%s5 + $0xc50] sm:$0xff]
  %v9985 = vld [vmem:[%s5 + $0xc58] sm:$0xff]
  %v9986 = vld [vmem:[%s5 + $0xc60] sm:$0xff]
  %v9987 = vld [vmem:[%s5 + $0xc68] sm:$0xff]
  %v9988 = vld [vmem:[%s5 + $0xc70] sm:$0xff]
  %v9989 = vld [vmem:[%s5 + $0xc78] sm:$0xff]
  %v9990 = vld [vmem:[%s6] sm:$0xf]
  %v9992 = vlaneseq
  %v9993 = vshrl.u32 %v9992, 7
  %v9994 = vsub.s32 0, %v9993
  %v9995 = vrot.slane %v9990, %v9994
  %v9996 = vlaneseq
  %v9997 = vshrl.u32 %v9996, 7
  %v9998 = vsub.s32 1, %v9997
  %v9999 = vrot.slane %v9990, %v9998
  %v10000 = vlaneseq
  %v10001 = vshrl.u32 %v10000, 7
  %v10002 = vsub.s32 2, %v10001
  %v10003 = vrot.slane %v9990, %v10002
  %v10004 = vlaneseq
  %v10005 = vshrl.u32 %v10004, 7
  %v10006 = vsub.s32 3, %v10005
  %v10007 = vrot.slane %v9990, %v10006
  %v10012 = vsel %vm3286, %v9582, 0
  %10014 = vmatprep.subr.mxu0 %v9591
  %10015 = vmatpush1.msra.mxu0 %v9590
  %10016 = vmatprep.subr.mxu0 %v9595
  %10017 = vmatpush1.msra.mxu0 %v9594
  %10018 = vmatprep.subr.mxu0 %v9599
  %10019 = vmatpush1.msra.mxu0 %v9598
  %10020 = vmatprep.subr.mxu0 %v9603
  %10021 = vmatpush1.msra.mxu0 %v9602
  %10022 = vmatprep.subr.mxu0 %v9607
  %10023 = vmatpush1.msra.mxu0 %v9606
  %10024 = vmatprep.subr.mxu0 %v9611
  %10025 = vmatpush1.msra.mxu0 %v9610
  %10026 = vmatprep.subr.mxu0 %v9615
  %10027 = vmatpush1.msra.mxu0 %v9614
  %10028 = vmatprep.subr.mxu0 %v9619
  %10029 = vmatpush1.msra.mxu0 %v9618
  %10030 = vmatprep.subr.mxu0 %v9623
  %10031 = vmatpush1.msra.mxu0 %v9622
  %10032 = vmatprep.subr.mxu0 %v9627
  %10033 = vmatpush1.msra.mxu0 %v9626
  %10034 = vmatprep.subr.mxu0 %v9631
  %10035 = vmatpush1.msra.mxu0 %v9630
  %10036 = vmatprep.subr.mxu0 %v9635
  %10037 = vmatpush1.msra.mxu0 %v9634
  %10038 = vmatprep.subr.mxu0 %v9639
  %10039 = vmatpush1.msra.mxu0 %v9638
  %10040 = vmatprep.subr.mxu0 %v9643
  %10041 = vmatpush1.msra.mxu0 %v9642
  %10042 = vmatprep.subr.mxu0 %v9647
  %10043 = vmatpush1.msra.mxu0 %v9646
  %10044 = vmatprep.subr.mxu0 %v9651
  %10045 = vmatpush1.msra.mxu0 %v9650
  %10046 = vmatprep.subr.mxu0 %v9655
  %10047 = vmatpush1.msra.mxu0 %v9654
  %10048 = vmatprep.subr.mxu0 %v9659
  %10049 = vmatpush1.msra.mxu0 %v9658
  %10050 = vmatprep.subr.mxu0 %v9663
  %10051 = vmatpush1.msra.mxu0 %v9662
  %10052 = vmatprep.subr.mxu0 %v9667
  %10053 = vmatpush1.msra.mxu0 %v9666
  %10054 = vmatprep.subr.mxu0 %v9671
  %10055 = vmatpush1.msra.mxu0 %v9670
  %10056 = vmatprep.subr.mxu0 %v9675
  %10057 = vmatpush1.msra.mxu0 %v9674
  %10058 = vmatprep.subr.mxu0 %v9679
  %10059 = vmatpush1.msra.mxu0 %v9678
  %10060 = vmatprep.subr.mxu0 %v9683
  %10061 = vmatpush1.msra.mxu0 %v9682
  %10062 = vmatprep.subr.mxu0 %v9687
  %10063 = vmatpush1.msra.mxu0 %v9686
  %10064 = vmatprep.subr.mxu0 %v9691
  %10065 = vmatpush1.msra.mxu0 %v9690
  %10066 = vmatprep.subr.mxu0 %v9695
  %10067 = vmatpush1.msra.mxu0 %v9694
  %10068 = vmatprep.subr.mxu0 %v9699
  %10069 = vmatpush1.msra.mxu0 %v9698
  %10070 = vmatprep.subr.mxu0 %v9703
  %10071 = vmatpush1.msra.mxu0 %v9702
  %10072 = vmatprep.subr.mxu0 %v9707
  %10073 = vmatpush1.msra.mxu0 %v9706
  %10074 = vmatprep.subr.mxu0 %v9711
  %10075 = vmatpush1.msra.mxu0 %v9710
  %10076 = vmatprep.subr.mxu0 %v9715
  %10077 = vmatpush1.msra.mxu0 %v9714
  %10078 = vmatprep.mubr.f32.mxu0 %v9587
  %10079 = vmatmul.mubr.f32.gmra.mrb[0].mxu0 %v9462
  %v10080 = vpop.f32.mrb[0].mxu0
  %v10081 = vadd.f32 %v9995, %v10080
  %v10082 = vpop.f32.mrb[0].mxu0
  %v10083 = vadd.f32 %v9999, %v10082
  %10084 = vdwg.mxu0
  %10085 = vmatprep.subr.mxu0 %v9719
  %10086 = vmatpush1.msra.mxu0 %v9718
  %10087 = vmatprep.subr.mxu0 %v9723
  %10088 = vmatpush1.msra.mxu0 %v9722
  %10089 = vmatprep.subr.mxu0 %v9727
  %10090 = vmatpush1.msra.mxu0 %v9726
  %10091 = vmatprep.subr.mxu0 %v9731
  %10092 = vmatpush1.msra.mxu0 %v9730
  %10093 = vmatprep.subr.mxu0 %v9735
  %10094 = vmatpush1.msra.mxu0 %v9734
  %10095 = vmatprep.subr.mxu0 %v9739
  %10096 = vmatpush1.msra.mxu0 %v9738
  %10097 = vmatprep.subr.mxu0 %v9743
  %10098 = vmatpush1.msra.mxu0 %v9742
  %10099 = vmatprep.subr.mxu0 %v9747
  %10100 = vmatpush1.msra.mxu0 %v9746
  %10101 = vmatprep.subr.mxu0 %v9751
  %10102 = vmatpush1.msra.mxu0 %v9750
  %10103 = vmatprep.subr.mxu0 %v9755
  %10104 = vmatpush1.msra.mxu0 %v9754
  %10105 = vmatprep.subr.mxu0 %v9759
  %10106 = vmatpush1.msra.mxu0 %v9758
  %10107 = vmatprep.subr.mxu0 %v9763
  %10108 = vmatpush1.msra.mxu0 %v9762
  %10109 = vmatprep.subr.mxu0 %v9767
  %10110 = vmatpush1.msra.mxu0 %v9766
  %10111 = vmatprep.subr.mxu0 %v9771
  %10112 = vmatpush1.msra.mxu0 %v9770
  %10113 = vmatprep.subr.mxu0 %v9775
  %10114 = vmatpush1.msra.mxu0 %v9774
  %10115 = vmatprep.subr.mxu0 %v9779
  %10116 = vmatpush1.msra.mxu0 %v9778
  %10117 = vmatprep.subr.mxu0 %v9783
  %10118 = vmatpush1.msra.mxu0 %v9782
  %10119 = vmatprep.subr.mxu0 %v9787
  %10120 = vmatpush1.msra.mxu0 %v9786
  %10121 = vmatprep.subr.mxu0 %v9791
  %10122 = vmatpush1.msra.mxu0 %v9790
  %10123 = vmatprep.subr.mxu0 %v9795
  %10124 = vmatpush1.msra.mxu0 %v9794
  %10125 = vmatprep.subr.mxu0 %v9799
  %10126 = vmatpush1.msra.mxu0 %v9798
  %10127 = vmatprep.subr.mxu0 %v9803
  %10128 = vmatpush1.msra.mxu0 %v9802
  %10129 = vmatprep.subr.mxu0 %v9807
  %10130 = vmatpush1.msra.mxu0 %v9806
  %10131 = vmatprep.subr.mxu0 %v9811
  %10132 = vmatpush1.msra.mxu0 %v9810
  %10133 = vmatprep.subr.mxu0 %v9815
  %10134 = vmatpush1.msra.mxu0 %v9814
  %10135 = vmatprep.subr.mxu0 %v9819
  %10136 = vmatpush1.msra.mxu0 %v9818
  %10137 = vmatprep.subr.mxu0 %v9823
  %10138 = vmatpush1.msra.mxu0 %v9822
  %10139 = vmatprep.subr.mxu0 %v9827
  %10140 = vmatpush1.msra.mxu0 %v9826
  %10141 = vmatprep.subr.mxu0 %v9831
  %10142 = vmatpush1.msra.mxu0 %v9830
  %10143 = vmatprep.subr.mxu0 %v9835
  %10144 = vmatpush1.msra.mxu0 %v9834
  %10145 = vmatprep.subr.mxu0 %v9839
  %10146 = vmatpush1.msra.mxu0 %v9838
  %10147 = vmatprep.subr.mxu0 %v9843
  %10148 = vmatpush1.msra.mxu0 %v9842
  %10149 = vmatprep.mubr.f32.mxu0 %v9588
  %10150 = vmatmul.mubr.f32.gmra.mrb[0].mxu0 %v9511
  %v10151 = vpop.f32.mrb[0].mxu0
  %v10152 = vadd.f32 %v10081, %v10151
  %v10153 = vpop.f32.mrb[0].mxu0
  %v10154 = vadd.f32 %v10083, %v10153
  %10155 = vdwg.mxu0
  %10156 = vmatprep.subr.mxu0 %v9847
  %10157 = vmatpush1.msra.mxu0 %v9846
  %10158 = vmatprep.subr.mxu0 %v9851
  %10159 = vmatpush1.msra.mxu0 %v9850
  %10160 = vmatprep.subr.mxu0 %v9855
  %10161 = vmatpush1.msra.mxu0 %v9854
  %10162 = vmatprep.subr.mxu0 %v9859
  %10163 = vmatpush1.msra.mxu0 %v9858
  %10164 = vmatprep.subr.mxu0 %v9863
  %10165 = vmatpush1.msra.mxu0 %v9862
  %10166 = vmatprep.subr.mxu0 %v9867
  %10167 = vmatpush1.msra.mxu0 %v9866
  %10168 = vmatprep.subr.mxu0 %v9871
  %10169 = vmatpush1.msra.mxu0 %v9870
  %10170 = vmatprep.subr.mxu0 %v9875
  %10171 = vmatpush1.msra.mxu0 %v9874
  %10172 = vmatprep.subr.mxu0 %v9879
  %10173 = vmatpush1.msra.mxu0 %v9878
  %10174 = vmatprep.subr.mxu0 %v9883
  %10175 = vmatpush1.msra.mxu0 %v9882
  %10176 = vmatprep.subr.mxu0 %v9887
  %10177 = vmatpush1.msra.mxu0 %v9886
  %10178 = vmatprep.subr.mxu0 %v9891
  %10179 = vmatpush1.msra.mxu0 %v9890
  %10180 = vmatprep.subr.mxu0 %v9895
  %10181 = vmatpush1.msra.mxu0 %v9894
  %10182 = vmatprep.subr.mxu0 %v9899
  %10183 = vmatpush1.msra.mxu0 %v9898
  %10184 = vmatprep.subr.mxu0 %v9903
  %10185 = vmatpush1.msra.mxu0 %v9902
  %10186 = vmatprep.subr.mxu0 %v9907
  %10187 = vmatpush1.msra.mxu0 %v9906
  %10188 = vmatprep.subr.mxu0 %v9911
  %10189 = vmatpush1.msra.mxu0 %v9910
  %10190 = vmatprep.subr.mxu0 %v9915
  %10191 = vmatpush1.msra.mxu0 %v9914
  %10192 = vmatprep.subr.mxu0 %v9919
  %10193 = vmatpush1.msra.mxu0 %v9918
  %10194 = vmatprep.subr.mxu0 %v9923
  %10195 = vmatpush1.msra.mxu0 %v9922
  %10196 = vmatprep.subr.mxu0 %v9927
  %10197 = vmatpush1.msra.mxu0 %v9926
  %10198 = vmatprep.subr.mxu0 %v9931
  %10199 = vmatpush1.msra.mxu0 %v9930
  %10200 = vmatprep.subr.mxu0 %v9935
  %10201 = vmatpush1.msra.mxu0 %v9934
  %10202 = vmatprep.subr.mxu0 %v9939
  %10203 = vmatpush1.msra.mxu0 %v9938
  %10204 = vmatprep.subr.mxu0 %v9943
  %10205 = vmatpush1.msra.mxu0 %v9942
  %10206 = vmatprep.subr.mxu0 %v9947
  %10207 = vmatpush1.msra.mxu0 %v9946
  %10208 = vmatprep.subr.mxu0 %v9951
  %10209 = vmatpush1.msra.mxu0 %v9950
  %10210 = vmatprep.subr.mxu0 %v9955
  %10211 = vmatpush1.msra.mxu0 %v9954
  %10212 = vmatprep.subr.mxu0 %v9959
  %10213 = vmatpush1.msra.mxu0 %v9958
  %10214 = vmatprep.subr.mxu0 %v9963
  %10215 = vmatpush1.msra.mxu0 %v9962
  %10216 = vmatprep.subr.mxu0 %v9967
  %10217 = vmatpush1.msra.mxu0 %v9966
  %10218 = vmatprep.subr.mxu0 %v9971
  %10219 = vmatpush1.msra.mxu0 %v9970
  %10220 = vmatprep.mubr.f32.mxu0 %v9584
  %10221 = vmatmul.mubr.f32.gmra.mrb[0].mxu0 %v9589
  %v10222 = vpop.f32.mrb[0].mxu0
  %v10223 = vadd.f32 %v10152, %v10222
  %v10224 = vpop.f32.mrb[0].mxu0
  %v10225 = vadd.f32 %v10154, %v10224
  %10226 = vdwg.mxu0
  %10227 = vmatprep.subr.mxu0 %v9975
  %10228 = vmatpush1.msra.mxu0 %v9974
  %10229 = vmatprep.subr.mxu0 %v9979
  %10230 = vmatpush1.msra.mxu0 %v9978
  %10231 = vmatprep.subr.mxu0 %v9983
  %10232 = vmatpush1.msra.mxu0 %v9982
  %10233 = vmatprep.subr.mxu0 %v9987
  %10234 = vmatpush1.msra.mxu0 %v9986
  %10235 = vmatprep.subr.mxu0 0.0
  %10236 = vmatpush1.msra.mxu0 0.0
  %10237 = vmatprep.subr.mxu0 0.0
  %10238 = vmatpush1.msra.mxu0 0.0
  %10239 = vmatprep.subr.mxu0 0.0
  %10240 = vmatpush1.msra.mxu0 0.0
  %10241 = vmatprep.subr.mxu0 0.0
  %10242 = vmatpush1.msra.mxu0 0.0
  %10243 = vmatprep.subr.mxu0 0.0
  %10244 = vmatpush1.msra.mxu0 0.0
  %10245 = vmatprep.subr.mxu0 0.0
  %10246 = vmatpush1.msra.mxu0 0.0
  %10247 = vmatprep.subr.mxu0 0.0
  %10248 = vmatpush1.msra.mxu0 0.0
  %10249 = vmatprep.subr.mxu0 0.0
  %10250 = vmatpush1.msra.mxu0 0.0
  %10251 = vmatprep.subr.mxu0 0.0
  %10252 = vmatpush1.msra.mxu0 0.0
  %10253 = vmatprep.subr.mxu0 0.0
  %10254 = vmatpush1.msra.mxu0 0.0
  %10255 = vmatprep.subr.mxu0 0.0
  %10256 = vmatpush1.msra.mxu0 0.0
  %10257 = vmatprep.subr.mxu0 0.0
  %10258 = vmatpush1.msra.mxu0 0.0
  %10259 = vmatprep.subr.mxu0 0.0
  %10260 = vmatpush1.msra.mxu0 0.0
  %10261 = vmatprep.subr.mxu0 0.0
  %10262 = vmatpush1.msra.mxu0 0.0
  %10263 = vmatprep.subr.mxu0 0.0
  %10264 = vmatpush1.msra.mxu0 0.0
  %10265 = vmatprep.subr.mxu0 0.0
  %10266 = vmatpush1.msra.mxu0 0.0
  %10267 = vmatprep.subr.mxu0 0.0
  %10268 = vmatpush1.msra.mxu0 0.0
  %10269 = vmatprep.subr.mxu0 0.0
  %10270 = vmatpush1.msra.mxu0 0.0
  %10271 = vmatprep.subr.mxu0 0.0
  %10272 = vmatpush1.msra.mxu0 0.0
  %10273 = vmatprep.subr.mxu0 0.0
  %10274 = vmatpush1.msra.mxu0 0.0
  %10275 = vmatprep.subr.mxu0 0.0
  %10276 = vmatpush1.msra.mxu0 0.0
  %10277 = vmatprep.subr.mxu0 0.0
  %10278 = vmatpush1.msra.mxu0 0.0
  %10279 = vmatprep.subr.mxu0 0.0
  %10280 = vmatpush1.msra.mxu0 0.0
  %10281 = vmatprep.subr.mxu0 0.0
  %10282 = vmatpush1.msra.mxu0 0.0
  %10283 = vmatprep.subr.mxu0 0.0
  %10284 = vmatpush1.msra.mxu0 0.0
  %10285 = vmatprep.subr.mxu0 0.0
  %10286 = vmatpush1.msra.mxu0 0.0
  %10287 = vmatprep.subr.mxu0 0.0
  %10288 = vmatpush1.msra.mxu0 0.0
  %10289 = vmatprep.subr.mxu0 0.0
  %10290 = vmatpush1.msra.mxu0 0.0
  %10291 = vmatprep.mubr.f32.mxu0 0.0
  %10292 = vmatmul.mubr.f32.gmra.mrb[0].mxu0 %v10012
  %v10293 = vpop.f32.mrb[0].mxu0
  %v10294 = vadd.f32 %v10223, %v10293
  %v10295 = vpop.f32.mrb[0].mxu0
  %v10296 = vadd.f32 %v10225, %v10295
  %10297 = vdwg.mxu0
  %10298 = vmatprep.subr.mxu0 %v9593
  %10299 = vmatpush1.msra.mxu0 %v9592
  %10300 = vmatprep.subr.mxu0 %v9597
  %10301 = vmatpush1.msra.mxu0 %v9596
  %10302 = vmatprep.subr.mxu0 %v9601
  %10303 = vmatpush1.msra.mxu0 %v9600
  %10304 = vmatprep.subr.mxu0 %v9605
  %10305 = vmatpush1.msra.mxu0 %v9604
  %10306 = vmatprep.subr.mxu0 %v9609
  %10307 = vmatpush1.msra.mxu0 %v9608
  %10308 = vmatprep.subr.mxu0 %v9613
  %10309 = vmatpush1.msra.mxu0 %v9612
  %10310 = vmatprep.subr.mxu0 %v9617
  %10311 = vmatpush1.msra.mxu0 %v9616
  %10312 = vmatprep.subr.mxu0 %v9621
  %10313 = vmatpush1.msra.mxu0 %v9620
  %10314 = vmatprep.subr.mxu0 %v9625
  %10315 = vmatpush1.msra.mxu0 %v9624
  %10316 = vmatprep.subr.mxu0 %v9629
  %10317 = vmatpush1.msra.mxu0 %v9628
  %10318 = vmatprep.subr.mxu0 %v9633
  %10319 = vmatpush1.msra.mxu0 %v9632
  %10320 = vmatprep.subr.mxu0 %v9637
  %10321 = vmatpush1.msra.mxu0 %v9636
  %10322 = vmatprep.subr.mxu0 %v9641
  %10323 = vmatpush1.msra.mxu0 %v9640
  %10324 = vmatprep.subr.mxu0 %v9645
  %10325 = vmatpush1.msra.mxu0 %v9644
  %10326 = vmatprep.subr.mxu0 %v9649
  %10327 = vmatpush1.msra.mxu0 %v9648
  %10328 = vmatprep.subr.mxu0 %v9653
  %10329 = vmatpush1.msra.mxu0 %v9652
  %10330 = vmatprep.subr.mxu0 %v9657
  %10331 = vmatpush1.msra.mxu0 %v9656
  %10332 = vmatprep.subr.mxu0 %v9661
  %10333 = vmatpush1.msra.mxu0 %v9660
  %10334 = vmatprep.subr.mxu0 %v9665
  %10335 = vmatpush1.msra.mxu0 %v9664
  %10336 = vmatprep.subr.mxu0 %v9669
  %10337 = vmatpush1.msra.mxu0 %v9668
  %10338 = vmatprep.subr.mxu0 %v9673
  %10339 = vmatpush1.msra.mxu0 %v9672
  %10340 = vmatprep.subr.mxu0 %v9677
  %10341 = vmatpush1.msra.mxu0 %v9676
  %10342 = vmatprep.subr.mxu0 %v9681
  %10343 = vmatpush1.msra.mxu0 %v9680
  %10344 = vmatprep.subr.mxu0 %v9685
  %10345 = vmatpush1.msra.mxu0 %v9684
  %10346 = vmatprep.subr.mxu0 %v9689
  %10347 = vmatpush1.msra.mxu0 %v9688
  %10348 = vmatprep.subr.mxu0 %v9693
  %10349 = vmatpush1.msra.mxu0 %v9692
  %10350 = vmatprep.subr.mxu0 %v9697
  %10351 = vmatpush1.msra.mxu0 %v9696
  %10352 = vmatprep.subr.mxu0 %v9701
  %10353 = vmatpush1.msra.mxu0 %v9700
  %10354 = vmatprep.subr.mxu0 %v9705
  %10355 = vmatpush1.msra.mxu0 %v9704
  %10356 = vmatprep.subr.mxu0 %v9709
  %10357 = vmatpush1.msra.mxu0 %v9708
  %10358 = vmatprep.subr.mxu0 %v9713
  %10359 = vmatpush1.msra.mxu0 %v9712
  %10360 = vmatprep.subr.mxu0 %v9717
  %10361 = vmatpush1.msra.mxu0 %v9716
  %10362 = vmatprep.mubr.f32.mxu0 %v9587
  %10363 = vmatmul.mubr.f32.gmra.mrb[0].mxu0 %v9462
  %v10364 = vpop.f32.mrb[0].mxu0
  %v10365 = vadd.f32 %v10003, %v10364
  %v10366 = vpop.f32.mrb[0].mxu0
  %v10367 = vadd.f32 %v10007, %v10366
  %10368 = vdwg.mxu0
  %10369 = vmatprep.subr.mxu0 %v9721
  %10370 = vmatpush1.msra.mxu0 %v9720
  %10371 = vmatprep.subr.mxu0 %v9725
  %10372 = vmatpush1.msra.mxu0 %v9724
  %10373 = vmatprep.subr.mxu0 %v9729
  %10374 = vmatpush1.msra.mxu0 %v9728
  %10375 = vmatprep.subr.mxu0 %v9733
  %10376 = vmatpush1.msra.mxu0 %v9732
  %10377 = vmatprep.subr.mxu0 %v9737
  %10378 = vmatpush1.msra.mxu0 %v9736
  %10379 = vmatprep.subr.mxu0 %v9741
  %10380 = vmatpush1.msra.mxu0 %v9740
  %10381 = vmatprep.subr.mxu0 %v9745
  %10382 = vmatpush1.msra.mxu0 %v9744
  %10383 = vmatprep.subr.mxu0 %v9749
  %10384 = vmatpush1.msra.mxu0 %v9748
  %10385 = vmatprep.subr.mxu0 %v9753
  %10386 = vmatpush1.msra.mxu0 %v9752
  %10387 = vmatprep.subr.mxu0 %v9757
  %10388 = vmatpush1.msra.mxu0 %v9756
  %10389 = vmatprep.subr.mxu0 %v9761
  %10390 = vmatpush1.msra.mxu0 %v9760
  %10391 = vmatprep.subr.mxu0 %v9765
  %10392 = vmatpush1.msra.mxu0 %v9764
  %10393 = vmatprep.subr.mxu0 %v9769
  %10394 = vmatpush1.msra.mxu0 %v9768
  %10395 = vmatprep.subr.mxu0 %v9773
  %10396 = vmatpush1.msra.mxu0 %v9772
  %10397 = vmatprep.subr.mxu0 %v9777
  %10398 = vmatpush1.msra.mxu0 %v9776
  %10399 = vmatprep.subr.mxu0 %v9781
  %10400 = vmatpush1.msra.mxu0 %v9780
  %10401 = vmatprep.subr.mxu0 %v9785
  %10402 = vmatpush1.msra.mxu0 %v9784
  %10403 = vmatprep.subr.mxu0 %v9789
  %10404 = vmatpush1.msra.mxu0 %v9788
  %10405 = vmatprep.subr.mxu0 %v9793
  %10406 = vmatpush1.msra.mxu0 %v9792
  %10407 = vmatprep.subr.mxu0 %v9797
  %10408 = vmatpush1.msra.mxu0 %v9796
  %10409 = vmatprep.subr.mxu0 %v9801
  %10410 = vmatpush1.msra.mxu0 %v9800
  %10411 = vmatprep.subr.mxu0 %v9805
  %10412 = vmatpush1.msra.mxu0 %v9804
  %10413 = vmatprep.subr.mxu0 %v9809
  %10414 = vmatpush1.msra.mxu0 %v9808
  %10415 = vmatprep.subr.mxu0 %v9813
  %10416 = vmatpush1.msra.mxu0 %v9812
  %10417 = vmatprep.subr.mxu0 %v9817
  %10418 = vmatpush1.msra.mxu0 %v9816
  %10419 = vmatprep.subr.mxu0 %v9821
  %10420 = vmatpush1.msra.mxu0 %v9820
  %10421 = vmatprep.subr.mxu0 %v9825
  %10422 = vmatpush1.msra.mxu0 %v9824
  %10423 = vmatprep.subr.mxu0 %v9829
  %10424 = vmatpush1.msra.mxu0 %v9828
  %10425 = vmatprep.subr.mxu0 %v9833
  %10426 = vmatpush1.msra.mxu0 %v9832
  %10427 = vmatprep.subr.mxu0 %v9837
  %10428 = vmatpush1.msra.mxu0 %v9836
  %10429 = vmatprep.subr.mxu0 %v9841
  %10430 = vmatpush1.msra.mxu0 %v9840
  %10431 = vmatprep.subr.mxu0 %v9845
  %10432 = vmatpush1.msra.mxu0 %v9844
  %10433 = vmatprep.mubr.f32.mxu0 %v9588
  %10434 = vmatmul.mubr.f32.gmra.mrb[0].mxu0 %v9511
  %v10435 = vpop.f32.mrb[0].mxu0
  %v10436 = vadd.f32 %v10365, %v10435
  %v10437 = vpop.f32.mrb[0].mxu0
  %v10438 = vadd.f32 %v10367, %v10437
  %10439 = vdwg.mxu0
  %10440 = vmatprep.subr.mxu0 %v9849
  %10441 = vmatpush1.msra.mxu0 %v9848
  %10442 = vmatprep.subr.mxu0 %v9853
  %10443 = vmatpush1.msra.mxu0 %v9852
  %10444 = vmatprep.subr.mxu0 %v9857
  %10445 = vmatpush1.msra.mxu0 %v9856
  %10446 = vmatprep.subr.mxu0 %v9861
  %10447 = vmatpush1.msra.mxu0 %v9860
  %10448 = vmatprep.subr.mxu0 %v9865
  %10449 = vmatpush1.msra.mxu0 %v9864
  %10450 = vmatprep.subr.mxu0 %v9869
  %10451 = vmatpush1.msra.mxu0 %v9868
  %10452 = vmatprep.subr.mxu0 %v9873
  %10453 = vmatpush1.msra.mxu0 %v9872
  %10454 = vmatprep.subr.mxu0 %v9877
  %10455 = vmatpush1.msra.mxu0 %v9876
  %10456 = vmatprep.subr.mxu0 %v9881
  %10457 = vmatpush1.msra.mxu0 %v9880
  %10458 = vmatprep.subr.mxu0 %v9885
  %10459 = vmatpush1.msra.mxu0 %v9884
  %10460 = vmatprep.subr.mxu0 %v9889
  %10461 = vmatpush1.msra.mxu0 %v9888
  %10462 = vmatprep.subr.mxu0 %v9893
  %10463 = vmatpush1.msra.mxu0 %v9892
  %10464 = vmatprep.subr.mxu0 %v9897
  %10465 = vmatpush1.msra.mxu0 %v9896
  %10466 = vmatprep.subr.mxu0 %v9901
  %10467 = vmatpush1.msra.mxu0 %v9900
  %10468 = vmatprep.subr.mxu0 %v9905
  %10469 = vmatpush1.msra.mxu0 %v9904
  %10470 = vmatprep.subr.mxu0 %v9909
  %10471 = vmatpush1.msra.mxu0 %v9908
  %10472 = vmatprep.subr.mxu0 %v9913
  %10473 = vmatpush1.msra.mxu0 %v9912
  %10474 = vmatprep.subr.mxu0 %v9917
  %10475 = vmatpush1.msra.mxu0 %v9916
  %10476 = vmatprep.subr.mxu0 %v9921
  %10477 = vmatpush1.msra.mxu0 %v9920
  %10478 = vmatprep.subr.mxu0 %v9925
  %10479 = vmatpush1.msra.mxu0 %v9924
  %10480 = vmatprep.subr.mxu0 %v9929
  %10481 = vmatpush1.msra.mxu0 %v9928
  %10482 = vmatprep.subr.mxu0 %v9933
  %10483 = vmatpush1.msra.mxu0 %v9932
  %10484 = vmatprep.subr.mxu0 %v9937
  %10485 = vmatpush1.msra.mxu0 %v9936
  %10486 = vmatprep.subr.mxu0 %v9941
  %10487 = vmatpush1.msra.mxu0 %v9940
  %10488 = vmatprep.subr.mxu0 %v9945
  %10489 = vmatpush1.msra.mxu0 %v9944
  %10490 = vmatprep.subr.mxu0 %v9949
  %10491 = vmatpush1.msra.mxu0 %v9948
  %10492 = vmatprep.subr.mxu0 %v9953
  %10493 = vmatpush1.msra.mxu0 %v9952
  %10494 = vmatprep.subr.mxu0 %v9957
  %10495 = vmatpush1.msra.mxu0 %v9956
  %10496 = vmatprep.subr.mxu0 %v9961
  %10497 = vmatpush1.msra.mxu0 %v9960
  %10498 = vmatprep.subr.mxu0 %v9965
  %10499 = vmatpush1.msra.mxu0 %v9964
  %10500 = vmatprep.subr.mxu0 %v9969
  %10501 = vmatpush1.msra.mxu0 %v9968
  %10502 = vmatprep.subr.mxu0 %v9973
  %10503 = vmatpush1.msra.mxu0 %v9972
  %10504 = vmatprep.mubr.f32.mxu0 %v9584
  %10505 = vmatmul.mubr.f32.gmra.mrb[0].mxu0 %v9589
  %v10506 = vpop.f32.mrb[0].mxu0
  %v10507 = vadd.f32 %v10436, %v10506
  %v10508 = vpop.f32.mrb[0].mxu0
  %v10509 = vadd.f32 %v10438, %v10508
  %10510 = vdwg.mxu0
  %10511 = vmatprep.subr.mxu0 %v9977
  %10512 = vmatpush1.msra.mxu0 %v9976
  %10513 = vmatprep.subr.mxu0 %v9981
  %10514 = vmatpush1.msra.mxu0 %v9980
  %10515 = vmatprep.subr.mxu0 %v9985
  %10516 = vmatpush1.msra.mxu0 %v9984
  %10517 = vmatprep.subr.mxu0 %v9989
  %10518 = vmatpush1.msra.mxu0 %v9988
  %10519 = vmatprep.subr.mxu0 0.0
  %10520 = vmatpush1.msra.mxu0 0.0
  %10521 = vmatprep.subr.mxu0 0.0
  %10522 = vmatpush1.msra.mxu0 0.0
  %10523 = vmatprep.subr.mxu0 0.0
  %10524 = vmatpush1.msra.mxu0 0.0
  %10525 = vmatprep.subr.mxu0 0.0
  %10526 = vmatpush1.msra.mxu0 0.0
  %10527 = vmatprep.subr.mxu0 0.0
  %10528 = vmatpush1.msra.mxu0 0.0
  %10529 = vmatprep.subr.mxu0 0.0
  %10530 = vmatpush1.msra.mxu0 0.0
  %10531 = vmatprep.subr.mxu0 0.0
  %10532 = vmatpush1.msra.mxu0 0.0
  %10533 = vmatprep.subr.mxu0 0.0
  %10534 = vmatpush1.msra.mxu0 0.0
  %10535 = vmatprep.subr.mxu0 0.0
  %10536 = vmatpush1.msra.mxu0 0.0
  %10537 = vmatprep.subr.mxu0 0.0
  %10538 = vmatpush1.msra.mxu0 0.0
  %10539 = vmatprep.subr.mxu0 0.0
  %10540 = vmatpush1.msra.mxu0 0.0
  %10541 = vmatprep.subr.mxu0 0.0
  %10542 = vmatpush1.msra.mxu0 0.0
  %10543 = vmatprep.subr.mxu0 0.0
  %10544 = vmatpush1.msra.mxu0 0.0
  %10545 = vmatprep.subr.mxu0 0.0
  %10546 = vmatpush1.msra.mxu0 0.0
  %10547 = vmatprep.subr.mxu0 0.0
  %10548 = vmatpush1.msra.mxu0 0.0
  %10549 = vmatprep.subr.mxu0 0.0
  %10550 = vmatpush1.msra.mxu0 0.0
  %10551 = vmatprep.subr.mxu0 0.0
  %10552 = vmatpush1.msra.mxu0 0.0
  %10553 = vmatprep.subr.mxu0 0.0
  %10554 = vmatpush1.msra.mxu0 0.0
  %10555 = vmatprep.subr.mxu0 0.0
  %10556 = vmatpush1.msra.mxu0 0.0
  %10557 = vmatprep.subr.mxu0 0.0
  %10558 = vmatpush1.msra.mxu0 0.0
  %10559 = vmatprep.subr.mxu0 0.0
  %10560 = vmatpush1.msra.mxu0 0.0
  %10561 = vmatprep.subr.mxu0 0.0
  %10562 = vmatpush1.msra.mxu0 0.0
  %10563 = vmatprep.subr.mxu0 0.0
  %10564 = vmatpush1.msra.mxu0 0.0
  %10565 = vmatprep.subr.mxu0 0.0
  %10566 = vmatpush1.msra.mxu0 0.0
  %10567 = vmatprep.subr.mxu0 0.0
  %10568 = vmatpush1.msra.mxu0 0.0
  %10569 = vmatprep.subr.mxu0 0.0
  %10570 = vmatpush1.msra.mxu0 0.0
  %10571 = vmatprep.subr.mxu0 0.0
  %10572 = vmatpush1.msra.mxu0 0.0
  %10573 = vmatprep.subr.mxu0 0.0
  %10574 = vmatpush1.msra.mxu0 0.0
  %10575 = vmatprep.mubr.f32.mxu0 0.0
  %10576 = vmatmul.mubr.f32.gmra.mrb[0].mxu0 %v10012
  %v10577 = vpop.f32.mrb[0].mxu0
  %v10578 = vadd.f32 %v10507, %v10577
  %v10579 = vpop.f32.mrb[0].mxu0
  %v10580 = vadd.f32 %v10509, %v10579
  %10581 = vdwg.mxu0
  %v10582 = vmax.f32 %v10294, 0.0
  %v10583 = vmax.f32 %v10296, 0.0
  %v10584 = vmax.f32 %v10578, 0.0
  %v10585 = vmax.f32 %v10580, 0.0
  %v10586 = vld [vmem:[%s7] sm:$0xff]
  %v10587 = vld [vmem:[%s7 + $0x8] sm:$0xff]
  %v10588 = vld [vmem:[%s7 + $0x10] sm:$0xff]
  %v10589 = vld [vmem:[%s7 + $0x18] sm:$0xff]
  %v10590 = vld [vmem:[%s7 + $0x20] sm:$0xff]
  %v10591 = vld [vmem:[%s7 + $0x28] sm:$0xff]
  %v10592 = vld [vmem:[%s7 + $0x30] sm:$0xff]
  %v10593 = vld [vmem:[%s7 + $0x38] sm:$0xff]
  %v10594 = vld [vmem:[%s7 + $0x40] sm:$0xff]
  %v10595 = vld [vmem:[%s7 + $0x48] sm:$0xff]
  %v10596 = vld [vmem:[%s7 + $0x50] sm:$0xff]
  %v10597 = vld [vmem:[%s7 + $0x58] sm:$0xff]
  %v10598 = vld [vmem:[%s7 + $0x60] sm:$0xff]
  %v10599 = vld [vmem:[%s7 + $0x68] sm:$0xff]
  %v10600 = vld [vmem:[%s7 + $0x70] sm:$0xff]
  %v10601 = vld [vmem:[%s7 + $0x78] sm:$0xff]
  %v10602 = vld [vmem:[%s7 + $0x80] sm:$0xff]
  %v10603 = vld [vmem:[%s7 + $0x88] sm:$0xff]
  %v10604 = vld [vmem:[%s7 + $0x90] sm:$0xff]
  %v10605 = vld [vmem:[%s7 + $0x98] sm:$0xff]
  %v10606 = vld [vmem:[%s7 + $0xa0] sm:$0xff]
  %v10607 = vld [vmem:[%s7 + $0xa8] sm:$0xff]
  %v10608 = vld [vmem:[%s7 + $0xb0] sm:$0xff]
  %v10609 = vld [vmem:[%s7 + $0xb8] sm:$0xff]
  %v10610 = vld [vmem:[%s7 + $0xc0] sm:$0xff]
  %v10611 = vld [vmem:[%s7 + $0xc8] sm:$0xff]
  %v10612 = vld [vmem:[%s7 + $0xd0] sm:$0xff]
  %v10613 = vld [vmem:[%s7 + $0xd8] sm:$0xff]
  %v10614 = vld [vmem:[%s7 + $0xe0] sm:$0xff]
  %v10615 = vld [vmem:[%s7 + $0xe8] sm:$0xff]
  %v10616 = vld [vmem:[%s7 + $0xf0] sm:$0xff]
  %v10617 = vld [vmem:[%s7 + $0xf8] sm:$0xff]
  %v10618 = vld [vmem:[%s7 + $0x100] sm:$0xff]
  %v10619 = vld [vmem:[%s7 + $0x108] sm:$0xff]
  %v10620 = vld [vmem:[%s7 + $0x110] sm:$0xff]
  %v10621 = vld [vmem:[%s7 + $0x118] sm:$0xff]
  %v10622 = vld [vmem:[%s7 + $0x120] sm:$0xff]
  %v10623 = vld [vmem:[%s7 + $0x128] sm:$0xff]
  %v10624 = vld [vmem:[%s7 + $0x130] sm:$0xff]
  %v10625 = vld [vmem:[%s7 + $0x138] sm:$0xff]
  %v10626 = vld [vmem:[%s7 + $0x140] sm:$0xff]
  %v10627 = vld [vmem:[%s7 + $0x148] sm:$0xff]
  %v10628 = vld [vmem:[%s7 + $0x150] sm:$0xff]
  %v10629 = vld [vmem:[%s7 + $0x158] sm:$0xff]
  %v10630 = vld [vmem:[%s7 + $0x160] sm:$0xff]
  %v10631 = vld [vmem:[%s7 + $0x168] sm:$0xff]
  %v10632 = vld [vmem:[%s7 + $0x170] sm:$0xff]
  %v10633 = vld [vmem:[%s7 + $0x178] sm:$0xff]
  %v10634 = vld [vmem:[%s7 + $0x180] sm:$0xff]
  %v10635 = vld [vmem:[%s7 + $0x188] sm:$0xff]
  %v10636 = vld [vmem:[%s7 + $0x190] sm:$0xff]
  %v10637 = vld [vmem:[%s7 + $0x198] sm:$0xff]
  %v10638 = vld [vmem:[%s7 + $0x1a0] sm:$0xff]
  %v10639 = vld [vmem:[%s7 + $0x1a8] sm:$0xff]
  %v10640 = vld [vmem:[%s7 + $0x1b0] sm:$0xff]
  %v10641 = vld [vmem:[%s7 + $0x1b8] sm:$0xff]
  %v10642 = vld [vmem:[%s7 + $0x1c0] sm:$0xff]
  %v10643 = vld [vmem:[%s7 + $0x1c8] sm:$0xff]
  %v10644 = vld [vmem:[%s7 + $0x1d0] sm:$0xff]
  %v10645 = vld [vmem:[%s7 + $0x1d8] sm:$0xff]
  %v10646 = vld [vmem:[%s7 + $0x1e0] sm:$0xff]
  %v10647 = vld [vmem:[%s7 + $0x1e8] sm:$0xff]
  %v10648 = vld [vmem:[%s7 + $0x1f0] sm:$0xf]
  %v10649 = vld [vmem:[%s8] sm:$0x1]
  %v10651 = vlaneseq
  %v10652 = vshrl.u32 %v10651, 7
  %v10653 = vsub.s32 0, %v10652
  %v10654 = vrot.slane %v10649, %v10653
  %vm10656 = vcmask 949248
  %v10658 = vsel %vm10656, %v10585, 0
  %v10661 = vsel %vm483, %v10648, 0
  %10663 = vmatprep.subr.mxu0 0.0
  %10664 = vmatpush1.msra.mxu0 %v10586
  %10665 = vmatprep.subr.mxu0 0.0
  %10666 = vmatpush1.msra.mxu0 %v10587
  %10667 = vmatprep.subr.mxu0 0.0
  %10668 = vmatpush1.msra.mxu0 %v10588
  %10669 = vmatprep.subr.mxu0 0.0
  %10670 = vmatpush1.msra.mxu0 %v10589
  %10671 = vmatprep.subr.mxu0 0.0
  %10672 = vmatpush1.msra.mxu0 %v10590
  %10673 = vmatprep.subr.mxu0 0.0
  %10674 = vmatpush1.msra.mxu0 %v10591
  %10675 = vmatprep.subr.mxu0 0.0
  %10676 = vmatpush1.msra.mxu0 %v10592
  %10677 = vmatprep.subr.mxu0 0.0
  %10678 = vmatpush1.msra.mxu0 %v10593
  %10679 = vmatprep.subr.mxu0 0.0
  %10680 = vmatpush1.msra.mxu0 %v10594
  %10681 = vmatprep.subr.mxu0 0.0
  %10682 = vmatpush1.msra.mxu0 %v10595
  %10683 = vmatprep.subr.mxu0 0.0
  %10684 = vmatpush1.msra.mxu0 %v10596
  %10685 = vmatprep.subr.mxu0 0.0
  %10686 = vmatpush1.msra.mxu0 %v10597
  %10687 = vmatprep.subr.mxu0 0.0
  %10688 = vmatpush1.msra.mxu0 %v10598
  %10689 = vmatprep.subr.mxu0 0.0
  %10690 = vmatpush1.msra.mxu0 %v10599
  %10691 = vmatprep.subr.mxu0 0.0
  %10692 = vmatpush1.msra.mxu0 %v10600
  %10693 = vmatprep.subr.mxu0 0.0
  %10694 = vmatpush1.msra.mxu0 %v10601
  %10695 = vmatprep.subr.mxu0 0.0
  %10696 = vmatpush1.msra.mxu0 %v10602
  %10697 = vmatprep.subr.mxu0 0.0
  %10698 = vmatpush1.msra.mxu0 %v10603
  %10699 = vmatprep.subr.mxu0 0.0
  %10700 = vmatpush1.msra.mxu0 %v10604
  %10701 = vmatprep.subr.mxu0 0.0
  %10702 = vmatpush1.msra.mxu0 %v10605
  %10703 = vmatprep.subr.mxu0 0.0
  %10704 = vmatpush1.msra.mxu0 %v10606
  %10705 = vmatprep.subr.mxu0 0.0
  %10706 = vmatpush1.msra.mxu0 %v10607
  %10707 = vmatprep.subr.mxu0 0.0
  %10708 = vmatpush1.msra.mxu0 %v10608
  %10709 = vmatprep.subr.mxu0 0.0
  %10710 = vmatpush1.msra.mxu0 %v10609
  %10711 = vmatprep.subr.mxu0 0.0
  %10712 = vmatpush1.msra.mxu0 %v10610
  %10713 = vmatprep.subr.mxu0 0.0
  %10714 = vmatpush1.msra.mxu0 %v10611
  %10715 = vmatprep.subr.mxu0 0.0
  %10716 = vmatpush1.msra.mxu0 %v10612
  %10717 = vmatprep.subr.mxu0 0.0
  %10718 = vmatpush1.msra.mxu0 %v10613
  %10719 = vmatprep.subr.mxu0 0.0
  %10720 = vmatpush1.msra.mxu0 %v10614
  %10721 = vmatprep.subr.mxu0 0.0
  %10722 = vmatpush1.msra.mxu0 %v10615
  %10723 = vmatprep.subr.mxu0 0.0
  %10724 = vmatpush1.msra.mxu0 %v10616
  %10725 = vmatprep.subr.mxu0 0.0
  %10726 = vmatpush1.msra.mxu0 %v10617
  %10727 = vmatprep.mubr.f32.mxu0 %v10583
  %10728 = vmatmul.mubr.f32.gmra.mrb[0].mxu0 %v10582
  %v10729 = vpop.f32.mrb[0].mxu0
  %v10730 = vadd.f32 %v10654, %v10729
  %v10731 = vpop.f32.mrb[0].mxu0
  %10732 = vdwg.mxu0
  %10733 = vmatprep.subr.mxu0 0.0
  %10734 = vmatpush1.msra.mxu0 %v10618
  %10735 = vmatprep.subr.mxu0 0.0
  %10736 = vmatpush1.msra.mxu0 %v10619
  %10737 = vmatprep.subr.mxu0 0.0
  %10738 = vmatpush1.msra.mxu0 %v10620
  %10739 = vmatprep.subr.mxu0 0.0
  %10740 = vmatpush1.msra.mxu0 %v10621
  %10741 = vmatprep.subr.mxu0 0.0
  %10742 = vmatpush1.msra.mxu0 %v10622
  %10743 = vmatprep.subr.mxu0 0.0
  %10744 = vmatpush1.msra.mxu0 %v10623
  %10745 = vmatprep.subr.mxu0 0.0
  %10746 = vmatpush1.msra.mxu0 %v10624
  %10747 = vmatprep.subr.mxu0 0.0
  %10748 = vmatpush1.msra.mxu0 %v10625
  %10749 = vmatprep.subr.mxu0 0.0
  %10750 = vmatpush1.msra.mxu0 %v10626
  %10751 = vmatprep.subr.mxu0 0.0
  %10752 = vmatpush1.msra.mxu0 %v10627
  %10753 = vmatprep.subr.mxu0 0.0
  %10754 = vmatpush1.msra.mxu0 %v10628
  %10755 = vmatprep.subr.mxu0 0.0
  %10756 = vmatpush1.msra.mxu0 %v10629
  %10757 = vmatprep.subr.mxu0 0.0
  %10758 = vmatpush1.msra.mxu0 %v10630
  %10759 = vmatprep.subr.mxu0 0.0
  %10760 = vmatpush1.msra.mxu0 %v10631
  %10761 = vmatprep.subr.mxu0 0.0
  %10762 = vmatpush1.msra.mxu0 %v10632
  %10763 = vmatprep.subr.mxu0 0.0
  %10764 = vmatpush1.msra.mxu0 %v10633
  %10765 = vmatprep.subr.mxu0 0.0
  %10766 = vmatpush1.msra.mxu0 %v10634
  %10767 = vmatprep.subr.mxu0 0.0
  %10768 = vmatpush1.msra.mxu0 %v10635
  %10769 = vmatprep.subr.mxu0 0.0
  %10770 = vmatpush1.msra.mxu0 %v10636
  %10771 = vmatprep.subr.mxu0 0.0
  %10772 = vmatpush1.msra.mxu0 %v10637
  %10773 = vmatprep.subr.mxu0 0.0
  %10774 = vmatpush1.msra.mxu0 %v10638
  %10775 = vmatprep.subr.mxu0 0.0
  %10776 = vmatpush1.msra.mxu0 %v10639
  %10777 = vmatprep.subr.mxu0 0.0
  %10778 = vmatpush1.msra.mxu0 %v10640
  %10779 = vmatprep.subr.mxu0 0.0
  %10780 = vmatpush1.msra.mxu0 %v10641
  %10781 = vmatprep.subr.mxu0 0.0
  %10782 = vmatpush1.msra.mxu0 %v10642
  %10783 = vmatprep.subr.mxu0 0.0
  %10784 = vmatpush1.msra.mxu0 %v10643
  %10785 = vmatprep.subr.mxu0 0.0
  %10786 = vmatpush1.msra.mxu0 %v10644
  %10787 = vmatprep.subr.mxu0 0.0
  %10788 = vmatpush1.msra.mxu0 %v10645
  %10789 = vmatprep.subr.mxu0 0.0
  %10790 = vmatpush1.msra.mxu0 %v10646
  %10791 = vmatprep.subr.mxu0 0.0
  %10792 = vmatpush1.msra.mxu0 %v10647
  %10793 = vmatprep.subr.mxu0 0.0
  %10794 = vmatpush1.msra.mxu0 %v10661
  %10795 = vmatprep.subr.mxu0 0.0
  %10796 = vmatpush1.msra.mxu0 0.0
  %10797 = vmatprep.mubr.f32.mxu0 %v10658
  %10798 = vmatmul.mubr.f32.gmra.mrb[0].mxu0 %v10584
  %v10799 = vpop.f32.mrb[0].mxu0
  %v10800 = vadd.f32 %v10730, %v10799
  %v10801 = vpop.f32.mrb[0].mxu0
  %10802 = vdwg.mxu0
  %10803 = vst [vmem:[%s9] sm:$0xff] %v10800
  // Predicated region
  $region38: #{whatnet_forward.1} parent=0 // pred_check
    _
  $region39: #{whatnet_forward.1} parent=0 // pred_check_branch
    %10805 = sbr.rel (0) target = $region41
  $region40: #{whatnet_forward.1} parent=0 // pred_region
    _
  $region41: #{whatnet_forward.1} parent=0 // pred_fallthru
    _
  // Predicated region
  $region42: #{whatnet_forward.1} parent=0 // pred_check
    _
  $region43: #{whatnet_forward.1} parent=0 // pred_check_branch
    %10807 = sbr.rel (0) target = $region45
  $region44: #{whatnet_forward.1} parent=0 // pred_region
    _
  $region45: #{whatnet_forward.1} parent=0 // pred_fallthru
    _

</llo_original>
